<compile_context>
chip_gen: v5e
topology: v5e:2x2
jax: 0.10.0
libtpu: 0.0.40
codegen_flags: <defaults>
</compile_context>

<pallas_src>
import numpy as np
import jax
import jax.numpy as jnp
from jax import lax
from jax.experimental import pallas as pl
from jax.experimental.pallas import tpu as pltpu

# ----------------------------- configuration -------------------------------
B = 2                       # batch
H = W = 8                   # spatial resolution (divisible by WS -> no pad)
DIM = 32                    # embedding dim C
HEADS = 4
HD = DIM // HEADS
WS = 4                      # window_size
SHIFT = WS // 2             # shift_size for odd blocks
N = WS * WS                 # tokens per window
NW = (H // WS) * (W // WS)  # windows per image
T = NW * N                  # tokens per image (window order)
DEPTH = 2
MLP_RATIO = 4.0
HID = int(DIM * MLP_RATIO)
SCALE = HD ** (-0.5)
LN_EPS = 1e-5
VROWS, VLANES = 8, 128      # packed small-vector layout

# drop / attn_drop / drop_path are 0.0 and the module runs in eval mode, so
# Dropout / DropPath are identities.
# TODO(synk): torch.utils.checkpoint (use_checkpoint) is a training-time
# memory optimisation with no forward-semantics effect; not reproduced.


# ------------------------------ host constants ------------------------------
def _win_order(a2d):
    """(H,W) int map -> (T,) flat spatial index per window-order position."""
    return a2d.reshape(H // WS, WS, W // WS, WS).transpose(0, 2, 1, 3).reshape(T)


def _relative_position_index():
    coords = np.stack(np.meshgrid(np.arange(WS), np.arange(WS), indexing="ij"))
    flat = coords.reshape(2, -1)                          # (2, N)
    rel = (flat[:, :, None] - flat[:, None, :]).transpose(1, 2, 0).astype(np.int64)
    rel[:, :, 0] += WS - 1
    rel[:, :, 1] += WS - 1
    rel[:, :, 0] *= 2 * WS - 1
    return rel.sum(-1)                                    # (N, N)


def _shift_window_mask():
    # Swin shift mask per window, (NW, N, N) with 0 / -100 (torch reference).
    hp = int(np.ceil(H / WS)) * WS
    wp = int(np.ceil(W / WS)) * WS
    img = np.zeros((hp, wp), np.float32)
    sl = (slice(0, -WS), slice(-WS, -SHIFT), slice(-SHIFT, None))
    cnt = 0
    for hs in sl:
        for wsl in sl:
            img[hs, wsl] = cnt
            cnt += 1
    mw = img.reshape(hp // WS, WS, wp // WS, WS).transpose(0, 2, 1, 3).reshape(NW, N)
    am = mw[:, None, :] - mw[:, :, None]                  # (NW, N, N)
    return np.where(am != 0, -100.0, 0.0).astype(np.float32)


def _shift_perm_matrix():
    """P (T,T): x_shifted_window_order = P @ x_window_order (and back via P^T)."""
    spatial = np.arange(H * W).reshape(H, W)
    w0 = _win_order(spatial)                              # block0 pos -> spatial idx
    inv_w0 = np.empty(T, np.int64)
    inv_w0[w0] = np.arange(T)
    w1 = _win_order(np.roll(spatial, (-SHIFT, -SHIFT), axis=(0, 1)))
    perm = inv_w0[w1]                                     # shifted pos -> block0 pos
    P = np.zeros((T, T), np.float32)
    P[np.arange(T), perm] = 1.0
    return P


REL_IDX = _relative_position_index()          # (N, N) int
SHIFT_MASK_NP = _shift_window_mask()          # (NW, N, N)
PERM_NP = _shift_perm_matrix()                # (T, T)


# --------------------------- in-kernel helpers ------------------------------
def _gelu(x):
    # tanh approximation (jax.nn.gelu(approximate=True) form); torch default
    # nn.GELU is exact erf -> max per-element deviation ~1e-3 (documented).
    c = 0.7978845608028654   # sqrt(2/pi)
    return 0.5 * x * (1.0 + jnp.tanh(c * (x + 0.044715 * x * x * x)))


def _layernorm(x, g, b):
    mu = jnp.mean(x, axis=-1, keepdims=True)
    xc = x - mu
    var = jnp.mean(xc * xc, axis=-1, keepdims=True)
    return xc * lax.rsqrt(var + LN_EPS) * g + b


# ------------------------------ Pallas kernel --------------------------------
def layer_kernel(xw_ref, perm_ref, bias_ref, vecs_ref, wqkv_ref, wproj_ref,
                 w1_ref, w2_ref, o_ref, attn_scr):
    """One image per grid step.  Both Swin blocks on T=64 window-order tokens,
    activation resident in VMEM; shifted-window re-ordering via permutation
    matmul."""
    x = xw_ref[0]                          # (T, C) in unshifted-window order
    perm = perm_ref[...]                   # (T, T) 0/1

    for d in range(DEPTH):
        shifted = (d % 2 == 1)
        if shifted:                        # -> shifted-window order
            x = jnp.dot(perm, x, preferred_element_type=jnp.float32)

        vec = vecs_ref[d]                  # (8, 128) packed small vectors
        g1, b1 = vec[0:1, :DIM], vec[1:2, :DIM]
        bq, bp = vec[2:3, :3 * DIM], vec[3:4, :DIM]
        g2, b2 = vec[4:5, :DIM], vec[5:6, :DIM]
        bm1, bm2 = vec[6:7, :HID], vec[7:8, :DIM]

        # ---- LN1 + fused QKV ----
        xn = _layernorm(x, g1, b1)
        qkv = jnp.dot(xn, wqkv_ref[d],
                      preferred_element_type=jnp.float32) + bq     # (T, 3C)
        qkv = qkv.reshape(NW, N, 3 * DIM)                          # per-window

        # ---- per-window block-diagonal multi-head attention ----
        for h in range(HEADS):
            q = qkv[:, :, h * HD:(h + 1) * HD] * SCALE             # (NW, N, HD)
            k = qkv[:, :, DIM + h * HD:DIM + (h + 1) * HD]
            v = qkv[:, :, 2 * DIM + h * HD:2 * DIM + (h + 1) * HD]
            s = jnp.einsum('wnd,wmd->wnm', q, k,
                           preferred_element_type=jnp.float32)     # (NW, N, N)
            s = s + bias_ref[d * HEADS + h]     # rel-pos bias (+ shift mask)
            s = s - jnp.max(s, axis=-1, keepdims=True)
            p = jnp.exp(s)
            p = p / jnp.sum(p, axis=-1, keepdims=True)             # exact divide
            o = jnp.einsum('wnm,wmd->wnd', p, v,
                           preferred_element_type=jnp.float32)     # (NW, N, HD)
            attn_scr[:, h * HD:(h + 1) * HD] = o.reshape(T, HD)    # stage head

        attn = jnp.dot(attn_scr[...], wproj_ref[d],
                       preferred_element_type=jnp.float32) + bp    # (T, C)

        # ---- residual 1 + LN2 + MLP(GELU) + residual 2 ----
        x = x + attn
        xn2 = _layernorm(x, g2, b2)
        hmid = _gelu(jnp.dot(xn2, w1_ref[d],
                             preferred_element_type=jnp.float32) + bm1)
        y = jnp.dot(hmid, w2_ref[d],
                    preferred_element_type=jnp.float32) + bm2
        x = x + y

        if shifted:                        # back to unshifted-window order
            x = lax.dot_general(perm, x, (((0,), (0,)), ((), ())),
                                preferred_element_type=jnp.float32)

    o_ref[0] = x


def fused_layer(xw, perm, bias, vecs, wqkv, wproj, w1, w2):
    """xw: (B, T, C) activation in unshifted-window order."""
    c2 = lambda i: (0, 0)
    c3 = lambda i: (0, 0, 0)
    c4 = lambda i: (0, 0, 0, 0)
    return pl.pallas_call(
        layer_kernel,
        out_shape=jax.ShapeDtypeStruct((B, T, DIM), jnp.float32),
        grid=(B,),
        in_specs=[
            pl.BlockSpec((1, T, DIM), lambda i: (i, 0, 0)),          # activation
            pl.BlockSpec((T, T), c2),                                # perm matrix
            pl.BlockSpec((DEPTH * HEADS, NW, N, N), c4),             # bias+mask
            pl.BlockSpec((DEPTH, VROWS, VLANES), c3),                # packed vecs
            pl.BlockSpec((DEPTH, DIM, 3 * DIM), c3),                 # wqkv
            pl.BlockSpec((DEPTH, DIM, DIM), c3),                     # wproj
            pl.BlockSpec((DEPTH, DIM, HID), c3),                     # mlp w1
            pl.BlockSpec((DEPTH, HID, DIM), c3),                     # mlp w2
        ],
        out_specs=pl.BlockSpec((1, T, DIM), lambda i: (i, 0, 0)),
        scratch_shapes=[pltpu.VMEM((T, DIM), jnp.float32)],          # head staging
        compiler_params=pltpu.CompilerParams(
            dimension_semantics=("parallel",)),
    )(xw, perm, bias, vecs, wqkv, wproj, w1, w2)


# ------------------------------ wrapper / glue --------------------------------
def _to_window_order(xv):    # (B,H,W,C) -> (B,T,C), windows row-major
    return (xv.reshape(B, H // WS, WS, W // WS, WS, DIM)
              .transpose(0, 1, 3, 2, 4, 5).reshape(B, T, DIM))


def _from_window_order(xw):  # (B,T,C) -> (B,H,W,C)
    return (xw.reshape(B, H // WS, W // WS, WS, WS, DIM)
              .transpose(0, 1, 3, 2, 4, 5).reshape(B, H, W, DIM))


def _build_bias(rel_tables):
    """(DEPTH*HEADS, NW, N, N): rel-pos bias per head, + shift mask on the
    shifted (odd) blocks.  Built directly in its final layout."""
    idx = jnp.asarray(REL_IDX.reshape(-1))
    rpb = (rel_tables[:, idx, :].reshape(DEPTH, N, N, HEADS)
           .transpose(0, 3, 1, 2))                                  # (D,H,N,N)
    bias = jnp.broadcast_to(rpb[:, :, None], (DEPTH, HEADS, NW, N, N))
    shifted = (jnp.arange(DEPTH) % 2 == 1).astype(jnp.float32)
    bias = bias + (shifted[:, None, None, None, None]
                   * jnp.asarray(SHIFT_MASK_NP)[None, None])
    return bias.reshape(DEPTH * HEADS, NW, N, N)


def _pack_vecs(p):
    """All small per-block vectors -> one (DEPTH, 8, 128) array (one row each)."""
    def row(v):
        return jnp.pad(v, ((0, 0), (0, VLANES - v.shape[-1])))
    rows = [row(p[k]) for k in ("ln1_g", "ln1_b", "bqkv", "bproj",
                                "ln2_g", "ln2_b", "b1", "b2")]
    return jnp.stack(rows, axis=1)


@jax.jit
def basic_layer_forward(x, p):
    xw = _to_window_order(x.reshape(B, H, W, DIM))
    bias = _build_bias(p["rel_table"])
    vecs = _pack_vecs(p)
    yw = fused_layer(xw, jnp.asarray(PERM_NP), bias, vecs,
                     p["wqkv"], p["wproj"], p["w1"], p["w2"])
    # downsample is None in this configuration
    return _from_window_order(yw).reshape(B, H * W, DIM)


# --------------------------- pure-JAX reference -------------------------------
@jax.jit
def reference_forward(x, p):
    def ln(z, g, b):
        mu = jnp.mean(z, axis=-1, keepdims=True)
        var = jnp.mean((z - mu) ** 2, axis=-1, keepdims=True)
        return (z - mu) / jnp.sqrt(var + LN_EPS) * g + b

    rel_idx = jnp.asarray(REL_IDX.reshape(-1))
    smask = jnp.asarray(SHIFT_MASK_NP)
    for d in range(DEPTH):
        shift = SHIFT if d % 2 == 1 else 0
        shortcut = x
        xn = ln(x, p["ln1_g"][d], p["ln1_b"][d]).reshape(B, H, W, DIM)
        if shift:
            xn = jnp.roll(xn, (-shift, -shift), axis=(1, 2))
        xw = (xn.reshape(B, H // WS, WS, W // WS, WS, DIM)
                .transpose(0, 1, 3, 2, 4, 5).reshape(B * NW, N, DIM))
        qkv = (xw @ p["wqkv"][d] + p["bqkv"][d]).reshape(B * NW, N, 3, HEADS, HD)
        qkv = qkv.transpose(2, 0, 3, 1, 4)
        q, k, v = qkv[0] * SCALE, qkv[1], qkv[2]
        attn = q @ k.transpose(0, 1, 3, 2)
        rpb = p["rel_table"][d][rel_idx].reshape(N, N, HEADS).transpose(2, 0, 1)
        attn = attn + rpb[None]
        if shift:
            attn = (attn.reshape(B, NW, HEADS, N, N)
                    + smask[None, :, None]).reshape(B * NW, HEADS, N, N)
        attn = jax.nn.softmax(attn, axis=-1)
        ow = (attn @ v).transpose(0, 2, 1, 3).reshape(B * NW, N, DIM)
        ow = ow @ p["wproj"][d] + p["bproj"][d]
        ov = (ow.reshape(B, H // WS, W // WS, WS, WS, DIM)
                .transpose(0, 1, 3, 2, 4, 5).reshape(B, H, W, DIM))
        if shift:
            ov = jnp.roll(ov, (shift, shift), axis=(1, 2))
        x = shortcut + ov.reshape(B, H * W, DIM)
        xn2 = ln(x, p["ln2_g"][d], p["ln2_b"][d])
        x = x + (_gelu(xn2 @ p["w1"][d] + p["b1"][d]) @ p["w2"][d] + p["b2"][d])
    return x


# ------------------------------ parameters ----------------------------------
def init_block_params(key):
    ks = jax.random.split(key, 8)
    s = 0.02
    return dict(
        ln1_g=jnp.ones((DIM,), jnp.float32),
        ln1_b=jnp.zeros((DIM,), jnp.float32),
        # weights stored (in, out); equivalent to torch Linear weight.T
        wqkv=s * jax.random.normal(ks[0], (DIM, 3 * DIM), jnp.float32),
        bqkv=s * jax.random.normal(ks[1], (3 * DIM,), jnp.float32),
        wproj=s * jax.random.normal(ks[2], (DIM, DIM), jnp.float32),
        bproj=s * jax.random.normal(ks[3], (DIM,), jnp.float32),
        rel_table=s * jax.random.normal(ks[4], ((2 * WS - 1) ** 2, HEADS),
                                        jnp.float32),
        ln2_g=jnp.ones((DIM,), jnp.float32),
        ln2_b=jnp.zeros((DIM,), jnp.float32),
        w1=s * jax.random.normal(ks[5], (DIM, HID), jnp.float32),
        b1=s * jax.random.normal(ks[6], (HID,), jnp.float32),
        w2=s * jax.random.normal(ks[7], (HID, DIM), jnp.float32),
        b2=jnp.zeros((DIM,), jnp.float32),
    )


# -------------------------------- main ---------------------------------------
if __name__ == "__main__":
    key = jax.random.PRNGKey(0)
    kx, kp = jax.random.split(key)
    x = jax.random.normal(kx, (B, H * W, DIM), jnp.float32)
    blocks = [init_block_params(k) for k in jax.random.split(kp, DEPTH)]
    params = {k: jnp.stack([blk[k] for blk in blocks]) for k in blocks[0]}

    out = jax.block_until_ready(basic_layer_forward(x, params))
    assert out.shape == (B, H * W, DIM)
    assert bool(jnp.all(jnp.isfinite(out)))

    ref = jax.block_until_ready(reference_forward(x, params))
    err = float(jnp.max(jnp.abs(out - ref)))
    assert np.isfinite(err) and err < 2e-3, f"max abs diff vs reference = {err}"
    print("KERNEL_OK")
</pallas_src>

<mosaic_0001>
module attributes {stable_mosaic.version = 11 : i64} {
  func.func @layer_kernel(%arg0: i32, %arg1: memref<1x64x32xf32, #tpu.memory_space<vmem>>, %arg2: memref<64x64xf32, #tpu.memory_space<vmem>>, %arg3: memref<8x4x16x16xf32, #tpu.memory_space<vmem>>, %arg4: memref<2x8x128xf32, #tpu.memory_space<vmem>>, %arg5: memref<2x32x96xf32, #tpu.memory_space<vmem>>, %arg6: memref<2x32x32xf32, #tpu.memory_space<vmem>>, %arg7: memref<2x32x128xf32, #tpu.memory_space<vmem>>, %arg8: memref<2x128x32xf32, #tpu.memory_space<vmem>>, %arg9: memref<1x64x32xf32, #tpu.memory_space<vmem>>, %arg10: memref<64x32xf32, #tpu.memory_space<vmem>>) attributes {dimension_semantics = [#tpu.dimension_semantics<parallel>], iteration_bounds = array<i64: 2>, scalar_prefetch = 0 : i64, scratch_operands = 1 : i64, tpu.core_type = #tpu.core_type<tc>, window_params = [{transform_indices = @transform_0, window_bounds = array<i64: 1, 64, 32>}, {pipeline_mode = #tpu.pipeline_mode<synchronous>, transform_indices = @transform_1, window_bounds = array<i64: 64, 64>}, {pipeline_mode = #tpu.pipeline_mode<synchronous>, transform_indices = @transform_2, window_bounds = array<i64: 8, 4, 16, 16>}, {pipeline_mode = #tpu.pipeline_mode<synchronous>, transform_indices = @transform_3, window_bounds = array<i64: 2, 8, 128>}, {pipeline_mode = #tpu.pipeline_mode<synchronous>, transform_indices = @transform_4, window_bounds = array<i64: 2, 32, 96>}, {pipeline_mode = #tpu.pipeline_mode<synchronous>, transform_indices = @transform_5, window_bounds = array<i64: 2, 32, 32>}, {pipeline_mode = #tpu.pipeline_mode<synchronous>, transform_indices = @transform_6, window_bounds = array<i64: 2, 32, 128>}, {pipeline_mode = #tpu.pipeline_mode<synchronous>, transform_indices = @transform_7, window_bounds = array<i64: 2, 128, 32>}, {transform_indices = @transform_8, window_bounds = array<i64: 1, 64, 32>}]} {
    %c0 = arith.constant 0 : index
    %c0_0 = arith.constant 0 : index
    %c0_1 = arith.constant 0 : index
    %0 = vector.load %arg1[%c0, %c0_0, %c0_1] : memref<1x64x32xf32, #tpu.memory_space<vmem>>, vector<1x64x32xf32>
    %1 = vector.shape_cast %0 : vector<1x64x32xf32> to vector<64x32xf32>
    %c0_2 = arith.constant 0 : index
    %c0_3 = arith.constant 0 : index
    %2 = vector.load %arg2[%c0_2, %c0_3] : memref<64x64xf32, #tpu.memory_space<vmem>>, vector<64x64xf32>
    %c0_4 = arith.constant 0 : index
    %c0_5 = arith.constant 0 : index
    %c0_6 = arith.constant 0 : index
    %3 = vector.load %arg4[%c0_4, %c0_5, %c0_6] : memref<2x8x128xf32, #tpu.memory_space<vmem>>, vector<1x8x128xf32>
    %4 = vector.shape_cast %3 : vector<1x8x128xf32> to vector<8x128xf32>
    %5 = vector.extract_strided_slice %4 {offsets = [0, 0], sizes = [1, 32], strides = [1, 1]} : vector<8x128xf32> to vector<1x32xf32>
    %6 = vector.extract_strided_slice %4 {offsets = [1, 0], sizes = [1, 32], strides = [1, 1]} : vector<8x128xf32> to vector<1x32xf32>
    %7 = vector.extract_strided_slice %4 {offsets = [2, 0], sizes = [1, 96], strides = [1, 1]} : vector<8x128xf32> to vector<1x96xf32>
    %8 = vector.extract_strided_slice %4 {offsets = [3, 0], sizes = [1, 32], strides = [1, 1]} : vector<8x128xf32> to vector<1x32xf32>
    %9 = vector.extract_strided_slice %4 {offsets = [4, 0], sizes = [1, 32], strides = [1, 1]} : vector<8x128xf32> to vector<1x32xf32>
    %10 = vector.extract_strided_slice %4 {offsets = [5, 0], sizes = [1, 32], strides = [1, 1]} : vector<8x128xf32> to vector<1x32xf32>
    %11 = vector.extract_strided_slice %4 {offsets = [6, 0], sizes = [1, 128], strides = [1, 1]} : vector<8x128xf32> to vector<1x128xf32>
    %12 = vector.extract_strided_slice %4 {offsets = [7, 0], sizes = [1, 32], strides = [1, 1]} : vector<8x128xf32> to vector<1x32xf32>
    %cst = arith.constant dense<0.000000e+00> : vector<64xf32>
    %13 = vector.multi_reduction <add>, %1, %cst [1] : vector<64x32xf32> to vector<64xf32>
    %14 = vector.shape_cast %13 : vector<64xf32> to vector<64x1xf32>
    %cst_7 = arith.constant 3.200000e+01 : f32
    %15 = vector.broadcast %cst_7 : f32 to vector<64x1xf32>
    %16 = arith.divf %14, %15 : vector<64x1xf32>
    %17 = vector.broadcast %16 : vector<64x1xf32> to vector<64x32xf32>
    %18 = arith.subf %1, %17 : vector<64x32xf32>
    %19 = arith.mulf %18, %18 : vector<64x32xf32>
    %cst_8 = arith.constant dense<0.000000e+00> : vector<64xf32>
    %20 = vector.multi_reduction <add>, %19, %cst_8 [1] : vector<64x32xf32> to vector<64xf32>
    %21 = vector.shape_cast %20 : vector<64xf32> to vector<64x1xf32>
    %cst_9 = arith.constant 3.200000e+01 : f32
    %22 = vector.broadcast %cst_9 : f32 to vector<64x1xf32>
    %23 = arith.divf %21, %22 : vector<64x1xf32>
    %cst_10 = arith.constant 9.99999974E-6 : f32
    %24 = vector.broadcast %cst_10 : f32 to vector<64x1xf32>
    %25 = arith.addf %23, %24 : vector<64x1xf32>
    %26 = math.rsqrt %25 : vector<64x1xf32>
    %27 = vector.broadcast %26 : vector<64x1xf32> to vector<64x32xf32>
    %28 = arith.mulf %18, %27 : vector<64x32xf32>
    %29 = vector.broadcast %5 : vector<1x32xf32> to vector<64x32xf32>
    %30 = arith.mulf %28, %29 : vector<64x32xf32>
    %31 = vector.broadcast %6 : vector<1x32xf32> to vector<64x32xf32>
    %32 = arith.addf %30, %31 : vector<64x32xf32>
    %c0_11 = arith.constant 0 : index
    %c0_12 = arith.constant 0 : index
    %c0_13 = arith.constant 0 : index
    %33 = vector.load %arg5[%c0_11, %c0_12, %c0_13] : memref<2x32x96xf32, #tpu.memory_space<vmem>>, vector<1x32x96xf32>
    %34 = vector.shape_cast %33 : vector<1x32x96xf32> to vector<32x96xf32>
    %cst_14 = arith.constant dense<0.000000e+00> : vector<64x96xf32>
    %35 = tpu.matmul %32, %34, %cst_14 {dimension_numbers = #tpu.dot_dimension_numbers<[1], [0], [0], [1], [0, 0, 1, 1], [], []>} : vector<64x32xf32>, vector<32x96xf32>, vector<64x96xf32> -> vector<64x96xf32>
    %36 = vector.broadcast %7 : vector<1x96xf32> to vector<64x96xf32>
    %37 = arith.addf %35, %36 : vector<64x96xf32>
    %38 = vector.shape_cast %37 : vector<64x96xf32> to vector<4x16x96xf32>
    %39 = vector.extract_strided_slice %38 {offsets = [0, 0, 0], sizes = [4, 16, 8], strides = [1, 1, 1]} : vector<4x16x96xf32> to vector<4x16x8xf32>
    %cst_15 = arith.constant 0.353553385 : f32
    %40 = vector.broadcast %cst_15 : f32 to vector<4x16x8xf32>
    %41 = arith.mulf %39, %40 : vector<4x16x8xf32>
    %42 = vector.extract_strided_slice %38 {offsets = [0, 0, 32], sizes = [4, 16, 8], strides = [1, 1, 1]} : vector<4x16x96xf32> to vector<4x16x8xf32>
    %43 = vector.extract_strided_slice %38 {offsets = [0, 0, 64], sizes = [4, 16, 8], strides = [1, 1, 1]} : vector<4x16x96xf32> to vector<4x16x8xf32>
    "tpu.trace_start"() <{level = 10 : i32, message = "wnd,wmd->wnm"}> : () -> ()
    %cst_16 = arith.constant dense<0.000000e+00> : vector<4x16x16xf32>
    %44 = tpu.matmul %41, %42, %cst_16 {dimension_numbers = #tpu.dot_dimension_numbers<[2], [2], [1], [1], [0, 0, 0, 1, 1, 1], [0], [0]>} : vector<4x16x8xf32>, vector<4x16x8xf32>, vector<4x16x16xf32> -> vector<4x16x16xf32>
    "tpu.trace_stop"() : () -> ()
    %c0_17 = arith.constant 0 : index
    %c0_18 = arith.constant 0 : index
    %c0_19 = arith.constant 0 : index
    %c0_20 = arith.constant 0 : index
    %45 = vector.load %arg3[%c0_17, %c0_18, %c0_19, %c0_20] : memref<8x4x16x16xf32, #tpu.memory_space<vmem>>, vector<1x4x16x16xf32>
    %46 = vector.shape_cast %45 : vector<1x4x16x16xf32> to vector<4x16x16xf32>
    %47 = arith.addf %44, %46 : vector<4x16x16xf32>
    %cst_21 = arith.constant dense<0xFF800000> : vector<4x16xf32>
    %48 = vector.multi_reduction <maximumf>, %47, %cst_21 [2] : vector<4x16x16xf32> to vector<4x16xf32>
    %49 = vector.shape_cast %48 : vector<4x16xf32> to vector<4x16x1xf32>
    %50 = vector.broadcast %49 : vector<4x16x1xf32> to vector<4x16x16xf32>
    %51 = arith.subf %47, %50 : vector<4x16x16xf32>
    %52 = math.exp %51 : vector<4x16x16xf32>
    %cst_22 = arith.constant dense<0.000000e+00> : vector<4x16xf32>
    %53 = vector.multi_reduction <add>, %52, %cst_22 [2] : vector<4x16x16xf32> to vector<4x16xf32>
    %54 = vector.shape_cast %53 : vector<4x16xf32> to vector<4x16x1xf32>
    %55 = vector.broadcast %54 : vector<4x16x1xf32> to vector<4x16x16xf32>
    %56 = arith.divf %52, %55 : vector<4x16x16xf32>
    "tpu.trace_start"() <{level = 10 : i32, message = "wnm,wmd->wnd"}> : () -> ()
    %cst_23 = arith.constant dense<0.000000e+00> : vector<4x16x8xf32>
    %57 = tpu.matmul %56, %43, %cst_23 {dimension_numbers = #tpu.dot_dimension_numbers<[2], [1], [1], [2], [0, 0, 0, 1, 1, 2], [0], [0]>} : vector<4x16x16xf32>, vector<4x16x8xf32>, vector<4x16x8xf32> -> vector<4x16x8xf32>
    "tpu.trace_stop"() : () -> ()
    %58 = vector.shape_cast %57 : vector<4x16x8xf32> to vector<64x8xf32>
    %c0_24 = arith.constant 0 : index
    %c0_25 = arith.constant 0 : index
    %59 = vector.load %arg10[%c0_24, %c0_25] : memref<64x32xf32, #tpu.memory_space<vmem>>, vector<64x8xf32>
    tpu.vector_store %arg10[%c0_24, %c0_25], %58 {strides = array<i32>} : memref<64x32xf32, #tpu.memory_space<vmem>>, vector<64x8xf32>,
    %60 = vector.extract_strided_slice %38 {offsets = [0, 0, 8], sizes = [4, 16, 8], strides = [1, 1, 1]} : vector<4x16x96xf32> to vector<4x16x8xf32>
    %cst_26 = arith.constant 0.353553385 : f32
    %61 = vector.broadcast %cst_26 : f32 to vector<4x16x8xf32>
    %62 = arith.mulf %60, %61 : vector<4x16x8xf32>
    %63 = vector.extract_strided_slice %38 {offsets = [0, 0, 40], sizes = [4, 16, 8], strides = [1, 1, 1]} : vector<4x16x96xf32> to vector<4x16x8xf32>
    %64 = vector.extract_strided_slice %38 {offsets = [0, 0, 72], sizes = [4, 16, 8], strides = [1, 1, 1]} : vector<4x16x96xf32> to vector<4x16x8xf32>
    "tpu.trace_start"() <{level = 10 : i32, message = "wnd,wmd->wnm"}> : () -> ()
    %cst_27 = arith.constant dense<0.000000e+00> : vector<4x16x16xf32>
    %65 = tpu.matmul %62, %63, %cst_27 {dimension_numbers = #tpu.dot_dimension_numbers<[2], [2], [1], [1], [0, 0, 0, 1, 1, 1], [0], [0]>} : vector<4x16x8xf32>, vector<4x16x8xf32>, vector<4x16x16xf32> -> vector<4x16x16xf32>
    "tpu.trace_stop"() : () -> ()
    %c1 = arith.constant 1 : index
    %c0_28 = arith.constant 0 : index
    %c0_29 = arith.constant 0 : index
    %c0_30 = arith.constant 0 : index
    %66 = vector.load %arg3[%c1, %c0_28, %c0_29, %c0_30] : memref<8x4x16x16xf32, #tpu.memory_space<vmem>>, vector<1x4x16x16xf32>
    %67 = vector.shape_cast %66 : vector<1x4x16x16xf32> to vector<4x16x16xf32>
    %68 = arith.addf %65, %67 : vector<4x16x16xf32>
    %cst_31 = arith.constant dense<0xFF800000> : vector<4x16xf32>
    %69 = vector.multi_reduction <maximumf>, %68, %cst_31 [2] : vector<4x16x16xf32> to vector<4x16xf32>
    %70 = vector.shape_cast %69 : vector<4x16xf32> to vector<4x16x1xf32>
    %71 = vector.broadcast %70 : vector<4x16x1xf32> to vector<4x16x16xf32>
    %72 = arith.subf %68, %71 : vector<4x16x16xf32>
    %73 = math.exp %72 : vector<4x16x16xf32>
    %cst_32 = arith.constant dense<0.000000e+00> : vector<4x16xf32>
    %74 = vector.multi_reduction <add>, %73, %cst_32 [2] : vector<4x16x16xf32> to vector<4x16xf32>
    %75 = vector.shape_cast %74 : vector<4x16xf32> to vector<4x16x1xf32>
    %76 = vector.broadcast %75 : vector<4x16x1xf32> to vector<4x16x16xf32>
    %77 = arith.divf %73, %76 : vector<4x16x16xf32>
    "tpu.trace_start"() <{level = 10 : i32, message = "wnm,wmd->wnd"}> : () -> ()
    %cst_33 = arith.constant dense<0.000000e+00> : vector<4x16x8xf32>
    %78 = tpu.matmul %77, %64, %cst_33 {dimension_numbers = #tpu.dot_dimension_numbers<[2], [1], [1], [2], [0, 0, 0, 1, 1, 2], [0], [0]>} : vector<4x16x16xf32>, vector<4x16x8xf32>, vector<4x16x8xf32> -> vector<4x16x8xf32>
    "tpu.trace_stop"() : () -> ()
    %79 = vector.shape_cast %78 : vector<4x16x8xf32> to vector<64x8xf32>
    %c0_34 = arith.constant 0 : index
    %c8 = arith.constant 8 : index
    %80 = vector.load %arg10[%c0_34, %c8] : memref<64x32xf32, #tpu.memory_space<vmem>>, vector<64x8xf32>
    tpu.vector_store %arg10[%c0_34, %c8], %79 {strides = array<i32>} : memref<64x32xf32, #tpu.memory_space<vmem>>, vector<64x8xf32>,
    %81 = vector.extract_strided_slice %38 {offsets = [0, 0, 16], sizes = [4, 16, 8], strides = [1, 1, 1]} : vector<4x16x96xf32> to vector<4x16x8xf32>
    %cst_35 = arith.constant 0.353553385 : f32
    %82 = vector.broadcast %cst_35 : f32 to vector<4x16x8xf32>
    %83 = arith.mulf %81, %82 : vector<4x16x8xf32>
    %84 = vector.extract_strided_slice %38 {offsets = [0, 0, 48], sizes = [4, 16, 8], strides = [1, 1, 1]} : vector<4x16x96xf32> to vector<4x16x8xf32>
    %85 = vector.extract_strided_slice %38 {offsets = [0, 0, 80], sizes = [4, 16, 8], strides = [1, 1, 1]} : vector<4x16x96xf32> to vector<4x16x8xf32>
    "tpu.trace_start"() <{level = 10 : i32, message = "wnd,wmd->wnm"}> : () -> ()
    %cst_36 = arith.constant dense<0.000000e+00> : vector<4x16x16xf32>
    %86 = tpu.matmul %83, %84, %cst_36 {dimension_numbers = #tpu.dot_dimension_numbers<[2], [2], [1], [1], [0, 0, 0, 1, 1, 1], [0], [0]>} : vector<4x16x8xf32>, vector<4x16x8xf32>, vector<4x16x16xf32> -> vector<4x16x16xf32>
    "tpu.trace_stop"() : () -> ()
    %c2 = arith.constant 2 : index
    %c0_37 = arith.constant 0 : index
    %c0_38 = arith.constant 0 : index
    %c0_39 = arith.constant 0 : index
    %87 = vector.load %arg3[%c2, %c0_37, %c0_38, %c0_39] : memref<8x4x16x16xf32, #tpu.memory_space<vmem>>, vector<1x4x16x16xf32>
    %88 = vector.shape_cast %87 : vector<1x4x16x16xf32> to vector<4x16x16xf32>
    %89 = arith.addf %86, %88 : vector<4x16x16xf32>
    %cst_40 = arith.constant dense<0xFF800000> : vector<4x16xf32>
    %90 = vector.multi_reduction <maximumf>, %89, %cst_40 [2] : vector<4x16x16xf32> to vector<4x16xf32>
    %91 = vector.shape_cast %90 : vector<4x16xf32> to vector<4x16x1xf32>
    %92 = vector.broadcast %91 : vector<4x16x1xf32> to vector<4x16x16xf32>
    %93 = arith.subf %89, %92 : vector<4x16x16xf32>
    %94 = math.exp %93 : vector<4x16x16xf32>
    %cst_41 = arith.constant dense<0.000000e+00> : vector<4x16xf32>
    %95 = vector.multi_reduction <add>, %94, %cst_41 [2] : vector<4x16x16xf32> to vector<4x16xf32>
    %96 = vector.shape_cast %95 : vector<4x16xf32> to vector<4x16x1xf32>
    %97 = vector.broadcast %96 : vector<4x16x1xf32> to vector<4x16x16xf32>
    %98 = arith.divf %94, %97 : vector<4x16x16xf32>
    "tpu.trace_start"() <{level = 10 : i32, message = "wnm,wmd->wnd"}> : () -> ()
    %cst_42 = arith.constant dense<0.000000e+00> : vector<4x16x8xf32>
    %99 = tpu.matmul %98, %85, %cst_42 {dimension_numbers = #tpu.dot_dimension_numbers<[2], [1], [1], [2], [0, 0, 0, 1, 1, 2], [0], [0]>} : vector<4x16x16xf32>, vector<4x16x8xf32>, vector<4x16x8xf32> -> vector<4x16x8xf32>
    "tpu.trace_stop"() : () -> ()
    %100 = vector.shape_cast %99 : vector<4x16x8xf32> to vector<64x8xf32>
    %c0_43 = arith.constant 0 : index
    %c16 = arith.constant 16 : index
    %101 = vector.load %arg10[%c0_43, %c16] : memref<64x32xf32, #tpu.memory_space<vmem>>, vector<64x8xf32>
    tpu.vector_store %arg10[%c0_43, %c16], %100 {strides = array<i32>} : memref<64x32xf32, #tpu.memory_space<vmem>>, vector<64x8xf32>,
    %102 = vector.extract_strided_slice %38 {offsets = [0, 0, 24], sizes = [4, 16, 8], strides = [1, 1, 1]} : vector<4x16x96xf32> to vector<4x16x8xf32>
    %cst_44 = arith.constant 0.353553385 : f32
    %103 = vector.broadcast %cst_44 : f32 to vector<4x16x8xf32>
    %104 = arith.mulf %102, %103 : vector<4x16x8xf32>
    %105 = vector.extract_strided_slice %38 {offsets = [0, 0, 56], sizes = [4, 16, 8], strides = [1, 1, 1]} : vector<4x16x96xf32> to vector<4x16x8xf32>
    %106 = vector.extract_strided_slice %38 {offsets = [0, 0, 88], sizes = [4, 16, 8], strides = [1, 1, 1]} : vector<4x16x96xf32> to vector<4x16x8xf32>
    "tpu.trace_start"() <{level = 10 : i32, message = "wnd,wmd->wnm"}> : () -> ()
    %cst_45 = arith.constant dense<0.000000e+00> : vector<4x16x16xf32>
    %107 = tpu.matmul %104, %105, %cst_45 {dimension_numbers = #tpu.dot_dimension_numbers<[2], [2], [1], [1], [0, 0, 0, 1, 1, 1], [0], [0]>} : vector<4x16x8xf32>, vector<4x16x8xf32>, vector<4x16x16xf32> -> vector<4x16x16xf32>
    "tpu.trace_stop"() : () -> ()
    %c3 = arith.constant 3 : index
    %c0_46 = arith.constant 0 : index
    %c0_47 = arith.constant 0 : index
    %c0_48 = arith.constant 0 : index
    %108 = vector.load %arg3[%c3, %c0_46, %c0_47, %c0_48] : memref<8x4x16x16xf32, #tpu.memory_space<vmem>>, vector<1x4x16x16xf32>
    %109 = vector.shape_cast %108 : vector<1x4x16x16xf32> to vector<4x16x16xf32>
    %110 = arith.addf %107, %109 : vector<4x16x16xf32>
    %cst_49 = arith.constant dense<0xFF800000> : vector<4x16xf32>
    %111 = vector.multi_reduction <maximumf>, %110, %cst_49 [2] : vector<4x16x16xf32> to vector<4x16xf32>
    %112 = vector.shape_cast %111 : vector<4x16xf32> to vector<4x16x1xf32>
    %113 = vector.broadcast %112 : vector<4x16x1xf32> to vector<4x16x16xf32>
    %114 = arith.subf %110, %113 : vector<4x16x16xf32>
    %115 = math.exp %114 : vector<4x16x16xf32>
    %cst_50 = arith.constant dense<0.000000e+00> : vector<4x16xf32>
    %116 = vector.multi_reduction <add>, %115, %cst_50 [2] : vector<4x16x16xf32> to vector<4x16xf32>
    %117 = vector.shape_cast %116 : vector<4x16xf32> to vector<4x16x1xf32>
    %118 = vector.broadcast %117 : vector<4x16x1xf32> to vector<4x16x16xf32>
    %119 = arith.divf %115, %118 : vector<4x16x16xf32>
    "tpu.trace_start"() <{level = 10 : i32, message = "wnm,wmd->wnd"}> : () -> ()
    %cst_51 = arith.constant dense<0.000000e+00> : vector<4x16x8xf32>
    %120 = tpu.matmul %119, %106, %cst_51 {dimension_numbers = #tpu.dot_dimension_numbers<[2], [1], [1], [2], [0, 0, 0, 1, 1, 2], [0], [0]>} : vector<4x16x16xf32>, vector<4x16x8xf32>, vector<4x16x8xf32> -> vector<4x16x8xf32>
    "tpu.trace_stop"() : () -> ()
    %121 = vector.shape_cast %120 : vector<4x16x8xf32> to vector<64x8xf32>
    %c0_52 = arith.constant 0 : index
    %c24 = arith.constant 24 : index
    %122 = vector.load %arg10[%c0_52, %c24] : memref<64x32xf32, #tpu.memory_space<vmem>>, vector<64x8xf32>
    tpu.vector_store %arg10[%c0_52, %c24], %121 {strides = array<i32>} : memref<64x32xf32, #tpu.memory_space<vmem>>, vector<64x8xf32>,
    %c0_53 = arith.constant 0 : index
    %c0_54 = arith.constant 0 : index
    %123 = vector.load %arg10[%c0_53, %c0_54] : memref<64x32xf32, #tpu.memory_space<vmem>>, vector<64x32xf32>
    %c0_55 = arith.constant 0 : index
    %c0_56 = arith.constant 0 : index
    %c0_57 = arith.constant 0 : index
    %124 = vector.load %arg6[%c0_55, %c0_56, %c0_57] : memref<2x32x32xf32, #tpu.memory_space<vmem>>, vector<1x32x32xf32>
    %125 = vector.shape_cast %124 : vector<1x32x32xf32> to vector<32x32xf32>
    %cst_58 = arith.constant dense<0.000000e+00> : vector<64x32xf32>
    %126 = tpu.matmul %123, %125, %cst_58 {dimension_numbers = #tpu.dot_dimension_numbers<[1], [0], [0], [1], [0, 0, 1, 1], [], []>} : vector<64x32xf32>, vector<32x32xf32>, vector<64x32xf32> -> vector<64x32xf32>
    %127 = vector.broadcast %8 : vector<1x32xf32> to vector<64x32xf32>
    %128 = arith.addf %126, %127 : vector<64x32xf32>
    %129 = arith.addf %1, %128 : vector<64x32xf32>
    %cst_59 = arith.constant dense<0.000000e+00> : vector<64xf32>
    %130 = vector.multi_reduction <add>, %129, %cst_59 [1] : vector<64x32xf32> to vector<64xf32>
    %131 = vector.shape_cast %130 : vector<64xf32> to vector<64x1xf32>
    %cst_60 = arith.constant 3.200000e+01 : f32
    %132 = vector.broadcast %cst_60 : f32 to vector<64x1xf32>
    %133 = arith.divf %131, %132 : vector<64x1xf32>
    %134 = vector.broadcast %133 : vector<64x1xf32> to vector<64x32xf32>
    %135 = arith.subf %129, %134 : vector<64x32xf32>
    %136 = arith.mulf %135, %135 : vector<64x32xf32>
    %cst_61 = arith.constant dense<0.000000e+00> : vector<64xf32>
    %137 = vector.multi_reduction <add>, %136, %cst_61 [1] : vector<64x32xf32> to vector<64xf32>
    %138 = vector.shape_cast %137 : vector<64xf32> to vector<64x1xf32>
    %cst_62 = arith.constant 3.200000e+01 : f32
    %139 = vector.broadcast %cst_62 : f32 to vector<64x1xf32>
    %140 = arith.divf %138, %139 : vector<64x1xf32>
    %cst_63 = arith.constant 9.99999974E-6 : f32
    %141 = vector.broadcast %cst_63 : f32 to vector<64x1xf32>
    %142 = arith.addf %140, %141 : vector<64x1xf32>
    %143 = math.rsqrt %142 : vector<64x1xf32>
    %144 = vector.broadcast %143 : vector<64x1xf32> to vector<64x32xf32>
    %145 = arith.mulf %135, %144 : vector<64x32xf32>
    %146 = vector.broadcast %9 : vector<1x32xf32> to vector<64x32xf32>
    %147 = arith.mulf %145, %146 : vector<64x32xf32>
    %148 = vector.broadcast %10 : vector<1x32xf32> to vector<64x32xf32>
    %149 = arith.addf %147, %148 : vector<64x32xf32>
    %c0_64 = arith.constant 0 : index
    %c0_65 = arith.constant 0 : index
    %c0_66 = arith.constant 0 : index
    %150 = vector.load %arg7[%c0_64, %c0_65, %c0_66] : memref<2x32x128xf32, #tpu.memory_space<vmem>>, vector<1x32x128xf32>
    %151 = vector.shape_cast %150 : vector<1x32x128xf32> to vector<32x128xf32>
    %cst_67 = arith.constant dense<0.000000e+00> : vector<64x128xf32>
    %152 = tpu.matmul %149, %151, %cst_67 {dimension_numbers = #tpu.dot_dimension_numbers<[1], [0], [0], [1], [0, 0, 1, 1], [], []>} : vector<64x32xf32>, vector<32x128xf32>, vector<64x128xf32> -> vector<64x128xf32>
    %153 = vector.broadcast %11 : vector<1x128xf32> to vector<64x128xf32>
    %154 = arith.addf %152, %153 : vector<64x128xf32>
    %cst_68 = arith.constant 5.000000e-01 : f32
    %155 = vector.broadcast %cst_68 : f32 to vector<64x128xf32>
    %156 = arith.mulf %155, %154 : vector<64x128xf32>
    %cst_69 = arith.constant 4.471500e-02 : f32
    %157 = vector.broadcast %cst_69 : f32 to vector<64x128xf32>
    %158 = arith.mulf %157, %154 : vector<64x128xf32>
    %159 = arith.mulf %158, %154 : vector<64x128xf32>
    %160 = arith.mulf %159, %154 : vector<64x128xf32>
    %161 = arith.addf %154, %160 : vector<64x128xf32>
    %cst_70 = arith.constant 0.797884583 : f32
    %162 = vector.broadcast %cst_70 : f32 to vector<64x128xf32>
    %163 = arith.mulf %162, %161 : vector<64x128xf32>
    %164 = math.tanh %163 : vector<64x128xf32>
    %cst_71 = arith.constant 1.000000e+00 : f32
    %165 = vector.broadcast %cst_71 : f32 to vector<64x128xf32>
    %166 = arith.addf %165, %164 : vector<64x128xf32>
    %167 = arith.mulf %156, %166 : vector<64x128xf32>
    %c0_72 = arith.constant 0 : index
    %c0_73 = arith.constant 0 : index
    %c0_74 = arith.constant 0 : index
    %168 = vector.load %arg8[%c0_72, %c0_73, %c0_74] : memref<2x128x32xf32, #tpu.memory_space<vmem>>, vector<1x128x32xf32>
    %169 = vector.shape_cast %168 : vector<1x128x32xf32> to vector<128x32xf32>
    %cst_75 = arith.constant dense<0.000000e+00> : vector<64x32xf32>
    %170 = tpu.matmul %167, %169, %cst_75 {dimension_numbers = #tpu.dot_dimension_numbers<[1], [0], [0], [1], [0, 0, 1, 1], [], []>} : vector<64x128xf32>, vector<128x32xf32>, vector<64x32xf32> -> vector<64x32xf32>
    %171 = vector.broadcast %12 : vector<1x32xf32> to vector<64x32xf32>
    %172 = arith.addf %170, %171 : vector<64x32xf32>
    %173 = arith.addf %129, %172 : vector<64x32xf32>
    %cst_76 = arith.constant dense<0.000000e+00> : vector<64x32xf32>
    %174 = tpu.matmul %2, %173, %cst_76 {dimension_numbers = #tpu.dot_dimension_numbers<[1], [0], [0], [1], [0, 0, 1, 1], [], []>} : vector<64x64xf32>, vector<64x32xf32>, vector<64x32xf32> -> vector<64x32xf32>
    %c1_77 = arith.constant 1 : index
    %c0_78 = arith.constant 0 : index
    %c0_79 = arith.constant 0 : index
    %175 = vector.load %arg4[%c1_77, %c0_78, %c0_79] : memref<2x8x128xf32, #tpu.memory_space<vmem>>, vector<1x8x128xf32>
    %176 = vector.shape_cast %175 : vector<1x8x128xf32> to vector<8x128xf32>
    %177 = vector.extract_strided_slice %176 {offsets = [0, 0], sizes = [1, 32], strides = [1, 1]} : vector<8x128xf32> to vector<1x32xf32>
    %178 = vector.extract_strided_slice %176 {offsets = [1, 0], sizes = [1, 32], strides = [1, 1]} : vector<8x128xf32> to vector<1x32xf32>
    %179 = vector.extract_strided_slice %176 {offsets = [2, 0], sizes = [1, 96], strides = [1, 1]} : vector<8x128xf32> to vector<1x96xf32>
    %180 = vector.extract_strided_slice %176 {offsets = [3, 0], sizes = [1, 32], strides = [1, 1]} : vector<8x128xf32> to vector<1x32xf32>
    %181 = vector.extract_strided_slice %176 {offsets = [4, 0], sizes = [1, 32], strides = [1, 1]} : vector<8x128xf32> to vector<1x32xf32>
    %182 = vector.extract_strided_slice %176 {offsets = [5, 0], sizes = [1, 32], strides = [1, 1]} : vector<8x128xf32> to vector<1x32xf32>
    %183 = vector.extract_strided_slice %176 {offsets = [6, 0], sizes = [1, 128], strides = [1, 1]} : vector<8x128xf32> to vector<1x128xf32>
    %184 = vector.extract_strided_slice %176 {offsets = [7, 0], sizes = [1, 32], strides = [1, 1]} : vector<8x128xf32> to vector<1x32xf32>
    %cst_80 = arith.constant dense<0.000000e+00> : vector<64xf32>
    %185 = vector.multi_reduction <add>, %174, %cst_80 [1] : vector<64x32xf32> to vector<64xf32>
    %186 = vector.shape_cast %185 : vector<64xf32> to vector<64x1xf32>
    %cst_81 = arith.constant 3.200000e+01 : f32
    %187 = vector.broadcast %cst_81 : f32 to vector<64x1xf32>
    %188 = arith.divf %186, %187 : vector<64x1xf32>
    %189 = vector.broadcast %188 : vector<64x1xf32> to vector<64x32xf32>
    %190 = arith.subf %174, %189 : vector<64x32xf32>
    %191 = arith.mulf %190, %190 : vector<64x32xf32>
    %cst_82 = arith.constant dense<0.000000e+00> : vector<64xf32>
    %192 = vector.multi_reduction <add>, %191, %cst_82 [1] : vector<64x32xf32> to vector<64xf32>
    %193 = vector.shape_cast %192 : vector<64xf32> to vector<64x1xf32>
    %cst_83 = arith.constant 3.200000e+01 : f32
    %194 = vector.broadcast %cst_83 : f32 to vector<64x1xf32>
    %195 = arith.divf %193, %194 : vector<64x1xf32>
    %cst_84 = arith.constant 9.99999974E-6 : f32
    %196 = vector.broadcast %cst_84 : f32 to vector<64x1xf32>
    %197 = arith.addf %195, %196 : vector<64x1xf32>
    %198 = math.rsqrt %197 : vector<64x1xf32>
    %199 = vector.broadcast %198 : vector<64x1xf32> to vector<64x32xf32>
    %200 = arith.mulf %190, %199 : vector<64x32xf32>
    %201 = vector.broadcast %177 : vector<1x32xf32> to vector<64x32xf32>
    %202 = arith.mulf %200, %201 : vector<64x32xf32>
    %203 = vector.broadcast %178 : vector<1x32xf32> to vector<64x32xf32>
    %204 = arith.addf %202, %203 : vector<64x32xf32>
    %c1_85 = arith.constant 1 : index
    %c0_86 = arith.constant 0 : index
    %c0_87 = arith.constant 0 : index
    %205 = vector.load %arg5[%c1_85, %c0_86, %c0_87] : memref<2x32x96xf32, #tpu.memory_space<vmem>>, vector<1x32x96xf32>
    %206 = vector.shape_cast %205 : vector<1x32x96xf32> to vector<32x96xf32>
    %cst_88 = arith.constant dense<0.000000e+00> : vector<64x96xf32>
    %207 = tpu.matmul %204, %206, %cst_88 {dimension_numbers = #tpu.dot_dimension_numbers<[1], [0], [0], [1], [0, 0, 1, 1], [], []>} : vector<64x32xf32>, vector<32x96xf32>, vector<64x96xf32> -> vector<64x96xf32>
    %208 = vector.broadcast %179 : vector<1x96xf32> to vector<64x96xf32>
    %209 = arith.addf %207, %208 : vector<64x96xf32>
    %210 = vector.shape_cast %209 : vector<64x96xf32> to vector<4x16x96xf32>
    %211 = vector.extract_strided_slice %210 {offsets = [0, 0, 0], sizes = [4, 16, 8], strides = [1, 1, 1]} : vector<4x16x96xf32> to vector<4x16x8xf32>
    %cst_89 = arith.constant 0.353553385 : f32
    %212 = vector.broadcast %cst_89 : f32 to vector<4x16x8xf32>
    %213 = arith.mulf %211, %212 : vector<4x16x8xf32>
    %214 = vector.extract_strided_slice %210 {offsets = [0, 0, 32], sizes = [4, 16, 8], strides = [1, 1, 1]} : vector<4x16x96xf32> to vector<4x16x8xf32>
    %215 = vector.extract_strided_slice %210 {offsets = [0, 0, 64], sizes = [4, 16, 8], strides = [1, 1, 1]} : vector<4x16x96xf32> to vector<4x16x8xf32>
    "tpu.trace_start"() <{level = 10 : i32, message = "wnd,wmd->wnm"}> : () -> ()
    %cst_90 = arith.constant dense<0.000000e+00> : vector<4x16x16xf32>
    %216 = tpu.matmul %213, %214, %cst_90 {dimension_numbers = #tpu.dot_dimension_numbers<[2], [2], [1], [1], [0, 0, 0, 1, 1, 1], [0], [0]>} : vector<4x16x8xf32>, vector<4x16x8xf32>, vector<4x16x16xf32> -> vector<4x16x16xf32>
    "tpu.trace_stop"() : () -> ()
    %c4 = arith.constant 4 : index
    %c0_91 = arith.constant 0 : index
    %c0_92 = arith.constant 0 : index
    %c0_93 = arith.constant 0 : index
    %217 = vector.load %arg3[%c4, %c0_91, %c0_92, %c0_93] : memref<8x4x16x16xf32, #tpu.memory_space<vmem>>, vector<1x4x16x16xf32>
    %218 = vector.shape_cast %217 : vector<1x4x16x16xf32> to vector<4x16x16xf32>
    %219 = arith.addf %216, %218 : vector<4x16x16xf32>
    %cst_94 = arith.constant dense<0xFF800000> : vector<4x16xf32>
    %220 = vector.multi_reduction <maximumf>, %219, %cst_94 [2] : vector<4x16x16xf32> to vector<4x16xf32>
    %221 = vector.shape_cast %220 : vector<4x16xf32> to vector<4x16x1xf32>
    %222 = vector.broadcast %221 : vector<4x16x1xf32> to vector<4x16x16xf32>
    %223 = arith.subf %219, %222 : vector<4x16x16xf32>
    %224 = math.exp %223 : vector<4x16x16xf32>
    %cst_95 = arith.constant dense<0.000000e+00> : vector<4x16xf32>
    %225 = vector.multi_reduction <add>, %224, %cst_95 [2] : vector<4x16x16xf32> to vector<4x16xf32>
    %226 = vector.shape_cast %225 : vector<4x16xf32> to vector<4x16x1xf32>
    %227 = vector.broadcast %226 : vector<4x16x1xf32> to vector<4x16x16xf32>
    %228 = arith.divf %224, %227 : vector<4x16x16xf32>
    "tpu.trace_start"() <{level = 10 : i32, message = "wnm,wmd->wnd"}> : () -> ()
    %cst_96 = arith.constant dense<0.000000e+00> : vector<4x16x8xf32>
    %229 = tpu.matmul %228, %215, %cst_96 {dimension_numbers = #tpu.dot_dimension_numbers<[2], [1], [1], [2], [0, 0, 0, 1, 1, 2], [0], [0]>} : vector<4x16x16xf32>, vector<4x16x8xf32>, vector<4x16x8xf32> -> vector<4x16x8xf32>
    "tpu.trace_stop"() : () -> ()
    %230 = vector.shape_cast %229 : vector<4x16x8xf32> to vector<64x8xf32>
    %c0_97 = arith.constant 0 : index
    %c0_98 = arith.constant 0 : index
    %231 = vector.load %arg10[%c0_97, %c0_98] : memref<64x32xf32, #tpu.memory_space<vmem>>, vector<64x8xf32>
    tpu.vector_store %arg10[%c0_97, %c0_98], %230 {strides = array<i32>} : memref<64x32xf32, #tpu.memory_space<vmem>>, vector<64x8xf32>,
    %232 = vector.extract_strided_slice %210 {offsets = [0, 0, 8], sizes = [4, 16, 8], strides = [1, 1, 1]} : vector<4x16x96xf32> to vector<4x16x8xf32>
    %cst_99 = arith.constant 0.353553385 : f32
    %233 = vector.broadcast %cst_99 : f32 to vector<4x16x8xf32>
    %234 = arith.mulf %232, %233 : vector<4x16x8xf32>
    %235 = vector.extract_strided_slice %210 {offsets = [0, 0, 40], sizes = [4, 16, 8], strides = [1, 1, 1]} : vector<4x16x96xf32> to vector<4x16x8xf32>
    %236 = vector.extract_strided_slice %210 {offsets = [0, 0, 72], sizes = [4, 16, 8], strides = [1, 1, 1]} : vector<4x16x96xf32> to vector<4x16x8xf32>
    "tpu.trace_start"() <{level = 10 : i32, message = "wnd,wmd->wnm"}> : () -> ()
    %cst_100 = arith.constant dense<0.000000e+00> : vector<4x16x16xf32>
    %237 = tpu.matmul %234, %235, %cst_100 {dimension_numbers = #tpu.dot_dimension_numbers<[2], [2], [1], [1], [0, 0, 0, 1, 1, 1], [0], [0]>} : vector<4x16x8xf32>, vector<4x16x8xf32>, vector<4x16x16xf32> -> vector<4x16x16xf32>
    "tpu.trace_stop"() : () -> ()
    %c5 = arith.constant 5 : index
    %c0_101 = arith.constant 0 : index
    %c0_102 = arith.constant 0 : index
    %c0_103 = arith.constant 0 : index
    %238 = vector.load %arg3[%c5, %c0_101, %c0_102, %c0_103] : memref<8x4x16x16xf32, #tpu.memory_space<vmem>>, vector<1x4x16x16xf32>
    %239 = vector.shape_cast %238 : vector<1x4x16x16xf32> to vector<4x16x16xf32>
    %240 = arith.addf %237, %239 : vector<4x16x16xf32>
    %cst_104 = arith.constant dense<0xFF800000> : vector<4x16xf32>
    %241 = vector.multi_reduction <maximumf>, %240, %cst_104 [2] : vector<4x16x16xf32> to vector<4x16xf32>
    %242 = vector.shape_cast %241 : vector<4x16xf32> to vector<4x16x1xf32>
    %243 = vector.broadcast %242 : vector<4x16x1xf32> to vector<4x16x16xf32>
    %244 = arith.subf %240, %243 : vector<4x16x16xf32>
    %245 = math.exp %244 : vector<4x16x16xf32>
    %cst_105 = arith.constant dense<0.000000e+00> : vector<4x16xf32>
    %246 = vector.multi_reduction <add>, %245, %cst_105 [2] : vector<4x16x16xf32> to vector<4x16xf32>
    %247 = vector.shape_cast %246 : vector<4x16xf32> to vector<4x16x1xf32>
    %248 = vector.broadcast %247 : vector<4x16x1xf32> to vector<4x16x16xf32>
    %249 = arith.divf %245, %248 : vector<4x16x16xf32>
    "tpu.trace_start"() <{level = 10 : i32, message = "wnm,wmd->wnd"}> : () -> ()
    %cst_106 = arith.constant dense<0.000000e+00> : vector<4x16x8xf32>
    %250 = tpu.matmul %249, %236, %cst_106 {dimension_numbers = #tpu.dot_dimension_numbers<[2], [1], [1], [2], [0, 0, 0, 1, 1, 2], [0], [0]>} : vector<4x16x16xf32>, vector<4x16x8xf32>, vector<4x16x8xf32> -> vector<4x16x8xf32>
    "tpu.trace_stop"() : () -> ()
    %251 = vector.shape_cast %250 : vector<4x16x8xf32> to vector<64x8xf32>
    %c0_107 = arith.constant 0 : index
    %c8_108 = arith.constant 8 : index
    %252 = vector.load %arg10[%c0_107, %c8_108] : memref<64x32xf32, #tpu.memory_space<vmem>>, vector<64x8xf32>
    tpu.vector_store %arg10[%c0_107, %c8_108], %251 {strides = array<i32>} : memref<64x32xf32, #tpu.memory_space<vmem>>, vector<64x8xf32>,
    %253 = vector.extract_strided_slice %210 {offsets = [0, 0, 16], sizes = [4, 16, 8], strides = [1, 1, 1]} : vector<4x16x96xf32> to vector<4x16x8xf32>
    %cst_109 = arith.constant 0.353553385 : f32
    %254 = vector.broadcast %cst_109 : f32 to vector<4x16x8xf32>
    %255 = arith.mulf %253, %254 : vector<4x16x8xf32>
    %256 = vector.extract_strided_slice %210 {offsets = [0, 0, 48], sizes = [4, 16, 8], strides = [1, 1, 1]} : vector<4x16x96xf32> to vector<4x16x8xf32>
    %257 = vector.extract_strided_slice %210 {offsets = [0, 0, 80], sizes = [4, 16, 8], strides = [1, 1, 1]} : vector<4x16x96xf32> to vector<4x16x8xf32>
    "tpu.trace_start"() <{level = 10 : i32, message = "wnd,wmd->wnm"}> : () -> ()
    %cst_110 = arith.constant dense<0.000000e+00> : vector<4x16x16xf32>
    %258 = tpu.matmul %255, %256, %cst_110 {dimension_numbers = #tpu.dot_dimension_numbers<[2], [2], [1], [1], [0, 0, 0, 1, 1, 1], [0], [0]>} : vector<4x16x8xf32>, vector<4x16x8xf32>, vector<4x16x16xf32> -> vector<4x16x16xf32>
    "tpu.trace_stop"() : () -> ()
    %c6 = arith.constant 6 : index
    %c0_111 = arith.constant 0 : index
    %c0_112 = arith.constant 0 : index
    %c0_113 = arith.constant 0 : index
    %259 = vector.load %arg3[%c6, %c0_111, %c0_112, %c0_113] : memref<8x4x16x16xf32, #tpu.memory_space<vmem>>, vector<1x4x16x16xf32>
    %260 = vector.shape_cast %259 : vector<1x4x16x16xf32> to vector<4x16x16xf32>
    %261 = arith.addf %258, %260 : vector<4x16x16xf32>
    %cst_114 = arith.constant dense<0xFF800000> : vector<4x16xf32>
    %262 = vector.multi_reduction <maximumf>, %261, %cst_114 [2] : vector<4x16x16xf32> to vector<4x16xf32>
    %263 = vector.shape_cast %262 : vector<4x16xf32> to vector<4x16x1xf32>
    %264 = vector.broadcast %263 : vector<4x16x1xf32> to vector<4x16x16xf32>
    %265 = arith.subf %261, %264 : vector<4x16x16xf32>
    %266 = math.exp %265 : vector<4x16x16xf32>
    %cst_115 = arith.constant dense<0.000000e+00> : vector<4x16xf32>
    %267 = vector.multi_reduction <add>, %266, %cst_115 [2] : vector<4x16x16xf32> to vector<4x16xf32>
    %268 = vector.shape_cast %267 : vector<4x16xf32> to vector<4x16x1xf32>
    %269 = vector.broadcast %268 : vector<4x16x1xf32> to vector<4x16x16xf32>
    %270 = arith.divf %266, %269 : vector<4x16x16xf32>
    "tpu.trace_start"() <{level = 10 : i32, message = "wnm,wmd->wnd"}> : () -> ()
    %cst_116 = arith.constant dense<0.000000e+00> : vector<4x16x8xf32>
    %271 = tpu.matmul %270, %257, %cst_116 {dimension_numbers = #tpu.dot_dimension_numbers<[2], [1], [1], [2], [0, 0, 0, 1, 1, 2], [0], [0]>} : vector<4x16x16xf32>, vector<4x16x8xf32>, vector<4x16x8xf32> -> vector<4x16x8xf32>
    "tpu.trace_stop"() : () -> ()
    %272 = vector.shape_cast %271 : vector<4x16x8xf32> to vector<64x8xf32>
    %c0_117 = arith.constant 0 : index
    %c16_118 = arith.constant 16 : index
    %273 = vector.load %arg10[%c0_117, %c16_118] : memref<64x32xf32, #tpu.memory_space<vmem>>, vector<64x8xf32>
    tpu.vector_store %arg10[%c0_117, %c16_118], %272 {strides = array<i32>} : memref<64x32xf32, #tpu.memory_space<vmem>>, vector<64x8xf32>,
    %274 = vector.extract_strided_slice %210 {offsets = [0, 0, 24], sizes = [4, 16, 8], strides = [1, 1, 1]} : vector<4x16x96xf32> to vector<4x16x8xf32>
    %cst_119 = arith.constant 0.353553385 : f32
    %275 = vector.broadcast %cst_119 : f32 to vector<4x16x8xf32>
    %276 = arith.mulf %274, %275 : vector<4x16x8xf32>
    %277 = vector.extract_strided_slice %210 {offsets = [0, 0, 56], sizes = [4, 16, 8], strides = [1, 1, 1]} : vector<4x16x96xf32> to vector<4x16x8xf32>
    %278 = vector.extract_strided_slice %210 {offsets = [0, 0, 88], sizes = [4, 16, 8], strides = [1, 1, 1]} : vector<4x16x96xf32> to vector<4x16x8xf32>
    "tpu.trace_start"() <{level = 10 : i32, message = "wnd,wmd->wnm"}> : () -> ()
    %cst_120 = arith.constant dense<0.000000e+00> : vector<4x16x16xf32>
    %279 = tpu.matmul %276, %277, %cst_120 {dimension_numbers = #tpu.dot_dimension_numbers<[2], [2], [1], [1], [0, 0, 0, 1, 1, 1], [0], [0]>} : vector<4x16x8xf32>, vector<4x16x8xf32>, vector<4x16x16xf32> -> vector<4x16x16xf32>
    "tpu.trace_stop"() : () -> ()
    %c7 = arith.constant 7 : index
    %c0_121 = arith.constant 0 : index
    %c0_122 = arith.constant 0 : index
    %c0_123 = arith.constant 0 : index
    %280 = vector.load %arg3[%c7, %c0_121, %c0_122, %c0_123] : memref<8x4x16x16xf32, #tpu.memory_space<vmem>>, vector<1x4x16x16xf32>
    %281 = vector.shape_cast %280 : vector<1x4x16x16xf32> to vector<4x16x16xf32>
    %282 = arith.addf %279, %281 : vector<4x16x16xf32>
    %cst_124 = arith.constant dense<0xFF800000> : vector<4x16xf32>
    %283 = vector.multi_reduction <maximumf>, %282, %cst_124 [2] : vector<4x16x16xf32> to vector<4x16xf32>
    %284 = vector.shape_cast %283 : vector<4x16xf32> to vector<4x16x1xf32>
    %285 = vector.broadcast %284 : vector<4x16x1xf32> to vector<4x16x16xf32>
    %286 = arith.subf %282, %285 : vector<4x16x16xf32>
    %287 = math.exp %286 : vector<4x16x16xf32>
    %cst_125 = arith.constant dense<0.000000e+00> : vector<4x16xf32>
    %288 = vector.multi_reduction <add>, %287, %cst_125 [2] : vector<4x16x16xf32> to vector<4x16xf32>
    %289 = vector.shape_cast %288 : vector<4x16xf32> to vector<4x16x1xf32>
    %290 = vector.broadcast %289 : vector<4x16x1xf32> to vector<4x16x16xf32>
    %291 = arith.divf %287, %290 : vector<4x16x16xf32>
    "tpu.trace_start"() <{level = 10 : i32, message = "wnm,wmd->wnd"}> : () -> ()
    %cst_126 = arith.constant dense<0.000000e+00> : vector<4x16x8xf32>
    %292 = tpu.matmul %291, %278, %cst_126 {dimension_numbers = #tpu.dot_dimension_numbers<[2], [1], [1], [2], [0, 0, 0, 1, 1, 2], [0], [0]>} : vector<4x16x16xf32>, vector<4x16x8xf32>, vector<4x16x8xf32> -> vector<4x16x8xf32>
    "tpu.trace_stop"() : () -> ()
    %293 = vector.shape_cast %292 : vector<4x16x8xf32> to vector<64x8xf32>
    %c0_127 = arith.constant 0 : index
    %c24_128 = arith.constant 24 : index
    %294 = vector.load %arg10[%c0_127, %c24_128] : memref<64x32xf32, #tpu.memory_space<vmem>>, vector<64x8xf32>
    tpu.vector_store %arg10[%c0_127, %c24_128], %293 {strides = array<i32>} : memref<64x32xf32, #tpu.memory_space<vmem>>, vector<64x8xf32>,
    %c0_129 = arith.constant 0 : index
    %c0_130 = arith.constant 0 : index
    %295 = vector.load %arg10[%c0_129, %c0_130] : memref<64x32xf32, #tpu.memory_space<vmem>>, vector<64x32xf32>
    %c1_131 = arith.constant 1 : index
    %c0_132 = arith.constant 0 : index
    %c0_133 = arith.constant 0 : index
    %296 = vector.load %arg6[%c1_131, %c0_132, %c0_133] : memref<2x32x32xf32, #tpu.memory_space<vmem>>, vector<1x32x32xf32>
    %297 = vector.shape_cast %296 : vector<1x32x32xf32> to vector<32x32xf32>
    %cst_134 = arith.constant dense<0.000000e+00> : vector<64x32xf32>
    %298 = tpu.matmul %295, %297, %cst_134 {dimension_numbers = #tpu.dot_dimension_numbers<[1], [0], [0], [1], [0, 0, 1, 1], [], []>} : vector<64x32xf32>, vector<32x32xf32>, vector<64x32xf32> -> vector<64x32xf32>
    %299 = vector.broadcast %180 : vector<1x32xf32> to vector<64x32xf32>
    %300 = arith.addf %298, %299 : vector<64x32xf32>
    %301 = arith.addf %174, %300 : vector<64x32xf32>
    %cst_135 = arith.constant dense<0.000000e+00> : vector<64xf32>
    %302 = vector.multi_reduction <add>, %301, %cst_135 [1] : vector<64x32xf32> to vector<64xf32>
    %303 = vector.shape_cast %302 : vector<64xf32> to vector<64x1xf32>
    %cst_136 = arith.constant 3.200000e+01 : f32
    %304 = vector.broadcast %cst_136 : f32 to vector<64x1xf32>
    %305 = arith.divf %303, %304 : vector<64x1xf32>
    %306 = vector.broadcast %305 : vector<64x1xf32> to vector<64x32xf32>
    %307 = arith.subf %301, %306 : vector<64x32xf32>
    %308 = arith.mulf %307, %307 : vector<64x32xf32>
    %cst_137 = arith.constant dense<0.000000e+00> : vector<64xf32>
    %309 = vector.multi_reduction <add>, %308, %cst_137 [1] : vector<64x32xf32> to vector<64xf32>
    %310 = vector.shape_cast %309 : vector<64xf32> to vector<64x1xf32>
    %cst_138 = arith.constant 3.200000e+01 : f32
    %311 = vector.broadcast %cst_138 : f32 to vector<64x1xf32>
    %312 = arith.divf %310, %311 : vector<64x1xf32>
    %cst_139 = arith.constant 9.99999974E-6 : f32
    %313 = vector.broadcast %cst_139 : f32 to vector<64x1xf32>
    %314 = arith.addf %312, %313 : vector<64x1xf32>
    %315 = math.rsqrt %314 : vector<64x1xf32>
    %316 = vector.broadcast %315 : vector<64x1xf32> to vector<64x32xf32>
    %317 = arith.mulf %307, %316 : vector<64x32xf32>
    %318 = vector.broadcast %181 : vector<1x32xf32> to vector<64x32xf32>
    %319 = arith.mulf %317, %318 : vector<64x32xf32>
    %320 = vector.broadcast %182 : vector<1x32xf32> to vector<64x32xf32>
    %321 = arith.addf %319, %320 : vector<64x32xf32>
    %c1_140 = arith.constant 1 : index
    %c0_141 = arith.constant 0 : index
    %c0_142 = arith.constant 0 : index
    %322 = vector.load %arg7[%c1_140, %c0_141, %c0_142] : memref<2x32x128xf32, #tpu.memory_space<vmem>>, vector<1x32x128xf32>
    %323 = vector.shape_cast %322 : vector<1x32x128xf32> to vector<32x128xf32>
    %cst_143 = arith.constant dense<0.000000e+00> : vector<64x128xf32>
    %324 = tpu.matmul %321, %323, %cst_143 {dimension_numbers = #tpu.dot_dimension_numbers<[1], [0], [0], [1], [0, 0, 1, 1], [], []>} : vector<64x32xf32>, vector<32x128xf32>, vector<64x128xf32> -> vector<64x128xf32>
    %325 = vector.broadcast %183 : vector<1x128xf32> to vector<64x128xf32>
    %326 = arith.addf %324, %325 : vector<64x128xf32>
    %cst_144 = arith.constant 5.000000e-01 : f32
    %327 = vector.broadcast %cst_144 : f32 to vector<64x128xf32>
    %328 = arith.mulf %327, %326 : vector<64x128xf32>
    %cst_145 = arith.constant 4.471500e-02 : f32
    %329 = vector.broadcast %cst_145 : f32 to vector<64x128xf32>
    %330 = arith.mulf %329, %326 : vector<64x128xf32>
    %331 = arith.mulf %330, %326 : vector<64x128xf32>
    %332 = arith.mulf %331, %326 : vector<64x128xf32>
    %333 = arith.addf %326, %332 : vector<64x128xf32>
    %cst_146 = arith.constant 0.797884583 : f32
    %334 = vector.broadcast %cst_146 : f32 to vector<64x128xf32>
    %335 = arith.mulf %334, %333 : vector<64x128xf32>
    %336 = math.tanh %335 : vector<64x128xf32>
    %cst_147 = arith.constant 1.000000e+00 : f32
    %337 = vector.broadcast %cst_147 : f32 to vector<64x128xf32>
    %338 = arith.addf %337, %336 : vector<64x128xf32>
    %339 = arith.mulf %328, %338 : vector<64x128xf32>
    %c1_148 = arith.constant 1 : index
    %c0_149 = arith.constant 0 : index
    %c0_150 = arith.constant 0 : index
    %340 = vector.load %arg8[%c1_148, %c0_149, %c0_150] : memref<2x128x32xf32, #tpu.memory_space<vmem>>, vector<1x128x32xf32>
    %341 = vector.shape_cast %340 : vector<1x128x32xf32> to vector<128x32xf32>
    %cst_151 = arith.constant dense<0.000000e+00> : vector<64x32xf32>
    %342 = tpu.matmul %339, %341, %cst_151 {dimension_numbers = #tpu.dot_dimension_numbers<[1], [0], [0], [1], [0, 0, 1, 1], [], []>} : vector<64x128xf32>, vector<128x32xf32>, vector<64x32xf32> -> vector<64x32xf32>
    %343 = vector.broadcast %184 : vector<1x32xf32> to vector<64x32xf32>
    %344 = arith.addf %342, %343 : vector<64x32xf32>
    %345 = arith.addf %301, %344 : vector<64x32xf32>
    %cst_152 = arith.constant dense<0.000000e+00> : vector<64x32xf32>
    %346 = tpu.matmul %2, %345, %cst_152 {dimension_numbers = #tpu.dot_dimension_numbers<[0], [0], [1], [1], [0, 1, 1, 1], [], []>} : vector<64x64xf32>, vector<64x32xf32>, vector<64x32xf32> -> vector<64x32xf32>
    %c0_153 = arith.constant 0 : index
    %c0_154 = arith.constant 0 : index
    %c0_155 = arith.constant 0 : index
    %347 = vector.load %arg9[%c0_153, %c0_154, %c0_155] : memref<1x64x32xf32, #tpu.memory_space<vmem>>, vector<1x64x32xf32>
    %348 = vector.shape_cast %347 : vector<1x64x32xf32> to vector<64x32xf32>
    %349 = vector.shape_cast %346 : vector<64x32xf32> to vector<1x64x32xf32>
    tpu.vector_store %arg9[%c0_153, %c0_154, %c0_155], %349 {strides = array<i32>} : memref<1x64x32xf32, #tpu.memory_space<vmem>>, vector<1x64x32xf32>,
    return
  }
  func.func @transform_0(%arg0: i32) -> (i32, i32, i32) {
    %c0_i32 = arith.constant 0 : i32
    %c0_i32_0 = arith.constant 0 : i32
    %c0_i32_1 = arith.constant 0 : i32
    return %arg0, %c0_i32, %c0_i32_0 : i32, i32, i32
  }
  func.func @transform_1(%arg0: i32) -> (i32, i32) {
    %c0_i32 = arith.constant 0 : i32
    %c0_i32_0 = arith.constant 0 : i32
    %c0_i32_1 = arith.constant 0 : i32
    return %c0_i32, %c0_i32_0 : i32, i32
  }
  func.func @transform_2(%arg0: i32) -> (i32, i32, i32, i32) {
    %c0_i32 = arith.constant 0 : i32
    %c0_i32_0 = arith.constant 0 : i32
    %c0_i32_1 = arith.constant 0 : i32
    %c0_i32_2 = arith.constant 0 : i32
    %c0_i32_3 = arith.constant 0 : i32
    return %c0_i32, %c0_i32_0, %c0_i32_1, %c0_i32_2 : i32, i32, i32, i32
  }
  func.func @transform_3(%arg0: i32) -> (i32, i32, i32) {
    %c0_i32 = arith.constant 0 : i32
    %c0_i32_0 = arith.constant 0 : i32
    %c0_i32_1 = arith.constant 0 : i32
    %c0_i32_2 = arith.constant 0 : i32
    return %c0_i32, %c0_i32_0, %c0_i32_1 : i32, i32, i32
  }
  func.func @transform_4(%arg0: i32) -> (i32, i32, i32) {
    %c0_i32 = arith.constant 0 : i32
    %c0_i32_0 = arith.constant 0 : i32
    %c0_i32_1 = arith.constant 0 : i32
    %c0_i32_2 = arith.constant 0 : i32
    return %c0_i32, %c0_i32_0, %c0_i32_1 : i32, i32, i32
  }
  func.func @transform_5(%arg0: i32) -> (i32, i32, i32) {
    %c0_i32 = arith.constant 0 : i32
    %c0_i32_0 = arith.constant 0 : i32
    %c0_i32_1 = arith.constant 0 : i32
    %c0_i32_2 = arith.constant 0 : i32
    return %c0_i32, %c0_i32_0, %c0_i32_1 : i32, i32, i32
  }
  func.func @transform_6(%arg0: i32) -> (i32, i32, i32) {
    %c0_i32 = arith.constant 0 : i32
    %c0_i32_0 = arith.constant 0 : i32
    %c0_i32_1 = arith.constant 0 : i32
    %c0_i32_2 = arith.constant 0 : i32
    return %c0_i32, %c0_i32_0, %c0_i32_1 : i32, i32, i32
  }
  func.func @transform_7(%arg0: i32) -> (i32, i32, i32) {
    %c0_i32 = arith.constant 0 : i32
    %c0_i32_0 = arith.constant 0 : i32
    %c0_i32_1 = arith.constant 0 : i32
    %c0_i32_2 = arith.constant 0 : i32
    return %c0_i32, %c0_i32_0, %c0_i32_1 : i32, i32, i32
  }
  func.func @transform_8(%arg0: i32) -> (i32, i32, i32) {
    %c0_i32 = arith.constant 0 : i32
    %c0_i32_0 = arith.constant 0 : i32
    %c0_i32_1 = arith.constant 0 : i32
    return %arg0, %c0_i32, %c0_i32_0 : i32, i32, i32
  }
}

</mosaic_0001>

<llo_original>
// kernel: basic_layer_forward.1
$region0: #{basic_layer_forward.1}
  #allocation0 [shape = 'u32[]', space=smem, size = 0x4, offset = 0x4, fixed_abs, tag = 'smem constant byte address 0x4 - core index']
  #allocation1 [shape = 'u32[72,128]{1,0:T(1,128)}', space=vmem, size = 0x9000, scoped, tag = 'internal scratch']
  #allocation2 [shape = 'f32[64,32]{1,0:T(8,128)}', space=vmem, size = 0x8000, scoped, tag = 'scratch operand']
  %s0 = inlined_call_operand.vmem [shape: f32[2,64,32], index: 0, kind: input, shape index: {}]
  %s1 = inlined_call_operand.vmem [shape: f32[64,64], index: 1, kind: input, shape index: {}]
  %s2 = inlined_call_operand.vmem [shape: f32[8,4,16,16], index: 2, kind: input, shape index: {}]
  %s3 = inlined_call_operand.vmem [shape: f32[2,8,128], index: 3, kind: input, shape index: {}]
  %s4 = inlined_call_operand.vmem [shape: f32[2,32,96], index: 4, kind: input, shape index: {}]
  %s5 = inlined_call_operand.vmem [shape: f32[2,32,32], index: 5, kind: input, shape index: {}]
  %s6 = inlined_call_operand.vmem [shape: f32[2,32,128], index: 6, kind: input, shape index: {}]
  %s7 = inlined_call_operand.vmem [shape: f32[2,128,32], index: 7, kind: input, shape index: {}]
  %s8 = inlined_call_operand.vmem [shape: f32[2,64,32], index: 8, kind: output, shape index: {}]
  %s9 = sld [smem:[#allocation0]]
  $region65: #{basic_layer_forward.1} parent=0
    _
  %s11 = ssub.s32 1, %s9
  %s12 = scalar_select 0, %s11, %s9
  loop: start=0, step=1, limit=4
  $region2: #{basic_layer_forward.1} parent=0 // loop_pre_header
    _
  $region3: #{basic_layer_forward.1} parent=0 // loop_header
    %s14 = sphi 0, %s18
    %p15 = scmp.ge.s32.totalorder %s14, 4
    %s24 = sphi 0, %s26
    %s27 = sphi 0, %s24
    %s28 = sphi 0, %s27
    %s44 = sphi 0, %s28
    %s48 = sphi 0, %s48
    %s50 = sphi 0, %s48
    %s51 = sphi 0, %s50
    %s65 = sphi 0, %s51
    %s69 = sphi 0, %s69
    %s71 = sphi 0, %s69
    %s72 = sphi 0, %s71
    %s86 = sphi 0, %s72
    %s90 = sphi 0, %s90
    %s92 = sphi 0, %s90
    %s93 = sphi 0, %s92
    %s107 = sphi 0, %s93
    %s111 = sphi 0, %s111
    %s113 = sphi 0, %s111
    %s114 = sphi 0, %s113
    %s128 = sphi 0, %s114
    %s132 = sphi 0, %s132
    %s134 = sphi 0, %s132
    %s135 = sphi 0, %s134
    %s149 = sphi 0, %s135
    %s153 = sphi 0, %s153
    %s155 = sphi 0, %s153
    %s156 = sphi 0, %s155
    %s170 = sphi 0, %s156
    %s174 = sphi 0, %s174
    %s176 = sphi 0, %s174
    %s177 = sphi 0, %s176
    %s191 = sphi 0, %s177
    %s197 = sphi 0, %s199
    %s200 = sphi 0, %s197
    %s201 = sphi 0, %s200
    %s217 = sphi 0, %s201
  $region4: #{basic_layer_forward.1} parent=0 // loop_header_branch
    %17 = sbr.rel (%p15) target = $region8
  $region5: #{basic_layer_forward.1} parent=0 // loop_body
    %s19 = ssub.s32 %s14, 1
    %s20 = ssub.s32 %s14, 2
    %s21 = sadd.s32 %s14, 1
    %s22 = ssub.s32 %s14, %s21
    %p23 = scmp.eq.s32.totalorder %s22, 0
    %s25 = sadd.s32 %s24, 1
    %s26 = scalar_select %p23, %s24, %s25
    %p29 = pneg %p23
    %p30 = scmp.eq.s32.totalorder %s14, 1
    %p31 = por %p29, %p30
    %p32 = scmp.ne.s32.totalorder %s24, %s27
    %p33 = scmp.eq.s32.totalorder %s14, 0
    %p34 = por %p32, %p33
    %p35 = scmp.ne.s32.totalorder %s24, %s27
    %p36 = scmp.eq.s32.totalorder %s19, 1
    %p37 = por %p35, %p36
    %p38 = scmp.ne.s32.totalorder %s27, %s28
    %p39 = scmp.eq.s32.totalorder %s19, 0
    %p40 = por %p38, %p39
    %p41 = scmp.ne.s32.totalorder %s27, %s28
    %p42 = scmp.eq.s32.totalorder %s20, 1
    %p43 = por %p41, %p42
    %p45 = scmp.ne.s32.totalorder %s28, %s44
    %p46 = scmp.eq.s32.totalorder %s20, 0
    %p47 = por %p45, %p46
    %s49 = sadd.s32 %s48, 1
    %p52 = scmp.eq.s32.totalorder %s14, 1
    %p53 = scmp.ne.s32.totalorder %s48, %s50
    %p54 = scmp.eq.s32.totalorder %s14, 0
    %p55 = por %p53, %p54
    %p56 = scmp.ne.s32.totalorder %s48, %s50
    %p57 = scmp.eq.s32.totalorder %s19, 1
    %p58 = por %p56, %p57
    %p59 = scmp.ne.s32.totalorder %s50, %s51
    %p60 = scmp.eq.s32.totalorder %s19, 0
    %p61 = por %p59, %p60
    %p62 = scmp.ne.s32.totalorder %s50, %s51
    %p63 = scmp.eq.s32.totalorder %s20, 1
    %p64 = por %p62, %p63
    %p66 = scmp.ne.s32.totalorder %s51, %s65
    %p67 = scmp.eq.s32.totalorder %s20, 0
    %p68 = por %p66, %p67
    %s70 = sadd.s32 %s69, 1
    %p73 = scmp.eq.s32.totalorder %s14, 1
    %p74 = scmp.ne.s32.totalorder %s69, %s71
    %p75 = scmp.eq.s32.totalorder %s14, 0
    %p76 = por %p74, %p75
    %p77 = scmp.ne.s32.totalorder %s69, %s71
    %p78 = scmp.eq.s32.totalorder %s19, 1
    %p79 = por %p77, %p78
    %p80 = scmp.ne.s32.totalorder %s71, %s72
    %p81 = scmp.eq.s32.totalorder %s19, 0
    %p82 = por %p80, %p81
    %p83 = scmp.ne.s32.totalorder %s71, %s72
    %p84 = scmp.eq.s32.totalorder %s20, 1
    %p85 = por %p83, %p84
    %p87 = scmp.ne.s32.totalorder %s72, %s86
    %p88 = scmp.eq.s32.totalorder %s20, 0
    %p89 = por %p87, %p88
    %s91 = sadd.s32 %s90, 1
    %p94 = scmp.eq.s32.totalorder %s14, 1
    %p95 = scmp.ne.s32.totalorder %s90, %s92
    %p96 = scmp.eq.s32.totalorder %s14, 0
    %p97 = por %p95, %p96
    %p98 = scmp.ne.s32.totalorder %s90, %s92
    %p99 = scmp.eq.s32.totalorder %s19, 1
    %p100 = por %p98, %p99
    %p101 = scmp.ne.s32.totalorder %s92, %s93
    %p102 = scmp.eq.s32.totalorder %s19, 0
    %p103 = por %p101, %p102
    %p104 = scmp.ne.s32.totalorder %s92, %s93
    %p105 = scmp.eq.s32.totalorder %s20, 1
    %p106 = por %p104, %p105
    %p108 = scmp.ne.s32.totalorder %s93, %s107
    %p109 = scmp.eq.s32.totalorder %s20, 0
    %p110 = por %p108, %p109
    %s112 = sadd.s32 %s111, 1
    %p115 = scmp.eq.s32.totalorder %s14, 1
    %p116 = scmp.ne.s32.totalorder %s111, %s113
    %p117 = scmp.eq.s32.totalorder %s14, 0
    %p118 = por %p116, %p117
    %p119 = scmp.ne.s32.totalorder %s111, %s113
    %p120 = scmp.eq.s32.totalorder %s19, 1
    %p121 = por %p119, %p120
    %p122 = scmp.ne.s32.totalorder %s113, %s114
    %p123 = scmp.eq.s32.totalorder %s19, 0
    %p124 = por %p122, %p123
    %p125 = scmp.ne.s32.totalorder %s113, %s114
    %p126 = scmp.eq.s32.totalorder %s20, 1
    %p127 = por %p125, %p126
    %p129 = scmp.ne.s32.totalorder %s114, %s128
    %p130 = scmp.eq.s32.totalorder %s20, 0
    %p131 = por %p129, %p130
    %s133 = sadd.s32 %s132, 1
    %p136 = scmp.eq.s32.totalorder %s14, 1
    %p137 = scmp.ne.s32.totalorder %s132, %s134
    %p138 = scmp.eq.s32.totalorder %s14, 0
    %p139 = por %p137, %p138
    %p140 = scmp.ne.s32.totalorder %s132, %s134
    %p141 = scmp.eq.s32.totalorder %s19, 1
    %p142 = por %p140, %p141
    %p143 = scmp.ne.s32.totalorder %s134, %s135
    %p144 = scmp.eq.s32.totalorder %s19, 0
    %p145 = por %p143, %p144
    %p146 = scmp.ne.s32.totalorder %s134, %s135
    %p147 = scmp.eq.s32.totalorder %s20, 1
    %p148 = por %p146, %p147
    %p150 = scmp.ne.s32.totalorder %s135, %s149
    %p151 = scmp.eq.s32.totalorder %s20, 0
    %p152 = por %p150, %p151
    %s154 = sadd.s32 %s153, 1
    %p157 = scmp.eq.s32.totalorder %s14, 1
    %p158 = scmp.ne.s32.totalorder %s153, %s155
    %p159 = scmp.eq.s32.totalorder %s14, 0
    %p160 = por %p158, %p159
    %p161 = scmp.ne.s32.totalorder %s153, %s155
    %p162 = scmp.eq.s32.totalorder %s19, 1
    %p163 = por %p161, %p162
    %p164 = scmp.ne.s32.totalorder %s155, %s156
    %p165 = scmp.eq.s32.totalorder %s19, 0
    %p166 = por %p164, %p165
    %p167 = scmp.ne.s32.totalorder %s155, %s156
    %p168 = scmp.eq.s32.totalorder %s20, 1
    %p169 = por %p167, %p168
    %p171 = scmp.ne.s32.totalorder %s156, %s170
    %p172 = scmp.eq.s32.totalorder %s20, 0
    %p173 = por %p171, %p172
    %s175 = sadd.s32 %s174, 1
    %p178 = scmp.eq.s32.totalorder %s14, 1
    %p179 = scmp.ne.s32.totalorder %s174, %s176
    %p180 = scmp.eq.s32.totalorder %s14, 0
    %p181 = por %p179, %p180
    %p182 = scmp.ne.s32.totalorder %s174, %s176
    %p183 = scmp.eq.s32.totalorder %s19, 1
    %p184 = por %p182, %p183
    %p185 = scmp.ne.s32.totalorder %s176, %s177
    %p186 = scmp.eq.s32.totalorder %s19, 0
    %p187 = por %p185, %p186
    %p188 = scmp.ne.s32.totalorder %s176, %s177
    %p189 = scmp.eq.s32.totalorder %s20, 1
    %p190 = por %p188, %p189
    %p192 = scmp.ne.s32.totalorder %s177, %s191
    %p193 = scmp.eq.s32.totalorder %s20, 0
    %p194 = por %p192, %p193
    %s195 = ssub.s32 %s14, %s21
    %p196 = scmp.eq.s32.totalorder %s195, 0
    %s198 = sadd.s32 %s197, 1
    %s199 = scalar_select %p196, %s197, %s198
    %p202 = pneg %p196
    %p203 = scmp.eq.s32.totalorder %s14, 1
    %p204 = por %p202, %p203
    %p205 = scmp.ne.s32.totalorder %s197, %s200
    %p206 = scmp.eq.s32.totalorder %s14, 0
    %p207 = por %p205, %p206
    %p208 = scmp.ne.s32.totalorder %s197, %s200
    %p209 = scmp.eq.s32.totalorder %s19, 1
    %p210 = por %p208, %p209
    %p211 = scmp.ne.s32.totalorder %s200, %s201
    %p212 = scmp.eq.s32.totalorder %s19, 0
    %p213 = por %p211, %p212
    %p214 = scmp.ne.s32.totalorder %s200, %s201
    %p215 = scmp.eq.s32.totalorder %s20, 1
    %p216 = por %p214, %p215
    %p218 = scmp.ne.s32.totalorder %s201, %s217
    %p219 = scmp.eq.s32.totalorder %s20, 0
    %p220 = por %p218, %p219
    %p221 = scmp.le.s32.totalorder 1, %s14
    %p222 = scmp.lt.s32.totalorder %s14, 3
    %p223 = pnand %p221, %p222
    %p224 = pneg %p223
    // Predicated region
    $region9: #{basic_layer_forward.1} parent=5 // pred_check
      _
    $region10: #{basic_layer_forward.1} parent=5 // pred_check_branch
      %226 = sbr.rel (%p223) target = $region12
    $region11: #{basic_layer_forward.1} parent=5 // pred_region
      %s227 = ssub.s32 %s14, 1
      // Predicated region
      $region13: #{basic_layer_forward.1} parent=11 // pred_check
        %p228 = pneg %p61
      $region14: #{basic_layer_forward.1} parent=11 // pred_check_branch
        %230 = sbr.rel (%p228) target = $region16
      $region15: #{basic_layer_forward.1} parent=11 // pred_region
        _
      $region16: #{basic_layer_forward.1} parent=11 // pred_fallthru
        _
      // Predicated region
      $region17: #{basic_layer_forward.1} parent=11 // pred_check
        %p231 = pneg %p82
      $region18: #{basic_layer_forward.1} parent=11 // pred_check_branch
        %233 = sbr.rel (%p231) target = $region20
      $region19: #{basic_layer_forward.1} parent=11 // pred_region
        _
      $region20: #{basic_layer_forward.1} parent=11 // pred_fallthru
        _
      // Predicated region
      $region21: #{basic_layer_forward.1} parent=11 // pred_check
        %p234 = pneg %p103
      $region22: #{basic_layer_forward.1} parent=11 // pred_check_branch
        %236 = sbr.rel (%p234) target = $region24
      $region23: #{basic_layer_forward.1} parent=11 // pred_region
        _
      $region24: #{basic_layer_forward.1} parent=11 // pred_fallthru
        _
      // Predicated region
      $region25: #{basic_layer_forward.1} parent=11 // pred_check
        %p237 = pneg %p124
      $region26: #{basic_layer_forward.1} parent=11 // pred_check_branch
        %239 = sbr.rel (%p237) target = $region28
      $region27: #{basic_layer_forward.1} parent=11 // pred_region
        _
      $region28: #{basic_layer_forward.1} parent=11 // pred_fallthru
        _
      // Predicated region
      $region29: #{basic_layer_forward.1} parent=11 // pred_check
        %p240 = pneg %p145
      $region30: #{basic_layer_forward.1} parent=11 // pred_check_branch
        %242 = sbr.rel (%p240) target = $region32
      $region31: #{basic_layer_forward.1} parent=11 // pred_region
        _
      $region32: #{basic_layer_forward.1} parent=11 // pred_fallthru
        _
      // Predicated region
      $region33: #{basic_layer_forward.1} parent=11 // pred_check
        %p243 = pneg %p166
      $region34: #{basic_layer_forward.1} parent=11 // pred_check_branch
        %245 = sbr.rel (%p243) target = $region36
      $region35: #{basic_layer_forward.1} parent=11 // pred_region
        _
      $region36: #{basic_layer_forward.1} parent=11 // pred_fallthru
        _
      // Predicated region
      $region37: #{basic_layer_forward.1} parent=11 // pred_check
        %p246 = pneg %p187
      $region38: #{basic_layer_forward.1} parent=11 // pred_check_branch
        %248 = sbr.rel (%p246) target = $region40
      $region39: #{basic_layer_forward.1} parent=11 // pred_region
        _
      $region40: #{basic_layer_forward.1} parent=11 // pred_fallthru
        _
    $region12: #{basic_layer_forward.1} parent=5 // pred_fallthru
      _
    %p249 = scmp.lt.s32.totalorder %s14, 2
    // Predicated region
    $region41: #{basic_layer_forward.1} parent=5 // pred_check
      %p250 = pneg %p249
    $region42: #{basic_layer_forward.1} parent=5 // pred_check_branch
      %252 = sbr.rel (%p250) target = $region44
    $region43: #{basic_layer_forward.1} parent=5 // pred_region
      // Predicated region
      $region45: #{basic_layer_forward.1} parent=43 // pred_check
        %p253 = pneg %p34
      $region46: #{basic_layer_forward.1} parent=43 // pred_check_branch
        %255 = sbr.rel (%p253) target = $region48
      $region47: #{basic_layer_forward.1} parent=43 // pred_region
        %p256 = scmp.lt.s32.totalorder %s14, 1
        %s257 = scalar_select %p256, %s14, 1
        %s258 = smul.addr %s257, 8
        %s259 = smul.addr %s258, 8
        %s260 = scalar_lea.vmem %s0, %s259
      $region48: #{basic_layer_forward.1} parent=43 // pred_fallthru
        _
    $region44: #{basic_layer_forward.1} parent=5 // pred_fallthru
      _
    %p261 = scmp.le.s32.totalorder 1, %s14
    %p262 = scmp.lt.s32.totalorder %s14, 3
    %p263 = pnand %p261, %p262
    %p264 = pneg %p263
    // Predicated region
    $region49: #{basic_layer_forward.1} parent=5 // pred_check
      _
    $region50: #{basic_layer_forward.1} parent=5 // pred_check_branch
      %266 = sbr.rel (%p263) target = $region52
    $region51: #{basic_layer_forward.1} parent=5 // pred_region
      %s267 = ssub.s32 %s14, 1
      %p268 = scmp.lt.s32.totalorder %s19, 1
      %s269 = scalar_select %p268, %s19, 1
      %s270 = smul.addr %s269, 8
      %s271 = smul.addr %s270, 8
      %s272 = scalar_lea.vmem %s0, %s271
      %p273 = pneg %p40
      %p274 = pneg %p37
      %p275 = pneg %p61
      %p276 = pneg %p58
      %p277 = pneg %p82
      %p278 = pneg %p79
      %p279 = pneg %p103
      %p280 = pneg %p100
      %p281 = pneg %p124
      %p282 = pneg %p121
      %p283 = pneg %p145
      %p284 = pneg %p142
      %p285 = pneg %p166
      %p286 = pneg %p163
      %p287 = pneg %p187
      %p288 = pneg %p184
      %p289 = pneg %p213
      %p290 = pneg %p210
      %p291 = scmp.lt.s32.totalorder %s19, 1
      %s292 = scalar_select %p291, %s19, 1
      %s293 = smul.addr %s292, 8
      %s294 = smul.addr %s293, 8
      %s295 = scalar_lea.vmem %s8, %s294
      %p296 = scmp.lt.s32.totalorder %s19, 1
      %s297 = scalar_select %p296, %s19, 1
      %s298 = smul.addr %s297, 8
      %s299 = smul.addr %s298, 8
      %s300 = scalar_lea.vmem %s0, %s299
      %p301 = scmp.lt.s32.totalorder %s19, 1
      %s302 = scalar_select %p301, %s19, 1
      %s303 = smul.addr %s302, 8
      %s304 = smul.addr %s303, 8
      %s305 = scalar_lea.vmem %s8, %s304
      %v306 = vld [vmem:[%s300] sm:$0xff]
      %v307 = vld [vmem:[%s300 + $0x8] sm:$0xff]
      %v308 = vld [vmem:[%s300 + $0x10] sm:$0xff]
      %v309 = vld [vmem:[%s300 + $0x18] sm:$0xff]
      %v310 = vld [vmem:[%s300 + $0x20] sm:$0xff]
      %v311 = vld [vmem:[%s300 + $0x28] sm:$0xff]
      %v312 = vld [vmem:[%s300 + $0x30] sm:$0xff]
      %v313 = vld [vmem:[%s300 + $0x38] sm:$0xff]
      %v314 = vld [vmem:[%s1] sm:$0xff]
      %v315 = vld [vmem:[%s1 + $0x8] sm:$0xff]
      %v316 = vld [vmem:[%s1 + $0x10] sm:$0xff]
      %v317 = vld [vmem:[%s1 + $0x18] sm:$0xff]
      %v318 = vld [vmem:[%s1 + $0x20] sm:$0xff]
      %v319 = vld [vmem:[%s1 + $0x28] sm:$0xff]
      %v320 = vld [vmem:[%s1 + $0x30] sm:$0xff]
      %v321 = vld [vmem:[%s1 + $0x38] sm:$0xff]
      %v322 = vld [vmem:[%s3] sm:$0xff]
      %vm323 = vcmask 261120
      %v324 = vsel %vm323, %v306, 0.0
      %325 = vadd.xlane.f32.xlu0 %v324
      %v326 = vpop.xlane.xlu0 %325
      %v327 = vsel %vm323, %v307, 0.0
      %328 = vadd.xlane.f32.xlu0 %v327
      %v329 = vpop.xlane.xlu0 %328
      %v330 = vsel %vm323, %v308, 0.0
      %331 = vadd.xlane.f32.xlu0 %v330
      %v332 = vpop.xlane.xlu0 %331
      %v333 = vsel %vm323, %v309, 0.0
      %334 = vadd.xlane.f32.xlu0 %v333
      %v335 = vpop.xlane.xlu0 %334
      %v336 = vsel %vm323, %v310, 0.0
      %337 = vadd.xlane.f32.xlu0 %v336
      %v338 = vpop.xlane.xlu0 %337
      %v339 = vsel %vm323, %v311, 0.0
      %340 = vadd.xlane.f32.xlu0 %v339
      %v341 = vpop.xlane.xlu0 %340
      %v342 = vsel %vm323, %v312, 0.0
      %343 = vadd.xlane.f32.xlu0 %v342
      %v344 = vpop.xlane.xlu0 %343
      %v345 = vsel %vm323, %v313, 0.0
      %346 = vadd.xlane.f32.xlu0 %v345
      %v347 = vpop.xlane.xlu0 %346
      %v348 = vrcp.pop 32.0
      %v349 = vmul.f32 32.0, %v348
      %v350 = vsub.f32 1.0, %v349
      %v351 = vmul.f32 %v348, %v350
      %v352 = vadd.f32 %v348, %v351
      %vm353 = vweird.f32 %v348
      %v354 = vsel %vm353, %v348, %v352
      %v355 = vmul.f32 %v326, %v354
      %v356 = vmul.f32 %v329, %v354
      %v357 = vmul.f32 %v332, %v354
      %v358 = vmul.f32 %v335, %v354
      %v359 = vmul.f32 %v338, %v354
      %v360 = vmul.f32 %v341, %v354
      %v361 = vmul.f32 %v344, %v354
      %v362 = vmul.f32 %v347, %v354
      %v363 = vsub.f32 %v306, %v355
      %v364 = vsub.f32 %v307, %v356
      %v365 = vsub.f32 %v308, %v357
      %v366 = vsub.f32 %v309, %v358
      %v367 = vsub.f32 %v310, %v359
      %v368 = vsub.f32 %v311, %v360
      %v369 = vsub.f32 %v312, %v361
      %v370 = vsub.f32 %v313, %v362
      %v371 = vmul.f32 %v363, %v363
      %v372 = vmul.f32 %v364, %v364
      %v373 = vmul.f32 %v365, %v365
      %v374 = vmul.f32 %v366, %v366
      %v375 = vmul.f32 %v367, %v367
      %v376 = vmul.f32 %v368, %v368
      %v377 = vmul.f32 %v369, %v369
      %v378 = vmul.f32 %v370, %v370
      %v379 = vsel %vm323, %v371, 0.0
      %380 = vadd.xlane.f32.xlu0 %v379
      %v381 = vpop.xlane.xlu0 %380
      %v382 = vsel %vm323, %v372, 0.0
      %383 = vadd.xlane.f32.xlu0 %v382
      %v384 = vpop.xlane.xlu0 %383
      %v385 = vsel %vm323, %v373, 0.0
      %386 = vadd.xlane.f32.xlu0 %v385
      %v387 = vpop.xlane.xlu0 %386
      %v388 = vsel %vm323, %v374, 0.0
      %389 = vadd.xlane.f32.xlu0 %v388
      %v390 = vpop.xlane.xlu0 %389
      %v391 = vsel %vm323, %v375, 0.0
      %392 = vadd.xlane.f32.xlu0 %v391
      %v393 = vpop.xlane.xlu0 %392
      %v394 = vsel %vm323, %v376, 0.0
      %395 = vadd.xlane.f32.xlu0 %v394
      %v396 = vpop.xlane.xlu0 %395
      %v397 = vsel %vm323, %v377, 0.0
      %398 = vadd.xlane.f32.xlu0 %v397
      %v399 = vpop.xlane.xlu0 %398
      %v400 = vsel %vm323, %v378, 0.0
      %401 = vadd.xlane.f32.xlu0 %v400
      %v402 = vpop.xlane.xlu0 %401
      %v403 = vmul.f32 %v381, %v354
      %v404 = vmul.f32 %v384, %v354
      %v405 = vmul.f32 %v387, %v354
      %v406 = vmul.f32 %v390, %v354
      %v407 = vmul.f32 %v393, %v354
      %v408 = vmul.f32 %v396, %v354
      %v409 = vmul.f32 %v399, %v354
      %v410 = vmul.f32 %v402, %v354
      %v411 = vadd.f32 %v403, 1e-05
      %v412 = vadd.f32 %v404, 1e-05
      %v413 = vadd.f32 %v405, 1e-05
      %v414 = vadd.f32 %v406, 1e-05
      %v415 = vadd.f32 %v407, 1e-05
      %v416 = vadd.f32 %v408, 1e-05
      %v417 = vadd.f32 %v409, 1e-05
      %v418 = vadd.f32 %v410, 1e-05
      %v419 = vrsqrt.pop %v411
      %v420 = vmul.f32 %v419, %v411
      %v421 = vmul.f32 %v420, %v419
      %v422 = vmul.f32 0.5, %v421
      %v423 = vsub.f32 1.5, %v422
      %v424 = vmul.f32 %v419, %v423
      %vm425 = vweird.f32 %v411
      %vm426 = vweird.f32 %v419
      %vm427 = vmor %vm425, %vm426
      %v428 = vsel %vm427, %v419, %v424
      %v429 = vrsqrt.pop %v412
      %v430 = vmul.f32 %v429, %v412
      %v431 = vmul.f32 %v430, %v429
      %v432 = vmul.f32 0.5, %v431
      %v433 = vsub.f32 1.5, %v432
      %v434 = vmul.f32 %v429, %v433
      %vm435 = vweird.f32 %v412
      %vm436 = vweird.f32 %v429
      %vm437 = vmor %vm435, %vm436
      %v438 = vsel %vm437, %v429, %v434
      %v439 = vrsqrt.pop %v413
      %v440 = vmul.f32 %v439, %v413
      %v441 = vmul.f32 %v440, %v439
      %v442 = vmul.f32 0.5, %v441
      %v443 = vsub.f32 1.5, %v442
      %v444 = vmul.f32 %v439, %v443
      %vm445 = vweird.f32 %v413
      %vm446 = vweird.f32 %v439
      %vm447 = vmor %vm445, %vm446
      %v448 = vsel %vm447, %v439, %v444
      %v449 = vrsqrt.pop %v414
      %v450 = vmul.f32 %v449, %v414
      %v451 = vmul.f32 %v450, %v449
      %v452 = vmul.f32 0.5, %v451
      %v453 = vsub.f32 1.5, %v452
      %v454 = vmul.f32 %v449, %v453
      %vm455 = vweird.f32 %v414
      %vm456 = vweird.f32 %v449
      %vm457 = vmor %vm455, %vm456
      %v458 = vsel %vm457, %v449, %v454
      %v459 = vrsqrt.pop %v415
      %v460 = vmul.f32 %v459, %v415
      %v461 = vmul.f32 %v460, %v459
      %v462 = vmul.f32 0.5, %v461
      %v463 = vsub.f32 1.5, %v462
      %v464 = vmul.f32 %v459, %v463
      %vm465 = vweird.f32 %v415
      %vm466 = vweird.f32 %v459
      %vm467 = vmor %vm465, %vm466
      %v468 = vsel %vm467, %v459, %v464
      %v469 = vrsqrt.pop %v416
      %v470 = vmul.f32 %v469, %v416
      %v471 = vmul.f32 %v470, %v469
      %v472 = vmul.f32 0.5, %v471
      %v473 = vsub.f32 1.5, %v472
      %v474 = vmul.f32 %v469, %v473
      %vm475 = vweird.f32 %v416
      %vm476 = vweird.f32 %v469
      %vm477 = vmor %vm475, %vm476
      %v478 = vsel %vm477, %v469, %v474
      %v479 = vrsqrt.pop %v417
      %v480 = vmul.f32 %v479, %v417
      %v481 = vmul.f32 %v480, %v479
      %v482 = vmul.f32 0.5, %v481
      %v483 = vsub.f32 1.5, %v482
      %v484 = vmul.f32 %v479, %v483
      %vm485 = vweird.f32 %v417
      %vm486 = vweird.f32 %v479
      %vm487 = vmor %vm485, %vm486
      %v488 = vsel %vm487, %v479, %v484
      %v489 = vrsqrt.pop %v418
      %v490 = vmul.f32 %v489, %v418
      %v491 = vmul.f32 %v490, %v489
      %v492 = vmul.f32 0.5, %v491
      %v493 = vsub.f32 1.5, %v492
      %v494 = vmul.f32 %v489, %v493
      %vm495 = vweird.f32 %v418
      %vm496 = vweird.f32 %v489
      %vm497 = vmor %vm495, %vm496
      %v498 = vsel %vm497, %v489, %v494
      %v499 = vmul.f32 %v363, %v428
      %v500 = vmul.f32 %v364, %v438
      %v501 = vmul.f32 %v365, %v448
      %v502 = vmul.f32 %v366, %v458
      %v503 = vmul.f32 %v367, %v468
      %v504 = vmul.f32 %v368, %v478
      %v505 = vmul.f32 %v369, %v488
      %v506 = vmul.f32 %v370, %v498
      %v507 = vperm.slane %v322, 0
      %v508 = vmul.f32 %v499, %v507
      %v509 = vmul.f32 %v500, %v507
      %v510 = vmul.f32 %v501, %v507
      %v511 = vmul.f32 %v502, %v507
      %v512 = vmul.f32 %v503, %v507
      %v513 = vmul.f32 %v504, %v507
      %v514 = vmul.f32 %v505, %v507
      %v515 = vmul.f32 %v506, %v507
      %v516 = vperm.slane %v322, 1
      %v517 = vadd.f32 %v508, %v516
      %v518 = vadd.f32 %v509, %v516
      %v519 = vadd.f32 %v510, %v516
      %v520 = vadd.f32 %v511, %v516
      %v521 = vadd.f32 %v512, %v516
      %v522 = vadd.f32 %v513, %v516
      %v523 = vadd.f32 %v514, %v516
      %v524 = vadd.f32 %v515, %v516
      %v525 = vld [vmem:[%s4] sm:$0xff]
      %v526 = vld [vmem:[%s4 + $0x8] sm:$0xff]
      %v527 = vld [vmem:[%s4 + $0x10] sm:$0xff]
      %v528 = vld [vmem:[%s4 + $0x18] sm:$0xff]
      %v529 = vperm.slane %v322, 2
      %v531 = vsel %vm323, %v517, 0
      %v534 = vsel %vm323, %v518, 0
      %v537 = vsel %vm323, %v519, 0
      %v540 = vsel %vm323, %v520, 0
      %v543 = vsel %vm323, %v521, 0
      %v546 = vsel %vm323, %v522, 0
      %v549 = vsel %vm323, %v523, 0
      %v552 = vsel %vm323, %v524, 0
      %554 = vmatpush.msra.mxu0 0.0
      %555 = vmatpush.msra.mxu0 0.0
      %556 = vmatpush.msra.mxu0 0.0
      %557 = vmatpush.msra.mxu0 0.0
      %558 = vmatpush.msra.mxu0 0.0
      %559 = vmatpush.msra.mxu0 0.0
      %560 = vmatpush.msra.mxu0 0.0
      %561 = vmatpush.msra.mxu0 0.0
      %562 = vmatpush.msra.mxu0 0.0
      %563 = vmatpush.msra.mxu0 0.0
      %564 = vmatpush.msra.mxu0 0.0
      %565 = vmatpush.msra.mxu0 0.0
      %566 = vmatpush.msra.mxu0 %v528
      %567 = vmatpush.msra.mxu0 %v527
      %568 = vmatpush.msra.mxu0 %v526
      %569 = vmatpush.msra.mxu0 %v525
      %570 = vmatmul.f32.gmra.mxu0 %v531
      %v571 = vpop.f32.mrf.mxu0
      %v572 = vadd.f32 %v529, %v571
      %573 = vmatmul.f32.gmra.mxu0 %v534
      %v574 = vpop.f32.mrf.mxu0
      %v575 = vadd.f32 %v529, %v574
      %576 = vmatmul.f32.gmra.mxu0 %v537
      %v577 = vpop.f32.mrf.mxu0
      %v578 = vadd.f32 %v529, %v577
      %579 = vmatmul.f32.gmra.mxu0 %v540
      %v580 = vpop.f32.mrf.mxu0
      %v581 = vadd.f32 %v529, %v580
      %582 = vmatmul.f32.gmra.mxu0 %v543
      %v583 = vpop.f32.mrf.mxu0
      %v584 = vadd.f32 %v529, %v583
      %585 = vmatmul.f32.gmra.mxu0 %v546
      %v586 = vpop.f32.mrf.mxu0
      %v587 = vadd.f32 %v529, %v586
      %588 = vmatmul.f32.gmra.mxu0 %v549
      %v589 = vpop.f32.mrf.mxu0
      %v590 = vadd.f32 %v529, %v589
      %591 = vmatmul.f32.gmra.mxu0 %v552
      %v592 = vpop.f32.mrf.mxu0
      %v593 = vadd.f32 %v529, %v592
      %594 = vdwg.mxu0
      %v595 = vmul.f32 %v572, 0.35355338
      %v596 = vmul.f32 %v575, 0.35355338
      %v597 = vmul.f32 %v578, 0.35355338
      %v598 = vmul.f32 %v581, 0.35355338
      %v599 = vmul.f32 %v584, 0.35355338
      %v600 = vmul.f32 %v587, 0.35355338
      %v601 = vmul.f32 %v590, 0.35355338
      %v602 = vmul.f32 %v593, 0.35355338
      %v603 = vld [vmem:[%s2] sm:$0xff]
      %v604 = vld [vmem:[%s2 + $0x8] sm:$0xff]
      %v605 = vld [vmem:[%s2 + $0x10] sm:$0xff]
      %v606 = vld [vmem:[%s2 + $0x18] sm:$0xff]
      %v607 = vld [vmem:[%s2 + $0x20] sm:$0xff]
      %v608 = vld [vmem:[%s2 + $0x28] sm:$0xff]
      %v609 = vld [vmem:[%s2 + $0x30] sm:$0xff]
      %v610 = vld [vmem:[%s2 + $0x38] sm:$0xff]
      %613 = vrot.lane.b32.xlu0 %v572, 96
      %v614 = vpop.permute.xlu0 %613
      %615 = vrot.lane.b32.xlu0 %v575, 96
      %v616 = vpop.permute.xlu0 %615
      %vm617 = vcmask 64512
      %v619 = vsel %vm617, %v595, 0
      %v622 = vsel %vm617, %v596, 0
      %v624 = vsel %vm617, %v614, 0
      %v626 = vsel %vm617, %v616, 0
      %628 = vmatpush.xpose.msra.mxu0 0.0
      %629 = vmatpush.xpose.msra.mxu0 0.0
      %630 = vmatpush.xpose.msra.mxu0 0.0
      %631 = vmatpush.xpose.msra.mxu0 0.0
      %632 = vmatpush.xpose.msra.mxu0 0.0
      %633 = vmatpush.xpose.msra.mxu0 0.0
      %634 = vmatpush.xpose.msra.mxu0 0.0
      %635 = vmatpush.xpose.msra.mxu0 0.0
      %636 = vmatpush.xpose.msra.mxu0 0.0
      %637 = vmatpush.xpose.msra.mxu0 0.0
      %638 = vmatpush.xpose.msra.mxu0 0.0
      %639 = vmatpush.xpose.msra.mxu0 0.0
      %640 = vmatpush.xpose.msra.mxu0 0.0
      %641 = vmatpush.xpose.msra.mxu0 0.0
      %642 = vmatpush.xpose.msra.mxu0 %v626
      %643 = vmatpush.xpose.msra.mxu0 %v624
      %644 = vmatmul.f32.gmra.mxu0 %v619
      %v645 = vpop.f32.mrf.mxu0
      %v646 = vadd.f32 %v603, %v645
      %647 = vmatmul.f32.gmra.mxu0 %v622
      %v648 = vpop.f32.mrf.mxu0
      %v649 = vadd.f32 %v604, %v648
      %650 = vdwg.mxu0
      %653 = vrot.lane.b32.xlu0 %v578, 96
      %v654 = vpop.permute.xlu0 %653
      %655 = vrot.lane.b32.xlu0 %v581, 96
      %v656 = vpop.permute.xlu0 %655
      %v658 = vsel %vm617, %v597, 0
      %v661 = vsel %vm617, %v598, 0
      %v663 = vsel %vm617, %v654, 0
      %v665 = vsel %vm617, %v656, 0
      %667 = vmatpush.xpose.msra.mxu0 0.0
      %668 = vmatpush.xpose.msra.mxu0 0.0
      %669 = vmatpush.xpose.msra.mxu0 0.0
      %670 = vmatpush.xpose.msra.mxu0 0.0
      %671 = vmatpush.xpose.msra.mxu0 0.0
      %672 = vmatpush.xpose.msra.mxu0 0.0
      %673 = vmatpush.xpose.msra.mxu0 0.0
      %674 = vmatpush.xpose.msra.mxu0 0.0
      %675 = vmatpush.xpose.msra.mxu0 0.0
      %676 = vmatpush.xpose.msra.mxu0 0.0
      %677 = vmatpush.xpose.msra.mxu0 0.0
      %678 = vmatpush.xpose.msra.mxu0 0.0
      %679 = vmatpush.xpose.msra.mxu0 0.0
      %680 = vmatpush.xpose.msra.mxu0 0.0
      %681 = vmatpush.xpose.msra.mxu0 %v665
      %682 = vmatpush.xpose.msra.mxu0 %v663
      %683 = vmatmul.f32.gmra.mxu0 %v658
      %v684 = vpop.f32.mrf.mxu0
      %v685 = vadd.f32 %v605, %v684
      %686 = vmatmul.f32.gmra.mxu0 %v661
      %v687 = vpop.f32.mrf.mxu0
      %v688 = vadd.f32 %v606, %v687
      %689 = vdwg.mxu0
      %692 = vrot.lane.b32.xlu0 %v584, 96
      %v693 = vpop.permute.xlu0 %692
      %694 = vrot.lane.b32.xlu0 %v587, 96
      %v695 = vpop.permute.xlu0 %694
      %v697 = vsel %vm617, %v599, 0
      %v700 = vsel %vm617, %v600, 0
      %v702 = vsel %vm617, %v693, 0
      %v704 = vsel %vm617, %v695, 0
      %706 = vmatpush.xpose.msra.mxu0 0.0
      %707 = vmatpush.xpose.msra.mxu0 0.0
      %708 = vmatpush.xpose.msra.mxu0 0.0
      %709 = vmatpush.xpose.msra.mxu0 0.0
      %710 = vmatpush.xpose.msra.mxu0 0.0
      %711 = vmatpush.xpose.msra.mxu0 0.0
      %712 = vmatpush.xpose.msra.mxu0 0.0
      %713 = vmatpush.xpose.msra.mxu0 0.0
      %714 = vmatpush.xpose.msra.mxu0 0.0
      %715 = vmatpush.xpose.msra.mxu0 0.0
      %716 = vmatpush.xpose.msra.mxu0 0.0
      %717 = vmatpush.xpose.msra.mxu0 0.0
      %718 = vmatpush.xpose.msra.mxu0 0.0
      %719 = vmatpush.xpose.msra.mxu0 0.0
      %720 = vmatpush.xpose.msra.mxu0 %v704
      %721 = vmatpush.xpose.msra.mxu0 %v702
      %722 = vmatmul.f32.gmra.mxu0 %v697
      %v723 = vpop.f32.mrf.mxu0
      %v724 = vadd.f32 %v607, %v723
      %725 = vmatmul.f32.gmra.mxu0 %v700
      %v726 = vpop.f32.mrf.mxu0
      %v727 = vadd.f32 %v608, %v726
      %728 = vdwg.mxu0
      %731 = vrot.lane.b32.xlu0 %v590, 96
      %v732 = vpop.permute.xlu0 %731
      %733 = vrot.lane.b32.xlu0 %v593, 96
      %v734 = vpop.permute.xlu0 %733
      %v736 = vsel %vm617, %v601, 0
      %v739 = vsel %vm617, %v602, 0
      %v741 = vsel %vm617, %v732, 0
      %v743 = vsel %vm617, %v734, 0
      %745 = vmatpush.xpose.msra.mxu0 0.0
      %746 = vmatpush.xpose.msra.mxu0 0.0
      %747 = vmatpush.xpose.msra.mxu0 0.0
      %748 = vmatpush.xpose.msra.mxu0 0.0
      %749 = vmatpush.xpose.msra.mxu0 0.0
      %750 = vmatpush.xpose.msra.mxu0 0.0
      %751 = vmatpush.xpose.msra.mxu0 0.0
      %752 = vmatpush.xpose.msra.mxu0 0.0
      %753 = vmatpush.xpose.msra.mxu0 0.0
      %754 = vmatpush.xpose.msra.mxu0 0.0
      %755 = vmatpush.xpose.msra.mxu0 0.0
      %756 = vmatpush.xpose.msra.mxu0 0.0
      %757 = vmatpush.xpose.msra.mxu0 0.0
      %758 = vmatpush.xpose.msra.mxu0 0.0
      %759 = vmatpush.xpose.msra.mxu0 %v743
      %760 = vmatpush.xpose.msra.mxu0 %v741
      %761 = vmatmul.f32.gmra.mxu0 %v736
      %v762 = vpop.f32.mrf.mxu0
      %v763 = vadd.f32 %v609, %v762
      %764 = vmatmul.f32.gmra.mxu0 %v739
      %v765 = vpop.f32.mrf.mxu0
      %v766 = vadd.f32 %v610, %v765
      %767 = vdwg.mxu0
      %vm768 = vcmask 130048
      %v769 = vsel %vm768, %v646, -inf
      %770 = vmax.xlane.f32.xlu0 %v769
      %v771 = vpop.xlane.xlu0 %770
      %v772 = vsel %vm768, %v649, -inf
      %773 = vmax.xlane.f32.xlu0 %v772
      %v774 = vpop.xlane.xlu0 %773
      %v775 = vsel %vm768, %v685, -inf
      %776 = vmax.xlane.f32.xlu0 %v775
      %v777 = vpop.xlane.xlu0 %776
      %v778 = vsel %vm768, %v688, -inf
      %779 = vmax.xlane.f32.xlu0 %v778
      %v780 = vpop.xlane.xlu0 %779
      %v781 = vsel %vm768, %v724, -inf
      %782 = vmax.xlane.f32.xlu0 %v781
      %v783 = vpop.xlane.xlu0 %782
      %v784 = vsel %vm768, %v727, -inf
      %785 = vmax.xlane.f32.xlu0 %v784
      %v786 = vpop.xlane.xlu0 %785
      %v787 = vsel %vm768, %v763, -inf
      %788 = vmax.xlane.f32.xlu0 %v787
      %v789 = vpop.xlane.xlu0 %788
      %v790 = vsel %vm768, %v766, -inf
      %791 = vmax.xlane.f32.xlu0 %v790
      %v792 = vpop.xlane.xlu0 %791
      %v793 = vsub.f32 %v646, %v771
      %v794 = vsub.f32 %v649, %v774
      %v795 = vsub.f32 %v685, %v777
      %v796 = vsub.f32 %v688, %v780
      %v797 = vsub.f32 %v724, %v783
      %v798 = vsub.f32 %v727, %v786
      %v799 = vsub.f32 %v763, %v789
      %v800 = vsub.f32 %v766, %v792
      %v801 = vmul.f32 %v793, 1.442695
      %v802 = vpow.pop %v801
      %v803 = vmul.f32 %v794, 1.442695
      %v804 = vpow.pop %v803
      %v805 = vmul.f32 %v795, 1.442695
      %v806 = vpow.pop %v805
      %v807 = vmul.f32 %v796, 1.442695
      %v808 = vpow.pop %v807
      %v809 = vmul.f32 %v797, 1.442695
      %v810 = vpow.pop %v809
      %v811 = vmul.f32 %v798, 1.442695
      %v812 = vpow.pop %v811
      %v813 = vmul.f32 %v799, 1.442695
      %v814 = vpow.pop %v813
      %v815 = vmul.f32 %v800, 1.442695
      %v816 = vpow.pop %v815
      %v817 = vsel %vm768, %v802, 0.0
      %818 = vadd.xlane.f32.xlu0 %v817
      %v819 = vpop.xlane.xlu0 %818
      %v820 = vsel %vm768, %v804, 0.0
      %821 = vadd.xlane.f32.xlu0 %v820
      %v822 = vpop.xlane.xlu0 %821
      %v823 = vsel %vm768, %v806, 0.0
      %824 = vadd.xlane.f32.xlu0 %v823
      %v825 = vpop.xlane.xlu0 %824
      %v826 = vsel %vm768, %v808, 0.0
      %827 = vadd.xlane.f32.xlu0 %v826
      %v828 = vpop.xlane.xlu0 %827
      %v829 = vsel %vm768, %v810, 0.0
      %830 = vadd.xlane.f32.xlu0 %v829
      %v831 = vpop.xlane.xlu0 %830
      %v832 = vsel %vm768, %v812, 0.0
      %833 = vadd.xlane.f32.xlu0 %v832
      %v834 = vpop.xlane.xlu0 %833
      %v835 = vsel %vm768, %v814, 0.0
      %836 = vadd.xlane.f32.xlu0 %v835
      %v837 = vpop.xlane.xlu0 %836
      %v838 = vsel %vm768, %v816, 0.0
      %839 = vadd.xlane.f32.xlu0 %v838
      %v840 = vpop.xlane.xlu0 %839
      %v841 = vrcp.pop %v819
      %v842 = vmul.f32 %v819, %v841
      %v843 = vsub.f32 1.0, %v842
      %v844 = vmul.f32 %v841, %v843
      %v845 = vadd.f32 %v841, %v844
      %vm846 = vweird.f32 %v819
      %vm847 = vweird.f32 %v841
      %vm848 = vmor %vm846, %vm847
      %v849 = vsel %vm848, %v841, %v845
      %v850 = vand.u32 2147483647, %v819
      %vm851 = vcmp.eq.f32.partialorder %v850, 8.507059e+37
      %v852 = vand.u32 %v819, 2147483648
      %v853 = vor.u32 1.1754944e-38, %v852
      %v854 = vsel %vm851, %v853, %v849
      %v855 = vmul.f32 %v802, %v854
      %v856 = vrcp.pop %v822
      %v857 = vmul.f32 %v822, %v856
      %v858 = vsub.f32 1.0, %v857
      %v859 = vmul.f32 %v856, %v858
      %v860 = vadd.f32 %v856, %v859
      %vm861 = vweird.f32 %v822
      %vm862 = vweird.f32 %v856
      %vm863 = vmor %vm861, %vm862
      %v864 = vsel %vm863, %v856, %v860
      %v865 = vand.u32 2147483647, %v822
      %vm866 = vcmp.eq.f32.partialorder %v865, 8.507059e+37
      %v867 = vand.u32 %v822, 2147483648
      %v868 = vor.u32 1.1754944e-38, %v867
      %v869 = vsel %vm866, %v868, %v864
      %v870 = vmul.f32 %v804, %v869
      %v871 = vrcp.pop %v825
      %v872 = vmul.f32 %v825, %v871
      %v873 = vsub.f32 1.0, %v872
      %v874 = vmul.f32 %v871, %v873
      %v875 = vadd.f32 %v871, %v874
      %vm876 = vweird.f32 %v825
      %vm877 = vweird.f32 %v871
      %vm878 = vmor %vm876, %vm877
      %v879 = vsel %vm878, %v871, %v875
      %v880 = vand.u32 2147483647, %v825
      %vm881 = vcmp.eq.f32.partialorder %v880, 8.507059e+37
      %v882 = vand.u32 %v825, 2147483648
      %v883 = vor.u32 1.1754944e-38, %v882
      %v884 = vsel %vm881, %v883, %v879
      %v885 = vmul.f32 %v806, %v884
      %v886 = vrcp.pop %v828
      %v887 = vmul.f32 %v828, %v886
      %v888 = vsub.f32 1.0, %v887
      %v889 = vmul.f32 %v886, %v888
      %v890 = vadd.f32 %v886, %v889
      %vm891 = vweird.f32 %v828
      %vm892 = vweird.f32 %v886
      %vm893 = vmor %vm891, %vm892
      %v894 = vsel %vm893, %v886, %v890
      %v895 = vand.u32 2147483647, %v828
      %vm896 = vcmp.eq.f32.partialorder %v895, 8.507059e+37
      %v897 = vand.u32 %v828, 2147483648
      %v898 = vor.u32 1.1754944e-38, %v897
      %v899 = vsel %vm896, %v898, %v894
      %v900 = vmul.f32 %v808, %v899
      %v901 = vrcp.pop %v831
      %v902 = vmul.f32 %v831, %v901
      %v903 = vsub.f32 1.0, %v902
      %v904 = vmul.f32 %v901, %v903
      %v905 = vadd.f32 %v901, %v904
      %vm906 = vweird.f32 %v831
      %vm907 = vweird.f32 %v901
      %vm908 = vmor %vm906, %vm907
      %v909 = vsel %vm908, %v901, %v905
      %v910 = vand.u32 2147483647, %v831
      %vm911 = vcmp.eq.f32.partialorder %v910, 8.507059e+37
      %v912 = vand.u32 %v831, 2147483648
      %v913 = vor.u32 1.1754944e-38, %v912
      %v914 = vsel %vm911, %v913, %v909
      %v915 = vmul.f32 %v810, %v914
      %v916 = vrcp.pop %v834
      %v917 = vmul.f32 %v834, %v916
      %v918 = vsub.f32 1.0, %v917
      %v919 = vmul.f32 %v916, %v918
      %v920 = vadd.f32 %v916, %v919
      %vm921 = vweird.f32 %v834
      %vm922 = vweird.f32 %v916
      %vm923 = vmor %vm921, %vm922
      %v924 = vsel %vm923, %v916, %v920
      %v925 = vand.u32 2147483647, %v834
      %vm926 = vcmp.eq.f32.partialorder %v925, 8.507059e+37
      %v927 = vand.u32 %v834, 2147483648
      %v928 = vor.u32 1.1754944e-38, %v927
      %v929 = vsel %vm926, %v928, %v924
      %v930 = vmul.f32 %v812, %v929
      %v931 = vrcp.pop %v837
      %v932 = vmul.f32 %v837, %v931
      %v933 = vsub.f32 1.0, %v932
      %v934 = vmul.f32 %v931, %v933
      %v935 = vadd.f32 %v931, %v934
      %vm936 = vweird.f32 %v837
      %vm937 = vweird.f32 %v931
      %vm938 = vmor %vm936, %vm937
      %v939 = vsel %vm938, %v931, %v935
      %v940 = vand.u32 2147483647, %v837
      %vm941 = vcmp.eq.f32.partialorder %v940, 8.507059e+37
      %v942 = vand.u32 %v837, 2147483648
      %v943 = vor.u32 1.1754944e-38, %v942
      %v944 = vsel %vm941, %v943, %v939
      %v945 = vmul.f32 %v814, %v944
      %v946 = vrcp.pop %v840
      %v947 = vmul.f32 %v840, %v946
      %v948 = vsub.f32 1.0, %v947
      %v949 = vmul.f32 %v946, %v948
      %v950 = vadd.f32 %v946, %v949
      %vm951 = vweird.f32 %v840
      %vm952 = vweird.f32 %v946
      %vm953 = vmor %vm951, %vm952
      %v954 = vsel %vm953, %v946, %v950
      %v955 = vand.u32 2147483647, %v840
      %vm956 = vcmp.eq.f32.partialorder %v955, 8.507059e+37
      %v957 = vand.u32 %v840, 2147483648
      %v958 = vor.u32 1.1754944e-38, %v957
      %v959 = vsel %vm956, %v958, %v954
      %v960 = vmul.f32 %v816, %v959
      %961 = vrot.lane.b32.xlu0 %v572, 64
      %v962 = vpop.permute.xlu0 %961
      %963 = vrot.lane.b32.xlu0 %v575, 64
      %v964 = vpop.permute.xlu0 %963
      %v968 = vsel %vm768, %v855, 0
      %v971 = vsel %vm768, %v870, 0
      %973 = vmatpush.msra.mxu0 0.0
      %974 = vmatpush.msra.mxu0 0.0
      %975 = vmatpush.msra.mxu0 0.0
      %976 = vmatpush.msra.mxu0 0.0
      %977 = vmatpush.msra.mxu0 0.0
      %978 = vmatpush.msra.mxu0 0.0
      %979 = vmatpush.msra.mxu0 0.0
      %980 = vmatpush.msra.mxu0 0.0
      %981 = vmatpush.msra.mxu0 0.0
      %982 = vmatpush.msra.mxu0 0.0
      %983 = vmatpush.msra.mxu0 0.0
      %984 = vmatpush.msra.mxu0 0.0
      %985 = vmatpush.msra.mxu0 0.0
      %986 = vmatpush.msra.mxu0 0.0
      %987 = vmatpush.msra.mxu0 %v964
      %988 = vmatpush.msra.mxu0 %v962
      %989 = vmatmul.f32.gmra.mxu0 %v968
      %v990 = vpop.f32.mrf.mxu0
      %v991 = vadd.f32 0.0, %v990
      %992 = vmatmul.f32.gmra.mxu0 %v971
      %v993 = vpop.f32.mrf.mxu0
      %v994 = vadd.f32 0.0, %v993
      %995 = vdwg.mxu0
      %996 = vrot.lane.b32.xlu0 %v578, 64
      %v997 = vpop.permute.xlu0 %996
      %998 = vrot.lane.b32.xlu0 %v581, 64
      %v999 = vpop.permute.xlu0 %998
      %v1003 = vsel %vm768, %v885, 0
      %v1006 = vsel %vm768, %v900, 0
      %1008 = vmatpush.msra.mxu0 0.0
      %1009 = vmatpush.msra.mxu0 0.0
      %1010 = vmatpush.msra.mxu0 0.0
      %1011 = vmatpush.msra.mxu0 0.0
      %1012 = vmatpush.msra.mxu0 0.0
      %1013 = vmatpush.msra.mxu0 0.0
      %1014 = vmatpush.msra.mxu0 0.0
      %1015 = vmatpush.msra.mxu0 0.0
      %1016 = vmatpush.msra.mxu0 0.0
      %1017 = vmatpush.msra.mxu0 0.0
      %1018 = vmatpush.msra.mxu0 0.0
      %1019 = vmatpush.msra.mxu0 0.0
      %1020 = vmatpush.msra.mxu0 0.0
      %1021 = vmatpush.msra.mxu0 0.0
      %1022 = vmatpush.msra.mxu0 %v999
      %1023 = vmatpush.msra.mxu0 %v997
      %1024 = vmatmul.f32.gmra.mxu0 %v1003
      %v1025 = vpop.f32.mrf.mxu0
      %v1026 = vadd.f32 0.0, %v1025
      %1027 = vmatmul.f32.gmra.mxu0 %v1006
      %v1028 = vpop.f32.mrf.mxu0
      %v1029 = vadd.f32 0.0, %v1028
      %1030 = vdwg.mxu0
      %1031 = vrot.lane.b32.xlu0 %v584, 64
      %v1032 = vpop.permute.xlu0 %1031
      %1033 = vrot.lane.b32.xlu0 %v587, 64
      %v1034 = vpop.permute.xlu0 %1033
      %v1038 = vsel %vm768, %v915, 0
      %v1041 = vsel %vm768, %v930, 0
      %1043 = vmatpush.msra.mxu0 0.0
      %1044 = vmatpush.msra.mxu0 0.0
      %1045 = vmatpush.msra.mxu0 0.0
      %1046 = vmatpush.msra.mxu0 0.0
      %1047 = vmatpush.msra.mxu0 0.0
      %1048 = vmatpush.msra.mxu0 0.0
      %1049 = vmatpush.msra.mxu0 0.0
      %1050 = vmatpush.msra.mxu0 0.0
      %1051 = vmatpush.msra.mxu0 0.0
      %1052 = vmatpush.msra.mxu0 0.0
      %1053 = vmatpush.msra.mxu0 0.0
      %1054 = vmatpush.msra.mxu0 0.0
      %1055 = vmatpush.msra.mxu0 0.0
      %1056 = vmatpush.msra.mxu0 0.0
      %1057 = vmatpush.msra.mxu0 %v1034
      %1058 = vmatpush.msra.mxu0 %v1032
      %1059 = vmatmul.f32.gmra.mxu0 %v1038
      %v1060 = vpop.f32.mrf.mxu0
      %v1061 = vadd.f32 0.0, %v1060
      %1062 = vmatmul.f32.gmra.mxu0 %v1041
      %v1063 = vpop.f32.mrf.mxu0
      %v1064 = vadd.f32 0.0, %v1063
      %1065 = vdwg.mxu0
      %1066 = vrot.lane.b32.xlu0 %v590, 64
      %v1067 = vpop.permute.xlu0 %1066
      %1068 = vrot.lane.b32.xlu0 %v593, 64
      %v1069 = vpop.permute.xlu0 %1068
      %v1073 = vsel %vm768, %v945, 0
      %v1076 = vsel %vm768, %v960, 0
      %1078 = vmatpush.msra.mxu0 0.0
      %1079 = vmatpush.msra.mxu0 0.0
      %1080 = vmatpush.msra.mxu0 0.0
      %1081 = vmatpush.msra.mxu0 0.0
      %1082 = vmatpush.msra.mxu0 0.0
      %1083 = vmatpush.msra.mxu0 0.0
      %1084 = vmatpush.msra.mxu0 0.0
      %1085 = vmatpush.msra.mxu0 0.0
      %1086 = vmatpush.msra.mxu0 0.0
      %1087 = vmatpush.msra.mxu0 0.0
      %1088 = vmatpush.msra.mxu0 0.0
      %1089 = vmatpush.msra.mxu0 0.0
      %1090 = vmatpush.msra.mxu0 0.0
      %1091 = vmatpush.msra.mxu0 0.0
      %1092 = vmatpush.msra.mxu0 %v1069
      %1093 = vmatpush.msra.mxu0 %v1067
      %1094 = vmatmul.f32.gmra.mxu0 %v1073
      %v1095 = vpop.f32.mrf.mxu0
      %v1096 = vadd.f32 0.0, %v1095
      %1097 = vmatmul.f32.gmra.mxu0 %v1076
      %v1098 = vpop.f32.mrf.mxu0
      %v1099 = vadd.f32 0.0, %v1098
      %1100 = vdwg.mxu0
      %1101 = vst.msk [vmem:[#allocation2] sm:$0xff] %vm617, %v991
      %1102 = vst.msk [vmem:[#allocation2 + $0x8] sm:$0xff] %vm617, %v994
      %1103 = vst.msk [vmem:[#allocation2 + $0x10] sm:$0xff] %vm617, %v1026
      %1104 = vst.msk [vmem:[#allocation2 + $0x18] sm:$0xff] %vm617, %v1029
      %1105 = vst.msk [vmem:[#allocation2 + $0x20] sm:$0xff] %vm617, %v1061
      %1106 = vst.msk [vmem:[#allocation2 + $0x28] sm:$0xff] %vm617, %v1064
      %1107 = vst.msk [vmem:[#allocation2 + $0x30] sm:$0xff] %vm617, %v1096
      %1108 = vst.msk [vmem:[#allocation2 + $0x38] sm:$0xff] %vm617, %v1099
      %s1109 = scalar_lea.vmem %s2, 64
      %v1110 = vld [vmem:[%s1109] sm:$0xff]
      %v1111 = vld [vmem:[%s1109 + $0x8] sm:$0xff]
      %v1112 = vld [vmem:[%s1109 + $0x10] sm:$0xff]
      %v1113 = vld [vmem:[%s1109 + $0x18] sm:$0xff]
      %v1114 = vld [vmem:[%s1109 + $0x20] sm:$0xff]
      %v1115 = vld [vmem:[%s1109 + $0x28] sm:$0xff]
      %v1116 = vld [vmem:[%s1109 + $0x30] sm:$0xff]
      %v1117 = vld [vmem:[%s1109 + $0x38] sm:$0xff]
      %1118 = vrot.lane.b32.xlu0 %v595, 120
      %v1119 = vpop.permute.xlu0 %1118
      %1120 = vrot.lane.b32.xlu0 %v596, 120
      %v1121 = vpop.permute.xlu0 %1120
      %1122 = vrot.lane.b32.xlu0 %v572, 88
      %v1123 = vpop.permute.xlu0 %1122
      %1124 = vrot.lane.b32.xlu0 %v575, 88
      %v1125 = vpop.permute.xlu0 %1124
      %v1126 = vsel %vm617, %v1119, 0
      %v1128 = vsel %vm617, %v1121, 0
      %v1130 = vsel %vm617, %v1123, 0
      %v1132 = vsel %vm617, %v1125, 0
      %1134 = vmatpush.xpose.msra.mxu0 0.0
      %1135 = vmatpush.xpose.msra.mxu0 0.0
      %1136 = vmatpush.xpose.msra.mxu0 0.0
      %1137 = vmatpush.xpose.msra.mxu0 0.0
      %1138 = vmatpush.xpose.msra.mxu0 0.0
      %1139 = vmatpush.xpose.msra.mxu0 0.0
      %1140 = vmatpush.xpose.msra.mxu0 0.0
      %1141 = vmatpush.xpose.msra.mxu0 0.0
      %1142 = vmatpush.xpose.msra.mxu0 0.0
      %1143 = vmatpush.xpose.msra.mxu0 0.0
      %1144 = vmatpush.xpose.msra.mxu0 0.0
      %1145 = vmatpush.xpose.msra.mxu0 0.0
      %1146 = vmatpush.xpose.msra.mxu0 0.0
      %1147 = vmatpush.xpose.msra.mxu0 0.0
      %1148 = vmatpush.xpose.msra.mxu0 %v1132
      %1149 = vmatpush.xpose.msra.mxu0 %v1130
      %1150 = vmatmul.f32.gmra.mxu0 %v1126
      %v1151 = vpop.f32.mrf.mxu0
      %v1152 = vadd.f32 %v1110, %v1151
      %1153 = vmatmul.f32.gmra.mxu0 %v1128
      %v1154 = vpop.f32.mrf.mxu0
      %v1155 = vadd.f32 %v1111, %v1154
      %1156 = vdwg.mxu0
      %1157 = vrot.lane.b32.xlu0 %v597, 120
      %v1158 = vpop.permute.xlu0 %1157
      %1159 = vrot.lane.b32.xlu0 %v598, 120
      %v1160 = vpop.permute.xlu0 %1159
      %1161 = vrot.lane.b32.xlu0 %v578, 88
      %v1162 = vpop.permute.xlu0 %1161
      %1163 = vrot.lane.b32.xlu0 %v581, 88
      %v1164 = vpop.permute.xlu0 %1163
      %v1165 = vsel %vm617, %v1158, 0
      %v1167 = vsel %vm617, %v1160, 0
      %v1169 = vsel %vm617, %v1162, 0
      %v1171 = vsel %vm617, %v1164, 0
      %1173 = vmatpush.xpose.msra.mxu0 0.0
      %1174 = vmatpush.xpose.msra.mxu0 0.0
      %1175 = vmatpush.xpose.msra.mxu0 0.0
      %1176 = vmatpush.xpose.msra.mxu0 0.0
      %1177 = vmatpush.xpose.msra.mxu0 0.0
      %1178 = vmatpush.xpose.msra.mxu0 0.0
      %1179 = vmatpush.xpose.msra.mxu0 0.0
      %1180 = vmatpush.xpose.msra.mxu0 0.0
      %1181 = vmatpush.xpose.msra.mxu0 0.0
      %1182 = vmatpush.xpose.msra.mxu0 0.0
      %1183 = vmatpush.xpose.msra.mxu0 0.0
      %1184 = vmatpush.xpose.msra.mxu0 0.0
      %1185 = vmatpush.xpose.msra.mxu0 0.0
      %1186 = vmatpush.xpose.msra.mxu0 0.0
      %1187 = vmatpush.xpose.msra.mxu0 %v1171
      %1188 = vmatpush.xpose.msra.mxu0 %v1169
      %1189 = vmatmul.f32.gmra.mxu0 %v1165
      %v1190 = vpop.f32.mrf.mxu0
      %v1191 = vadd.f32 %v1112, %v1190
      %1192 = vmatmul.f32.gmra.mxu0 %v1167
      %v1193 = vpop.f32.mrf.mxu0
      %v1194 = vadd.f32 %v1113, %v1193
      %1195 = vdwg.mxu0
      %1196 = vrot.lane.b32.xlu0 %v599, 120
      %v1197 = vpop.permute.xlu0 %1196
      %1198 = vrot.lane.b32.xlu0 %v600, 120
      %v1199 = vpop.permute.xlu0 %1198
      %1200 = vrot.lane.b32.xlu0 %v584, 88
      %v1201 = vpop.permute.xlu0 %1200
      %1202 = vrot.lane.b32.xlu0 %v587, 88
      %v1203 = vpop.permute.xlu0 %1202
      %v1204 = vsel %vm617, %v1197, 0
      %v1206 = vsel %vm617, %v1199, 0
      %v1208 = vsel %vm617, %v1201, 0
      %v1210 = vsel %vm617, %v1203, 0
      %1212 = vmatpush.xpose.msra.mxu0 0.0
      %1213 = vmatpush.xpose.msra.mxu0 0.0
      %1214 = vmatpush.xpose.msra.mxu0 0.0
      %1215 = vmatpush.xpose.msra.mxu0 0.0
      %1216 = vmatpush.xpose.msra.mxu0 0.0
      %1217 = vmatpush.xpose.msra.mxu0 0.0
      %1218 = vmatpush.xpose.msra.mxu0 0.0
      %1219 = vmatpush.xpose.msra.mxu0 0.0
      %1220 = vmatpush.xpose.msra.mxu0 0.0
      %1221 = vmatpush.xpose.msra.mxu0 0.0
      %1222 = vmatpush.xpose.msra.mxu0 0.0
      %1223 = vmatpush.xpose.msra.mxu0 0.0
      %1224 = vmatpush.xpose.msra.mxu0 0.0
      %1225 = vmatpush.xpose.msra.mxu0 0.0
      %1226 = vmatpush.xpose.msra.mxu0 %v1210
      %1227 = vmatpush.xpose.msra.mxu0 %v1208
      %1228 = vmatmul.f32.gmra.mxu0 %v1204
      %v1229 = vpop.f32.mrf.mxu0
      %v1230 = vadd.f32 %v1114, %v1229
      %1231 = vmatmul.f32.gmra.mxu0 %v1206
      %v1232 = vpop.f32.mrf.mxu0
      %v1233 = vadd.f32 %v1115, %v1232
      %1234 = vdwg.mxu0
      %1235 = vrot.lane.b32.xlu0 %v601, 120
      %v1236 = vpop.permute.xlu0 %1235
      %1237 = vrot.lane.b32.xlu0 %v602, 120
      %v1238 = vpop.permute.xlu0 %1237
      %1239 = vrot.lane.b32.xlu0 %v590, 88
      %v1240 = vpop.permute.xlu0 %1239
      %1241 = vrot.lane.b32.xlu0 %v593, 88
      %v1242 = vpop.permute.xlu0 %1241
      %v1243 = vsel %vm617, %v1236, 0
      %v1245 = vsel %vm617, %v1238, 0
      %v1247 = vsel %vm617, %v1240, 0
      %v1249 = vsel %vm617, %v1242, 0
      %1251 = vmatpush.xpose.msra.mxu0 0.0
      %1252 = vmatpush.xpose.msra.mxu0 0.0
      %1253 = vmatpush.xpose.msra.mxu0 0.0
      %1254 = vmatpush.xpose.msra.mxu0 0.0
      %1255 = vmatpush.xpose.msra.mxu0 0.0
      %1256 = vmatpush.xpose.msra.mxu0 0.0
      %1257 = vmatpush.xpose.msra.mxu0 0.0
      %1258 = vmatpush.xpose.msra.mxu0 0.0
      %1259 = vmatpush.xpose.msra.mxu0 0.0
      %1260 = vmatpush.xpose.msra.mxu0 0.0
      %1261 = vmatpush.xpose.msra.mxu0 0.0
      %1262 = vmatpush.xpose.msra.mxu0 0.0
      %1263 = vmatpush.xpose.msra.mxu0 0.0
      %1264 = vmatpush.xpose.msra.mxu0 0.0
      %1265 = vmatpush.xpose.msra.mxu0 %v1249
      %1266 = vmatpush.xpose.msra.mxu0 %v1247
      %1267 = vmatmul.f32.gmra.mxu0 %v1243
      %v1268 = vpop.f32.mrf.mxu0
      %v1269 = vadd.f32 %v1116, %v1268
      %1270 = vmatmul.f32.gmra.mxu0 %v1245
      %v1271 = vpop.f32.mrf.mxu0
      %v1272 = vadd.f32 %v1117, %v1271
      %1273 = vdwg.mxu0
      %v1274 = vsel %vm768, %v1152, -inf
      %1275 = vmax.xlane.f32.xlu0 %v1274
      %v1276 = vpop.xlane.xlu0 %1275
      %v1277 = vsel %vm768, %v1155, -inf
      %1278 = vmax.xlane.f32.xlu0 %v1277
      %v1279 = vpop.xlane.xlu0 %1278
      %v1280 = vsel %vm768, %v1191, -inf
      %1281 = vmax.xlane.f32.xlu0 %v1280
      %v1282 = vpop.xlane.xlu0 %1281
      %v1283 = vsel %vm768, %v1194, -inf
      %1284 = vmax.xlane.f32.xlu0 %v1283
      %v1285 = vpop.xlane.xlu0 %1284
      %v1286 = vsel %vm768, %v1230, -inf
      %1287 = vmax.xlane.f32.xlu0 %v1286
      %v1288 = vpop.xlane.xlu0 %1287
      %v1289 = vsel %vm768, %v1233, -inf
      %1290 = vmax.xlane.f32.xlu0 %v1289
      %v1291 = vpop.xlane.xlu0 %1290
      %v1292 = vsel %vm768, %v1269, -inf
      %1293 = vmax.xlane.f32.xlu0 %v1292
      %v1294 = vpop.xlane.xlu0 %1293
      %v1295 = vsel %vm768, %v1272, -inf
      %1296 = vmax.xlane.f32.xlu0 %v1295
      %v1297 = vpop.xlane.xlu0 %1296
      %v1298 = vsub.f32 %v1152, %v1276
      %v1299 = vsub.f32 %v1155, %v1279
      %v1300 = vsub.f32 %v1191, %v1282
      %v1301 = vsub.f32 %v1194, %v1285
      %v1302 = vsub.f32 %v1230, %v1288
      %v1303 = vsub.f32 %v1233, %v1291
      %v1304 = vsub.f32 %v1269, %v1294
      %v1305 = vsub.f32 %v1272, %v1297
      %v1306 = vmul.f32 %v1298, 1.442695
      %v1307 = vpow.pop %v1306
      %v1308 = vmul.f32 %v1299, 1.442695
      %v1309 = vpow.pop %v1308
      %v1310 = vmul.f32 %v1300, 1.442695
      %v1311 = vpow.pop %v1310
      %v1312 = vmul.f32 %v1301, 1.442695
      %v1313 = vpow.pop %v1312
      %v1314 = vmul.f32 %v1302, 1.442695
      %v1315 = vpow.pop %v1314
      %v1316 = vmul.f32 %v1303, 1.442695
      %v1317 = vpow.pop %v1316
      %v1318 = vmul.f32 %v1304, 1.442695
      %v1319 = vpow.pop %v1318
      %v1320 = vmul.f32 %v1305, 1.442695
      %v1321 = vpow.pop %v1320
      %v1322 = vsel %vm768, %v1307, 0.0
      %1323 = vadd.xlane.f32.xlu0 %v1322
      %v1324 = vpop.xlane.xlu0 %1323
      %v1325 = vsel %vm768, %v1309, 0.0
      %1326 = vadd.xlane.f32.xlu0 %v1325
      %v1327 = vpop.xlane.xlu0 %1326
      %v1328 = vsel %vm768, %v1311, 0.0
      %1329 = vadd.xlane.f32.xlu0 %v1328
      %v1330 = vpop.xlane.xlu0 %1329
      %v1331 = vsel %vm768, %v1313, 0.0
      %1332 = vadd.xlane.f32.xlu0 %v1331
      %v1333 = vpop.xlane.xlu0 %1332
      %v1334 = vsel %vm768, %v1315, 0.0
      %1335 = vadd.xlane.f32.xlu0 %v1334
      %v1336 = vpop.xlane.xlu0 %1335
      %v1337 = vsel %vm768, %v1317, 0.0
      %1338 = vadd.xlane.f32.xlu0 %v1337
      %v1339 = vpop.xlane.xlu0 %1338
      %v1340 = vsel %vm768, %v1319, 0.0
      %1341 = vadd.xlane.f32.xlu0 %v1340
      %v1342 = vpop.xlane.xlu0 %1341
      %v1343 = vsel %vm768, %v1321, 0.0
      %1344 = vadd.xlane.f32.xlu0 %v1343
      %v1345 = vpop.xlane.xlu0 %1344
      %v1346 = vrcp.pop %v1324
      %v1347 = vmul.f32 %v1324, %v1346
      %v1348 = vsub.f32 1.0, %v1347
      %v1349 = vmul.f32 %v1346, %v1348
      %v1350 = vadd.f32 %v1346, %v1349
      %vm1351 = vweird.f32 %v1324
      %vm1352 = vweird.f32 %v1346
      %vm1353 = vmor %vm1351, %vm1352
      %v1354 = vsel %vm1353, %v1346, %v1350
      %v1355 = vand.u32 2147483647, %v1324
      %vm1356 = vcmp.eq.f32.partialorder %v1355, 8.507059e+37
      %v1357 = vand.u32 %v1324, 2147483648
      %v1358 = vor.u32 1.1754944e-38, %v1357
      %v1359 = vsel %vm1356, %v1358, %v1354
      %v1360 = vmul.f32 %v1307, %v1359
      %v1361 = vrcp.pop %v1327
      %v1362 = vmul.f32 %v1327, %v1361
      %v1363 = vsub.f32 1.0, %v1362
      %v1364 = vmul.f32 %v1361, %v1363
      %v1365 = vadd.f32 %v1361, %v1364
      %vm1366 = vweird.f32 %v1327
      %vm1367 = vweird.f32 %v1361
      %vm1368 = vmor %vm1366, %vm1367
      %v1369 = vsel %vm1368, %v1361, %v1365
      %v1370 = vand.u32 2147483647, %v1327
      %vm1371 = vcmp.eq.f32.partialorder %v1370, 8.507059e+37
      %v1372 = vand.u32 %v1327, 2147483648
      %v1373 = vor.u32 1.1754944e-38, %v1372
      %v1374 = vsel %vm1371, %v1373, %v1369
      %v1375 = vmul.f32 %v1309, %v1374
      %v1376 = vrcp.pop %v1330
      %v1377 = vmul.f32 %v1330, %v1376
      %v1378 = vsub.f32 1.0, %v1377
      %v1379 = vmul.f32 %v1376, %v1378
      %v1380 = vadd.f32 %v1376, %v1379
      %vm1381 = vweird.f32 %v1330
      %vm1382 = vweird.f32 %v1376
      %vm1383 = vmor %vm1381, %vm1382
      %v1384 = vsel %vm1383, %v1376, %v1380
      %v1385 = vand.u32 2147483647, %v1330
      %vm1386 = vcmp.eq.f32.partialorder %v1385, 8.507059e+37
      %v1387 = vand.u32 %v1330, 2147483648
      %v1388 = vor.u32 1.1754944e-38, %v1387
      %v1389 = vsel %vm1386, %v1388, %v1384
      %v1390 = vmul.f32 %v1311, %v1389
      %v1391 = vrcp.pop %v1333
      %v1392 = vmul.f32 %v1333, %v1391
      %v1393 = vsub.f32 1.0, %v1392
      %v1394 = vmul.f32 %v1391, %v1393
      %v1395 = vadd.f32 %v1391, %v1394
      %vm1396 = vweird.f32 %v1333
      %vm1397 = vweird.f32 %v1391
      %vm1398 = vmor %vm1396, %vm1397
      %v1399 = vsel %vm1398, %v1391, %v1395
      %v1400 = vand.u32 2147483647, %v1333
      %vm1401 = vcmp.eq.f32.partialorder %v1400, 8.507059e+37
      %v1402 = vand.u32 %v1333, 2147483648
      %v1403 = vor.u32 1.1754944e-38, %v1402
      %v1404 = vsel %vm1401, %v1403, %v1399
      %v1405 = vmul.f32 %v1313, %v1404
      %v1406 = vrcp.pop %v1336
      %v1407 = vmul.f32 %v1336, %v1406
      %v1408 = vsub.f32 1.0, %v1407
      %v1409 = vmul.f32 %v1406, %v1408
      %v1410 = vadd.f32 %v1406, %v1409
      %vm1411 = vweird.f32 %v1336
      %vm1412 = vweird.f32 %v1406
      %vm1413 = vmor %vm1411, %vm1412
      %v1414 = vsel %vm1413, %v1406, %v1410
      %v1415 = vand.u32 2147483647, %v1336
      %vm1416 = vcmp.eq.f32.partialorder %v1415, 8.507059e+37
      %v1417 = vand.u32 %v1336, 2147483648
      %v1418 = vor.u32 1.1754944e-38, %v1417
      %v1419 = vsel %vm1416, %v1418, %v1414
      %v1420 = vmul.f32 %v1315, %v1419
      %v1421 = vrcp.pop %v1339
      %v1422 = vmul.f32 %v1339, %v1421
      %v1423 = vsub.f32 1.0, %v1422
      %v1424 = vmul.f32 %v1421, %v1423
      %v1425 = vadd.f32 %v1421, %v1424
      %vm1426 = vweird.f32 %v1339
      %vm1427 = vweird.f32 %v1421
      %vm1428 = vmor %vm1426, %vm1427
      %v1429 = vsel %vm1428, %v1421, %v1425
      %v1430 = vand.u32 2147483647, %v1339
      %vm1431 = vcmp.eq.f32.partialorder %v1430, 8.507059e+37
      %v1432 = vand.u32 %v1339, 2147483648
      %v1433 = vor.u32 1.1754944e-38, %v1432
      %v1434 = vsel %vm1431, %v1433, %v1429
      %v1435 = vmul.f32 %v1317, %v1434
      %v1436 = vrcp.pop %v1342
      %v1437 = vmul.f32 %v1342, %v1436
      %v1438 = vsub.f32 1.0, %v1437
      %v1439 = vmul.f32 %v1436, %v1438
      %v1440 = vadd.f32 %v1436, %v1439
      %vm1441 = vweird.f32 %v1342
      %vm1442 = vweird.f32 %v1436
      %vm1443 = vmor %vm1441, %vm1442
      %v1444 = vsel %vm1443, %v1436, %v1440
      %v1445 = vand.u32 2147483647, %v1342
      %vm1446 = vcmp.eq.f32.partialorder %v1445, 8.507059e+37
      %v1447 = vand.u32 %v1342, 2147483648
      %v1448 = vor.u32 1.1754944e-38, %v1447
      %v1449 = vsel %vm1446, %v1448, %v1444
      %v1450 = vmul.f32 %v1319, %v1449
      %v1451 = vrcp.pop %v1345
      %v1452 = vmul.f32 %v1345, %v1451
      %v1453 = vsub.f32 1.0, %v1452
      %v1454 = vmul.f32 %v1451, %v1453
      %v1455 = vadd.f32 %v1451, %v1454
      %vm1456 = vweird.f32 %v1345
      %vm1457 = vweird.f32 %v1451
      %vm1458 = vmor %vm1456, %vm1457
      %v1459 = vsel %vm1458, %v1451, %v1455
      %v1460 = vand.u32 2147483647, %v1345
      %vm1461 = vcmp.eq.f32.partialorder %v1460, 8.507059e+37
      %v1462 = vand.u32 %v1345, 2147483648
      %v1463 = vor.u32 1.1754944e-38, %v1462
      %v1464 = vsel %vm1461, %v1463, %v1459
      %v1465 = vmul.f32 %v1321, %v1464
      %1466 = vrot.lane.b32.xlu0 %v572, 56
      %v1467 = vpop.permute.xlu0 %1466
      %1468 = vrot.lane.b32.xlu0 %v575, 56
      %v1469 = vpop.permute.xlu0 %1468
      %v1473 = vsel %vm768, %v1360, 0
      %v1476 = vsel %vm768, %v1375, 0
      %1478 = vmatpush.msra.mxu0 0.0
      %1479 = vmatpush.msra.mxu0 0.0
      %1480 = vmatpush.msra.mxu0 0.0
      %1481 = vmatpush.msra.mxu0 0.0
      %1482 = vmatpush.msra.mxu0 0.0
      %1483 = vmatpush.msra.mxu0 0.0
      %1484 = vmatpush.msra.mxu0 0.0
      %1485 = vmatpush.msra.mxu0 0.0
      %1486 = vmatpush.msra.mxu0 0.0
      %1487 = vmatpush.msra.mxu0 0.0
      %1488 = vmatpush.msra.mxu0 0.0
      %1489 = vmatpush.msra.mxu0 0.0
      %1490 = vmatpush.msra.mxu0 0.0
      %1491 = vmatpush.msra.mxu0 0.0
      %1492 = vmatpush.msra.mxu0 %v1469
      %1493 = vmatpush.msra.mxu0 %v1467
      %1494 = vmatmul.f32.gmra.mxu0 %v1473
      %v1495 = vpop.f32.mrf.mxu0
      %v1496 = vadd.f32 0.0, %v1495
      %1497 = vmatmul.f32.gmra.mxu0 %v1476
      %v1498 = vpop.f32.mrf.mxu0
      %v1499 = vadd.f32 0.0, %v1498
      %1500 = vdwg.mxu0
      %1501 = vrot.lane.b32.xlu0 %v578, 56
      %v1502 = vpop.permute.xlu0 %1501
      %1503 = vrot.lane.b32.xlu0 %v581, 56
      %v1504 = vpop.permute.xlu0 %1503
      %v1508 = vsel %vm768, %v1390, 0
      %v1511 = vsel %vm768, %v1405, 0
      %1513 = vmatpush.msra.mxu0 0.0
      %1514 = vmatpush.msra.mxu0 0.0
      %1515 = vmatpush.msra.mxu0 0.0
      %1516 = vmatpush.msra.mxu0 0.0
      %1517 = vmatpush.msra.mxu0 0.0
      %1518 = vmatpush.msra.mxu0 0.0
      %1519 = vmatpush.msra.mxu0 0.0
      %1520 = vmatpush.msra.mxu0 0.0
      %1521 = vmatpush.msra.mxu0 0.0
      %1522 = vmatpush.msra.mxu0 0.0
      %1523 = vmatpush.msra.mxu0 0.0
      %1524 = vmatpush.msra.mxu0 0.0
      %1525 = vmatpush.msra.mxu0 0.0
      %1526 = vmatpush.msra.mxu0 0.0
      %1527 = vmatpush.msra.mxu0 %v1504
      %1528 = vmatpush.msra.mxu0 %v1502
      %1529 = vmatmul.f32.gmra.mxu0 %v1508
      %v1530 = vpop.f32.mrf.mxu0
      %v1531 = vadd.f32 0.0, %v1530
      %1532 = vmatmul.f32.gmra.mxu0 %v1511
      %v1533 = vpop.f32.mrf.mxu0
      %v1534 = vadd.f32 0.0, %v1533
      %1535 = vdwg.mxu0
      %1536 = vrot.lane.b32.xlu0 %v584, 56
      %v1537 = vpop.permute.xlu0 %1536
      %1538 = vrot.lane.b32.xlu0 %v587, 56
      %v1539 = vpop.permute.xlu0 %1538
      %v1543 = vsel %vm768, %v1420, 0
      %v1546 = vsel %vm768, %v1435, 0
      %1548 = vmatpush.msra.mxu0 0.0
      %1549 = vmatpush.msra.mxu0 0.0
      %1550 = vmatpush.msra.mxu0 0.0
      %1551 = vmatpush.msra.mxu0 0.0
      %1552 = vmatpush.msra.mxu0 0.0
      %1553 = vmatpush.msra.mxu0 0.0
      %1554 = vmatpush.msra.mxu0 0.0
      %1555 = vmatpush.msra.mxu0 0.0
      %1556 = vmatpush.msra.mxu0 0.0
      %1557 = vmatpush.msra.mxu0 0.0
      %1558 = vmatpush.msra.mxu0 0.0
      %1559 = vmatpush.msra.mxu0 0.0
      %1560 = vmatpush.msra.mxu0 0.0
      %1561 = vmatpush.msra.mxu0 0.0
      %1562 = vmatpush.msra.mxu0 %v1539
      %1563 = vmatpush.msra.mxu0 %v1537
      %1564 = vmatmul.f32.gmra.mxu0 %v1543
      %v1565 = vpop.f32.mrf.mxu0
      %v1566 = vadd.f32 0.0, %v1565
      %1567 = vmatmul.f32.gmra.mxu0 %v1546
      %v1568 = vpop.f32.mrf.mxu0
      %v1569 = vadd.f32 0.0, %v1568
      %1570 = vdwg.mxu0
      %1571 = vrot.lane.b32.xlu0 %v590, 56
      %v1572 = vpop.permute.xlu0 %1571
      %1573 = vrot.lane.b32.xlu0 %v593, 56
      %v1574 = vpop.permute.xlu0 %1573
      %v1578 = vsel %vm768, %v1450, 0
      %v1581 = vsel %vm768, %v1465, 0
      %1583 = vmatpush.msra.mxu0 0.0
      %1584 = vmatpush.msra.mxu0 0.0
      %1585 = vmatpush.msra.mxu0 0.0
      %1586 = vmatpush.msra.mxu0 0.0
      %1587 = vmatpush.msra.mxu0 0.0
      %1588 = vmatpush.msra.mxu0 0.0
      %1589 = vmatpush.msra.mxu0 0.0
      %1590 = vmatpush.msra.mxu0 0.0
      %1591 = vmatpush.msra.mxu0 0.0
      %1592 = vmatpush.msra.mxu0 0.0
      %1593 = vmatpush.msra.mxu0 0.0
      %1594 = vmatpush.msra.mxu0 0.0
      %1595 = vmatpush.msra.mxu0 0.0
      %1596 = vmatpush.msra.mxu0 0.0
      %1597 = vmatpush.msra.mxu0 %v1574
      %1598 = vmatpush.msra.mxu0 %v1572
      %1599 = vmatmul.f32.gmra.mxu0 %v1578
      %v1600 = vpop.f32.mrf.mxu0
      %v1601 = vadd.f32 0.0, %v1600
      %1602 = vmatmul.f32.gmra.mxu0 %v1581
      %v1603 = vpop.f32.mrf.mxu0
      %v1604 = vadd.f32 0.0, %v1603
      %1605 = vdwg.mxu0
      %1614 = vrot.lane.b32.xlu0 %v1496, 8
      %v1615 = vpop.permute.xlu0 %1614
      %1616 = vrot.lane.b32.xlu0 %v1499, 8
      %v1617 = vpop.permute.xlu0 %1616
      %1618 = vrot.lane.b32.xlu0 %v1531, 8
      %v1619 = vpop.permute.xlu0 %1618
      %1620 = vrot.lane.b32.xlu0 %v1534, 8
      %v1621 = vpop.permute.xlu0 %1620
      %1622 = vrot.lane.b32.xlu0 %v1566, 8
      %v1623 = vpop.permute.xlu0 %1622
      %1624 = vrot.lane.b32.xlu0 %v1569, 8
      %v1625 = vpop.permute.xlu0 %1624
      %1626 = vrot.lane.b32.xlu0 %v1601, 8
      %v1627 = vpop.permute.xlu0 %1626
      %1628 = vrot.lane.b32.xlu0 %v1604, 8
      %v1629 = vpop.permute.xlu0 %1628
      %vm1638 = vcmask 130112
      %1639 = vst.msk [vmem:[#allocation2] sm:$0xff] %vm1638, %v1615
      %1640 = vst.msk [vmem:[#allocation2 + $0x8] sm:$0xff] %vm1638, %v1617
      %1641 = vst.msk [vmem:[#allocation2 + $0x10] sm:$0xff] %vm1638, %v1619
      %1642 = vst.msk [vmem:[#allocation2 + $0x18] sm:$0xff] %vm1638, %v1621
      %1643 = vst.msk [vmem:[#allocation2 + $0x20] sm:$0xff] %vm1638, %v1623
      %1644 = vst.msk [vmem:[#allocation2 + $0x28] sm:$0xff] %vm1638, %v1625
      %1645 = vst.msk [vmem:[#allocation2 + $0x30] sm:$0xff] %vm1638, %v1627
      %1646 = vst.msk [vmem:[#allocation2 + $0x38] sm:$0xff] %vm1638, %v1629
      %s1647 = scalar_lea.vmem %s2, 128
      %v1648 = vld [vmem:[%s1647] sm:$0xff]
      %v1649 = vld [vmem:[%s1647 + $0x8] sm:$0xff]
      %v1650 = vld [vmem:[%s1647 + $0x10] sm:$0xff]
      %v1651 = vld [vmem:[%s1647 + $0x18] sm:$0xff]
      %v1652 = vld [vmem:[%s1647 + $0x20] sm:$0xff]
      %v1653 = vld [vmem:[%s1647 + $0x28] sm:$0xff]
      %v1654 = vld [vmem:[%s1647 + $0x30] sm:$0xff]
      %v1655 = vld [vmem:[%s1647 + $0x38] sm:$0xff]
      %1656 = vrot.lane.b32.xlu0 %v595, 112
      %v1657 = vpop.permute.xlu0 %1656
      %1658 = vrot.lane.b32.xlu0 %v596, 112
      %v1659 = vpop.permute.xlu0 %1658
      %1660 = vrot.lane.b32.xlu0 %v572, 80
      %v1661 = vpop.permute.xlu0 %1660
      %1662 = vrot.lane.b32.xlu0 %v575, 80
      %v1663 = vpop.permute.xlu0 %1662
      %v1664 = vsel %vm617, %v1657, 0
      %v1666 = vsel %vm617, %v1659, 0
      %v1668 = vsel %vm617, %v1661, 0
      %v1670 = vsel %vm617, %v1663, 0
      %1672 = vmatpush.xpose.msra.mxu0 0.0
      %1673 = vmatpush.xpose.msra.mxu0 0.0
      %1674 = vmatpush.xpose.msra.mxu0 0.0
      %1675 = vmatpush.xpose.msra.mxu0 0.0
      %1676 = vmatpush.xpose.msra.mxu0 0.0
      %1677 = vmatpush.xpose.msra.mxu0 0.0
      %1678 = vmatpush.xpose.msra.mxu0 0.0
      %1679 = vmatpush.xpose.msra.mxu0 0.0
      %1680 = vmatpush.xpose.msra.mxu0 0.0
      %1681 = vmatpush.xpose.msra.mxu0 0.0
      %1682 = vmatpush.xpose.msra.mxu0 0.0
      %1683 = vmatpush.xpose.msra.mxu0 0.0
      %1684 = vmatpush.xpose.msra.mxu0 0.0
      %1685 = vmatpush.xpose.msra.mxu0 0.0
      %1686 = vmatpush.xpose.msra.mxu0 %v1670
      %1687 = vmatpush.xpose.msra.mxu0 %v1668
      %1688 = vmatmul.f32.gmra.mxu0 %v1664
      %v1689 = vpop.f32.mrf.mxu0
      %v1690 = vadd.f32 %v1648, %v1689
      %1691 = vmatmul.f32.gmra.mxu0 %v1666
      %v1692 = vpop.f32.mrf.mxu0
      %v1693 = vadd.f32 %v1649, %v1692
      %1694 = vdwg.mxu0
      %1695 = vrot.lane.b32.xlu0 %v597, 112
      %v1696 = vpop.permute.xlu0 %1695
      %1697 = vrot.lane.b32.xlu0 %v598, 112
      %v1698 = vpop.permute.xlu0 %1697
      %1699 = vrot.lane.b32.xlu0 %v578, 80
      %v1700 = vpop.permute.xlu0 %1699
      %1701 = vrot.lane.b32.xlu0 %v581, 80
      %v1702 = vpop.permute.xlu0 %1701
      %v1703 = vsel %vm617, %v1696, 0
      %v1705 = vsel %vm617, %v1698, 0
      %v1707 = vsel %vm617, %v1700, 0
      %v1709 = vsel %vm617, %v1702, 0
      %1711 = vmatpush.xpose.msra.mxu0 0.0
      %1712 = vmatpush.xpose.msra.mxu0 0.0
      %1713 = vmatpush.xpose.msra.mxu0 0.0
      %1714 = vmatpush.xpose.msra.mxu0 0.0
      %1715 = vmatpush.xpose.msra.mxu0 0.0
      %1716 = vmatpush.xpose.msra.mxu0 0.0
      %1717 = vmatpush.xpose.msra.mxu0 0.0
      %1718 = vmatpush.xpose.msra.mxu0 0.0
      %1719 = vmatpush.xpose.msra.mxu0 0.0
      %1720 = vmatpush.xpose.msra.mxu0 0.0
      %1721 = vmatpush.xpose.msra.mxu0 0.0
      %1722 = vmatpush.xpose.msra.mxu0 0.0
      %1723 = vmatpush.xpose.msra.mxu0 0.0
      %1724 = vmatpush.xpose.msra.mxu0 0.0
      %1725 = vmatpush.xpose.msra.mxu0 %v1709
      %1726 = vmatpush.xpose.msra.mxu0 %v1707
      %1727 = vmatmul.f32.gmra.mxu0 %v1703
      %v1728 = vpop.f32.mrf.mxu0
      %v1729 = vadd.f32 %v1650, %v1728
      %1730 = vmatmul.f32.gmra.mxu0 %v1705
      %v1731 = vpop.f32.mrf.mxu0
      %v1732 = vadd.f32 %v1651, %v1731
      %1733 = vdwg.mxu0
      %1734 = vrot.lane.b32.xlu0 %v599, 112
      %v1735 = vpop.permute.xlu0 %1734
      %1736 = vrot.lane.b32.xlu0 %v600, 112
      %v1737 = vpop.permute.xlu0 %1736
      %1738 = vrot.lane.b32.xlu0 %v584, 80
      %v1739 = vpop.permute.xlu0 %1738
      %1740 = vrot.lane.b32.xlu0 %v587, 80
      %v1741 = vpop.permute.xlu0 %1740
      %v1742 = vsel %vm617, %v1735, 0
      %v1744 = vsel %vm617, %v1737, 0
      %v1746 = vsel %vm617, %v1739, 0
      %v1748 = vsel %vm617, %v1741, 0
      %1750 = vmatpush.xpose.msra.mxu0 0.0
      %1751 = vmatpush.xpose.msra.mxu0 0.0
      %1752 = vmatpush.xpose.msra.mxu0 0.0
      %1753 = vmatpush.xpose.msra.mxu0 0.0
      %1754 = vmatpush.xpose.msra.mxu0 0.0
      %1755 = vmatpush.xpose.msra.mxu0 0.0
      %1756 = vmatpush.xpose.msra.mxu0 0.0
      %1757 = vmatpush.xpose.msra.mxu0 0.0
      %1758 = vmatpush.xpose.msra.mxu0 0.0
      %1759 = vmatpush.xpose.msra.mxu0 0.0
      %1760 = vmatpush.xpose.msra.mxu0 0.0
      %1761 = vmatpush.xpose.msra.mxu0 0.0
      %1762 = vmatpush.xpose.msra.mxu0 0.0
      %1763 = vmatpush.xpose.msra.mxu0 0.0
      %1764 = vmatpush.xpose.msra.mxu0 %v1748
      %1765 = vmatpush.xpose.msra.mxu0 %v1746
      %1766 = vmatmul.f32.gmra.mxu0 %v1742
      %v1767 = vpop.f32.mrf.mxu0
      %v1768 = vadd.f32 %v1652, %v1767
      %1769 = vmatmul.f32.gmra.mxu0 %v1744
      %v1770 = vpop.f32.mrf.mxu0
      %v1771 = vadd.f32 %v1653, %v1770
      %1772 = vdwg.mxu0
      %1773 = vrot.lane.b32.xlu0 %v601, 112
      %v1774 = vpop.permute.xlu0 %1773
      %1775 = vrot.lane.b32.xlu0 %v602, 112
      %v1776 = vpop.permute.xlu0 %1775
      %1777 = vrot.lane.b32.xlu0 %v590, 80
      %v1778 = vpop.permute.xlu0 %1777
      %1779 = vrot.lane.b32.xlu0 %v593, 80
      %v1780 = vpop.permute.xlu0 %1779
      %v1781 = vsel %vm617, %v1774, 0
      %v1783 = vsel %vm617, %v1776, 0
      %v1785 = vsel %vm617, %v1778, 0
      %v1787 = vsel %vm617, %v1780, 0
      %1789 = vmatpush.xpose.msra.mxu0 0.0
      %1790 = vmatpush.xpose.msra.mxu0 0.0
      %1791 = vmatpush.xpose.msra.mxu0 0.0
      %1792 = vmatpush.xpose.msra.mxu0 0.0
      %1793 = vmatpush.xpose.msra.mxu0 0.0
      %1794 = vmatpush.xpose.msra.mxu0 0.0
      %1795 = vmatpush.xpose.msra.mxu0 0.0
      %1796 = vmatpush.xpose.msra.mxu0 0.0
      %1797 = vmatpush.xpose.msra.mxu0 0.0
      %1798 = vmatpush.xpose.msra.mxu0 0.0
      %1799 = vmatpush.xpose.msra.mxu0 0.0
      %1800 = vmatpush.xpose.msra.mxu0 0.0
      %1801 = vmatpush.xpose.msra.mxu0 0.0
      %1802 = vmatpush.xpose.msra.mxu0 0.0
      %1803 = vmatpush.xpose.msra.mxu0 %v1787
      %1804 = vmatpush.xpose.msra.mxu0 %v1785
      %1805 = vmatmul.f32.gmra.mxu0 %v1781
      %v1806 = vpop.f32.mrf.mxu0
      %v1807 = vadd.f32 %v1654, %v1806
      %1808 = vmatmul.f32.gmra.mxu0 %v1783
      %v1809 = vpop.f32.mrf.mxu0
      %v1810 = vadd.f32 %v1655, %v1809
      %1811 = vdwg.mxu0
      %v1812 = vsel %vm768, %v1690, -inf
      %1813 = vmax.xlane.f32.xlu0 %v1812
      %v1814 = vpop.xlane.xlu0 %1813
      %v1815 = vsel %vm768, %v1693, -inf
      %1816 = vmax.xlane.f32.xlu0 %v1815
      %v1817 = vpop.xlane.xlu0 %1816
      %v1818 = vsel %vm768, %v1729, -inf
      %1819 = vmax.xlane.f32.xlu0 %v1818
      %v1820 = vpop.xlane.xlu0 %1819
      %v1821 = vsel %vm768, %v1732, -inf
      %1822 = vmax.xlane.f32.xlu0 %v1821
      %v1823 = vpop.xlane.xlu0 %1822
      %v1824 = vsel %vm768, %v1768, -inf
      %1825 = vmax.xlane.f32.xlu0 %v1824
      %v1826 = vpop.xlane.xlu0 %1825
      %v1827 = vsel %vm768, %v1771, -inf
      %1828 = vmax.xlane.f32.xlu0 %v1827
      %v1829 = vpop.xlane.xlu0 %1828
      %v1830 = vsel %vm768, %v1807, -inf
      %1831 = vmax.xlane.f32.xlu0 %v1830
      %v1832 = vpop.xlane.xlu0 %1831
      %v1833 = vsel %vm768, %v1810, -inf
      %1834 = vmax.xlane.f32.xlu0 %v1833
      %v1835 = vpop.xlane.xlu0 %1834
      %v1836 = vsub.f32 %v1690, %v1814
      %v1837 = vsub.f32 %v1693, %v1817
      %v1838 = vsub.f32 %v1729, %v1820
      %v1839 = vsub.f32 %v1732, %v1823
      %v1840 = vsub.f32 %v1768, %v1826
      %v1841 = vsub.f32 %v1771, %v1829
      %v1842 = vsub.f32 %v1807, %v1832
      %v1843 = vsub.f32 %v1810, %v1835
      %v1844 = vmul.f32 %v1836, 1.442695
      %v1845 = vpow.pop %v1844
      %v1846 = vmul.f32 %v1837, 1.442695
      %v1847 = vpow.pop %v1846
      %v1848 = vmul.f32 %v1838, 1.442695
      %v1849 = vpow.pop %v1848
      %v1850 = vmul.f32 %v1839, 1.442695
      %v1851 = vpow.pop %v1850
      %v1852 = vmul.f32 %v1840, 1.442695
      %v1853 = vpow.pop %v1852
      %v1854 = vmul.f32 %v1841, 1.442695
      %v1855 = vpow.pop %v1854
      %v1856 = vmul.f32 %v1842, 1.442695
      %v1857 = vpow.pop %v1856
      %v1858 = vmul.f32 %v1843, 1.442695
      %v1859 = vpow.pop %v1858
      %v1860 = vsel %vm768, %v1845, 0.0
      %1861 = vadd.xlane.f32.xlu0 %v1860
      %v1862 = vpop.xlane.xlu0 %1861
      %v1863 = vsel %vm768, %v1847, 0.0
      %1864 = vadd.xlane.f32.xlu0 %v1863
      %v1865 = vpop.xlane.xlu0 %1864
      %v1866 = vsel %vm768, %v1849, 0.0
      %1867 = vadd.xlane.f32.xlu0 %v1866
      %v1868 = vpop.xlane.xlu0 %1867
      %v1869 = vsel %vm768, %v1851, 0.0
      %1870 = vadd.xlane.f32.xlu0 %v1869
      %v1871 = vpop.xlane.xlu0 %1870
      %v1872 = vsel %vm768, %v1853, 0.0
      %1873 = vadd.xlane.f32.xlu0 %v1872
      %v1874 = vpop.xlane.xlu0 %1873
      %v1875 = vsel %vm768, %v1855, 0.0
      %1876 = vadd.xlane.f32.xlu0 %v1875
      %v1877 = vpop.xlane.xlu0 %1876
      %v1878 = vsel %vm768, %v1857, 0.0
      %1879 = vadd.xlane.f32.xlu0 %v1878
      %v1880 = vpop.xlane.xlu0 %1879
      %v1881 = vsel %vm768, %v1859, 0.0
      %1882 = vadd.xlane.f32.xlu0 %v1881
      %v1883 = vpop.xlane.xlu0 %1882
      %v1884 = vrcp.pop %v1862
      %v1885 = vmul.f32 %v1862, %v1884
      %v1886 = vsub.f32 1.0, %v1885
      %v1887 = vmul.f32 %v1884, %v1886
      %v1888 = vadd.f32 %v1884, %v1887
      %vm1889 = vweird.f32 %v1862
      %vm1890 = vweird.f32 %v1884
      %vm1891 = vmor %vm1889, %vm1890
      %v1892 = vsel %vm1891, %v1884, %v1888
      %v1893 = vand.u32 2147483647, %v1862
      %vm1894 = vcmp.eq.f32.partialorder %v1893, 8.507059e+37
      %v1895 = vand.u32 %v1862, 2147483648
      %v1896 = vor.u32 1.1754944e-38, %v1895
      %v1897 = vsel %vm1894, %v1896, %v1892
      %v1898 = vmul.f32 %v1845, %v1897
      %v1899 = vrcp.pop %v1865
      %v1900 = vmul.f32 %v1865, %v1899
      %v1901 = vsub.f32 1.0, %v1900
      %v1902 = vmul.f32 %v1899, %v1901
      %v1903 = vadd.f32 %v1899, %v1902
      %vm1904 = vweird.f32 %v1865
      %vm1905 = vweird.f32 %v1899
      %vm1906 = vmor %vm1904, %vm1905
      %v1907 = vsel %vm1906, %v1899, %v1903
      %v1908 = vand.u32 2147483647, %v1865
      %vm1909 = vcmp.eq.f32.partialorder %v1908, 8.507059e+37
      %v1910 = vand.u32 %v1865, 2147483648
      %v1911 = vor.u32 1.1754944e-38, %v1910
      %v1912 = vsel %vm1909, %v1911, %v1907
      %v1913 = vmul.f32 %v1847, %v1912
      %v1914 = vrcp.pop %v1868
      %v1915 = vmul.f32 %v1868, %v1914
      %v1916 = vsub.f32 1.0, %v1915
      %v1917 = vmul.f32 %v1914, %v1916
      %v1918 = vadd.f32 %v1914, %v1917
      %vm1919 = vweird.f32 %v1868
      %vm1920 = vweird.f32 %v1914
      %vm1921 = vmor %vm1919, %vm1920
      %v1922 = vsel %vm1921, %v1914, %v1918
      %v1923 = vand.u32 2147483647, %v1868
      %vm1924 = vcmp.eq.f32.partialorder %v1923, 8.507059e+37
      %v1925 = vand.u32 %v1868, 2147483648
      %v1926 = vor.u32 1.1754944e-38, %v1925
      %v1927 = vsel %vm1924, %v1926, %v1922
      %v1928 = vmul.f32 %v1849, %v1927
      %v1929 = vrcp.pop %v1871
      %v1930 = vmul.f32 %v1871, %v1929
      %v1931 = vsub.f32 1.0, %v1930
      %v1932 = vmul.f32 %v1929, %v1931
      %v1933 = vadd.f32 %v1929, %v1932
      %vm1934 = vweird.f32 %v1871
      %vm1935 = vweird.f32 %v1929
      %vm1936 = vmor %vm1934, %vm1935
      %v1937 = vsel %vm1936, %v1929, %v1933
      %v1938 = vand.u32 2147483647, %v1871
      %vm1939 = vcmp.eq.f32.partialorder %v1938, 8.507059e+37
      %v1940 = vand.u32 %v1871, 2147483648
      %v1941 = vor.u32 1.1754944e-38, %v1940
      %v1942 = vsel %vm1939, %v1941, %v1937
      %v1943 = vmul.f32 %v1851, %v1942
      %v1944 = vrcp.pop %v1874
      %v1945 = vmul.f32 %v1874, %v1944
      %v1946 = vsub.f32 1.0, %v1945
      %v1947 = vmul.f32 %v1944, %v1946
      %v1948 = vadd.f32 %v1944, %v1947
      %vm1949 = vweird.f32 %v1874
      %vm1950 = vweird.f32 %v1944
      %vm1951 = vmor %vm1949, %vm1950
      %v1952 = vsel %vm1951, %v1944, %v1948
      %v1953 = vand.u32 2147483647, %v1874
      %vm1954 = vcmp.eq.f32.partialorder %v1953, 8.507059e+37
      %v1955 = vand.u32 %v1874, 2147483648
      %v1956 = vor.u32 1.1754944e-38, %v1955
      %v1957 = vsel %vm1954, %v1956, %v1952
      %v1958 = vmul.f32 %v1853, %v1957
      %v1959 = vrcp.pop %v1877
      %v1960 = vmul.f32 %v1877, %v1959
      %v1961 = vsub.f32 1.0, %v1960
      %v1962 = vmul.f32 %v1959, %v1961
      %v1963 = vadd.f32 %v1959, %v1962
      %vm1964 = vweird.f32 %v1877
      %vm1965 = vweird.f32 %v1959
      %vm1966 = vmor %vm1964, %vm1965
      %v1967 = vsel %vm1966, %v1959, %v1963
      %v1968 = vand.u32 2147483647, %v1877
      %vm1969 = vcmp.eq.f32.partialorder %v1968, 8.507059e+37
      %v1970 = vand.u32 %v1877, 2147483648
      %v1971 = vor.u32 1.1754944e-38, %v1970
      %v1972 = vsel %vm1969, %v1971, %v1967
      %v1973 = vmul.f32 %v1855, %v1972
      %v1974 = vrcp.pop %v1880
      %v1975 = vmul.f32 %v1880, %v1974
      %v1976 = vsub.f32 1.0, %v1975
      %v1977 = vmul.f32 %v1974, %v1976
      %v1978 = vadd.f32 %v1974, %v1977
      %vm1979 = vweird.f32 %v1880
      %vm1980 = vweird.f32 %v1974
      %vm1981 = vmor %vm1979, %vm1980
      %v1982 = vsel %vm1981, %v1974, %v1978
      %v1983 = vand.u32 2147483647, %v1880
      %vm1984 = vcmp.eq.f32.partialorder %v1983, 8.507059e+37
      %v1985 = vand.u32 %v1880, 2147483648
      %v1986 = vor.u32 1.1754944e-38, %v1985
      %v1987 = vsel %vm1984, %v1986, %v1982
      %v1988 = vmul.f32 %v1857, %v1987
      %v1989 = vrcp.pop %v1883
      %v1990 = vmul.f32 %v1883, %v1989
      %v1991 = vsub.f32 1.0, %v1990
      %v1992 = vmul.f32 %v1989, %v1991
      %v1993 = vadd.f32 %v1989, %v1992
      %vm1994 = vweird.f32 %v1883
      %vm1995 = vweird.f32 %v1989
      %vm1996 = vmor %vm1994, %vm1995
      %v1997 = vsel %vm1996, %v1989, %v1993
      %v1998 = vand.u32 2147483647, %v1883
      %vm1999 = vcmp.eq.f32.partialorder %v1998, 8.507059e+37
      %v2000 = vand.u32 %v1883, 2147483648
      %v2001 = vor.u32 1.1754944e-38, %v2000
      %v2002 = vsel %vm1999, %v2001, %v1997
      %v2003 = vmul.f32 %v1859, %v2002
      %2004 = vrot.lane.b32.xlu0 %v572, 48
      %v2005 = vpop.permute.xlu0 %2004
      %2006 = vrot.lane.b32.xlu0 %v575, 48
      %v2007 = vpop.permute.xlu0 %2006
      %v2011 = vsel %vm768, %v1898, 0
      %v2014 = vsel %vm768, %v1913, 0
      %2016 = vmatpush.msra.mxu0 0.0
      %2017 = vmatpush.msra.mxu0 0.0
      %2018 = vmatpush.msra.mxu0 0.0
      %2019 = vmatpush.msra.mxu0 0.0
      %2020 = vmatpush.msra.mxu0 0.0
      %2021 = vmatpush.msra.mxu0 0.0
      %2022 = vmatpush.msra.mxu0 0.0
      %2023 = vmatpush.msra.mxu0 0.0
      %2024 = vmatpush.msra.mxu0 0.0
      %2025 = vmatpush.msra.mxu0 0.0
      %2026 = vmatpush.msra.mxu0 0.0
      %2027 = vmatpush.msra.mxu0 0.0
      %2028 = vmatpush.msra.mxu0 0.0
      %2029 = vmatpush.msra.mxu0 0.0
      %2030 = vmatpush.msra.mxu0 %v2007
      %2031 = vmatpush.msra.mxu0 %v2005
      %2032 = vmatmul.f32.gmra.mxu0 %v2011
      %v2033 = vpop.f32.mrf.mxu0
      %v2034 = vadd.f32 0.0, %v2033
      %2035 = vmatmul.f32.gmra.mxu0 %v2014
      %v2036 = vpop.f32.mrf.mxu0
      %v2037 = vadd.f32 0.0, %v2036
      %2038 = vdwg.mxu0
      %2039 = vrot.lane.b32.xlu0 %v578, 48
      %v2040 = vpop.permute.xlu0 %2039
      %2041 = vrot.lane.b32.xlu0 %v581, 48
      %v2042 = vpop.permute.xlu0 %2041
      %v2046 = vsel %vm768, %v1928, 0
      %v2049 = vsel %vm768, %v1943, 0
      %2051 = vmatpush.msra.mxu0 0.0
      %2052 = vmatpush.msra.mxu0 0.0
      %2053 = vmatpush.msra.mxu0 0.0
      %2054 = vmatpush.msra.mxu0 0.0
      %2055 = vmatpush.msra.mxu0 0.0
      %2056 = vmatpush.msra.mxu0 0.0
      %2057 = vmatpush.msra.mxu0 0.0
      %2058 = vmatpush.msra.mxu0 0.0
      %2059 = vmatpush.msra.mxu0 0.0
      %2060 = vmatpush.msra.mxu0 0.0
      %2061 = vmatpush.msra.mxu0 0.0
      %2062 = vmatpush.msra.mxu0 0.0
      %2063 = vmatpush.msra.mxu0 0.0
      %2064 = vmatpush.msra.mxu0 0.0
      %2065 = vmatpush.msra.mxu0 %v2042
      %2066 = vmatpush.msra.mxu0 %v2040
      %2067 = vmatmul.f32.gmra.mxu0 %v2046
      %v2068 = vpop.f32.mrf.mxu0
      %v2069 = vadd.f32 0.0, %v2068
      %2070 = vmatmul.f32.gmra.mxu0 %v2049
      %v2071 = vpop.f32.mrf.mxu0
      %v2072 = vadd.f32 0.0, %v2071
      %2073 = vdwg.mxu0
      %2074 = vrot.lane.b32.xlu0 %v584, 48
      %v2075 = vpop.permute.xlu0 %2074
      %2076 = vrot.lane.b32.xlu0 %v587, 48
      %v2077 = vpop.permute.xlu0 %2076
      %v2081 = vsel %vm768, %v1958, 0
      %v2084 = vsel %vm768, %v1973, 0
      %2086 = vmatpush.msra.mxu0 0.0
      %2087 = vmatpush.msra.mxu0 0.0
      %2088 = vmatpush.msra.mxu0 0.0
      %2089 = vmatpush.msra.mxu0 0.0
      %2090 = vmatpush.msra.mxu0 0.0
      %2091 = vmatpush.msra.mxu0 0.0
      %2092 = vmatpush.msra.mxu0 0.0
      %2093 = vmatpush.msra.mxu0 0.0
      %2094 = vmatpush.msra.mxu0 0.0
      %2095 = vmatpush.msra.mxu0 0.0
      %2096 = vmatpush.msra.mxu0 0.0
      %2097 = vmatpush.msra.mxu0 0.0
      %2098 = vmatpush.msra.mxu0 0.0
      %2099 = vmatpush.msra.mxu0 0.0
      %2100 = vmatpush.msra.mxu0 %v2077
      %2101 = vmatpush.msra.mxu0 %v2075
      %2102 = vmatmul.f32.gmra.mxu0 %v2081
      %v2103 = vpop.f32.mrf.mxu0
      %v2104 = vadd.f32 0.0, %v2103
      %2105 = vmatmul.f32.gmra.mxu0 %v2084
      %v2106 = vpop.f32.mrf.mxu0
      %v2107 = vadd.f32 0.0, %v2106
      %2108 = vdwg.mxu0
      %2109 = vrot.lane.b32.xlu0 %v590, 48
      %v2110 = vpop.permute.xlu0 %2109
      %2111 = vrot.lane.b32.xlu0 %v593, 48
      %v2112 = vpop.permute.xlu0 %2111
      %v2116 = vsel %vm768, %v1988, 0
      %v2119 = vsel %vm768, %v2003, 0
      %2121 = vmatpush.msra.mxu0 0.0
      %2122 = vmatpush.msra.mxu0 0.0
      %2123 = vmatpush.msra.mxu0 0.0
      %2124 = vmatpush.msra.mxu0 0.0
      %2125 = vmatpush.msra.mxu0 0.0
      %2126 = vmatpush.msra.mxu0 0.0
      %2127 = vmatpush.msra.mxu0 0.0
      %2128 = vmatpush.msra.mxu0 0.0
      %2129 = vmatpush.msra.mxu0 0.0
      %2130 = vmatpush.msra.mxu0 0.0
      %2131 = vmatpush.msra.mxu0 0.0
      %2132 = vmatpush.msra.mxu0 0.0
      %2133 = vmatpush.msra.mxu0 0.0
      %2134 = vmatpush.msra.mxu0 0.0
      %2135 = vmatpush.msra.mxu0 %v2112
      %2136 = vmatpush.msra.mxu0 %v2110
      %2137 = vmatmul.f32.gmra.mxu0 %v2116
      %v2138 = vpop.f32.mrf.mxu0
      %v2139 = vadd.f32 0.0, %v2138
      %2140 = vmatmul.f32.gmra.mxu0 %v2119
      %v2141 = vpop.f32.mrf.mxu0
      %v2142 = vadd.f32 0.0, %v2141
      %2143 = vdwg.mxu0
      %2152 = vrot.lane.b32.xlu0 %v2034, 16
      %v2153 = vpop.permute.xlu0 %2152
      %2154 = vrot.lane.b32.xlu0 %v2037, 16
      %v2155 = vpop.permute.xlu0 %2154
      %2156 = vrot.lane.b32.xlu0 %v2069, 16
      %v2157 = vpop.permute.xlu0 %2156
      %2158 = vrot.lane.b32.xlu0 %v2072, 16
      %v2159 = vpop.permute.xlu0 %2158
      %2160 = vrot.lane.b32.xlu0 %v2104, 16
      %v2161 = vpop.permute.xlu0 %2160
      %2162 = vrot.lane.b32.xlu0 %v2107, 16
      %v2163 = vpop.permute.xlu0 %2162
      %2164 = vrot.lane.b32.xlu0 %v2139, 16
      %v2165 = vpop.permute.xlu0 %2164
      %2166 = vrot.lane.b32.xlu0 %v2142, 16
      %v2167 = vpop.permute.xlu0 %2166
      %vm2176 = vcmask 195712
      %2177 = vst.msk [vmem:[#allocation2] sm:$0xff] %vm2176, %v2153
      %2178 = vst.msk [vmem:[#allocation2 + $0x8] sm:$0xff] %vm2176, %v2155
      %2179 = vst.msk [vmem:[#allocation2 + $0x10] sm:$0xff] %vm2176, %v2157
      %2180 = vst.msk [vmem:[#allocation2 + $0x18] sm:$0xff] %vm2176, %v2159
      %2181 = vst.msk [vmem:[#allocation2 + $0x20] sm:$0xff] %vm2176, %v2161
      %2182 = vst.msk [vmem:[#allocation2 + $0x28] sm:$0xff] %vm2176, %v2163
      %2183 = vst.msk [vmem:[#allocation2 + $0x30] sm:$0xff] %vm2176, %v2165
      %2184 = vst.msk [vmem:[#allocation2 + $0x38] sm:$0xff] %vm2176, %v2167
      %s2185 = scalar_lea.vmem %s2, 192
      %v2186 = vld [vmem:[%s2185] sm:$0xff]
      %v2187 = vld [vmem:[%s2185 + $0x8] sm:$0xff]
      %v2188 = vld [vmem:[%s2185 + $0x10] sm:$0xff]
      %v2189 = vld [vmem:[%s2185 + $0x18] sm:$0xff]
      %v2190 = vld [vmem:[%s2185 + $0x20] sm:$0xff]
      %v2191 = vld [vmem:[%s2185 + $0x28] sm:$0xff]
      %v2192 = vld [vmem:[%s2185 + $0x30] sm:$0xff]
      %v2193 = vld [vmem:[%s2185 + $0x38] sm:$0xff]
      %2194 = vrot.lane.b32.xlu0 %v595, 104
      %v2195 = vpop.permute.xlu0 %2194
      %2196 = vrot.lane.b32.xlu0 %v596, 104
      %v2197 = vpop.permute.xlu0 %2196
      %2198 = vrot.lane.b32.xlu0 %v572, 72
      %v2199 = vpop.permute.xlu0 %2198
      %2200 = vrot.lane.b32.xlu0 %v575, 72
      %v2201 = vpop.permute.xlu0 %2200
      %v2202 = vsel %vm617, %v2195, 0
      %v2204 = vsel %vm617, %v2197, 0
      %v2206 = vsel %vm617, %v2199, 0
      %v2208 = vsel %vm617, %v2201, 0
      %2210 = vmatpush.xpose.msra.mxu0 0.0
      %2211 = vmatpush.xpose.msra.mxu0 0.0
      %2212 = vmatpush.xpose.msra.mxu0 0.0
      %2213 = vmatpush.xpose.msra.mxu0 0.0
      %2214 = vmatpush.xpose.msra.mxu0 0.0
      %2215 = vmatpush.xpose.msra.mxu0 0.0
      %2216 = vmatpush.xpose.msra.mxu0 0.0
      %2217 = vmatpush.xpose.msra.mxu0 0.0
      %2218 = vmatpush.xpose.msra.mxu0 0.0
      %2219 = vmatpush.xpose.msra.mxu0 0.0
      %2220 = vmatpush.xpose.msra.mxu0 0.0
      %2221 = vmatpush.xpose.msra.mxu0 0.0
      %2222 = vmatpush.xpose.msra.mxu0 0.0
      %2223 = vmatpush.xpose.msra.mxu0 0.0
      %2224 = vmatpush.xpose.msra.mxu0 %v2208
      %2225 = vmatpush.xpose.msra.mxu0 %v2206
      %2226 = vmatmul.f32.gmra.mxu0 %v2202
      %v2227 = vpop.f32.mrf.mxu0
      %v2228 = vadd.f32 %v2186, %v2227
      %2229 = vmatmul.f32.gmra.mxu0 %v2204
      %v2230 = vpop.f32.mrf.mxu0
      %v2231 = vadd.f32 %v2187, %v2230
      %2232 = vdwg.mxu0
      %2233 = vrot.lane.b32.xlu0 %v597, 104
      %v2234 = vpop.permute.xlu0 %2233
      %2235 = vrot.lane.b32.xlu0 %v598, 104
      %v2236 = vpop.permute.xlu0 %2235
      %2237 = vrot.lane.b32.xlu0 %v578, 72
      %v2238 = vpop.permute.xlu0 %2237
      %2239 = vrot.lane.b32.xlu0 %v581, 72
      %v2240 = vpop.permute.xlu0 %2239
      %v2241 = vsel %vm617, %v2234, 0
      %v2243 = vsel %vm617, %v2236, 0
      %v2245 = vsel %vm617, %v2238, 0
      %v2247 = vsel %vm617, %v2240, 0
      %2249 = vmatpush.xpose.msra.mxu0 0.0
      %2250 = vmatpush.xpose.msra.mxu0 0.0
      %2251 = vmatpush.xpose.msra.mxu0 0.0
      %2252 = vmatpush.xpose.msra.mxu0 0.0
      %2253 = vmatpush.xpose.msra.mxu0 0.0
      %2254 = vmatpush.xpose.msra.mxu0 0.0
      %2255 = vmatpush.xpose.msra.mxu0 0.0
      %2256 = vmatpush.xpose.msra.mxu0 0.0
      %2257 = vmatpush.xpose.msra.mxu0 0.0
      %2258 = vmatpush.xpose.msra.mxu0 0.0
      %2259 = vmatpush.xpose.msra.mxu0 0.0
      %2260 = vmatpush.xpose.msra.mxu0 0.0
      %2261 = vmatpush.xpose.msra.mxu0 0.0
      %2262 = vmatpush.xpose.msra.mxu0 0.0
      %2263 = vmatpush.xpose.msra.mxu0 %v2247
      %2264 = vmatpush.xpose.msra.mxu0 %v2245
      %2265 = vmatmul.f32.gmra.mxu0 %v2241
      %v2266 = vpop.f32.mrf.mxu0
      %v2267 = vadd.f32 %v2188, %v2266
      %2268 = vmatmul.f32.gmra.mxu0 %v2243
      %v2269 = vpop.f32.mrf.mxu0
      %v2270 = vadd.f32 %v2189, %v2269
      %2271 = vdwg.mxu0
      %2272 = vrot.lane.b32.xlu0 %v599, 104
      %v2273 = vpop.permute.xlu0 %2272
      %2274 = vrot.lane.b32.xlu0 %v600, 104
      %v2275 = vpop.permute.xlu0 %2274
      %2276 = vrot.lane.b32.xlu0 %v584, 72
      %v2277 = vpop.permute.xlu0 %2276
      %2278 = vrot.lane.b32.xlu0 %v587, 72
      %v2279 = vpop.permute.xlu0 %2278
      %v2280 = vsel %vm617, %v2273, 0
      %v2282 = vsel %vm617, %v2275, 0
      %v2284 = vsel %vm617, %v2277, 0
      %v2286 = vsel %vm617, %v2279, 0
      %2288 = vmatpush.xpose.msra.mxu0 0.0
      %2289 = vmatpush.xpose.msra.mxu0 0.0
      %2290 = vmatpush.xpose.msra.mxu0 0.0
      %2291 = vmatpush.xpose.msra.mxu0 0.0
      %2292 = vmatpush.xpose.msra.mxu0 0.0
      %2293 = vmatpush.xpose.msra.mxu0 0.0
      %2294 = vmatpush.xpose.msra.mxu0 0.0
      %2295 = vmatpush.xpose.msra.mxu0 0.0
      %2296 = vmatpush.xpose.msra.mxu0 0.0
      %2297 = vmatpush.xpose.msra.mxu0 0.0
      %2298 = vmatpush.xpose.msra.mxu0 0.0
      %2299 = vmatpush.xpose.msra.mxu0 0.0
      %2300 = vmatpush.xpose.msra.mxu0 0.0
      %2301 = vmatpush.xpose.msra.mxu0 0.0
      %2302 = vmatpush.xpose.msra.mxu0 %v2286
      %2303 = vmatpush.xpose.msra.mxu0 %v2284
      %2304 = vmatmul.f32.gmra.mxu0 %v2280
      %v2305 = vpop.f32.mrf.mxu0
      %v2306 = vadd.f32 %v2190, %v2305
      %2307 = vmatmul.f32.gmra.mxu0 %v2282
      %v2308 = vpop.f32.mrf.mxu0
      %v2309 = vadd.f32 %v2191, %v2308
      %2310 = vdwg.mxu0
      %2311 = vrot.lane.b32.xlu0 %v601, 104
      %v2312 = vpop.permute.xlu0 %2311
      %2313 = vrot.lane.b32.xlu0 %v602, 104
      %v2314 = vpop.permute.xlu0 %2313
      %2315 = vrot.lane.b32.xlu0 %v590, 72
      %v2316 = vpop.permute.xlu0 %2315
      %2317 = vrot.lane.b32.xlu0 %v593, 72
      %v2318 = vpop.permute.xlu0 %2317
      %v2319 = vsel %vm617, %v2312, 0
      %v2321 = vsel %vm617, %v2314, 0
      %v2323 = vsel %vm617, %v2316, 0
      %v2325 = vsel %vm617, %v2318, 0
      %2327 = vmatpush.xpose.msra.mxu0 0.0
      %2328 = vmatpush.xpose.msra.mxu0 0.0
      %2329 = vmatpush.xpose.msra.mxu0 0.0
      %2330 = vmatpush.xpose.msra.mxu0 0.0
      %2331 = vmatpush.xpose.msra.mxu0 0.0
      %2332 = vmatpush.xpose.msra.mxu0 0.0
      %2333 = vmatpush.xpose.msra.mxu0 0.0
      %2334 = vmatpush.xpose.msra.mxu0 0.0
      %2335 = vmatpush.xpose.msra.mxu0 0.0
      %2336 = vmatpush.xpose.msra.mxu0 0.0
      %2337 = vmatpush.xpose.msra.mxu0 0.0
      %2338 = vmatpush.xpose.msra.mxu0 0.0
      %2339 = vmatpush.xpose.msra.mxu0 0.0
      %2340 = vmatpush.xpose.msra.mxu0 0.0
      %2341 = vmatpush.xpose.msra.mxu0 %v2325
      %2342 = vmatpush.xpose.msra.mxu0 %v2323
      %2343 = vmatmul.f32.gmra.mxu0 %v2319
      %v2344 = vpop.f32.mrf.mxu0
      %v2345 = vadd.f32 %v2192, %v2344
      %2346 = vmatmul.f32.gmra.mxu0 %v2321
      %v2347 = vpop.f32.mrf.mxu0
      %v2348 = vadd.f32 %v2193, %v2347
      %2349 = vdwg.mxu0
      %v2350 = vsel %vm768, %v2228, -inf
      %2351 = vmax.xlane.f32.xlu0 %v2350
      %v2352 = vpop.xlane.xlu0 %2351
      %v2353 = vsel %vm768, %v2231, -inf
      %2354 = vmax.xlane.f32.xlu0 %v2353
      %v2355 = vpop.xlane.xlu0 %2354
      %v2356 = vsel %vm768, %v2267, -inf
      %2357 = vmax.xlane.f32.xlu0 %v2356
      %v2358 = vpop.xlane.xlu0 %2357
      %v2359 = vsel %vm768, %v2270, -inf
      %2360 = vmax.xlane.f32.xlu0 %v2359
      %v2361 = vpop.xlane.xlu0 %2360
      %v2362 = vsel %vm768, %v2306, -inf
      %2363 = vmax.xlane.f32.xlu0 %v2362
      %v2364 = vpop.xlane.xlu0 %2363
      %v2365 = vsel %vm768, %v2309, -inf
      %2366 = vmax.xlane.f32.xlu0 %v2365
      %v2367 = vpop.xlane.xlu0 %2366
      %v2368 = vsel %vm768, %v2345, -inf
      %2369 = vmax.xlane.f32.xlu0 %v2368
      %v2370 = vpop.xlane.xlu0 %2369
      %v2371 = vsel %vm768, %v2348, -inf
      %2372 = vmax.xlane.f32.xlu0 %v2371
      %v2373 = vpop.xlane.xlu0 %2372
      %v2374 = vsub.f32 %v2228, %v2352
      %v2375 = vsub.f32 %v2231, %v2355
      %v2376 = vsub.f32 %v2267, %v2358
      %v2377 = vsub.f32 %v2270, %v2361
      %v2378 = vsub.f32 %v2306, %v2364
      %v2379 = vsub.f32 %v2309, %v2367
      %v2380 = vsub.f32 %v2345, %v2370
      %v2381 = vsub.f32 %v2348, %v2373
      %v2382 = vmul.f32 %v2374, 1.442695
      %v2383 = vpow.pop %v2382
      %v2384 = vmul.f32 %v2375, 1.442695
      %v2385 = vpow.pop %v2384
      %v2386 = vmul.f32 %v2376, 1.442695
      %v2387 = vpow.pop %v2386
      %v2388 = vmul.f32 %v2377, 1.442695
      %v2389 = vpow.pop %v2388
      %v2390 = vmul.f32 %v2378, 1.442695
      %v2391 = vpow.pop %v2390
      %v2392 = vmul.f32 %v2379, 1.442695
      %v2393 = vpow.pop %v2392
      %v2394 = vmul.f32 %v2380, 1.442695
      %v2395 = vpow.pop %v2394
      %v2396 = vmul.f32 %v2381, 1.442695
      %v2397 = vpow.pop %v2396
      %v2398 = vsel %vm768, %v2383, 0.0
      %2399 = vadd.xlane.f32.xlu0 %v2398
      %v2400 = vpop.xlane.xlu0 %2399
      %v2401 = vsel %vm768, %v2385, 0.0
      %2402 = vadd.xlane.f32.xlu0 %v2401
      %v2403 = vpop.xlane.xlu0 %2402
      %v2404 = vsel %vm768, %v2387, 0.0
      %2405 = vadd.xlane.f32.xlu0 %v2404
      %v2406 = vpop.xlane.xlu0 %2405
      %v2407 = vsel %vm768, %v2389, 0.0
      %2408 = vadd.xlane.f32.xlu0 %v2407
      %v2409 = vpop.xlane.xlu0 %2408
      %v2410 = vsel %vm768, %v2391, 0.0
      %2411 = vadd.xlane.f32.xlu0 %v2410
      %v2412 = vpop.xlane.xlu0 %2411
      %v2413 = vsel %vm768, %v2393, 0.0
      %2414 = vadd.xlane.f32.xlu0 %v2413
      %v2415 = vpop.xlane.xlu0 %2414
      %v2416 = vsel %vm768, %v2395, 0.0
      %2417 = vadd.xlane.f32.xlu0 %v2416
      %v2418 = vpop.xlane.xlu0 %2417
      %v2419 = vsel %vm768, %v2397, 0.0
      %2420 = vadd.xlane.f32.xlu0 %v2419
      %v2421 = vpop.xlane.xlu0 %2420
      %v2422 = vrcp.pop %v2400
      %v2423 = vmul.f32 %v2400, %v2422
      %v2424 = vsub.f32 1.0, %v2423
      %v2425 = vmul.f32 %v2422, %v2424
      %v2426 = vadd.f32 %v2422, %v2425
      %vm2427 = vweird.f32 %v2400
      %vm2428 = vweird.f32 %v2422
      %vm2429 = vmor %vm2427, %vm2428
      %v2430 = vsel %vm2429, %v2422, %v2426
      %v2431 = vand.u32 2147483647, %v2400
      %vm2432 = vcmp.eq.f32.partialorder %v2431, 8.507059e+37
      %v2433 = vand.u32 %v2400, 2147483648
      %v2434 = vor.u32 1.1754944e-38, %v2433
      %v2435 = vsel %vm2432, %v2434, %v2430
      %v2436 = vmul.f32 %v2383, %v2435
      %v2437 = vrcp.pop %v2403
      %v2438 = vmul.f32 %v2403, %v2437
      %v2439 = vsub.f32 1.0, %v2438
      %v2440 = vmul.f32 %v2437, %v2439
      %v2441 = vadd.f32 %v2437, %v2440
      %vm2442 = vweird.f32 %v2403
      %vm2443 = vweird.f32 %v2437
      %vm2444 = vmor %vm2442, %vm2443
      %v2445 = vsel %vm2444, %v2437, %v2441
      %v2446 = vand.u32 2147483647, %v2403
      %vm2447 = vcmp.eq.f32.partialorder %v2446, 8.507059e+37
      %v2448 = vand.u32 %v2403, 2147483648
      %v2449 = vor.u32 1.1754944e-38, %v2448
      %v2450 = vsel %vm2447, %v2449, %v2445
      %v2451 = vmul.f32 %v2385, %v2450
      %v2452 = vrcp.pop %v2406
      %v2453 = vmul.f32 %v2406, %v2452
      %v2454 = vsub.f32 1.0, %v2453
      %v2455 = vmul.f32 %v2452, %v2454
      %v2456 = vadd.f32 %v2452, %v2455
      %vm2457 = vweird.f32 %v2406
      %vm2458 = vweird.f32 %v2452
      %vm2459 = vmor %vm2457, %vm2458
      %v2460 = vsel %vm2459, %v2452, %v2456
      %v2461 = vand.u32 2147483647, %v2406
      %vm2462 = vcmp.eq.f32.partialorder %v2461, 8.507059e+37
      %v2463 = vand.u32 %v2406, 2147483648
      %v2464 = vor.u32 1.1754944e-38, %v2463
      %v2465 = vsel %vm2462, %v2464, %v2460
      %v2466 = vmul.f32 %v2387, %v2465
      %v2467 = vrcp.pop %v2409
      %v2468 = vmul.f32 %v2409, %v2467
      %v2469 = vsub.f32 1.0, %v2468
      %v2470 = vmul.f32 %v2467, %v2469
      %v2471 = vadd.f32 %v2467, %v2470
      %vm2472 = vweird.f32 %v2409
      %vm2473 = vweird.f32 %v2467
      %vm2474 = vmor %vm2472, %vm2473
      %v2475 = vsel %vm2474, %v2467, %v2471
      %v2476 = vand.u32 2147483647, %v2409
      %vm2477 = vcmp.eq.f32.partialorder %v2476, 8.507059e+37
      %v2478 = vand.u32 %v2409, 2147483648
      %v2479 = vor.u32 1.1754944e-38, %v2478
      %v2480 = vsel %vm2477, %v2479, %v2475
      %v2481 = vmul.f32 %v2389, %v2480
      %v2482 = vrcp.pop %v2412
      %v2483 = vmul.f32 %v2412, %v2482
      %v2484 = vsub.f32 1.0, %v2483
      %v2485 = vmul.f32 %v2482, %v2484
      %v2486 = vadd.f32 %v2482, %v2485
      %vm2487 = vweird.f32 %v2412
      %vm2488 = vweird.f32 %v2482
      %vm2489 = vmor %vm2487, %vm2488
      %v2490 = vsel %vm2489, %v2482, %v2486
      %v2491 = vand.u32 2147483647, %v2412
      %vm2492 = vcmp.eq.f32.partialorder %v2491, 8.507059e+37
      %v2493 = vand.u32 %v2412, 2147483648
      %v2494 = vor.u32 1.1754944e-38, %v2493
      %v2495 = vsel %vm2492, %v2494, %v2490
      %v2496 = vmul.f32 %v2391, %v2495
      %v2497 = vrcp.pop %v2415
      %v2498 = vmul.f32 %v2415, %v2497
      %v2499 = vsub.f32 1.0, %v2498
      %v2500 = vmul.f32 %v2497, %v2499
      %v2501 = vadd.f32 %v2497, %v2500
      %vm2502 = vweird.f32 %v2415
      %vm2503 = vweird.f32 %v2497
      %vm2504 = vmor %vm2502, %vm2503
      %v2505 = vsel %vm2504, %v2497, %v2501
      %v2506 = vand.u32 2147483647, %v2415
      %vm2507 = vcmp.eq.f32.partialorder %v2506, 8.507059e+37
      %v2508 = vand.u32 %v2415, 2147483648
      %v2509 = vor.u32 1.1754944e-38, %v2508
      %v2510 = vsel %vm2507, %v2509, %v2505
      %v2511 = vmul.f32 %v2393, %v2510
      %v2512 = vrcp.pop %v2418
      %v2513 = vmul.f32 %v2418, %v2512
      %v2514 = vsub.f32 1.0, %v2513
      %v2515 = vmul.f32 %v2512, %v2514
      %v2516 = vadd.f32 %v2512, %v2515
      %vm2517 = vweird.f32 %v2418
      %vm2518 = vweird.f32 %v2512
      %vm2519 = vmor %vm2517, %vm2518
      %v2520 = vsel %vm2519, %v2512, %v2516
      %v2521 = vand.u32 2147483647, %v2418
      %vm2522 = vcmp.eq.f32.partialorder %v2521, 8.507059e+37
      %v2523 = vand.u32 %v2418, 2147483648
      %v2524 = vor.u32 1.1754944e-38, %v2523
      %v2525 = vsel %vm2522, %v2524, %v2520
      %v2526 = vmul.f32 %v2395, %v2525
      %v2527 = vrcp.pop %v2421
      %v2528 = vmul.f32 %v2421, %v2527
      %v2529 = vsub.f32 1.0, %v2528
      %v2530 = vmul.f32 %v2527, %v2529
      %v2531 = vadd.f32 %v2527, %v2530
      %vm2532 = vweird.f32 %v2421
      %vm2533 = vweird.f32 %v2527
      %vm2534 = vmor %vm2532, %vm2533
      %v2535 = vsel %vm2534, %v2527, %v2531
      %v2536 = vand.u32 2147483647, %v2421
      %vm2537 = vcmp.eq.f32.partialorder %v2536, 8.507059e+37
      %v2538 = vand.u32 %v2421, 2147483648
      %v2539 = vor.u32 1.1754944e-38, %v2538
      %v2540 = vsel %vm2537, %v2539, %v2535
      %v2541 = vmul.f32 %v2397, %v2540
      %2542 = vrot.lane.b32.xlu0 %v572, 40
      %v2543 = vpop.permute.xlu0 %2542
      %2544 = vrot.lane.b32.xlu0 %v575, 40
      %v2545 = vpop.permute.xlu0 %2544
      %v2549 = vsel %vm768, %v2436, 0
      %v2552 = vsel %vm768, %v2451, 0
      %2554 = vmatpush.msra.mxu0 0.0
      %2555 = vmatpush.msra.mxu0 0.0
      %2556 = vmatpush.msra.mxu0 0.0
      %2557 = vmatpush.msra.mxu0 0.0
      %2558 = vmatpush.msra.mxu0 0.0
      %2559 = vmatpush.msra.mxu0 0.0
      %2560 = vmatpush.msra.mxu0 0.0
      %2561 = vmatpush.msra.mxu0 0.0
      %2562 = vmatpush.msra.mxu0 0.0
      %2563 = vmatpush.msra.mxu0 0.0
      %2564 = vmatpush.msra.mxu0 0.0
      %2565 = vmatpush.msra.mxu0 0.0
      %2566 = vmatpush.msra.mxu0 0.0
      %2567 = vmatpush.msra.mxu0 0.0
      %2568 = vmatpush.msra.mxu0 %v2545
      %2569 = vmatpush.msra.mxu0 %v2543
      %2570 = vmatmul.f32.gmra.mxu0 %v2549
      %v2571 = vpop.f32.mrf.mxu0
      %v2572 = vadd.f32 0.0, %v2571
      %2573 = vmatmul.f32.gmra.mxu0 %v2552
      %v2574 = vpop.f32.mrf.mxu0
      %v2575 = vadd.f32 0.0, %v2574
      %2576 = vdwg.mxu0
      %2577 = vrot.lane.b32.xlu0 %v578, 40
      %v2578 = vpop.permute.xlu0 %2577
      %2579 = vrot.lane.b32.xlu0 %v581, 40
      %v2580 = vpop.permute.xlu0 %2579
      %v2584 = vsel %vm768, %v2466, 0
      %v2587 = vsel %vm768, %v2481, 0
      %2589 = vmatpush.msra.mxu0 0.0
      %2590 = vmatpush.msra.mxu0 0.0
      %2591 = vmatpush.msra.mxu0 0.0
      %2592 = vmatpush.msra.mxu0 0.0
      %2593 = vmatpush.msra.mxu0 0.0
      %2594 = vmatpush.msra.mxu0 0.0
      %2595 = vmatpush.msra.mxu0 0.0
      %2596 = vmatpush.msra.mxu0 0.0
      %2597 = vmatpush.msra.mxu0 0.0
      %2598 = vmatpush.msra.mxu0 0.0
      %2599 = vmatpush.msra.mxu0 0.0
      %2600 = vmatpush.msra.mxu0 0.0
      %2601 = vmatpush.msra.mxu0 0.0
      %2602 = vmatpush.msra.mxu0 0.0
      %2603 = vmatpush.msra.mxu0 %v2580
      %2604 = vmatpush.msra.mxu0 %v2578
      %2605 = vmatmul.f32.gmra.mxu0 %v2584
      %v2606 = vpop.f32.mrf.mxu0
      %v2607 = vadd.f32 0.0, %v2606
      %2608 = vmatmul.f32.gmra.mxu0 %v2587
      %v2609 = vpop.f32.mrf.mxu0
      %v2610 = vadd.f32 0.0, %v2609
      %2611 = vdwg.mxu0
      %2612 = vrot.lane.b32.xlu0 %v584, 40
      %v2613 = vpop.permute.xlu0 %2612
      %2614 = vrot.lane.b32.xlu0 %v587, 40
      %v2615 = vpop.permute.xlu0 %2614
      %v2619 = vsel %vm768, %v2496, 0
      %v2622 = vsel %vm768, %v2511, 0
      %2624 = vmatpush.msra.mxu0 0.0
      %2625 = vmatpush.msra.mxu0 0.0
      %2626 = vmatpush.msra.mxu0 0.0
      %2627 = vmatpush.msra.mxu0 0.0
      %2628 = vmatpush.msra.mxu0 0.0
      %2629 = vmatpush.msra.mxu0 0.0
      %2630 = vmatpush.msra.mxu0 0.0
      %2631 = vmatpush.msra.mxu0 0.0
      %2632 = vmatpush.msra.mxu0 0.0
      %2633 = vmatpush.msra.mxu0 0.0
      %2634 = vmatpush.msra.mxu0 0.0
      %2635 = vmatpush.msra.mxu0 0.0
      %2636 = vmatpush.msra.mxu0 0.0
      %2637 = vmatpush.msra.mxu0 0.0
      %2638 = vmatpush.msra.mxu0 %v2615
      %2639 = vmatpush.msra.mxu0 %v2613
      %2640 = vmatmul.f32.gmra.mxu0 %v2619
      %v2641 = vpop.f32.mrf.mxu0
      %v2642 = vadd.f32 0.0, %v2641
      %2643 = vmatmul.f32.gmra.mxu0 %v2622
      %v2644 = vpop.f32.mrf.mxu0
      %v2645 = vadd.f32 0.0, %v2644
      %2646 = vdwg.mxu0
      %2647 = vrot.lane.b32.xlu0 %v590, 40
      %v2648 = vpop.permute.xlu0 %2647
      %2649 = vrot.lane.b32.xlu0 %v593, 40
      %v2650 = vpop.permute.xlu0 %2649
      %v2654 = vsel %vm768, %v2526, 0
      %v2657 = vsel %vm768, %v2541, 0
      %2659 = vmatpush.msra.mxu0 0.0
      %2660 = vmatpush.msra.mxu0 0.0
      %2661 = vmatpush.msra.mxu0 0.0
      %2662 = vmatpush.msra.mxu0 0.0
      %2663 = vmatpush.msra.mxu0 0.0
      %2664 = vmatpush.msra.mxu0 0.0
      %2665 = vmatpush.msra.mxu0 0.0
      %2666 = vmatpush.msra.mxu0 0.0
      %2667 = vmatpush.msra.mxu0 0.0
      %2668 = vmatpush.msra.mxu0 0.0
      %2669 = vmatpush.msra.mxu0 0.0
      %2670 = vmatpush.msra.mxu0 0.0
      %2671 = vmatpush.msra.mxu0 0.0
      %2672 = vmatpush.msra.mxu0 0.0
      %2673 = vmatpush.msra.mxu0 %v2650
      %2674 = vmatpush.msra.mxu0 %v2648
      %2675 = vmatmul.f32.gmra.mxu0 %v2654
      %v2676 = vpop.f32.mrf.mxu0
      %v2677 = vadd.f32 0.0, %v2676
      %2678 = vmatmul.f32.gmra.mxu0 %v2657
      %v2679 = vpop.f32.mrf.mxu0
      %v2680 = vadd.f32 0.0, %v2679
      %2681 = vdwg.mxu0
      %2690 = vrot.lane.b32.xlu0 %v2572, 24
      %v2691 = vpop.permute.xlu0 %2690
      %2692 = vrot.lane.b32.xlu0 %v2575, 24
      %v2693 = vpop.permute.xlu0 %2692
      %2694 = vrot.lane.b32.xlu0 %v2607, 24
      %v2695 = vpop.permute.xlu0 %2694
      %2696 = vrot.lane.b32.xlu0 %v2610, 24
      %v2697 = vpop.permute.xlu0 %2696
      %2698 = vrot.lane.b32.xlu0 %v2642, 24
      %v2699 = vpop.permute.xlu0 %2698
      %2700 = vrot.lane.b32.xlu0 %v2645, 24
      %v2701 = vpop.permute.xlu0 %2700
      %2702 = vrot.lane.b32.xlu0 %v2677, 24
      %v2703 = vpop.permute.xlu0 %2702
      %2704 = vrot.lane.b32.xlu0 %v2680, 24
      %v2705 = vpop.permute.xlu0 %2704
      %vm2714 = vcmask 261312
      %2715 = vst.msk [vmem:[#allocation2] sm:$0xff] %vm2714, %v2691
      %2716 = vst.msk [vmem:[#allocation2 + $0x8] sm:$0xff] %vm2714, %v2693
      %2717 = vst.msk [vmem:[#allocation2 + $0x10] sm:$0xff] %vm2714, %v2695
      %2718 = vst.msk [vmem:[#allocation2 + $0x18] sm:$0xff] %vm2714, %v2697
      %2719 = vst.msk [vmem:[#allocation2 + $0x20] sm:$0xff] %vm2714, %v2699
      %2720 = vst.msk [vmem:[#allocation2 + $0x28] sm:$0xff] %vm2714, %v2701
      %2721 = vst.msk [vmem:[#allocation2 + $0x30] sm:$0xff] %vm2714, %v2703
      %2722 = vst.msk [vmem:[#allocation2 + $0x38] sm:$0xff] %vm2714, %v2705
      %v2723 = vld [vmem:[#allocation2] sm:$0xff]
      %v2724 = vld [vmem:[#allocation2 + $0x8] sm:$0xff]
      %v2725 = vld [vmem:[#allocation2 + $0x10] sm:$0xff]
      %v2726 = vld [vmem:[#allocation2 + $0x18] sm:$0xff]
      %v2727 = vld [vmem:[#allocation2 + $0x20] sm:$0xff]
      %v2728 = vld [vmem:[#allocation2 + $0x28] sm:$0xff]
      %v2729 = vld [vmem:[#allocation2 + $0x30] sm:$0xff]
      %v2730 = vld [vmem:[#allocation2 + $0x38] sm:$0xff]
      %v2731 = vld [vmem:[%s5] sm:$0xff]
      %v2732 = vld [vmem:[%s5 + $0x8] sm:$0xff]
      %v2733 = vld [vmem:[%s5 + $0x10] sm:$0xff]
      %v2734 = vld [vmem:[%s5 + $0x18] sm:$0xff]
      %v2735 = vperm.slane %v322, 3
      %v2737 = vsel %vm323, %v2723, 0
      %v2740 = vsel %vm323, %v2724, 0
      %v2743 = vsel %vm323, %v2725, 0
      %v2746 = vsel %vm323, %v2726, 0
      %v2749 = vsel %vm323, %v2727, 0
      %v2752 = vsel %vm323, %v2728, 0
      %v2755 = vsel %vm323, %v2729, 0
      %v2758 = vsel %vm323, %v2730, 0
      %2760 = vmatpush.msra.mxu0 0.0
      %2761 = vmatpush.msra.mxu0 0.0
      %2762 = vmatpush.msra.mxu0 0.0
      %2763 = vmatpush.msra.mxu0 0.0
      %2764 = vmatpush.msra.mxu0 0.0
      %2765 = vmatpush.msra.mxu0 0.0
      %2766 = vmatpush.msra.mxu0 0.0
      %2767 = vmatpush.msra.mxu0 0.0
      %2768 = vmatpush.msra.mxu0 0.0
      %2769 = vmatpush.msra.mxu0 0.0
      %2770 = vmatpush.msra.mxu0 0.0
      %2771 = vmatpush.msra.mxu0 0.0
      %2772 = vmatpush.msra.mxu0 %v2734
      %2773 = vmatpush.msra.mxu0 %v2733
      %2774 = vmatpush.msra.mxu0 %v2732
      %2775 = vmatpush.msra.mxu0 %v2731
      %2776 = vmatmul.f32.gmra.mxu0 %v2737
      %v2777 = vpop.f32.mrf.mxu0
      %v2778 = vadd.f32 %v2735, %v2777
      %2779 = vmatmul.f32.gmra.mxu0 %v2740
      %v2780 = vpop.f32.mrf.mxu0
      %v2781 = vadd.f32 %v2735, %v2780
      %2782 = vmatmul.f32.gmra.mxu0 %v2743
      %v2783 = vpop.f32.mrf.mxu0
      %v2784 = vadd.f32 %v2735, %v2783
      %2785 = vmatmul.f32.gmra.mxu0 %v2746
      %v2786 = vpop.f32.mrf.mxu0
      %v2787 = vadd.f32 %v2735, %v2786
      %2788 = vmatmul.f32.gmra.mxu0 %v2749
      %v2789 = vpop.f32.mrf.mxu0
      %v2790 = vadd.f32 %v2735, %v2789
      %2791 = vmatmul.f32.gmra.mxu0 %v2752
      %v2792 = vpop.f32.mrf.mxu0
      %v2793 = vadd.f32 %v2735, %v2792
      %2794 = vmatmul.f32.gmra.mxu0 %v2755
      %v2795 = vpop.f32.mrf.mxu0
      %v2796 = vadd.f32 %v2735, %v2795
      %2797 = vmatmul.f32.gmra.mxu0 %v2758
      %v2798 = vpop.f32.mrf.mxu0
      %v2799 = vadd.f32 %v2735, %v2798
      %2800 = vdwg.mxu0
      %v2801 = vadd.f32 %v306, %v2778
      %v2802 = vadd.f32 %v307, %v2781
      %v2803 = vadd.f32 %v308, %v2784
      %v2804 = vadd.f32 %v309, %v2787
      %v2805 = vadd.f32 %v310, %v2790
      %v2806 = vadd.f32 %v311, %v2793
      %v2807 = vadd.f32 %v312, %v2796
      %v2808 = vadd.f32 %v313, %v2799
      %v2809 = vsel %vm323, %v2801, 0.0
      %2810 = vadd.xlane.f32.xlu0 %v2809
      %v2811 = vpop.xlane.xlu0 %2810
      %v2812 = vsel %vm323, %v2802, 0.0
      %2813 = vadd.xlane.f32.xlu0 %v2812
      %v2814 = vpop.xlane.xlu0 %2813
      %v2815 = vsel %vm323, %v2803, 0.0
      %2816 = vadd.xlane.f32.xlu0 %v2815
      %v2817 = vpop.xlane.xlu0 %2816
      %v2818 = vsel %vm323, %v2804, 0.0
      %2819 = vadd.xlane.f32.xlu0 %v2818
      %v2820 = vpop.xlane.xlu0 %2819
      %v2821 = vsel %vm323, %v2805, 0.0
      %2822 = vadd.xlane.f32.xlu0 %v2821
      %v2823 = vpop.xlane.xlu0 %2822
      %v2824 = vsel %vm323, %v2806, 0.0
      %2825 = vadd.xlane.f32.xlu0 %v2824
      %v2826 = vpop.xlane.xlu0 %2825
      %v2827 = vsel %vm323, %v2807, 0.0
      %2828 = vadd.xlane.f32.xlu0 %v2827
      %v2829 = vpop.xlane.xlu0 %2828
      %v2830 = vsel %vm323, %v2808, 0.0
      %2831 = vadd.xlane.f32.xlu0 %v2830
      %v2832 = vpop.xlane.xlu0 %2831
      %v2833 = vmul.f32 %v2811, %v354
      %v2834 = vmul.f32 %v2814, %v354
      %v2835 = vmul.f32 %v2817, %v354
      %v2836 = vmul.f32 %v2820, %v354
      %v2837 = vmul.f32 %v2823, %v354
      %v2838 = vmul.f32 %v2826, %v354
      %v2839 = vmul.f32 %v2829, %v354
      %v2840 = vmul.f32 %v2832, %v354
      %v2841 = vsub.f32 %v2801, %v2833
      %v2842 = vsub.f32 %v2802, %v2834
      %v2843 = vsub.f32 %v2803, %v2835
      %v2844 = vsub.f32 %v2804, %v2836
      %v2845 = vsub.f32 %v2805, %v2837
      %v2846 = vsub.f32 %v2806, %v2838
      %v2847 = vsub.f32 %v2807, %v2839
      %v2848 = vsub.f32 %v2808, %v2840
      %v2849 = vmul.f32 %v2841, %v2841
      %v2850 = vmul.f32 %v2842, %v2842
      %v2851 = vmul.f32 %v2843, %v2843
      %v2852 = vmul.f32 %v2844, %v2844
      %v2853 = vmul.f32 %v2845, %v2845
      %v2854 = vmul.f32 %v2846, %v2846
      %v2855 = vmul.f32 %v2847, %v2847
      %v2856 = vmul.f32 %v2848, %v2848
      %v2857 = vsel %vm323, %v2849, 0.0
      %2858 = vadd.xlane.f32.xlu0 %v2857
      %v2859 = vpop.xlane.xlu0 %2858
      %v2860 = vsel %vm323, %v2850, 0.0
      %2861 = vadd.xlane.f32.xlu0 %v2860
      %v2862 = vpop.xlane.xlu0 %2861
      %v2863 = vsel %vm323, %v2851, 0.0
      %2864 = vadd.xlane.f32.xlu0 %v2863
      %v2865 = vpop.xlane.xlu0 %2864
      %v2866 = vsel %vm323, %v2852, 0.0
      %2867 = vadd.xlane.f32.xlu0 %v2866
      %v2868 = vpop.xlane.xlu0 %2867
      %v2869 = vsel %vm323, %v2853, 0.0
      %2870 = vadd.xlane.f32.xlu0 %v2869
      %v2871 = vpop.xlane.xlu0 %2870
      %v2872 = vsel %vm323, %v2854, 0.0
      %2873 = vadd.xlane.f32.xlu0 %v2872
      %v2874 = vpop.xlane.xlu0 %2873
      %v2875 = vsel %vm323, %v2855, 0.0
      %2876 = vadd.xlane.f32.xlu0 %v2875
      %v2877 = vpop.xlane.xlu0 %2876
      %v2878 = vsel %vm323, %v2856, 0.0
      %2879 = vadd.xlane.f32.xlu0 %v2878
      %v2880 = vpop.xlane.xlu0 %2879
      %v2881 = vmul.f32 %v2859, %v354
      %v2882 = vmul.f32 %v2862, %v354
      %v2883 = vmul.f32 %v2865, %v354
      %v2884 = vmul.f32 %v2868, %v354
      %v2885 = vmul.f32 %v2871, %v354
      %v2886 = vmul.f32 %v2874, %v354
      %v2887 = vmul.f32 %v2877, %v354
      %v2888 = vmul.f32 %v2880, %v354
      %v2889 = vadd.f32 %v2881, 1e-05
      %v2890 = vadd.f32 %v2882, 1e-05
      %v2891 = vadd.f32 %v2883, 1e-05
      %v2892 = vadd.f32 %v2884, 1e-05
      %v2893 = vadd.f32 %v2885, 1e-05
      %v2894 = vadd.f32 %v2886, 1e-05
      %v2895 = vadd.f32 %v2887, 1e-05
      %v2896 = vadd.f32 %v2888, 1e-05
      %v2897 = vrsqrt.pop %v2889
      %v2898 = vmul.f32 %v2897, %v2889
      %v2899 = vmul.f32 %v2898, %v2897
      %v2900 = vmul.f32 0.5, %v2899
      %v2901 = vsub.f32 1.5, %v2900
      %v2902 = vmul.f32 %v2897, %v2901
      %vm2903 = vweird.f32 %v2889
      %vm2904 = vweird.f32 %v2897
      %vm2905 = vmor %vm2903, %vm2904
      %v2906 = vsel %vm2905, %v2897, %v2902
      %v2907 = vrsqrt.pop %v2890
      %v2908 = vmul.f32 %v2907, %v2890
      %v2909 = vmul.f32 %v2908, %v2907
      %v2910 = vmul.f32 0.5, %v2909
      %v2911 = vsub.f32 1.5, %v2910
      %v2912 = vmul.f32 %v2907, %v2911
      %vm2913 = vweird.f32 %v2890
      %vm2914 = vweird.f32 %v2907
      %vm2915 = vmor %vm2913, %vm2914
      %v2916 = vsel %vm2915, %v2907, %v2912
      %v2917 = vrsqrt.pop %v2891
      %v2918 = vmul.f32 %v2917, %v2891
      %v2919 = vmul.f32 %v2918, %v2917
      %v2920 = vmul.f32 0.5, %v2919
      %v2921 = vsub.f32 1.5, %v2920
      %v2922 = vmul.f32 %v2917, %v2921
      %vm2923 = vweird.f32 %v2891
      %vm2924 = vweird.f32 %v2917
      %vm2925 = vmor %vm2923, %vm2924
      %v2926 = vsel %vm2925, %v2917, %v2922
      %v2927 = vrsqrt.pop %v2892
      %v2928 = vmul.f32 %v2927, %v2892
      %v2929 = vmul.f32 %v2928, %v2927
      %v2930 = vmul.f32 0.5, %v2929
      %v2931 = vsub.f32 1.5, %v2930
      %v2932 = vmul.f32 %v2927, %v2931
      %vm2933 = vweird.f32 %v2892
      %vm2934 = vweird.f32 %v2927
      %vm2935 = vmor %vm2933, %vm2934
      %v2936 = vsel %vm2935, %v2927, %v2932
      %v2937 = vrsqrt.pop %v2893
      %v2938 = vmul.f32 %v2937, %v2893
      %v2939 = vmul.f32 %v2938, %v2937
      %v2940 = vmul.f32 0.5, %v2939
      %v2941 = vsub.f32 1.5, %v2940
      %v2942 = vmul.f32 %v2937, %v2941
      %vm2943 = vweird.f32 %v2893
      %vm2944 = vweird.f32 %v2937
      %vm2945 = vmor %vm2943, %vm2944
      %v2946 = vsel %vm2945, %v2937, %v2942
      %v2947 = vrsqrt.pop %v2894
      %v2948 = vmul.f32 %v2947, %v2894
      %v2949 = vmul.f32 %v2948, %v2947
      %v2950 = vmul.f32 0.5, %v2949
      %v2951 = vsub.f32 1.5, %v2950
      %v2952 = vmul.f32 %v2947, %v2951
      %vm2953 = vweird.f32 %v2894
      %vm2954 = vweird.f32 %v2947
      %vm2955 = vmor %vm2953, %vm2954
      %v2956 = vsel %vm2955, %v2947, %v2952
      %v2957 = vrsqrt.pop %v2895
      %v2958 = vmul.f32 %v2957, %v2895
      %v2959 = vmul.f32 %v2958, %v2957
      %v2960 = vmul.f32 0.5, %v2959
      %v2961 = vsub.f32 1.5, %v2960
      %v2962 = vmul.f32 %v2957, %v2961
      %vm2963 = vweird.f32 %v2895
      %vm2964 = vweird.f32 %v2957
      %vm2965 = vmor %vm2963, %vm2964
      %v2966 = vsel %vm2965, %v2957, %v2962
      %v2967 = vrsqrt.pop %v2896
      %v2968 = vmul.f32 %v2967, %v2896
      %v2969 = vmul.f32 %v2968, %v2967
      %v2970 = vmul.f32 0.5, %v2969
      %v2971 = vsub.f32 1.5, %v2970
      %v2972 = vmul.f32 %v2967, %v2971
      %vm2973 = vweird.f32 %v2896
      %vm2974 = vweird.f32 %v2967
      %vm2975 = vmor %vm2973, %vm2974
      %v2976 = vsel %vm2975, %v2967, %v2972
      %v2977 = vmul.f32 %v2841, %v2906
      %v2978 = vmul.f32 %v2842, %v2916
      %v2979 = vmul.f32 %v2843, %v2926
      %v2980 = vmul.f32 %v2844, %v2936
      %v2981 = vmul.f32 %v2845, %v2946
      %v2982 = vmul.f32 %v2846, %v2956
      %v2983 = vmul.f32 %v2847, %v2966
      %v2984 = vmul.f32 %v2848, %v2976
      %v2985 = vperm.slane %v322, 4
      %v2986 = vmul.f32 %v2977, %v2985
      %v2987 = vmul.f32 %v2978, %v2985
      %v2988 = vmul.f32 %v2979, %v2985
      %v2989 = vmul.f32 %v2980, %v2985
      %v2990 = vmul.f32 %v2981, %v2985
      %v2991 = vmul.f32 %v2982, %v2985
      %v2992 = vmul.f32 %v2983, %v2985
      %v2993 = vmul.f32 %v2984, %v2985
      %v2994 = vperm.slane %v322, 5
      %v2995 = vadd.f32 %v2986, %v2994
      %v2996 = vadd.f32 %v2987, %v2994
      %v2997 = vadd.f32 %v2988, %v2994
      %v2998 = vadd.f32 %v2989, %v2994
      %v2999 = vadd.f32 %v2990, %v2994
      %v3000 = vadd.f32 %v2991, %v2994
      %v3001 = vadd.f32 %v2992, %v2994
      %v3002 = vadd.f32 %v2993, %v2994
      %v3003 = vld [vmem:[%s6] sm:$0xff]
      %v3004 = vld [vmem:[%s6 + $0x8] sm:$0xff]
      %v3005 = vld [vmem:[%s6 + $0x10] sm:$0xff]
      %v3006 = vld [vmem:[%s6 + $0x18] sm:$0xff]
      %v3007 = vperm.slane %v322, 6
      %v3009 = vsel %vm323, %v2995, 0
      %v3012 = vsel %vm323, %v2996, 0
      %v3015 = vsel %vm323, %v2997, 0
      %v3018 = vsel %vm323, %v2998, 0
      %v3021 = vsel %vm323, %v2999, 0
      %v3024 = vsel %vm323, %v3000, 0
      %v3027 = vsel %vm323, %v3001, 0
      %v3030 = vsel %vm323, %v3002, 0
      %3032 = vmatpush.msra.mxu0 0.0
      %3033 = vmatpush.msra.mxu0 0.0
      %3034 = vmatpush.msra.mxu0 0.0
      %3035 = vmatpush.msra.mxu0 0.0
      %3036 = vmatpush.msra.mxu0 0.0
      %3037 = vmatpush.msra.mxu0 0.0
      %3038 = vmatpush.msra.mxu0 0.0
      %3039 = vmatpush.msra.mxu0 0.0
      %3040 = vmatpush.msra.mxu0 0.0
      %3041 = vmatpush.msra.mxu0 0.0
      %3042 = vmatpush.msra.mxu0 0.0
      %3043 = vmatpush.msra.mxu0 0.0
      %3044 = vmatpush.msra.mxu0 %v3006
      %3045 = vmatpush.msra.mxu0 %v3005
      %3046 = vmatpush.msra.mxu0 %v3004
      %3047 = vmatpush.msra.mxu0 %v3003
      %3048 = vmatmul.f32.gmra.mxu0 %v3009
      %v3049 = vpop.f32.mrf.mxu0
      %v3050 = vadd.f32 %v3007, %v3049
      %3051 = vmatmul.f32.gmra.mxu0 %v3012
      %v3052 = vpop.f32.mrf.mxu0
      %v3053 = vadd.f32 %v3007, %v3052
      %3054 = vmatmul.f32.gmra.mxu0 %v3015
      %v3055 = vpop.f32.mrf.mxu0
      %v3056 = vadd.f32 %v3007, %v3055
      %3057 = vmatmul.f32.gmra.mxu0 %v3018
      %v3058 = vpop.f32.mrf.mxu0
      %v3059 = vadd.f32 %v3007, %v3058
      %3060 = vmatmul.f32.gmra.mxu0 %v3021
      %v3061 = vpop.f32.mrf.mxu0
      %v3062 = vadd.f32 %v3007, %v3061
      %3063 = vmatmul.f32.gmra.mxu0 %v3024
      %v3064 = vpop.f32.mrf.mxu0
      %v3065 = vadd.f32 %v3007, %v3064
      %3066 = vmatmul.f32.gmra.mxu0 %v3027
      %v3067 = vpop.f32.mrf.mxu0
      %v3068 = vadd.f32 %v3007, %v3067
      %3069 = vmatmul.f32.gmra.mxu0 %v3030
      %v3070 = vpop.f32.mrf.mxu0
      %v3071 = vadd.f32 %v3007, %v3070
      %3072 = vdwg.mxu0
      %v3073 = vmul.f32 %v3050, 0.5
      %v3074 = vmul.f32 %v3053, 0.5
      %v3075 = vmul.f32 %v3056, 0.5
      %v3076 = vmul.f32 %v3059, 0.5
      %v3077 = vmul.f32 %v3062, 0.5
      %v3078 = vmul.f32 %v3065, 0.5
      %v3079 = vmul.f32 %v3068, 0.5
      %v3080 = vmul.f32 %v3071, 0.5
      %v3081 = vmul.f32 %v3050, 0.044715
      %v3082 = vmul.f32 %v3053, 0.044715
      %v3083 = vmul.f32 %v3056, 0.044715
      %v3084 = vmul.f32 %v3059, 0.044715
      %v3085 = vmul.f32 %v3062, 0.044715
      %v3086 = vmul.f32 %v3065, 0.044715
      %v3087 = vmul.f32 %v3068, 0.044715
      %v3088 = vmul.f32 %v3071, 0.044715
      %v3089 = vmul.f32 %v3081, %v3050
      %v3090 = vmul.f32 %v3082, %v3053
      %v3091 = vmul.f32 %v3083, %v3056
      %v3092 = vmul.f32 %v3084, %v3059
      %v3093 = vmul.f32 %v3085, %v3062
      %v3094 = vmul.f32 %v3086, %v3065
      %v3095 = vmul.f32 %v3087, %v3068
      %v3096 = vmul.f32 %v3088, %v3071
      %v3097 = vmul.f32 %v3089, %v3050
      %v3098 = vmul.f32 %v3090, %v3053
      %v3099 = vmul.f32 %v3091, %v3056
      %v3100 = vmul.f32 %v3092, %v3059
      %v3101 = vmul.f32 %v3093, %v3062
      %v3102 = vmul.f32 %v3094, %v3065
      %v3103 = vmul.f32 %v3095, %v3068
      %v3104 = vmul.f32 %v3096, %v3071
      %v3105 = vadd.f32 %v3050, %v3097
      %v3106 = vadd.f32 %v3053, %v3098
      %v3107 = vadd.f32 %v3056, %v3099
      %v3108 = vadd.f32 %v3059, %v3100
      %v3109 = vadd.f32 %v3062, %v3101
      %v3110 = vadd.f32 %v3065, %v3102
      %v3111 = vadd.f32 %v3068, %v3103
      %v3112 = vadd.f32 %v3071, %v3104
      %v3113 = vmul.f32 %v3105, 0.7978846
      %v3114 = vmul.f32 %v3106, 0.7978846
      %v3115 = vmul.f32 %v3107, 0.7978846
      %v3116 = vmul.f32 %v3108, 0.7978846
      %v3117 = vmul.f32 %v3109, 0.7978846
      %v3118 = vmul.f32 %v3110, 0.7978846
      %v3119 = vmul.f32 %v3111, 0.7978846
      %v3120 = vmul.f32 %v3112, 0.7978846
      %v3121 = vtanh.pop %v3113
      %v3122 = vtanh.pop %v3114
      %v3123 = vtanh.pop %v3115
      %v3124 = vtanh.pop %v3116
      %v3125 = vtanh.pop %v3117
      %v3126 = vtanh.pop %v3118
      %v3127 = vtanh.pop %v3119
      %v3128 = vtanh.pop %v3120
      %v3129 = vadd.f32 %v3121, 1.0
      %v3130 = vadd.f32 %v3122, 1.0
      %v3131 = vadd.f32 %v3123, 1.0
      %v3132 = vadd.f32 %v3124, 1.0
      %v3133 = vadd.f32 %v3125, 1.0
      %v3134 = vadd.f32 %v3126, 1.0
      %v3135 = vadd.f32 %v3127, 1.0
      %v3136 = vadd.f32 %v3128, 1.0
      %v3137 = vmul.f32 %v3073, %v3129
      %v3138 = vmul.f32 %v3074, %v3130
      %v3139 = vmul.f32 %v3075, %v3131
      %v3140 = vmul.f32 %v3076, %v3132
      %v3141 = vmul.f32 %v3077, %v3133
      %v3142 = vmul.f32 %v3078, %v3134
      %v3143 = vmul.f32 %v3079, %v3135
      %v3144 = vmul.f32 %v3080, %v3136
      %v3145 = vld [vmem:[%s7] sm:$0xff]
      %v3146 = vld [vmem:[%s7 + $0x8] sm:$0xff]
      %v3147 = vld [vmem:[%s7 + $0x10] sm:$0xff]
      %v3148 = vld [vmem:[%s7 + $0x18] sm:$0xff]
      %v3149 = vld [vmem:[%s7 + $0x20] sm:$0xff]
      %v3150 = vld [vmem:[%s7 + $0x28] sm:$0xff]
      %v3151 = vld [vmem:[%s7 + $0x30] sm:$0xff]
      %v3152 = vld [vmem:[%s7 + $0x38] sm:$0xff]
      %v3153 = vld [vmem:[%s7 + $0x40] sm:$0xff]
      %v3154 = vld [vmem:[%s7 + $0x48] sm:$0xff]
      %v3155 = vld [vmem:[%s7 + $0x50] sm:$0xff]
      %v3156 = vld [vmem:[%s7 + $0x58] sm:$0xff]
      %v3157 = vld [vmem:[%s7 + $0x60] sm:$0xff]
      %v3158 = vld [vmem:[%s7 + $0x68] sm:$0xff]
      %v3159 = vld [vmem:[%s7 + $0x70] sm:$0xff]
      %v3160 = vld [vmem:[%s7 + $0x78] sm:$0xff]
      %v3161 = vperm.slane %v322, 7
      %3162 = vmatpush.msra.mxu0 %v3160
      %3163 = vmatpush.msra.mxu0 %v3159
      %3164 = vmatpush.msra.mxu0 %v3158
      %3165 = vmatpush.msra.mxu0 %v3157
      %3166 = vmatpush.msra.mxu0 %v3156
      %3167 = vmatpush.msra.mxu0 %v3155
      %3168 = vmatpush.msra.mxu0 %v3154
      %3169 = vmatpush.msra.mxu0 %v3153
      %3170 = vmatpush.msra.mxu0 %v3152
      %3171 = vmatpush.msra.mxu0 %v3151
      %3172 = vmatpush.msra.mxu0 %v3150
      %3173 = vmatpush.msra.mxu0 %v3149
      %3174 = vmatpush.msra.mxu0 %v3148
      %3175 = vmatpush.msra.mxu0 %v3147
      %3176 = vmatpush.msra.mxu0 %v3146
      %3177 = vmatpush.msra.mxu0 %v3145
      %3178 = vmatmul.f32.gmra.mxu0 %v3137
      %v3179 = vpop.f32.mrf.mxu0
      %v3180 = vadd.f32 %v3161, %v3179
      %3181 = vmatmul.f32.gmra.mxu0 %v3138
      %v3182 = vpop.f32.mrf.mxu0
      %v3183 = vadd.f32 %v3161, %v3182
      %3184 = vmatmul.f32.gmra.mxu0 %v3139
      %v3185 = vpop.f32.mrf.mxu0
      %v3186 = vadd.f32 %v3161, %v3185
      %3187 = vmatmul.f32.gmra.mxu0 %v3140
      %v3188 = vpop.f32.mrf.mxu0
      %v3189 = vadd.f32 %v3161, %v3188
      %3190 = vmatmul.f32.gmra.mxu0 %v3141
      %v3191 = vpop.f32.mrf.mxu0
      %v3192 = vadd.f32 %v3161, %v3191
      %3193 = vmatmul.f32.gmra.mxu0 %v3142
      %v3194 = vpop.f32.mrf.mxu0
      %v3195 = vadd.f32 %v3161, %v3194
      %3196 = vmatmul.f32.gmra.mxu0 %v3143
      %v3197 = vpop.f32.mrf.mxu0
      %v3198 = vadd.f32 %v3161, %v3197
      %3199 = vmatmul.f32.gmra.mxu0 %v3144
      %v3200 = vpop.f32.mrf.mxu0
      %v3201 = vadd.f32 %v3161, %v3200
      %3202 = vdwg.mxu0
      %v3203 = vadd.f32 %v2801, %v3180
      %v3204 = vadd.f32 %v2802, %v3183
      %v3205 = vadd.f32 %v2803, %v3186
      %v3206 = vadd.f32 %v2804, %v3189
      %v3207 = vadd.f32 %v2805, %v3192
      %v3208 = vadd.f32 %v2806, %v3195
      %v3209 = vadd.f32 %v2807, %v3198
      %v3210 = vadd.f32 %v2808, %v3201
      %vm3211 = vcmask 523264
      %v3213 = vsel %vm3211, %v314, 0
      %v3216 = vsel %vm3211, %v315, 0
      %v3219 = vsel %vm3211, %v316, 0
      %v3222 = vsel %vm3211, %v317, 0
      %v3225 = vsel %vm3211, %v318, 0
      %v3228 = vsel %vm3211, %v319, 0
      %v3231 = vsel %vm3211, %v320, 0
      %v3234 = vsel %vm3211, %v321, 0
      %3236 = vmatpush.msra.mxu0 0.0
      %3237 = vmatpush.msra.mxu0 0.0
      %3238 = vmatpush.msra.mxu0 0.0
      %3239 = vmatpush.msra.mxu0 0.0
      %3240 = vmatpush.msra.mxu0 0.0
      %3241 = vmatpush.msra.mxu0 0.0
      %3242 = vmatpush.msra.mxu0 0.0
      %3243 = vmatpush.msra.mxu0 0.0
      %3244 = vmatpush.msra.mxu0 %v3210
      %3245 = vmatpush.msra.mxu0 %v3209
      %3246 = vmatpush.msra.mxu0 %v3208
      %3247 = vmatpush.msra.mxu0 %v3207
      %3248 = vmatpush.msra.mxu0 %v3206
      %3249 = vmatpush.msra.mxu0 %v3205
      %3250 = vmatpush.msra.mxu0 %v3204
      %3251 = vmatpush.msra.mxu0 %v3203
      %3252 = vmatmul.f32.gmra.mxu0 %v3213
      %v3253 = vpop.f32.mrf.mxu0
      %v3254 = vadd.f32 0.0, %v3253
      %3255 = vmatmul.f32.gmra.mxu0 %v3216
      %v3256 = vpop.f32.mrf.mxu0
      %v3257 = vadd.f32 0.0, %v3256
      %3258 = vmatmul.f32.gmra.mxu0 %v3219
      %v3259 = vpop.f32.mrf.mxu0
      %v3260 = vadd.f32 0.0, %v3259
      %3261 = vmatmul.f32.gmra.mxu0 %v3222
      %v3262 = vpop.f32.mrf.mxu0
      %v3263 = vadd.f32 0.0, %v3262
      %3264 = vmatmul.f32.gmra.mxu0 %v3225
      %v3265 = vpop.f32.mrf.mxu0
      %v3266 = vadd.f32 0.0, %v3265
      %3267 = vmatmul.f32.gmra.mxu0 %v3228
      %v3268 = vpop.f32.mrf.mxu0
      %v3269 = vadd.f32 0.0, %v3268
      %3270 = vmatmul.f32.gmra.mxu0 %v3231
      %v3271 = vpop.f32.mrf.mxu0
      %v3272 = vadd.f32 0.0, %v3271
      %3273 = vmatmul.f32.gmra.mxu0 %v3234
      %v3274 = vpop.f32.mrf.mxu0
      %v3275 = vadd.f32 0.0, %v3274
      %3276 = vdwg.mxu0
      %s3277 = scalar_lea.vmem %s3, 8
      %v3278 = vld [vmem:[%s3277] sm:$0xff]
      %v3279 = vsel %vm323, %v3254, 0.0
      %3280 = vadd.xlane.f32.xlu0 %v3279
      %v3281 = vpop.xlane.xlu0 %3280
      %v3282 = vsel %vm323, %v3257, 0.0
      %3283 = vadd.xlane.f32.xlu0 %v3282
      %v3284 = vpop.xlane.xlu0 %3283
      %v3285 = vsel %vm323, %v3260, 0.0
      %3286 = vadd.xlane.f32.xlu0 %v3285
      %v3287 = vpop.xlane.xlu0 %3286
      %v3288 = vsel %vm323, %v3263, 0.0
      %3289 = vadd.xlane.f32.xlu0 %v3288
      %v3290 = vpop.xlane.xlu0 %3289
      %v3291 = vsel %vm323, %v3266, 0.0
      %3292 = vadd.xlane.f32.xlu0 %v3291
      %v3293 = vpop.xlane.xlu0 %3292
      %v3294 = vsel %vm323, %v3269, 0.0
      %3295 = vadd.xlane.f32.xlu0 %v3294
      %v3296 = vpop.xlane.xlu0 %3295
      %v3297 = vsel %vm323, %v3272, 0.0
      %3298 = vadd.xlane.f32.xlu0 %v3297
      %v3299 = vpop.xlane.xlu0 %3298
      %v3300 = vsel %vm323, %v3275, 0.0
      %3301 = vadd.xlane.f32.xlu0 %v3300
      %v3302 = vpop.xlane.xlu0 %3301
      %v3303 = vmul.f32 %v3281, %v354
      %v3304 = vmul.f32 %v3284, %v354
      %v3305 = vmul.f32 %v3287, %v354
      %v3306 = vmul.f32 %v3290, %v354
      %v3307 = vmul.f32 %v3293, %v354
      %v3308 = vmul.f32 %v3296, %v354
      %v3309 = vmul.f32 %v3299, %v354
      %v3310 = vmul.f32 %v3302, %v354
      %v3311 = vsub.f32 %v3254, %v3303
      %v3312 = vsub.f32 %v3257, %v3304
      %v3313 = vsub.f32 %v3260, %v3305
      %v3314 = vsub.f32 %v3263, %v3306
      %v3315 = vsub.f32 %v3266, %v3307
      %v3316 = vsub.f32 %v3269, %v3308
      %v3317 = vsub.f32 %v3272, %v3309
      %v3318 = vsub.f32 %v3275, %v3310
      %v3319 = vmul.f32 %v3311, %v3311
      %v3320 = vmul.f32 %v3312, %v3312
      %v3321 = vmul.f32 %v3313, %v3313
      %v3322 = vmul.f32 %v3314, %v3314
      %v3323 = vmul.f32 %v3315, %v3315
      %v3324 = vmul.f32 %v3316, %v3316
      %v3325 = vmul.f32 %v3317, %v3317
      %v3326 = vmul.f32 %v3318, %v3318
      %v3327 = vsel %vm323, %v3319, 0.0
      %3328 = vadd.xlane.f32.xlu0 %v3327
      %v3329 = vpop.xlane.xlu0 %3328
      %v3330 = vsel %vm323, %v3320, 0.0
      %3331 = vadd.xlane.f32.xlu0 %v3330
      %v3332 = vpop.xlane.xlu0 %3331
      %v3333 = vsel %vm323, %v3321, 0.0
      %3334 = vadd.xlane.f32.xlu0 %v3333
      %v3335 = vpop.xlane.xlu0 %3334
      %v3336 = vsel %vm323, %v3322, 0.0
      %3337 = vadd.xlane.f32.xlu0 %v3336
      %v3338 = vpop.xlane.xlu0 %3337
      %v3339 = vsel %vm323, %v3323, 0.0
      %3340 = vadd.xlane.f32.xlu0 %v3339
      %v3341 = vpop.xlane.xlu0 %3340
      %v3342 = vsel %vm323, %v3324, 0.0
      %3343 = vadd.xlane.f32.xlu0 %v3342
      %v3344 = vpop.xlane.xlu0 %3343
      %v3345 = vsel %vm323, %v3325, 0.0
      %3346 = vadd.xlane.f32.xlu0 %v3345
      %v3347 = vpop.xlane.xlu0 %3346
      %v3348 = vsel %vm323, %v3326, 0.0
      %3349 = vadd.xlane.f32.xlu0 %v3348
      %v3350 = vpop.xlane.xlu0 %3349
      %v3351 = vmul.f32 %v3329, %v354
      %v3352 = vmul.f32 %v3332, %v354
      %v3353 = vmul.f32 %v3335, %v354
      %v3354 = vmul.f32 %v3338, %v354
      %v3355 = vmul.f32 %v3341, %v354
      %v3356 = vmul.f32 %v3344, %v354
      %v3357 = vmul.f32 %v3347, %v354
      %v3358 = vmul.f32 %v3350, %v354
      %v3359 = vadd.f32 %v3351, 1e-05
      %v3360 = vadd.f32 %v3352, 1e-05
      %v3361 = vadd.f32 %v3353, 1e-05
      %v3362 = vadd.f32 %v3354, 1e-05
      %v3363 = vadd.f32 %v3355, 1e-05
      %v3364 = vadd.f32 %v3356, 1e-05
      %v3365 = vadd.f32 %v3357, 1e-05
      %v3366 = vadd.f32 %v3358, 1e-05
      %v3367 = vrsqrt.pop %v3359
      %v3368 = vmul.f32 %v3367, %v3359
      %v3369 = vmul.f32 %v3368, %v3367
      %v3370 = vmul.f32 0.5, %v3369
      %v3371 = vsub.f32 1.5, %v3370
      %v3372 = vmul.f32 %v3367, %v3371
      %vm3373 = vweird.f32 %v3359
      %vm3374 = vweird.f32 %v3367
      %vm3375 = vmor %vm3373, %vm3374
      %v3376 = vsel %vm3375, %v3367, %v3372
      %v3377 = vrsqrt.pop %v3360
      %v3378 = vmul.f32 %v3377, %v3360
      %v3379 = vmul.f32 %v3378, %v3377
      %v3380 = vmul.f32 0.5, %v3379
      %v3381 = vsub.f32 1.5, %v3380
      %v3382 = vmul.f32 %v3377, %v3381
      %vm3383 = vweird.f32 %v3360
      %vm3384 = vweird.f32 %v3377
      %vm3385 = vmor %vm3383, %vm3384
      %v3386 = vsel %vm3385, %v3377, %v3382
      %v3387 = vrsqrt.pop %v3361
      %v3388 = vmul.f32 %v3387, %v3361
      %v3389 = vmul.f32 %v3388, %v3387
      %v3390 = vmul.f32 0.5, %v3389
      %v3391 = vsub.f32 1.5, %v3390
      %v3392 = vmul.f32 %v3387, %v3391
      %vm3393 = vweird.f32 %v3361
      %vm3394 = vweird.f32 %v3387
      %vm3395 = vmor %vm3393, %vm3394
      %v3396 = vsel %vm3395, %v3387, %v3392
      %v3397 = vrsqrt.pop %v3362
      %v3398 = vmul.f32 %v3397, %v3362
      %v3399 = vmul.f32 %v3398, %v3397
      %v3400 = vmul.f32 0.5, %v3399
      %v3401 = vsub.f32 1.5, %v3400
      %v3402 = vmul.f32 %v3397, %v3401
      %vm3403 = vweird.f32 %v3362
      %vm3404 = vweird.f32 %v3397
      %vm3405 = vmor %vm3403, %vm3404
      %v3406 = vsel %vm3405, %v3397, %v3402
      %v3407 = vrsqrt.pop %v3363
      %v3408 = vmul.f32 %v3407, %v3363
      %v3409 = vmul.f32 %v3408, %v3407
      %v3410 = vmul.f32 0.5, %v3409
      %v3411 = vsub.f32 1.5, %v3410
      %v3412 = vmul.f32 %v3407, %v3411
      %vm3413 = vweird.f32 %v3363
      %vm3414 = vweird.f32 %v3407
      %vm3415 = vmor %vm3413, %vm3414
      %v3416 = vsel %vm3415, %v3407, %v3412
      %v3417 = vrsqrt.pop %v3364
      %v3418 = vmul.f32 %v3417, %v3364
      %v3419 = vmul.f32 %v3418, %v3417
      %v3420 = vmul.f32 0.5, %v3419
      %v3421 = vsub.f32 1.5, %v3420
      %v3422 = vmul.f32 %v3417, %v3421
      %vm3423 = vweird.f32 %v3364
      %vm3424 = vweird.f32 %v3417
      %vm3425 = vmor %vm3423, %vm3424
      %v3426 = vsel %vm3425, %v3417, %v3422
      %v3427 = vrsqrt.pop %v3365
      %v3428 = vmul.f32 %v3427, %v3365
      %v3429 = vmul.f32 %v3428, %v3427
      %v3430 = vmul.f32 0.5, %v3429
      %v3431 = vsub.f32 1.5, %v3430
      %v3432 = vmul.f32 %v3427, %v3431
      %vm3433 = vweird.f32 %v3365
      %vm3434 = vweird.f32 %v3427
      %vm3435 = vmor %vm3433, %vm3434
      %v3436 = vsel %vm3435, %v3427, %v3432
      %v3437 = vrsqrt.pop %v3366
      %v3438 = vmul.f32 %v3437, %v3366
      %v3439 = vmul.f32 %v3438, %v3437
      %v3440 = vmul.f32 0.5, %v3439
      %v3441 = vsub.f32 1.5, %v3440
      %v3442 = vmul.f32 %v3437, %v3441
      %vm3443 = vweird.f32 %v3366
      %vm3444 = vweird.f32 %v3437
      %vm3445 = vmor %vm3443, %vm3444
      %v3446 = vsel %vm3445, %v3437, %v3442
      %v3447 = vmul.f32 %v3311, %v3376
      %v3448 = vmul.f32 %v3312, %v3386
      %v3449 = vmul.f32 %v3313, %v3396
      %v3450 = vmul.f32 %v3314, %v3406
      %v3451 = vmul.f32 %v3315, %v3416
      %v3452 = vmul.f32 %v3316, %v3426
      %v3453 = vmul.f32 %v3317, %v3436
      %v3454 = vmul.f32 %v3318, %v3446
      %v3455 = vperm.slane %v3278, 0
      %v3456 = vmul.f32 %v3447, %v3455
      %v3457 = vmul.f32 %v3448, %v3455
      %v3458 = vmul.f32 %v3449, %v3455
      %v3459 = vmul.f32 %v3450, %v3455
      %v3460 = vmul.f32 %v3451, %v3455
      %v3461 = vmul.f32 %v3452, %v3455
      %v3462 = vmul.f32 %v3453, %v3455
      %v3463 = vmul.f32 %v3454, %v3455
      %v3464 = vperm.slane %v3278, 1
      %v3465 = vadd.f32 %v3456, %v3464
      %v3466 = vadd.f32 %v3457, %v3464
      %v3467 = vadd.f32 %v3458, %v3464
      %v3468 = vadd.f32 %v3459, %v3464
      %v3469 = vadd.f32 %v3460, %v3464
      %v3470 = vadd.f32 %v3461, %v3464
      %v3471 = vadd.f32 %v3462, %v3464
      %v3472 = vadd.f32 %v3463, %v3464
      %s3473 = scalar_lea.vmem %s4, 32
      %v3474 = vld [vmem:[%s3473] sm:$0xff]
      %v3475 = vld [vmem:[%s3473 + $0x8] sm:$0xff]
      %v3476 = vld [vmem:[%s3473 + $0x10] sm:$0xff]
      %v3477 = vld [vmem:[%s3473 + $0x18] sm:$0xff]
      %v3478 = vperm.slane %v3278, 2
      %v3480 = vsel %vm323, %v3465, 0
      %v3483 = vsel %vm323, %v3466, 0
      %v3486 = vsel %vm323, %v3467, 0
      %v3489 = vsel %vm323, %v3468, 0
      %v3492 = vsel %vm323, %v3469, 0
      %v3495 = vsel %vm323, %v3470, 0
      %v3498 = vsel %vm323, %v3471, 0
      %v3501 = vsel %vm323, %v3472, 0
      %3503 = vmatpush.msra.mxu0 0.0
      %3504 = vmatpush.msra.mxu0 0.0
      %3505 = vmatpush.msra.mxu0 0.0
      %3506 = vmatpush.msra.mxu0 0.0
      %3507 = vmatpush.msra.mxu0 0.0
      %3508 = vmatpush.msra.mxu0 0.0
      %3509 = vmatpush.msra.mxu0 0.0
      %3510 = vmatpush.msra.mxu0 0.0
      %3511 = vmatpush.msra.mxu0 0.0
      %3512 = vmatpush.msra.mxu0 0.0
      %3513 = vmatpush.msra.mxu0 0.0
      %3514 = vmatpush.msra.mxu0 0.0
      %3515 = vmatpush.msra.mxu0 %v3477
      %3516 = vmatpush.msra.mxu0 %v3476
      %3517 = vmatpush.msra.mxu0 %v3475
      %3518 = vmatpush.msra.mxu0 %v3474
      %3519 = vmatmul.f32.gmra.mxu0 %v3480
      %v3520 = vpop.f32.mrf.mxu0
      %v3521 = vadd.f32 %v3478, %v3520
      %3522 = vmatmul.f32.gmra.mxu0 %v3483
      %v3523 = vpop.f32.mrf.mxu0
      %v3524 = vadd.f32 %v3478, %v3523
      %3525 = vmatmul.f32.gmra.mxu0 %v3486
      %v3526 = vpop.f32.mrf.mxu0
      %v3527 = vadd.f32 %v3478, %v3526
      %3528 = vmatmul.f32.gmra.mxu0 %v3489
      %v3529 = vpop.f32.mrf.mxu0
      %v3530 = vadd.f32 %v3478, %v3529
      %3531 = vmatmul.f32.gmra.mxu0 %v3492
      %v3532 = vpop.f32.mrf.mxu0
      %v3533 = vadd.f32 %v3478, %v3532
      %3534 = vmatmul.f32.gmra.mxu0 %v3495
      %v3535 = vpop.f32.mrf.mxu0
      %v3536 = vadd.f32 %v3478, %v3535
      %3537 = vmatmul.f32.gmra.mxu0 %v3498
      %v3538 = vpop.f32.mrf.mxu0
      %v3539 = vadd.f32 %v3478, %v3538
      %3540 = vmatmul.f32.gmra.mxu0 %v3501
      %v3541 = vpop.f32.mrf.mxu0
      %v3542 = vadd.f32 %v3478, %v3541
      %3543 = vdwg.mxu0
      %v3544 = vmul.f32 %v3521, 0.35355338
      %v3545 = vmul.f32 %v3524, 0.35355338
      %v3546 = vmul.f32 %v3527, 0.35355338
      %v3547 = vmul.f32 %v3530, 0.35355338
      %v3548 = vmul.f32 %v3533, 0.35355338
      %v3549 = vmul.f32 %v3536, 0.35355338
      %v3550 = vmul.f32 %v3539, 0.35355338
      %v3551 = vmul.f32 %v3542, 0.35355338
      %s3552 = scalar_lea.vmem %s2, 256
      %v3553 = vld [vmem:[%s3552] sm:$0xff]
      %v3554 = vld [vmem:[%s3552 + $0x8] sm:$0xff]
      %v3555 = vld [vmem:[%s3552 + $0x10] sm:$0xff]
      %v3556 = vld [vmem:[%s3552 + $0x18] sm:$0xff]
      %v3557 = vld [vmem:[%s3552 + $0x20] sm:$0xff]
      %v3558 = vld [vmem:[%s3552 + $0x28] sm:$0xff]
      %v3559 = vld [vmem:[%s3552 + $0x30] sm:$0xff]
      %v3560 = vld [vmem:[%s3552 + $0x38] sm:$0xff]
      %3563 = vrot.lane.b32.xlu0 %v3521, 96
      %v3564 = vpop.permute.xlu0 %3563
      %3565 = vrot.lane.b32.xlu0 %v3524, 96
      %v3566 = vpop.permute.xlu0 %3565
      %v3568 = vsel %vm617, %v3544, 0
      %v3571 = vsel %vm617, %v3545, 0
      %v3573 = vsel %vm617, %v3564, 0
      %v3575 = vsel %vm617, %v3566, 0
      %3577 = vmatpush.xpose.msra.mxu0 0.0
      %3578 = vmatpush.xpose.msra.mxu0 0.0
      %3579 = vmatpush.xpose.msra.mxu0 0.0
      %3580 = vmatpush.xpose.msra.mxu0 0.0
      %3581 = vmatpush.xpose.msra.mxu0 0.0
      %3582 = vmatpush.xpose.msra.mxu0 0.0
      %3583 = vmatpush.xpose.msra.mxu0 0.0
      %3584 = vmatpush.xpose.msra.mxu0 0.0
      %3585 = vmatpush.xpose.msra.mxu0 0.0
      %3586 = vmatpush.xpose.msra.mxu0 0.0
      %3587 = vmatpush.xpose.msra.mxu0 0.0
      %3588 = vmatpush.xpose.msra.mxu0 0.0
      %3589 = vmatpush.xpose.msra.mxu0 0.0
      %3590 = vmatpush.xpose.msra.mxu0 0.0
      %3591 = vmatpush.xpose.msra.mxu0 %v3575
      %3592 = vmatpush.xpose.msra.mxu0 %v3573
      %3593 = vmatmul.f32.gmra.mxu0 %v3568
      %v3594 = vpop.f32.mrf.mxu0
      %v3595 = vadd.f32 %v3553, %v3594
      %3596 = vmatmul.f32.gmra.mxu0 %v3571
      %v3597 = vpop.f32.mrf.mxu0
      %v3598 = vadd.f32 %v3554, %v3597
      %3599 = vdwg.mxu0
      %3602 = vrot.lane.b32.xlu0 %v3527, 96
      %v3603 = vpop.permute.xlu0 %3602
      %3604 = vrot.lane.b32.xlu0 %v3530, 96
      %v3605 = vpop.permute.xlu0 %3604
      %v3607 = vsel %vm617, %v3546, 0
      %v3610 = vsel %vm617, %v3547, 0
      %v3612 = vsel %vm617, %v3603, 0
      %v3614 = vsel %vm617, %v3605, 0
      %3616 = vmatpush.xpose.msra.mxu0 0.0
      %3617 = vmatpush.xpose.msra.mxu0 0.0
      %3618 = vmatpush.xpose.msra.mxu0 0.0
      %3619 = vmatpush.xpose.msra.mxu0 0.0
      %3620 = vmatpush.xpose.msra.mxu0 0.0
      %3621 = vmatpush.xpose.msra.mxu0 0.0
      %3622 = vmatpush.xpose.msra.mxu0 0.0
      %3623 = vmatpush.xpose.msra.mxu0 0.0
      %3624 = vmatpush.xpose.msra.mxu0 0.0
      %3625 = vmatpush.xpose.msra.mxu0 0.0
      %3626 = vmatpush.xpose.msra.mxu0 0.0
      %3627 = vmatpush.xpose.msra.mxu0 0.0
      %3628 = vmatpush.xpose.msra.mxu0 0.0
      %3629 = vmatpush.xpose.msra.mxu0 0.0
      %3630 = vmatpush.xpose.msra.mxu0 %v3614
      %3631 = vmatpush.xpose.msra.mxu0 %v3612
      %3632 = vmatmul.f32.gmra.mxu0 %v3607
      %v3633 = vpop.f32.mrf.mxu0
      %v3634 = vadd.f32 %v3555, %v3633
      %3635 = vmatmul.f32.gmra.mxu0 %v3610
      %v3636 = vpop.f32.mrf.mxu0
      %v3637 = vadd.f32 %v3556, %v3636
      %3638 = vdwg.mxu0
      %3641 = vrot.lane.b32.xlu0 %v3533, 96
      %v3642 = vpop.permute.xlu0 %3641
      %3643 = vrot.lane.b32.xlu0 %v3536, 96
      %v3644 = vpop.permute.xlu0 %3643
      %v3646 = vsel %vm617, %v3548, 0
      %v3649 = vsel %vm617, %v3549, 0
      %v3651 = vsel %vm617, %v3642, 0
      %v3653 = vsel %vm617, %v3644, 0
      %3655 = vmatpush.xpose.msra.mxu0 0.0
      %3656 = vmatpush.xpose.msra.mxu0 0.0
      %3657 = vmatpush.xpose.msra.mxu0 0.0
      %3658 = vmatpush.xpose.msra.mxu0 0.0
      %3659 = vmatpush.xpose.msra.mxu0 0.0
      %3660 = vmatpush.xpose.msra.mxu0 0.0
      %3661 = vmatpush.xpose.msra.mxu0 0.0
      %3662 = vmatpush.xpose.msra.mxu0 0.0
      %3663 = vmatpush.xpose.msra.mxu0 0.0
      %3664 = vmatpush.xpose.msra.mxu0 0.0
      %3665 = vmatpush.xpose.msra.mxu0 0.0
      %3666 = vmatpush.xpose.msra.mxu0 0.0
      %3667 = vmatpush.xpose.msra.mxu0 0.0
      %3668 = vmatpush.xpose.msra.mxu0 0.0
      %3669 = vmatpush.xpose.msra.mxu0 %v3653
      %3670 = vmatpush.xpose.msra.mxu0 %v3651
      %3671 = vmatmul.f32.gmra.mxu0 %v3646
      %v3672 = vpop.f32.mrf.mxu0
      %v3673 = vadd.f32 %v3557, %v3672
      %3674 = vmatmul.f32.gmra.mxu0 %v3649
      %v3675 = vpop.f32.mrf.mxu0
      %v3676 = vadd.f32 %v3558, %v3675
      %3677 = vdwg.mxu0
      %3680 = vrot.lane.b32.xlu0 %v3539, 96
      %v3681 = vpop.permute.xlu0 %3680
      %3682 = vrot.lane.b32.xlu0 %v3542, 96
      %v3683 = vpop.permute.xlu0 %3682
      %v3685 = vsel %vm617, %v3550, 0
      %v3688 = vsel %vm617, %v3551, 0
      %v3690 = vsel %vm617, %v3681, 0
      %v3692 = vsel %vm617, %v3683, 0
      %3694 = vmatpush.xpose.msra.mxu0 0.0
      %3695 = vmatpush.xpose.msra.mxu0 0.0
      %3696 = vmatpush.xpose.msra.mxu0 0.0
      %3697 = vmatpush.xpose.msra.mxu0 0.0
      %3698 = vmatpush.xpose.msra.mxu0 0.0
      %3699 = vmatpush.xpose.msra.mxu0 0.0
      %3700 = vmatpush.xpose.msra.mxu0 0.0
      %3701 = vmatpush.xpose.msra.mxu0 0.0
      %3702 = vmatpush.xpose.msra.mxu0 0.0
      %3703 = vmatpush.xpose.msra.mxu0 0.0
      %3704 = vmatpush.xpose.msra.mxu0 0.0
      %3705 = vmatpush.xpose.msra.mxu0 0.0
      %3706 = vmatpush.xpose.msra.mxu0 0.0
      %3707 = vmatpush.xpose.msra.mxu0 0.0
      %3708 = vmatpush.xpose.msra.mxu0 %v3692
      %3709 = vmatpush.xpose.msra.mxu0 %v3690
      %3710 = vmatmul.f32.gmra.mxu0 %v3685
      %v3711 = vpop.f32.mrf.mxu0
      %v3712 = vadd.f32 %v3559, %v3711
      %3713 = vmatmul.f32.gmra.mxu0 %v3688
      %v3714 = vpop.f32.mrf.mxu0
      %v3715 = vadd.f32 %v3560, %v3714
      %3716 = vdwg.mxu0
      %v3717 = vsel %vm768, %v3595, -inf
      %3718 = vmax.xlane.f32.xlu0 %v3717
      %v3719 = vpop.xlane.xlu0 %3718
      %v3720 = vsel %vm768, %v3598, -inf
      %3721 = vmax.xlane.f32.xlu0 %v3720
      %v3722 = vpop.xlane.xlu0 %3721
      %v3723 = vsel %vm768, %v3634, -inf
      %3724 = vmax.xlane.f32.xlu0 %v3723
      %v3725 = vpop.xlane.xlu0 %3724
      %v3726 = vsel %vm768, %v3637, -inf
      %3727 = vmax.xlane.f32.xlu0 %v3726
      %v3728 = vpop.xlane.xlu0 %3727
      %v3729 = vsel %vm768, %v3673, -inf
      %3730 = vmax.xlane.f32.xlu0 %v3729
      %v3731 = vpop.xlane.xlu0 %3730
      %v3732 = vsel %vm768, %v3676, -inf
      %3733 = vmax.xlane.f32.xlu0 %v3732
      %v3734 = vpop.xlane.xlu0 %3733
      %v3735 = vsel %vm768, %v3712, -inf
      %3736 = vmax.xlane.f32.xlu0 %v3735
      %v3737 = vpop.xlane.xlu0 %3736
      %v3738 = vsel %vm768, %v3715, -inf
      %3739 = vmax.xlane.f32.xlu0 %v3738
      %v3740 = vpop.xlane.xlu0 %3739
      %v3741 = vsub.f32 %v3595, %v3719
      %v3742 = vsub.f32 %v3598, %v3722
      %v3743 = vsub.f32 %v3634, %v3725
      %v3744 = vsub.f32 %v3637, %v3728
      %v3745 = vsub.f32 %v3673, %v3731
      %v3746 = vsub.f32 %v3676, %v3734
      %v3747 = vsub.f32 %v3712, %v3737
      %v3748 = vsub.f32 %v3715, %v3740
      %v3749 = vmul.f32 %v3741, 1.442695
      %v3750 = vpow.pop %v3749
      %v3751 = vmul.f32 %v3742, 1.442695
      %v3752 = vpow.pop %v3751
      %v3753 = vmul.f32 %v3743, 1.442695
      %v3754 = vpow.pop %v3753
      %v3755 = vmul.f32 %v3744, 1.442695
      %v3756 = vpow.pop %v3755
      %v3757 = vmul.f32 %v3745, 1.442695
      %v3758 = vpow.pop %v3757
      %v3759 = vmul.f32 %v3746, 1.442695
      %v3760 = vpow.pop %v3759
      %v3761 = vmul.f32 %v3747, 1.442695
      %v3762 = vpow.pop %v3761
      %v3763 = vmul.f32 %v3748, 1.442695
      %v3764 = vpow.pop %v3763
      %v3765 = vsel %vm768, %v3750, 0.0
      %3766 = vadd.xlane.f32.xlu0 %v3765
      %v3767 = vpop.xlane.xlu0 %3766
      %v3768 = vsel %vm768, %v3752, 0.0
      %3769 = vadd.xlane.f32.xlu0 %v3768
      %v3770 = vpop.xlane.xlu0 %3769
      %v3771 = vsel %vm768, %v3754, 0.0
      %3772 = vadd.xlane.f32.xlu0 %v3771
      %v3773 = vpop.xlane.xlu0 %3772
      %v3774 = vsel %vm768, %v3756, 0.0
      %3775 = vadd.xlane.f32.xlu0 %v3774
      %v3776 = vpop.xlane.xlu0 %3775
      %v3777 = vsel %vm768, %v3758, 0.0
      %3778 = vadd.xlane.f32.xlu0 %v3777
      %v3779 = vpop.xlane.xlu0 %3778
      %v3780 = vsel %vm768, %v3760, 0.0
      %3781 = vadd.xlane.f32.xlu0 %v3780
      %v3782 = vpop.xlane.xlu0 %3781
      %v3783 = vsel %vm768, %v3762, 0.0
      %3784 = vadd.xlane.f32.xlu0 %v3783
      %v3785 = vpop.xlane.xlu0 %3784
      %v3786 = vsel %vm768, %v3764, 0.0
      %3787 = vadd.xlane.f32.xlu0 %v3786
      %v3788 = vpop.xlane.xlu0 %3787
      %v3789 = vrcp.pop %v3767
      %v3790 = vmul.f32 %v3767, %v3789
      %v3791 = vsub.f32 1.0, %v3790
      %v3792 = vmul.f32 %v3789, %v3791
      %v3793 = vadd.f32 %v3789, %v3792
      %vm3794 = vweird.f32 %v3767
      %vm3795 = vweird.f32 %v3789
      %vm3796 = vmor %vm3794, %vm3795
      %v3797 = vsel %vm3796, %v3789, %v3793
      %v3798 = vand.u32 2147483647, %v3767
      %vm3799 = vcmp.eq.f32.partialorder %v3798, 8.507059e+37
      %v3800 = vand.u32 %v3767, 2147483648
      %v3801 = vor.u32 1.1754944e-38, %v3800
      %v3802 = vsel %vm3799, %v3801, %v3797
      %v3803 = vmul.f32 %v3750, %v3802
      %v3804 = vrcp.pop %v3770
      %v3805 = vmul.f32 %v3770, %v3804
      %v3806 = vsub.f32 1.0, %v3805
      %v3807 = vmul.f32 %v3804, %v3806
      %v3808 = vadd.f32 %v3804, %v3807
      %vm3809 = vweird.f32 %v3770
      %vm3810 = vweird.f32 %v3804
      %vm3811 = vmor %vm3809, %vm3810
      %v3812 = vsel %vm3811, %v3804, %v3808
      %v3813 = vand.u32 2147483647, %v3770
      %vm3814 = vcmp.eq.f32.partialorder %v3813, 8.507059e+37
      %v3815 = vand.u32 %v3770, 2147483648
      %v3816 = vor.u32 1.1754944e-38, %v3815
      %v3817 = vsel %vm3814, %v3816, %v3812
      %v3818 = vmul.f32 %v3752, %v3817
      %v3819 = vrcp.pop %v3773
      %v3820 = vmul.f32 %v3773, %v3819
      %v3821 = vsub.f32 1.0, %v3820
      %v3822 = vmul.f32 %v3819, %v3821
      %v3823 = vadd.f32 %v3819, %v3822
      %vm3824 = vweird.f32 %v3773
      %vm3825 = vweird.f32 %v3819
      %vm3826 = vmor %vm3824, %vm3825
      %v3827 = vsel %vm3826, %v3819, %v3823
      %v3828 = vand.u32 2147483647, %v3773
      %vm3829 = vcmp.eq.f32.partialorder %v3828, 8.507059e+37
      %v3830 = vand.u32 %v3773, 2147483648
      %v3831 = vor.u32 1.1754944e-38, %v3830
      %v3832 = vsel %vm3829, %v3831, %v3827
      %v3833 = vmul.f32 %v3754, %v3832
      %v3834 = vrcp.pop %v3776
      %v3835 = vmul.f32 %v3776, %v3834
      %v3836 = vsub.f32 1.0, %v3835
      %v3837 = vmul.f32 %v3834, %v3836
      %v3838 = vadd.f32 %v3834, %v3837
      %vm3839 = vweird.f32 %v3776
      %vm3840 = vweird.f32 %v3834
      %vm3841 = vmor %vm3839, %vm3840
      %v3842 = vsel %vm3841, %v3834, %v3838
      %v3843 = vand.u32 2147483647, %v3776
      %vm3844 = vcmp.eq.f32.partialorder %v3843, 8.507059e+37
      %v3845 = vand.u32 %v3776, 2147483648
      %v3846 = vor.u32 1.1754944e-38, %v3845
      %v3847 = vsel %vm3844, %v3846, %v3842
      %v3848 = vmul.f32 %v3756, %v3847
      %v3849 = vrcp.pop %v3779
      %v3850 = vmul.f32 %v3779, %v3849
      %v3851 = vsub.f32 1.0, %v3850
      %v3852 = vmul.f32 %v3849, %v3851
      %v3853 = vadd.f32 %v3849, %v3852
      %vm3854 = vweird.f32 %v3779
      %vm3855 = vweird.f32 %v3849
      %vm3856 = vmor %vm3854, %vm3855
      %v3857 = vsel %vm3856, %v3849, %v3853
      %v3858 = vand.u32 2147483647, %v3779
      %vm3859 = vcmp.eq.f32.partialorder %v3858, 8.507059e+37
      %v3860 = vand.u32 %v3779, 2147483648
      %v3861 = vor.u32 1.1754944e-38, %v3860
      %v3862 = vsel %vm3859, %v3861, %v3857
      %v3863 = vmul.f32 %v3758, %v3862
      %v3864 = vrcp.pop %v3782
      %v3865 = vmul.f32 %v3782, %v3864
      %v3866 = vsub.f32 1.0, %v3865
      %v3867 = vmul.f32 %v3864, %v3866
      %v3868 = vadd.f32 %v3864, %v3867
      %vm3869 = vweird.f32 %v3782
      %vm3870 = vweird.f32 %v3864
      %vm3871 = vmor %vm3869, %vm3870
      %v3872 = vsel %vm3871, %v3864, %v3868
      %v3873 = vand.u32 2147483647, %v3782
      %vm3874 = vcmp.eq.f32.partialorder %v3873, 8.507059e+37
      %v3875 = vand.u32 %v3782, 2147483648
      %v3876 = vor.u32 1.1754944e-38, %v3875
      %v3877 = vsel %vm3874, %v3876, %v3872
      %v3878 = vmul.f32 %v3760, %v3877
      %v3879 = vrcp.pop %v3785
      %v3880 = vmul.f32 %v3785, %v3879
      %v3881 = vsub.f32 1.0, %v3880
      %v3882 = vmul.f32 %v3879, %v3881
      %v3883 = vadd.f32 %v3879, %v3882
      %vm3884 = vweird.f32 %v3785
      %vm3885 = vweird.f32 %v3879
      %vm3886 = vmor %vm3884, %vm3885
      %v3887 = vsel %vm3886, %v3879, %v3883
      %v3888 = vand.u32 2147483647, %v3785
      %vm3889 = vcmp.eq.f32.partialorder %v3888, 8.507059e+37
      %v3890 = vand.u32 %v3785, 2147483648
      %v3891 = vor.u32 1.1754944e-38, %v3890
      %v3892 = vsel %vm3889, %v3891, %v3887
      %v3893 = vmul.f32 %v3762, %v3892
      %v3894 = vrcp.pop %v3788
      %v3895 = vmul.f32 %v3788, %v3894
      %v3896 = vsub.f32 1.0, %v3895
      %v3897 = vmul.f32 %v3894, %v3896
      %v3898 = vadd.f32 %v3894, %v3897
      %vm3899 = vweird.f32 %v3788
      %vm3900 = vweird.f32 %v3894
      %vm3901 = vmor %vm3899, %vm3900
      %v3902 = vsel %vm3901, %v3894, %v3898
      %v3903 = vand.u32 2147483647, %v3788
      %vm3904 = vcmp.eq.f32.partialorder %v3903, 8.507059e+37
      %v3905 = vand.u32 %v3788, 2147483648
      %v3906 = vor.u32 1.1754944e-38, %v3905
      %v3907 = vsel %vm3904, %v3906, %v3902
      %v3908 = vmul.f32 %v3764, %v3907
      %3909 = vrot.lane.b32.xlu0 %v3521, 64
      %v3910 = vpop.permute.xlu0 %3909
      %3911 = vrot.lane.b32.xlu0 %v3524, 64
      %v3912 = vpop.permute.xlu0 %3911
      %v3916 = vsel %vm768, %v3803, 0
      %v3919 = vsel %vm768, %v3818, 0
      %3921 = vmatpush.msra.mxu0 0.0
      %3922 = vmatpush.msra.mxu0 0.0
      %3923 = vmatpush.msra.mxu0 0.0
      %3924 = vmatpush.msra.mxu0 0.0
      %3925 = vmatpush.msra.mxu0 0.0
      %3926 = vmatpush.msra.mxu0 0.0
      %3927 = vmatpush.msra.mxu0 0.0
      %3928 = vmatpush.msra.mxu0 0.0
      %3929 = vmatpush.msra.mxu0 0.0
      %3930 = vmatpush.msra.mxu0 0.0
      %3931 = vmatpush.msra.mxu0 0.0
      %3932 = vmatpush.msra.mxu0 0.0
      %3933 = vmatpush.msra.mxu0 0.0
      %3934 = vmatpush.msra.mxu0 0.0
      %3935 = vmatpush.msra.mxu0 %v3912
      %3936 = vmatpush.msra.mxu0 %v3910
      %3937 = vmatmul.f32.gmra.mxu0 %v3916
      %v3938 = vpop.f32.mrf.mxu0
      %v3939 = vadd.f32 0.0, %v3938
      %3940 = vmatmul.f32.gmra.mxu0 %v3919
      %v3941 = vpop.f32.mrf.mxu0
      %v3942 = vadd.f32 0.0, %v3941
      %3943 = vdwg.mxu0
      %3944 = vrot.lane.b32.xlu0 %v3527, 64
      %v3945 = vpop.permute.xlu0 %3944
      %3946 = vrot.lane.b32.xlu0 %v3530, 64
      %v3947 = vpop.permute.xlu0 %3946
      %v3951 = vsel %vm768, %v3833, 0
      %v3954 = vsel %vm768, %v3848, 0
      %3956 = vmatpush.msra.mxu0 0.0
      %3957 = vmatpush.msra.mxu0 0.0
      %3958 = vmatpush.msra.mxu0 0.0
      %3959 = vmatpush.msra.mxu0 0.0
      %3960 = vmatpush.msra.mxu0 0.0
      %3961 = vmatpush.msra.mxu0 0.0
      %3962 = vmatpush.msra.mxu0 0.0
      %3963 = vmatpush.msra.mxu0 0.0
      %3964 = vmatpush.msra.mxu0 0.0
      %3965 = vmatpush.msra.mxu0 0.0
      %3966 = vmatpush.msra.mxu0 0.0
      %3967 = vmatpush.msra.mxu0 0.0
      %3968 = vmatpush.msra.mxu0 0.0
      %3969 = vmatpush.msra.mxu0 0.0
      %3970 = vmatpush.msra.mxu0 %v3947
      %3971 = vmatpush.msra.mxu0 %v3945
      %3972 = vmatmul.f32.gmra.mxu0 %v3951
      %v3973 = vpop.f32.mrf.mxu0
      %v3974 = vadd.f32 0.0, %v3973
      %3975 = vmatmul.f32.gmra.mxu0 %v3954
      %v3976 = vpop.f32.mrf.mxu0
      %v3977 = vadd.f32 0.0, %v3976
      %3978 = vdwg.mxu0
      %3979 = vrot.lane.b32.xlu0 %v3533, 64
      %v3980 = vpop.permute.xlu0 %3979
      %3981 = vrot.lane.b32.xlu0 %v3536, 64
      %v3982 = vpop.permute.xlu0 %3981
      %v3986 = vsel %vm768, %v3863, 0
      %v3989 = vsel %vm768, %v3878, 0
      %3991 = vmatpush.msra.mxu0 0.0
      %3992 = vmatpush.msra.mxu0 0.0
      %3993 = vmatpush.msra.mxu0 0.0
      %3994 = vmatpush.msra.mxu0 0.0
      %3995 = vmatpush.msra.mxu0 0.0
      %3996 = vmatpush.msra.mxu0 0.0
      %3997 = vmatpush.msra.mxu0 0.0
      %3998 = vmatpush.msra.mxu0 0.0
      %3999 = vmatpush.msra.mxu0 0.0
      %4000 = vmatpush.msra.mxu0 0.0
      %4001 = vmatpush.msra.mxu0 0.0
      %4002 = vmatpush.msra.mxu0 0.0
      %4003 = vmatpush.msra.mxu0 0.0
      %4004 = vmatpush.msra.mxu0 0.0
      %4005 = vmatpush.msra.mxu0 %v3982
      %4006 = vmatpush.msra.mxu0 %v3980
      %4007 = vmatmul.f32.gmra.mxu0 %v3986
      %v4008 = vpop.f32.mrf.mxu0
      %v4009 = vadd.f32 0.0, %v4008
      %4010 = vmatmul.f32.gmra.mxu0 %v3989
      %v4011 = vpop.f32.mrf.mxu0
      %v4012 = vadd.f32 0.0, %v4011
      %4013 = vdwg.mxu0
      %4014 = vrot.lane.b32.xlu0 %v3539, 64
      %v4015 = vpop.permute.xlu0 %4014
      %4016 = vrot.lane.b32.xlu0 %v3542, 64
      %v4017 = vpop.permute.xlu0 %4016
      %v4021 = vsel %vm768, %v3893, 0
      %v4024 = vsel %vm768, %v3908, 0
      %4026 = vmatpush.msra.mxu0 0.0
      %4027 = vmatpush.msra.mxu0 0.0
      %4028 = vmatpush.msra.mxu0 0.0
      %4029 = vmatpush.msra.mxu0 0.0
      %4030 = vmatpush.msra.mxu0 0.0
      %4031 = vmatpush.msra.mxu0 0.0
      %4032 = vmatpush.msra.mxu0 0.0
      %4033 = vmatpush.msra.mxu0 0.0
      %4034 = vmatpush.msra.mxu0 0.0
      %4035 = vmatpush.msra.mxu0 0.0
      %4036 = vmatpush.msra.mxu0 0.0
      %4037 = vmatpush.msra.mxu0 0.0
      %4038 = vmatpush.msra.mxu0 0.0
      %4039 = vmatpush.msra.mxu0 0.0
      %4040 = vmatpush.msra.mxu0 %v4017
      %4041 = vmatpush.msra.mxu0 %v4015
      %4042 = vmatmul.f32.gmra.mxu0 %v4021
      %v4043 = vpop.f32.mrf.mxu0
      %v4044 = vadd.f32 0.0, %v4043
      %4045 = vmatmul.f32.gmra.mxu0 %v4024
      %v4046 = vpop.f32.mrf.mxu0
      %v4047 = vadd.f32 0.0, %v4046
      %4048 = vdwg.mxu0
      %4049 = vst.msk [vmem:[#allocation2] sm:$0xff] %vm617, %v3939
      %4050 = vst.msk [vmem:[#allocation2 + $0x8] sm:$0xff] %vm617, %v3942
      %4051 = vst.msk [vmem:[#allocation2 + $0x10] sm:$0xff] %vm617, %v3974
      %4052 = vst.msk [vmem:[#allocation2 + $0x18] sm:$0xff] %vm617, %v3977
      %4053 = vst.msk [vmem:[#allocation2 + $0x20] sm:$0xff] %vm617, %v4009
      %4054 = vst.msk [vmem:[#allocation2 + $0x28] sm:$0xff] %vm617, %v4012
      %4055 = vst.msk [vmem:[#allocation2 + $0x30] sm:$0xff] %vm617, %v4044
      %4056 = vst.msk [vmem:[#allocation2 + $0x38] sm:$0xff] %vm617, %v4047
      %s4057 = scalar_lea.vmem %s2, 320
      %v4058 = vld [vmem:[%s4057] sm:$0xff]
      %v4059 = vld [vmem:[%s4057 + $0x8] sm:$0xff]
      %v4060 = vld [vmem:[%s4057 + $0x10] sm:$0xff]
      %v4061 = vld [vmem:[%s4057 + $0x18] sm:$0xff]
      %v4062 = vld [vmem:[%s4057 + $0x20] sm:$0xff]
      %v4063 = vld [vmem:[%s4057 + $0x28] sm:$0xff]
      %v4064 = vld [vmem:[%s4057 + $0x30] sm:$0xff]
      %v4065 = vld [vmem:[%s4057 + $0x38] sm:$0xff]
      %4066 = vrot.lane.b32.xlu0 %v3544, 120
      %v4067 = vpop.permute.xlu0 %4066
      %4068 = vrot.lane.b32.xlu0 %v3545, 120
      %v4069 = vpop.permute.xlu0 %4068
      %4070 = vrot.lane.b32.xlu0 %v3521, 88
      %v4071 = vpop.permute.xlu0 %4070
      %4072 = vrot.lane.b32.xlu0 %v3524, 88
      %v4073 = vpop.permute.xlu0 %4072
      %v4074 = vsel %vm617, %v4067, 0
      %v4076 = vsel %vm617, %v4069, 0
      %v4078 = vsel %vm617, %v4071, 0
      %v4080 = vsel %vm617, %v4073, 0
      %4082 = vmatpush.xpose.msra.mxu0 0.0
      %4083 = vmatpush.xpose.msra.mxu0 0.0
      %4084 = vmatpush.xpose.msra.mxu0 0.0
      %4085 = vmatpush.xpose.msra.mxu0 0.0
      %4086 = vmatpush.xpose.msra.mxu0 0.0
      %4087 = vmatpush.xpose.msra.mxu0 0.0
      %4088 = vmatpush.xpose.msra.mxu0 0.0
      %4089 = vmatpush.xpose.msra.mxu0 0.0
      %4090 = vmatpush.xpose.msra.mxu0 0.0
      %4091 = vmatpush.xpose.msra.mxu0 0.0
      %4092 = vmatpush.xpose.msra.mxu0 0.0
      %4093 = vmatpush.xpose.msra.mxu0 0.0
      %4094 = vmatpush.xpose.msra.mxu0 0.0
      %4095 = vmatpush.xpose.msra.mxu0 0.0
      %4096 = vmatpush.xpose.msra.mxu0 %v4080
      %4097 = vmatpush.xpose.msra.mxu0 %v4078
      %4098 = vmatmul.f32.gmra.mxu0 %v4074
      %v4099 = vpop.f32.mrf.mxu0
      %v4100 = vadd.f32 %v4058, %v4099
      %4101 = vmatmul.f32.gmra.mxu0 %v4076
      %v4102 = vpop.f32.mrf.mxu0
      %v4103 = vadd.f32 %v4059, %v4102
      %4104 = vdwg.mxu0
      %4105 = vrot.lane.b32.xlu0 %v3546, 120
      %v4106 = vpop.permute.xlu0 %4105
      %4107 = vrot.lane.b32.xlu0 %v3547, 120
      %v4108 = vpop.permute.xlu0 %4107
      %4109 = vrot.lane.b32.xlu0 %v3527, 88
      %v4110 = vpop.permute.xlu0 %4109
      %4111 = vrot.lane.b32.xlu0 %v3530, 88
      %v4112 = vpop.permute.xlu0 %4111
      %v4113 = vsel %vm617, %v4106, 0
      %v4115 = vsel %vm617, %v4108, 0
      %v4117 = vsel %vm617, %v4110, 0
      %v4119 = vsel %vm617, %v4112, 0
      %4121 = vmatpush.xpose.msra.mxu0 0.0
      %4122 = vmatpush.xpose.msra.mxu0 0.0
      %4123 = vmatpush.xpose.msra.mxu0 0.0
      %4124 = vmatpush.xpose.msra.mxu0 0.0
      %4125 = vmatpush.xpose.msra.mxu0 0.0
      %4126 = vmatpush.xpose.msra.mxu0 0.0
      %4127 = vmatpush.xpose.msra.mxu0 0.0
      %4128 = vmatpush.xpose.msra.mxu0 0.0
      %4129 = vmatpush.xpose.msra.mxu0 0.0
      %4130 = vmatpush.xpose.msra.mxu0 0.0
      %4131 = vmatpush.xpose.msra.mxu0 0.0
      %4132 = vmatpush.xpose.msra.mxu0 0.0
      %4133 = vmatpush.xpose.msra.mxu0 0.0
      %4134 = vmatpush.xpose.msra.mxu0 0.0
      %4135 = vmatpush.xpose.msra.mxu0 %v4119
      %4136 = vmatpush.xpose.msra.mxu0 %v4117
      %4137 = vmatmul.f32.gmra.mxu0 %v4113
      %v4138 = vpop.f32.mrf.mxu0
      %v4139 = vadd.f32 %v4060, %v4138
      %4140 = vmatmul.f32.gmra.mxu0 %v4115
      %v4141 = vpop.f32.mrf.mxu0
      %v4142 = vadd.f32 %v4061, %v4141
      %4143 = vdwg.mxu0
      %4144 = vrot.lane.b32.xlu0 %v3548, 120
      %v4145 = vpop.permute.xlu0 %4144
      %4146 = vrot.lane.b32.xlu0 %v3549, 120
      %v4147 = vpop.permute.xlu0 %4146
      %4148 = vrot.lane.b32.xlu0 %v3533, 88
      %v4149 = vpop.permute.xlu0 %4148
      %4150 = vrot.lane.b32.xlu0 %v3536, 88
      %v4151 = vpop.permute.xlu0 %4150
      %v4152 = vsel %vm617, %v4145, 0
      %v4154 = vsel %vm617, %v4147, 0
      %v4156 = vsel %vm617, %v4149, 0
      %v4158 = vsel %vm617, %v4151, 0
      %4160 = vmatpush.xpose.msra.mxu0 0.0
      %4161 = vmatpush.xpose.msra.mxu0 0.0
      %4162 = vmatpush.xpose.msra.mxu0 0.0
      %4163 = vmatpush.xpose.msra.mxu0 0.0
      %4164 = vmatpush.xpose.msra.mxu0 0.0
      %4165 = vmatpush.xpose.msra.mxu0 0.0
      %4166 = vmatpush.xpose.msra.mxu0 0.0
      %4167 = vmatpush.xpose.msra.mxu0 0.0
      %4168 = vmatpush.xpose.msra.mxu0 0.0
      %4169 = vmatpush.xpose.msra.mxu0 0.0
      %4170 = vmatpush.xpose.msra.mxu0 0.0
      %4171 = vmatpush.xpose.msra.mxu0 0.0
      %4172 = vmatpush.xpose.msra.mxu0 0.0
      %4173 = vmatpush.xpose.msra.mxu0 0.0
      %4174 = vmatpush.xpose.msra.mxu0 %v4158
      %4175 = vmatpush.xpose.msra.mxu0 %v4156
      %4176 = vmatmul.f32.gmra.mxu0 %v4152
      %v4177 = vpop.f32.mrf.mxu0
      %v4178 = vadd.f32 %v4062, %v4177
      %4179 = vmatmul.f32.gmra.mxu0 %v4154
      %v4180 = vpop.f32.mrf.mxu0
      %v4181 = vadd.f32 %v4063, %v4180
      %4182 = vdwg.mxu0
      %4183 = vrot.lane.b32.xlu0 %v3550, 120
      %v4184 = vpop.permute.xlu0 %4183
      %4185 = vrot.lane.b32.xlu0 %v3551, 120
      %v4186 = vpop.permute.xlu0 %4185
      %4187 = vrot.lane.b32.xlu0 %v3539, 88
      %v4188 = vpop.permute.xlu0 %4187
      %4189 = vrot.lane.b32.xlu0 %v3542, 88
      %v4190 = vpop.permute.xlu0 %4189
      %v4191 = vsel %vm617, %v4184, 0
      %v4193 = vsel %vm617, %v4186, 0
      %v4195 = vsel %vm617, %v4188, 0
      %v4197 = vsel %vm617, %v4190, 0
      %4199 = vmatpush.xpose.msra.mxu0 0.0
      %4200 = vmatpush.xpose.msra.mxu0 0.0
      %4201 = vmatpush.xpose.msra.mxu0 0.0
      %4202 = vmatpush.xpose.msra.mxu0 0.0
      %4203 = vmatpush.xpose.msra.mxu0 0.0
      %4204 = vmatpush.xpose.msra.mxu0 0.0
      %4205 = vmatpush.xpose.msra.mxu0 0.0
      %4206 = vmatpush.xpose.msra.mxu0 0.0
      %4207 = vmatpush.xpose.msra.mxu0 0.0
      %4208 = vmatpush.xpose.msra.mxu0 0.0
      %4209 = vmatpush.xpose.msra.mxu0 0.0
      %4210 = vmatpush.xpose.msra.mxu0 0.0
      %4211 = vmatpush.xpose.msra.mxu0 0.0
      %4212 = vmatpush.xpose.msra.mxu0 0.0
      %4213 = vmatpush.xpose.msra.mxu0 %v4197
      %4214 = vmatpush.xpose.msra.mxu0 %v4195
      %4215 = vmatmul.f32.gmra.mxu0 %v4191
      %v4216 = vpop.f32.mrf.mxu0
      %v4217 = vadd.f32 %v4064, %v4216
      %4218 = vmatmul.f32.gmra.mxu0 %v4193
      %v4219 = vpop.f32.mrf.mxu0
      %v4220 = vadd.f32 %v4065, %v4219
      %4221 = vdwg.mxu0
      %v4222 = vsel %vm768, %v4100, -inf
      %4223 = vmax.xlane.f32.xlu0 %v4222
      %v4224 = vpop.xlane.xlu0 %4223
      %v4225 = vsel %vm768, %v4103, -inf
      %4226 = vmax.xlane.f32.xlu0 %v4225
      %v4227 = vpop.xlane.xlu0 %4226
      %v4228 = vsel %vm768, %v4139, -inf
      %4229 = vmax.xlane.f32.xlu0 %v4228
      %v4230 = vpop.xlane.xlu0 %4229
      %v4231 = vsel %vm768, %v4142, -inf
      %4232 = vmax.xlane.f32.xlu0 %v4231
      %v4233 = vpop.xlane.xlu0 %4232
      %v4234 = vsel %vm768, %v4178, -inf
      %4235 = vmax.xlane.f32.xlu0 %v4234
      %v4236 = vpop.xlane.xlu0 %4235
      %v4237 = vsel %vm768, %v4181, -inf
      %4238 = vmax.xlane.f32.xlu0 %v4237
      %v4239 = vpop.xlane.xlu0 %4238
      %v4240 = vsel %vm768, %v4217, -inf
      %4241 = vmax.xlane.f32.xlu0 %v4240
      %v4242 = vpop.xlane.xlu0 %4241
      %v4243 = vsel %vm768, %v4220, -inf
      %4244 = vmax.xlane.f32.xlu0 %v4243
      %v4245 = vpop.xlane.xlu0 %4244
      %v4246 = vsub.f32 %v4100, %v4224
      %v4247 = vsub.f32 %v4103, %v4227
      %v4248 = vsub.f32 %v4139, %v4230
      %v4249 = vsub.f32 %v4142, %v4233
      %v4250 = vsub.f32 %v4178, %v4236
      %v4251 = vsub.f32 %v4181, %v4239
      %v4252 = vsub.f32 %v4217, %v4242
      %v4253 = vsub.f32 %v4220, %v4245
      %v4254 = vmul.f32 %v4246, 1.442695
      %v4255 = vpow.pop %v4254
      %v4256 = vmul.f32 %v4247, 1.442695
      %v4257 = vpow.pop %v4256
      %v4258 = vmul.f32 %v4248, 1.442695
      %v4259 = vpow.pop %v4258
      %v4260 = vmul.f32 %v4249, 1.442695
      %v4261 = vpow.pop %v4260
      %v4262 = vmul.f32 %v4250, 1.442695
      %v4263 = vpow.pop %v4262
      %v4264 = vmul.f32 %v4251, 1.442695
      %v4265 = vpow.pop %v4264
      %v4266 = vmul.f32 %v4252, 1.442695
      %v4267 = vpow.pop %v4266
      %v4268 = vmul.f32 %v4253, 1.442695
      %v4269 = vpow.pop %v4268
      %v4270 = vsel %vm768, %v4255, 0.0
      %4271 = vadd.xlane.f32.xlu0 %v4270
      %v4272 = vpop.xlane.xlu0 %4271
      %v4273 = vsel %vm768, %v4257, 0.0
      %4274 = vadd.xlane.f32.xlu0 %v4273
      %v4275 = vpop.xlane.xlu0 %4274
      %v4276 = vsel %vm768, %v4259, 0.0
      %4277 = vadd.xlane.f32.xlu0 %v4276
      %v4278 = vpop.xlane.xlu0 %4277
      %v4279 = vsel %vm768, %v4261, 0.0
      %4280 = vadd.xlane.f32.xlu0 %v4279
      %v4281 = vpop.xlane.xlu0 %4280
      %v4282 = vsel %vm768, %v4263, 0.0
      %4283 = vadd.xlane.f32.xlu0 %v4282
      %v4284 = vpop.xlane.xlu0 %4283
      %v4285 = vsel %vm768, %v4265, 0.0
      %4286 = vadd.xlane.f32.xlu0 %v4285
      %v4287 = vpop.xlane.xlu0 %4286
      %v4288 = vsel %vm768, %v4267, 0.0
      %4289 = vadd.xlane.f32.xlu0 %v4288
      %v4290 = vpop.xlane.xlu0 %4289
      %v4291 = vsel %vm768, %v4269, 0.0
      %4292 = vadd.xlane.f32.xlu0 %v4291
      %v4293 = vpop.xlane.xlu0 %4292
      %v4294 = vrcp.pop %v4272
      %v4295 = vmul.f32 %v4272, %v4294
      %v4296 = vsub.f32 1.0, %v4295
      %v4297 = vmul.f32 %v4294, %v4296
      %v4298 = vadd.f32 %v4294, %v4297
      %vm4299 = vweird.f32 %v4272
      %vm4300 = vweird.f32 %v4294
      %vm4301 = vmor %vm4299, %vm4300
      %v4302 = vsel %vm4301, %v4294, %v4298
      %v4303 = vand.u32 2147483647, %v4272
      %vm4304 = vcmp.eq.f32.partialorder %v4303, 8.507059e+37
      %v4305 = vand.u32 %v4272, 2147483648
      %v4306 = vor.u32 1.1754944e-38, %v4305
      %v4307 = vsel %vm4304, %v4306, %v4302
      %v4308 = vmul.f32 %v4255, %v4307
      %v4309 = vrcp.pop %v4275
      %v4310 = vmul.f32 %v4275, %v4309
      %v4311 = vsub.f32 1.0, %v4310
      %v4312 = vmul.f32 %v4309, %v4311
      %v4313 = vadd.f32 %v4309, %v4312
      %vm4314 = vweird.f32 %v4275
      %vm4315 = vweird.f32 %v4309
      %vm4316 = vmor %vm4314, %vm4315
      %v4317 = vsel %vm4316, %v4309, %v4313
      %v4318 = vand.u32 2147483647, %v4275
      %vm4319 = vcmp.eq.f32.partialorder %v4318, 8.507059e+37
      %v4320 = vand.u32 %v4275, 2147483648
      %v4321 = vor.u32 1.1754944e-38, %v4320
      %v4322 = vsel %vm4319, %v4321, %v4317
      %v4323 = vmul.f32 %v4257, %v4322
      %v4324 = vrcp.pop %v4278
      %v4325 = vmul.f32 %v4278, %v4324
      %v4326 = vsub.f32 1.0, %v4325
      %v4327 = vmul.f32 %v4324, %v4326
      %v4328 = vadd.f32 %v4324, %v4327
      %vm4329 = vweird.f32 %v4278
      %vm4330 = vweird.f32 %v4324
      %vm4331 = vmor %vm4329, %vm4330
      %v4332 = vsel %vm4331, %v4324, %v4328
      %v4333 = vand.u32 2147483647, %v4278
      %vm4334 = vcmp.eq.f32.partialorder %v4333, 8.507059e+37
      %v4335 = vand.u32 %v4278, 2147483648
      %v4336 = vor.u32 1.1754944e-38, %v4335
      %v4337 = vsel %vm4334, %v4336, %v4332
      %v4338 = vmul.f32 %v4259, %v4337
      %v4339 = vrcp.pop %v4281
      %v4340 = vmul.f32 %v4281, %v4339
      %v4341 = vsub.f32 1.0, %v4340
      %v4342 = vmul.f32 %v4339, %v4341
      %v4343 = vadd.f32 %v4339, %v4342
      %vm4344 = vweird.f32 %v4281
      %vm4345 = vweird.f32 %v4339
      %vm4346 = vmor %vm4344, %vm4345
      %v4347 = vsel %vm4346, %v4339, %v4343
      %v4348 = vand.u32 2147483647, %v4281
      %vm4349 = vcmp.eq.f32.partialorder %v4348, 8.507059e+37
      %v4350 = vand.u32 %v4281, 2147483648
      %v4351 = vor.u32 1.1754944e-38, %v4350
      %v4352 = vsel %vm4349, %v4351, %v4347
      %v4353 = vmul.f32 %v4261, %v4352
      %v4354 = vrcp.pop %v4284
      %v4355 = vmul.f32 %v4284, %v4354
      %v4356 = vsub.f32 1.0, %v4355
      %v4357 = vmul.f32 %v4354, %v4356
      %v4358 = vadd.f32 %v4354, %v4357
      %vm4359 = vweird.f32 %v4284
      %vm4360 = vweird.f32 %v4354
      %vm4361 = vmor %vm4359, %vm4360
      %v4362 = vsel %vm4361, %v4354, %v4358
      %v4363 = vand.u32 2147483647, %v4284
      %vm4364 = vcmp.eq.f32.partialorder %v4363, 8.507059e+37
      %v4365 = vand.u32 %v4284, 2147483648
      %v4366 = vor.u32 1.1754944e-38, %v4365
      %v4367 = vsel %vm4364, %v4366, %v4362
      %v4368 = vmul.f32 %v4263, %v4367
      %v4369 = vrcp.pop %v4287
      %v4370 = vmul.f32 %v4287, %v4369
      %v4371 = vsub.f32 1.0, %v4370
      %v4372 = vmul.f32 %v4369, %v4371
      %v4373 = vadd.f32 %v4369, %v4372
      %vm4374 = vweird.f32 %v4287
      %vm4375 = vweird.f32 %v4369
      %vm4376 = vmor %vm4374, %vm4375
      %v4377 = vsel %vm4376, %v4369, %v4373
      %v4378 = vand.u32 2147483647, %v4287
      %vm4379 = vcmp.eq.f32.partialorder %v4378, 8.507059e+37
      %v4380 = vand.u32 %v4287, 2147483648
      %v4381 = vor.u32 1.1754944e-38, %v4380
      %v4382 = vsel %vm4379, %v4381, %v4377
      %v4383 = vmul.f32 %v4265, %v4382
      %v4384 = vrcp.pop %v4290
      %v4385 = vmul.f32 %v4290, %v4384
      %v4386 = vsub.f32 1.0, %v4385
      %v4387 = vmul.f32 %v4384, %v4386
      %v4388 = vadd.f32 %v4384, %v4387
      %vm4389 = vweird.f32 %v4290
      %vm4390 = vweird.f32 %v4384
      %vm4391 = vmor %vm4389, %vm4390
      %v4392 = vsel %vm4391, %v4384, %v4388
      %v4393 = vand.u32 2147483647, %v4290
      %vm4394 = vcmp.eq.f32.partialorder %v4393, 8.507059e+37
      %v4395 = vand.u32 %v4290, 2147483648
      %v4396 = vor.u32 1.1754944e-38, %v4395
      %v4397 = vsel %vm4394, %v4396, %v4392
      %v4398 = vmul.f32 %v4267, %v4397
      %v4399 = vrcp.pop %v4293
      %v4400 = vmul.f32 %v4293, %v4399
      %v4401 = vsub.f32 1.0, %v4400
      %v4402 = vmul.f32 %v4399, %v4401
      %v4403 = vadd.f32 %v4399, %v4402
      %vm4404 = vweird.f32 %v4293
      %vm4405 = vweird.f32 %v4399
      %vm4406 = vmor %vm4404, %vm4405
      %v4407 = vsel %vm4406, %v4399, %v4403
      %v4408 = vand.u32 2147483647, %v4293
      %vm4409 = vcmp.eq.f32.partialorder %v4408, 8.507059e+37
      %v4410 = vand.u32 %v4293, 2147483648
      %v4411 = vor.u32 1.1754944e-38, %v4410
      %v4412 = vsel %vm4409, %v4411, %v4407
      %v4413 = vmul.f32 %v4269, %v4412
      %4414 = vrot.lane.b32.xlu0 %v3521, 56
      %v4415 = vpop.permute.xlu0 %4414
      %4416 = vrot.lane.b32.xlu0 %v3524, 56
      %v4417 = vpop.permute.xlu0 %4416
      %v4421 = vsel %vm768, %v4308, 0
      %v4424 = vsel %vm768, %v4323, 0
      %4426 = vmatpush.msra.mxu0 0.0
      %4427 = vmatpush.msra.mxu0 0.0
      %4428 = vmatpush.msra.mxu0 0.0
      %4429 = vmatpush.msra.mxu0 0.0
      %4430 = vmatpush.msra.mxu0 0.0
      %4431 = vmatpush.msra.mxu0 0.0
      %4432 = vmatpush.msra.mxu0 0.0
      %4433 = vmatpush.msra.mxu0 0.0
      %4434 = vmatpush.msra.mxu0 0.0
      %4435 = vmatpush.msra.mxu0 0.0
      %4436 = vmatpush.msra.mxu0 0.0
      %4437 = vmatpush.msra.mxu0 0.0
      %4438 = vmatpush.msra.mxu0 0.0
      %4439 = vmatpush.msra.mxu0 0.0
      %4440 = vmatpush.msra.mxu0 %v4417
      %4441 = vmatpush.msra.mxu0 %v4415
      %4442 = vmatmul.f32.gmra.mxu0 %v4421
      %v4443 = vpop.f32.mrf.mxu0
      %v4444 = vadd.f32 0.0, %v4443
      %4445 = vmatmul.f32.gmra.mxu0 %v4424
      %v4446 = vpop.f32.mrf.mxu0
      %v4447 = vadd.f32 0.0, %v4446
      %4448 = vdwg.mxu0
      %4449 = vrot.lane.b32.xlu0 %v3527, 56
      %v4450 = vpop.permute.xlu0 %4449
      %4451 = vrot.lane.b32.xlu0 %v3530, 56
      %v4452 = vpop.permute.xlu0 %4451
      %v4456 = vsel %vm768, %v4338, 0
      %v4459 = vsel %vm768, %v4353, 0
      %4461 = vmatpush.msra.mxu0 0.0
      %4462 = vmatpush.msra.mxu0 0.0
      %4463 = vmatpush.msra.mxu0 0.0
      %4464 = vmatpush.msra.mxu0 0.0
      %4465 = vmatpush.msra.mxu0 0.0
      %4466 = vmatpush.msra.mxu0 0.0
      %4467 = vmatpush.msra.mxu0 0.0
      %4468 = vmatpush.msra.mxu0 0.0
      %4469 = vmatpush.msra.mxu0 0.0
      %4470 = vmatpush.msra.mxu0 0.0
      %4471 = vmatpush.msra.mxu0 0.0
      %4472 = vmatpush.msra.mxu0 0.0
      %4473 = vmatpush.msra.mxu0 0.0
      %4474 = vmatpush.msra.mxu0 0.0
      %4475 = vmatpush.msra.mxu0 %v4452
      %4476 = vmatpush.msra.mxu0 %v4450
      %4477 = vmatmul.f32.gmra.mxu0 %v4456
      %v4478 = vpop.f32.mrf.mxu0
      %v4479 = vadd.f32 0.0, %v4478
      %4480 = vmatmul.f32.gmra.mxu0 %v4459
      %v4481 = vpop.f32.mrf.mxu0
      %v4482 = vadd.f32 0.0, %v4481
      %4483 = vdwg.mxu0
      %4484 = vrot.lane.b32.xlu0 %v3533, 56
      %v4485 = vpop.permute.xlu0 %4484
      %4486 = vrot.lane.b32.xlu0 %v3536, 56
      %v4487 = vpop.permute.xlu0 %4486
      %v4491 = vsel %vm768, %v4368, 0
      %v4494 = vsel %vm768, %v4383, 0
      %4496 = vmatpush.msra.mxu0 0.0
      %4497 = vmatpush.msra.mxu0 0.0
      %4498 = vmatpush.msra.mxu0 0.0
      %4499 = vmatpush.msra.mxu0 0.0
      %4500 = vmatpush.msra.mxu0 0.0
      %4501 = vmatpush.msra.mxu0 0.0
      %4502 = vmatpush.msra.mxu0 0.0
      %4503 = vmatpush.msra.mxu0 0.0
      %4504 = vmatpush.msra.mxu0 0.0
      %4505 = vmatpush.msra.mxu0 0.0
      %4506 = vmatpush.msra.mxu0 0.0
      %4507 = vmatpush.msra.mxu0 0.0
      %4508 = vmatpush.msra.mxu0 0.0
      %4509 = vmatpush.msra.mxu0 0.0
      %4510 = vmatpush.msra.mxu0 %v4487
      %4511 = vmatpush.msra.mxu0 %v4485
      %4512 = vmatmul.f32.gmra.mxu0 %v4491
      %v4513 = vpop.f32.mrf.mxu0
      %v4514 = vadd.f32 0.0, %v4513
      %4515 = vmatmul.f32.gmra.mxu0 %v4494
      %v4516 = vpop.f32.mrf.mxu0
      %v4517 = vadd.f32 0.0, %v4516
      %4518 = vdwg.mxu0
      %4519 = vrot.lane.b32.xlu0 %v3539, 56
      %v4520 = vpop.permute.xlu0 %4519
      %4521 = vrot.lane.b32.xlu0 %v3542, 56
      %v4522 = vpop.permute.xlu0 %4521
      %v4526 = vsel %vm768, %v4398, 0
      %v4529 = vsel %vm768, %v4413, 0
      %4531 = vmatpush.msra.mxu0 0.0
      %4532 = vmatpush.msra.mxu0 0.0
      %4533 = vmatpush.msra.mxu0 0.0
      %4534 = vmatpush.msra.mxu0 0.0
      %4535 = vmatpush.msra.mxu0 0.0
      %4536 = vmatpush.msra.mxu0 0.0
      %4537 = vmatpush.msra.mxu0 0.0
      %4538 = vmatpush.msra.mxu0 0.0
      %4539 = vmatpush.msra.mxu0 0.0
      %4540 = vmatpush.msra.mxu0 0.0
      %4541 = vmatpush.msra.mxu0 0.0
      %4542 = vmatpush.msra.mxu0 0.0
      %4543 = vmatpush.msra.mxu0 0.0
      %4544 = vmatpush.msra.mxu0 0.0
      %4545 = vmatpush.msra.mxu0 %v4522
      %4546 = vmatpush.msra.mxu0 %v4520
      %4547 = vmatmul.f32.gmra.mxu0 %v4526
      %v4548 = vpop.f32.mrf.mxu0
      %v4549 = vadd.f32 0.0, %v4548
      %4550 = vmatmul.f32.gmra.mxu0 %v4529
      %v4551 = vpop.f32.mrf.mxu0
      %v4552 = vadd.f32 0.0, %v4551
      %4553 = vdwg.mxu0
      %4562 = vrot.lane.b32.xlu0 %v4444, 8
      %v4563 = vpop.permute.xlu0 %4562
      %4564 = vrot.lane.b32.xlu0 %v4447, 8
      %v4565 = vpop.permute.xlu0 %4564
      %4566 = vrot.lane.b32.xlu0 %v4479, 8
      %v4567 = vpop.permute.xlu0 %4566
      %4568 = vrot.lane.b32.xlu0 %v4482, 8
      %v4569 = vpop.permute.xlu0 %4568
      %4570 = vrot.lane.b32.xlu0 %v4514, 8
      %v4571 = vpop.permute.xlu0 %4570
      %4572 = vrot.lane.b32.xlu0 %v4517, 8
      %v4573 = vpop.permute.xlu0 %4572
      %4574 = vrot.lane.b32.xlu0 %v4549, 8
      %v4575 = vpop.permute.xlu0 %4574
      %4576 = vrot.lane.b32.xlu0 %v4552, 8
      %v4577 = vpop.permute.xlu0 %4576
      %4586 = vst.msk [vmem:[#allocation2] sm:$0xff] %vm1638, %v4563
      %4587 = vst.msk [vmem:[#allocation2 + $0x8] sm:$0xff] %vm1638, %v4565
      %4588 = vst.msk [vmem:[#allocation2 + $0x10] sm:$0xff] %vm1638, %v4567
      %4589 = vst.msk [vmem:[#allocation2 + $0x18] sm:$0xff] %vm1638, %v4569
      %4590 = vst.msk [vmem:[#allocation2 + $0x20] sm:$0xff] %vm1638, %v4571
      %4591 = vst.msk [vmem:[#allocation2 + $0x28] sm:$0xff] %vm1638, %v4573
      %4592 = vst.msk [vmem:[#allocation2 + $0x30] sm:$0xff] %vm1638, %v4575
      %4593 = vst.msk [vmem:[#allocation2 + $0x38] sm:$0xff] %vm1638, %v4577
      %s4594 = scalar_lea.vmem %s2, 384
      %v4595 = vld [vmem:[%s4594] sm:$0xff]
      %v4596 = vld [vmem:[%s4594 + $0x8] sm:$0xff]
      %v4597 = vld [vmem:[%s4594 + $0x10] sm:$0xff]
      %v4598 = vld [vmem:[%s4594 + $0x18] sm:$0xff]
      %v4599 = vld [vmem:[%s4594 + $0x20] sm:$0xff]
      %v4600 = vld [vmem:[%s4594 + $0x28] sm:$0xff]
      %v4601 = vld [vmem:[%s4594 + $0x30] sm:$0xff]
      %v4602 = vld [vmem:[%s4594 + $0x38] sm:$0xff]
      %4603 = vrot.lane.b32.xlu0 %v3544, 112
      %v4604 = vpop.permute.xlu0 %4603
      %4605 = vrot.lane.b32.xlu0 %v3545, 112
      %v4606 = vpop.permute.xlu0 %4605
      %4607 = vrot.lane.b32.xlu0 %v3521, 80
      %v4608 = vpop.permute.xlu0 %4607
      %4609 = vrot.lane.b32.xlu0 %v3524, 80
      %v4610 = vpop.permute.xlu0 %4609
      %v4611 = vsel %vm617, %v4604, 0
      %v4613 = vsel %vm617, %v4606, 0
      %v4615 = vsel %vm617, %v4608, 0
      %v4617 = vsel %vm617, %v4610, 0
      %4619 = vmatpush.xpose.msra.mxu0 0.0
      %4620 = vmatpush.xpose.msra.mxu0 0.0
      %4621 = vmatpush.xpose.msra.mxu0 0.0
      %4622 = vmatpush.xpose.msra.mxu0 0.0
      %4623 = vmatpush.xpose.msra.mxu0 0.0
      %4624 = vmatpush.xpose.msra.mxu0 0.0
      %4625 = vmatpush.xpose.msra.mxu0 0.0
      %4626 = vmatpush.xpose.msra.mxu0 0.0
      %4627 = vmatpush.xpose.msra.mxu0 0.0
      %4628 = vmatpush.xpose.msra.mxu0 0.0
      %4629 = vmatpush.xpose.msra.mxu0 0.0
      %4630 = vmatpush.xpose.msra.mxu0 0.0
      %4631 = vmatpush.xpose.msra.mxu0 0.0
      %4632 = vmatpush.xpose.msra.mxu0 0.0
      %4633 = vmatpush.xpose.msra.mxu0 %v4617
      %4634 = vmatpush.xpose.msra.mxu0 %v4615
      %4635 = vmatmul.f32.gmra.mxu0 %v4611
      %v4636 = vpop.f32.mrf.mxu0
      %v4637 = vadd.f32 %v4595, %v4636
      %4638 = vmatmul.f32.gmra.mxu0 %v4613
      %v4639 = vpop.f32.mrf.mxu0
      %v4640 = vadd.f32 %v4596, %v4639
      %4641 = vdwg.mxu0
      %4642 = vrot.lane.b32.xlu0 %v3546, 112
      %v4643 = vpop.permute.xlu0 %4642
      %4644 = vrot.lane.b32.xlu0 %v3547, 112
      %v4645 = vpop.permute.xlu0 %4644
      %4646 = vrot.lane.b32.xlu0 %v3527, 80
      %v4647 = vpop.permute.xlu0 %4646
      %4648 = vrot.lane.b32.xlu0 %v3530, 80
      %v4649 = vpop.permute.xlu0 %4648
      %v4650 = vsel %vm617, %v4643, 0
      %v4652 = vsel %vm617, %v4645, 0
      %v4654 = vsel %vm617, %v4647, 0
      %v4656 = vsel %vm617, %v4649, 0
      %4658 = vmatpush.xpose.msra.mxu0 0.0
      %4659 = vmatpush.xpose.msra.mxu0 0.0
      %4660 = vmatpush.xpose.msra.mxu0 0.0
      %4661 = vmatpush.xpose.msra.mxu0 0.0
      %4662 = vmatpush.xpose.msra.mxu0 0.0
      %4663 = vmatpush.xpose.msra.mxu0 0.0
      %4664 = vmatpush.xpose.msra.mxu0 0.0
      %4665 = vmatpush.xpose.msra.mxu0 0.0
      %4666 = vmatpush.xpose.msra.mxu0 0.0
      %4667 = vmatpush.xpose.msra.mxu0 0.0
      %4668 = vmatpush.xpose.msra.mxu0 0.0
      %4669 = vmatpush.xpose.msra.mxu0 0.0
      %4670 = vmatpush.xpose.msra.mxu0 0.0
      %4671 = vmatpush.xpose.msra.mxu0 0.0
      %4672 = vmatpush.xpose.msra.mxu0 %v4656
      %4673 = vmatpush.xpose.msra.mxu0 %v4654
      %4674 = vmatmul.f32.gmra.mxu0 %v4650
      %v4675 = vpop.f32.mrf.mxu0
      %v4676 = vadd.f32 %v4597, %v4675
      %4677 = vmatmul.f32.gmra.mxu0 %v4652
      %v4678 = vpop.f32.mrf.mxu0
      %v4679 = vadd.f32 %v4598, %v4678
      %4680 = vdwg.mxu0
      %4681 = vrot.lane.b32.xlu0 %v3548, 112
      %v4682 = vpop.permute.xlu0 %4681
      %4683 = vrot.lane.b32.xlu0 %v3549, 112
      %v4684 = vpop.permute.xlu0 %4683
      %4685 = vrot.lane.b32.xlu0 %v3533, 80
      %v4686 = vpop.permute.xlu0 %4685
      %4687 = vrot.lane.b32.xlu0 %v3536, 80
      %v4688 = vpop.permute.xlu0 %4687
      %v4689 = vsel %vm617, %v4682, 0
      %v4691 = vsel %vm617, %v4684, 0
      %v4693 = vsel %vm617, %v4686, 0
      %v4695 = vsel %vm617, %v4688, 0
      %4697 = vmatpush.xpose.msra.mxu0 0.0
      %4698 = vmatpush.xpose.msra.mxu0 0.0
      %4699 = vmatpush.xpose.msra.mxu0 0.0
      %4700 = vmatpush.xpose.msra.mxu0 0.0
      %4701 = vmatpush.xpose.msra.mxu0 0.0
      %4702 = vmatpush.xpose.msra.mxu0 0.0
      %4703 = vmatpush.xpose.msra.mxu0 0.0
      %4704 = vmatpush.xpose.msra.mxu0 0.0
      %4705 = vmatpush.xpose.msra.mxu0 0.0
      %4706 = vmatpush.xpose.msra.mxu0 0.0
      %4707 = vmatpush.xpose.msra.mxu0 0.0
      %4708 = vmatpush.xpose.msra.mxu0 0.0
      %4709 = vmatpush.xpose.msra.mxu0 0.0
      %4710 = vmatpush.xpose.msra.mxu0 0.0
      %4711 = vmatpush.xpose.msra.mxu0 %v4695
      %4712 = vmatpush.xpose.msra.mxu0 %v4693
      %4713 = vmatmul.f32.gmra.mxu0 %v4689
      %v4714 = vpop.f32.mrf.mxu0
      %v4715 = vadd.f32 %v4599, %v4714
      %4716 = vmatmul.f32.gmra.mxu0 %v4691
      %v4717 = vpop.f32.mrf.mxu0
      %v4718 = vadd.f32 %v4600, %v4717
      %4719 = vdwg.mxu0
      %4720 = vrot.lane.b32.xlu0 %v3550, 112
      %v4721 = vpop.permute.xlu0 %4720
      %4722 = vrot.lane.b32.xlu0 %v3551, 112
      %v4723 = vpop.permute.xlu0 %4722
      %4724 = vrot.lane.b32.xlu0 %v3539, 80
      %v4725 = vpop.permute.xlu0 %4724
      %4726 = vrot.lane.b32.xlu0 %v3542, 80
      %v4727 = vpop.permute.xlu0 %4726
      %v4728 = vsel %vm617, %v4721, 0
      %v4730 = vsel %vm617, %v4723, 0
      %v4732 = vsel %vm617, %v4725, 0
      %v4734 = vsel %vm617, %v4727, 0
      %4736 = vmatpush.xpose.msra.mxu0 0.0
      %4737 = vmatpush.xpose.msra.mxu0 0.0
      %4738 = vmatpush.xpose.msra.mxu0 0.0
      %4739 = vmatpush.xpose.msra.mxu0 0.0
      %4740 = vmatpush.xpose.msra.mxu0 0.0
      %4741 = vmatpush.xpose.msra.mxu0 0.0
      %4742 = vmatpush.xpose.msra.mxu0 0.0
      %4743 = vmatpush.xpose.msra.mxu0 0.0
      %4744 = vmatpush.xpose.msra.mxu0 0.0
      %4745 = vmatpush.xpose.msra.mxu0 0.0
      %4746 = vmatpush.xpose.msra.mxu0 0.0
      %4747 = vmatpush.xpose.msra.mxu0 0.0
      %4748 = vmatpush.xpose.msra.mxu0 0.0
      %4749 = vmatpush.xpose.msra.mxu0 0.0
      %4750 = vmatpush.xpose.msra.mxu0 %v4734
      %4751 = vmatpush.xpose.msra.mxu0 %v4732
      %4752 = vmatmul.f32.gmra.mxu0 %v4728
      %v4753 = vpop.f32.mrf.mxu0
      %v4754 = vadd.f32 %v4601, %v4753
      %4755 = vmatmul.f32.gmra.mxu0 %v4730
      %v4756 = vpop.f32.mrf.mxu0
      %v4757 = vadd.f32 %v4602, %v4756
      %4758 = vdwg.mxu0
      %v4759 = vsel %vm768, %v4637, -inf
      %4760 = vmax.xlane.f32.xlu0 %v4759
      %v4761 = vpop.xlane.xlu0 %4760
      %v4762 = vsel %vm768, %v4640, -inf
      %4763 = vmax.xlane.f32.xlu0 %v4762
      %v4764 = vpop.xlane.xlu0 %4763
      %v4765 = vsel %vm768, %v4676, -inf
      %4766 = vmax.xlane.f32.xlu0 %v4765
      %v4767 = vpop.xlane.xlu0 %4766
      %v4768 = vsel %vm768, %v4679, -inf
      %4769 = vmax.xlane.f32.xlu0 %v4768
      %v4770 = vpop.xlane.xlu0 %4769
      %v4771 = vsel %vm768, %v4715, -inf
      %4772 = vmax.xlane.f32.xlu0 %v4771
      %v4773 = vpop.xlane.xlu0 %4772
      %v4774 = vsel %vm768, %v4718, -inf
      %4775 = vmax.xlane.f32.xlu0 %v4774
      %v4776 = vpop.xlane.xlu0 %4775
      %v4777 = vsel %vm768, %v4754, -inf
      %4778 = vmax.xlane.f32.xlu0 %v4777
      %v4779 = vpop.xlane.xlu0 %4778
      %v4780 = vsel %vm768, %v4757, -inf
      %4781 = vmax.xlane.f32.xlu0 %v4780
      %v4782 = vpop.xlane.xlu0 %4781
      %v4783 = vsub.f32 %v4637, %v4761
      %v4784 = vsub.f32 %v4640, %v4764
      %v4785 = vsub.f32 %v4676, %v4767
      %v4786 = vsub.f32 %v4679, %v4770
      %v4787 = vsub.f32 %v4715, %v4773
      %v4788 = vsub.f32 %v4718, %v4776
      %v4789 = vsub.f32 %v4754, %v4779
      %v4790 = vsub.f32 %v4757, %v4782
      %v4791 = vmul.f32 %v4783, 1.442695
      %v4792 = vpow.pop %v4791
      %v4793 = vmul.f32 %v4784, 1.442695
      %v4794 = vpow.pop %v4793
      %v4795 = vmul.f32 %v4785, 1.442695
      %v4796 = vpow.pop %v4795
      %v4797 = vmul.f32 %v4786, 1.442695
      %v4798 = vpow.pop %v4797
      %v4799 = vmul.f32 %v4787, 1.442695
      %v4800 = vpow.pop %v4799
      %v4801 = vmul.f32 %v4788, 1.442695
      %v4802 = vpow.pop %v4801
      %v4803 = vmul.f32 %v4789, 1.442695
      %v4804 = vpow.pop %v4803
      %v4805 = vmul.f32 %v4790, 1.442695
      %v4806 = vpow.pop %v4805
      %v4807 = vsel %vm768, %v4792, 0.0
      %4808 = vadd.xlane.f32.xlu0 %v4807
      %v4809 = vpop.xlane.xlu0 %4808
      %v4810 = vsel %vm768, %v4794, 0.0
      %4811 = vadd.xlane.f32.xlu0 %v4810
      %v4812 = vpop.xlane.xlu0 %4811
      %v4813 = vsel %vm768, %v4796, 0.0
      %4814 = vadd.xlane.f32.xlu0 %v4813
      %v4815 = vpop.xlane.xlu0 %4814
      %v4816 = vsel %vm768, %v4798, 0.0
      %4817 = vadd.xlane.f32.xlu0 %v4816
      %v4818 = vpop.xlane.xlu0 %4817
      %v4819 = vsel %vm768, %v4800, 0.0
      %4820 = vadd.xlane.f32.xlu0 %v4819
      %v4821 = vpop.xlane.xlu0 %4820
      %v4822 = vsel %vm768, %v4802, 0.0
      %4823 = vadd.xlane.f32.xlu0 %v4822
      %v4824 = vpop.xlane.xlu0 %4823
      %v4825 = vsel %vm768, %v4804, 0.0
      %4826 = vadd.xlane.f32.xlu0 %v4825
      %v4827 = vpop.xlane.xlu0 %4826
      %v4828 = vsel %vm768, %v4806, 0.0
      %4829 = vadd.xlane.f32.xlu0 %v4828
      %v4830 = vpop.xlane.xlu0 %4829
      %v4831 = vrcp.pop %v4809
      %v4832 = vmul.f32 %v4809, %v4831
      %v4833 = vsub.f32 1.0, %v4832
      %v4834 = vmul.f32 %v4831, %v4833
      %v4835 = vadd.f32 %v4831, %v4834
      %vm4836 = vweird.f32 %v4809
      %vm4837 = vweird.f32 %v4831
      %vm4838 = vmor %vm4836, %vm4837
      %v4839 = vsel %vm4838, %v4831, %v4835
      %v4840 = vand.u32 2147483647, %v4809
      %vm4841 = vcmp.eq.f32.partialorder %v4840, 8.507059e+37
      %v4842 = vand.u32 %v4809, 2147483648
      %v4843 = vor.u32 1.1754944e-38, %v4842
      %v4844 = vsel %vm4841, %v4843, %v4839
      %v4845 = vmul.f32 %v4792, %v4844
      %v4846 = vrcp.pop %v4812
      %v4847 = vmul.f32 %v4812, %v4846
      %v4848 = vsub.f32 1.0, %v4847
      %v4849 = vmul.f32 %v4846, %v4848
      %v4850 = vadd.f32 %v4846, %v4849
      %vm4851 = vweird.f32 %v4812
      %vm4852 = vweird.f32 %v4846
      %vm4853 = vmor %vm4851, %vm4852
      %v4854 = vsel %vm4853, %v4846, %v4850
      %v4855 = vand.u32 2147483647, %v4812
      %vm4856 = vcmp.eq.f32.partialorder %v4855, 8.507059e+37
      %v4857 = vand.u32 %v4812, 2147483648
      %v4858 = vor.u32 1.1754944e-38, %v4857
      %v4859 = vsel %vm4856, %v4858, %v4854
      %v4860 = vmul.f32 %v4794, %v4859
      %v4861 = vrcp.pop %v4815
      %v4862 = vmul.f32 %v4815, %v4861
      %v4863 = vsub.f32 1.0, %v4862
      %v4864 = vmul.f32 %v4861, %v4863
      %v4865 = vadd.f32 %v4861, %v4864
      %vm4866 = vweird.f32 %v4815
      %vm4867 = vweird.f32 %v4861
      %vm4868 = vmor %vm4866, %vm4867
      %v4869 = vsel %vm4868, %v4861, %v4865
      %v4870 = vand.u32 2147483647, %v4815
      %vm4871 = vcmp.eq.f32.partialorder %v4870, 8.507059e+37
      %v4872 = vand.u32 %v4815, 2147483648
      %v4873 = vor.u32 1.1754944e-38, %v4872
      %v4874 = vsel %vm4871, %v4873, %v4869
      %v4875 = vmul.f32 %v4796, %v4874
      %v4876 = vrcp.pop %v4818
      %v4877 = vmul.f32 %v4818, %v4876
      %v4878 = vsub.f32 1.0, %v4877
      %v4879 = vmul.f32 %v4876, %v4878
      %v4880 = vadd.f32 %v4876, %v4879
      %vm4881 = vweird.f32 %v4818
      %vm4882 = vweird.f32 %v4876
      %vm4883 = vmor %vm4881, %vm4882
      %v4884 = vsel %vm4883, %v4876, %v4880
      %v4885 = vand.u32 2147483647, %v4818
      %vm4886 = vcmp.eq.f32.partialorder %v4885, 8.507059e+37
      %v4887 = vand.u32 %v4818, 2147483648
      %v4888 = vor.u32 1.1754944e-38, %v4887
      %v4889 = vsel %vm4886, %v4888, %v4884
      %v4890 = vmul.f32 %v4798, %v4889
      %v4891 = vrcp.pop %v4821
      %v4892 = vmul.f32 %v4821, %v4891
      %v4893 = vsub.f32 1.0, %v4892
      %v4894 = vmul.f32 %v4891, %v4893
      %v4895 = vadd.f32 %v4891, %v4894
      %vm4896 = vweird.f32 %v4821
      %vm4897 = vweird.f32 %v4891
      %vm4898 = vmor %vm4896, %vm4897
      %v4899 = vsel %vm4898, %v4891, %v4895
      %v4900 = vand.u32 2147483647, %v4821
      %vm4901 = vcmp.eq.f32.partialorder %v4900, 8.507059e+37
      %v4902 = vand.u32 %v4821, 2147483648
      %v4903 = vor.u32 1.1754944e-38, %v4902
      %v4904 = vsel %vm4901, %v4903, %v4899
      %v4905 = vmul.f32 %v4800, %v4904
      %v4906 = vrcp.pop %v4824
      %v4907 = vmul.f32 %v4824, %v4906
      %v4908 = vsub.f32 1.0, %v4907
      %v4909 = vmul.f32 %v4906, %v4908
      %v4910 = vadd.f32 %v4906, %v4909
      %vm4911 = vweird.f32 %v4824
      %vm4912 = vweird.f32 %v4906
      %vm4913 = vmor %vm4911, %vm4912
      %v4914 = vsel %vm4913, %v4906, %v4910
      %v4915 = vand.u32 2147483647, %v4824
      %vm4916 = vcmp.eq.f32.partialorder %v4915, 8.507059e+37
      %v4917 = vand.u32 %v4824, 2147483648
      %v4918 = vor.u32 1.1754944e-38, %v4917
      %v4919 = vsel %vm4916, %v4918, %v4914
      %v4920 = vmul.f32 %v4802, %v4919
      %v4921 = vrcp.pop %v4827
      %v4922 = vmul.f32 %v4827, %v4921
      %v4923 = vsub.f32 1.0, %v4922
      %v4924 = vmul.f32 %v4921, %v4923
      %v4925 = vadd.f32 %v4921, %v4924
      %vm4926 = vweird.f32 %v4827
      %vm4927 = vweird.f32 %v4921
      %vm4928 = vmor %vm4926, %vm4927
      %v4929 = vsel %vm4928, %v4921, %v4925
      %v4930 = vand.u32 2147483647, %v4827
      %vm4931 = vcmp.eq.f32.partialorder %v4930, 8.507059e+37
      %v4932 = vand.u32 %v4827, 2147483648
      %v4933 = vor.u32 1.1754944e-38, %v4932
      %v4934 = vsel %vm4931, %v4933, %v4929
      %v4935 = vmul.f32 %v4804, %v4934
      %v4936 = vrcp.pop %v4830
      %v4937 = vmul.f32 %v4830, %v4936
      %v4938 = vsub.f32 1.0, %v4937
      %v4939 = vmul.f32 %v4936, %v4938
      %v4940 = vadd.f32 %v4936, %v4939
      %vm4941 = vweird.f32 %v4830
      %vm4942 = vweird.f32 %v4936
      %vm4943 = vmor %vm4941, %vm4942
      %v4944 = vsel %vm4943, %v4936, %v4940
      %v4945 = vand.u32 2147483647, %v4830
      %vm4946 = vcmp.eq.f32.partialorder %v4945, 8.507059e+37
      %v4947 = vand.u32 %v4830, 2147483648
      %v4948 = vor.u32 1.1754944e-38, %v4947
      %v4949 = vsel %vm4946, %v4948, %v4944
      %v4950 = vmul.f32 %v4806, %v4949
      %4951 = vrot.lane.b32.xlu0 %v3521, 48
      %v4952 = vpop.permute.xlu0 %4951
      %4953 = vrot.lane.b32.xlu0 %v3524, 48
      %v4954 = vpop.permute.xlu0 %4953
      %v4958 = vsel %vm768, %v4845, 0
      %v4961 = vsel %vm768, %v4860, 0
      %4963 = vmatpush.msra.mxu0 0.0
      %4964 = vmatpush.msra.mxu0 0.0
      %4965 = vmatpush.msra.mxu0 0.0
      %4966 = vmatpush.msra.mxu0 0.0
      %4967 = vmatpush.msra.mxu0 0.0
      %4968 = vmatpush.msra.mxu0 0.0
      %4969 = vmatpush.msra.mxu0 0.0
      %4970 = vmatpush.msra.mxu0 0.0
      %4971 = vmatpush.msra.mxu0 0.0
      %4972 = vmatpush.msra.mxu0 0.0
      %4973 = vmatpush.msra.mxu0 0.0
      %4974 = vmatpush.msra.mxu0 0.0
      %4975 = vmatpush.msra.mxu0 0.0
      %4976 = vmatpush.msra.mxu0 0.0
      %4977 = vmatpush.msra.mxu0 %v4954
      %4978 = vmatpush.msra.mxu0 %v4952
      %4979 = vmatmul.f32.gmra.mxu0 %v4958
      %v4980 = vpop.f32.mrf.mxu0
      %v4981 = vadd.f32 0.0, %v4980
      %4982 = vmatmul.f32.gmra.mxu0 %v4961
      %v4983 = vpop.f32.mrf.mxu0
      %v4984 = vadd.f32 0.0, %v4983
      %4985 = vdwg.mxu0
      %4986 = vrot.lane.b32.xlu0 %v3527, 48
      %v4987 = vpop.permute.xlu0 %4986
      %4988 = vrot.lane.b32.xlu0 %v3530, 48
      %v4989 = vpop.permute.xlu0 %4988
      %v4993 = vsel %vm768, %v4875, 0
      %v4996 = vsel %vm768, %v4890, 0
      %4998 = vmatpush.msra.mxu0 0.0
      %4999 = vmatpush.msra.mxu0 0.0
      %5000 = vmatpush.msra.mxu0 0.0
      %5001 = vmatpush.msra.mxu0 0.0
      %5002 = vmatpush.msra.mxu0 0.0
      %5003 = vmatpush.msra.mxu0 0.0
      %5004 = vmatpush.msra.mxu0 0.0
      %5005 = vmatpush.msra.mxu0 0.0
      %5006 = vmatpush.msra.mxu0 0.0
      %5007 = vmatpush.msra.mxu0 0.0
      %5008 = vmatpush.msra.mxu0 0.0
      %5009 = vmatpush.msra.mxu0 0.0
      %5010 = vmatpush.msra.mxu0 0.0
      %5011 = vmatpush.msra.mxu0 0.0
      %5012 = vmatpush.msra.mxu0 %v4989
      %5013 = vmatpush.msra.mxu0 %v4987
      %5014 = vmatmul.f32.gmra.mxu0 %v4993
      %v5015 = vpop.f32.mrf.mxu0
      %v5016 = vadd.f32 0.0, %v5015
      %5017 = vmatmul.f32.gmra.mxu0 %v4996
      %v5018 = vpop.f32.mrf.mxu0
      %v5019 = vadd.f32 0.0, %v5018
      %5020 = vdwg.mxu0
      %5021 = vrot.lane.b32.xlu0 %v3533, 48
      %v5022 = vpop.permute.xlu0 %5021
      %5023 = vrot.lane.b32.xlu0 %v3536, 48
      %v5024 = vpop.permute.xlu0 %5023
      %v5028 = vsel %vm768, %v4905, 0
      %v5031 = vsel %vm768, %v4920, 0
      %5033 = vmatpush.msra.mxu0 0.0
      %5034 = vmatpush.msra.mxu0 0.0
      %5035 = vmatpush.msra.mxu0 0.0
      %5036 = vmatpush.msra.mxu0 0.0
      %5037 = vmatpush.msra.mxu0 0.0
      %5038 = vmatpush.msra.mxu0 0.0
      %5039 = vmatpush.msra.mxu0 0.0
      %5040 = vmatpush.msra.mxu0 0.0
      %5041 = vmatpush.msra.mxu0 0.0
      %5042 = vmatpush.msra.mxu0 0.0
      %5043 = vmatpush.msra.mxu0 0.0
      %5044 = vmatpush.msra.mxu0 0.0
      %5045 = vmatpush.msra.mxu0 0.0
      %5046 = vmatpush.msra.mxu0 0.0
      %5047 = vmatpush.msra.mxu0 %v5024
      %5048 = vmatpush.msra.mxu0 %v5022
      %5049 = vmatmul.f32.gmra.mxu0 %v5028
      %v5050 = vpop.f32.mrf.mxu0
      %v5051 = vadd.f32 0.0, %v5050
      %5052 = vmatmul.f32.gmra.mxu0 %v5031
      %v5053 = vpop.f32.mrf.mxu0
      %v5054 = vadd.f32 0.0, %v5053
      %5055 = vdwg.mxu0
      %5056 = vrot.lane.b32.xlu0 %v3539, 48
      %v5057 = vpop.permute.xlu0 %5056
      %5058 = vrot.lane.b32.xlu0 %v3542, 48
      %v5059 = vpop.permute.xlu0 %5058
      %v5063 = vsel %vm768, %v4935, 0
      %v5066 = vsel %vm768, %v4950, 0
      %5068 = vmatpush.msra.mxu0 0.0
      %5069 = vmatpush.msra.mxu0 0.0
      %5070 = vmatpush.msra.mxu0 0.0
      %5071 = vmatpush.msra.mxu0 0.0
      %5072 = vmatpush.msra.mxu0 0.0
      %5073 = vmatpush.msra.mxu0 0.0
      %5074 = vmatpush.msra.mxu0 0.0
      %5075 = vmatpush.msra.mxu0 0.0
      %5076 = vmatpush.msra.mxu0 0.0
      %5077 = vmatpush.msra.mxu0 0.0
      %5078 = vmatpush.msra.mxu0 0.0
      %5079 = vmatpush.msra.mxu0 0.0
      %5080 = vmatpush.msra.mxu0 0.0
      %5081 = vmatpush.msra.mxu0 0.0
      %5082 = vmatpush.msra.mxu0 %v5059
      %5083 = vmatpush.msra.mxu0 %v5057
      %5084 = vmatmul.f32.gmra.mxu0 %v5063
      %v5085 = vpop.f32.mrf.mxu0
      %v5086 = vadd.f32 0.0, %v5085
      %5087 = vmatmul.f32.gmra.mxu0 %v5066
      %v5088 = vpop.f32.mrf.mxu0
      %v5089 = vadd.f32 0.0, %v5088
      %5090 = vdwg.mxu0
      %5099 = vrot.lane.b32.xlu0 %v4981, 16
      %v5100 = vpop.permute.xlu0 %5099
      %5101 = vrot.lane.b32.xlu0 %v4984, 16
      %v5102 = vpop.permute.xlu0 %5101
      %5103 = vrot.lane.b32.xlu0 %v5016, 16
      %v5104 = vpop.permute.xlu0 %5103
      %5105 = vrot.lane.b32.xlu0 %v5019, 16
      %v5106 = vpop.permute.xlu0 %5105
      %5107 = vrot.lane.b32.xlu0 %v5051, 16
      %v5108 = vpop.permute.xlu0 %5107
      %5109 = vrot.lane.b32.xlu0 %v5054, 16
      %v5110 = vpop.permute.xlu0 %5109
      %5111 = vrot.lane.b32.xlu0 %v5086, 16
      %v5112 = vpop.permute.xlu0 %5111
      %5113 = vrot.lane.b32.xlu0 %v5089, 16
      %v5114 = vpop.permute.xlu0 %5113
      %5123 = vst.msk [vmem:[#allocation2] sm:$0xff] %vm2176, %v5100
      %5124 = vst.msk [vmem:[#allocation2 + $0x8] sm:$0xff] %vm2176, %v5102
      %5125 = vst.msk [vmem:[#allocation2 + $0x10] sm:$0xff] %vm2176, %v5104
      %5126 = vst.msk [vmem:[#allocation2 + $0x18] sm:$0xff] %vm2176, %v5106
      %5127 = vst.msk [vmem:[#allocation2 + $0x20] sm:$0xff] %vm2176, %v5108
      %5128 = vst.msk [vmem:[#allocation2 + $0x28] sm:$0xff] %vm2176, %v5110
      %5129 = vst.msk [vmem:[#allocation2 + $0x30] sm:$0xff] %vm2176, %v5112
      %5130 = vst.msk [vmem:[#allocation2 + $0x38] sm:$0xff] %vm2176, %v5114
      %s5131 = scalar_lea.vmem %s2, 448
      %v5132 = vld [vmem:[%s5131] sm:$0xff]
      %v5133 = vld [vmem:[%s5131 + $0x8] sm:$0xff]
      %v5134 = vld [vmem:[%s5131 + $0x10] sm:$0xff]
      %v5135 = vld [vmem:[%s5131 + $0x18] sm:$0xff]
      %v5136 = vld [vmem:[%s5131 + $0x20] sm:$0xff]
      %v5137 = vld [vmem:[%s5131 + $0x28] sm:$0xff]
      %v5138 = vld [vmem:[%s5131 + $0x30] sm:$0xff]
      %v5139 = vld [vmem:[%s5131 + $0x38] sm:$0xff]
      %5140 = vrot.lane.b32.xlu0 %v3544, 104
      %v5141 = vpop.permute.xlu0 %5140
      %5142 = vrot.lane.b32.xlu0 %v3545, 104
      %v5143 = vpop.permute.xlu0 %5142
      %5144 = vrot.lane.b32.xlu0 %v3521, 72
      %v5145 = vpop.permute.xlu0 %5144
      %5146 = vrot.lane.b32.xlu0 %v3524, 72
      %v5147 = vpop.permute.xlu0 %5146
      %v5148 = vsel %vm617, %v5141, 0
      %v5150 = vsel %vm617, %v5143, 0
      %v5152 = vsel %vm617, %v5145, 0
      %v5154 = vsel %vm617, %v5147, 0
      %5156 = vmatpush.xpose.msra.mxu0 0.0
      %5157 = vmatpush.xpose.msra.mxu0 0.0
      %5158 = vmatpush.xpose.msra.mxu0 0.0
      %5159 = vmatpush.xpose.msra.mxu0 0.0
      %5160 = vmatpush.xpose.msra.mxu0 0.0
      %5161 = vmatpush.xpose.msra.mxu0 0.0
      %5162 = vmatpush.xpose.msra.mxu0 0.0
      %5163 = vmatpush.xpose.msra.mxu0 0.0
      %5164 = vmatpush.xpose.msra.mxu0 0.0
      %5165 = vmatpush.xpose.msra.mxu0 0.0
      %5166 = vmatpush.xpose.msra.mxu0 0.0
      %5167 = vmatpush.xpose.msra.mxu0 0.0
      %5168 = vmatpush.xpose.msra.mxu0 0.0
      %5169 = vmatpush.xpose.msra.mxu0 0.0
      %5170 = vmatpush.xpose.msra.mxu0 %v5154
      %5171 = vmatpush.xpose.msra.mxu0 %v5152
      %5172 = vmatmul.f32.gmra.mxu0 %v5148
      %v5173 = vpop.f32.mrf.mxu0
      %v5174 = vadd.f32 %v5132, %v5173
      %5175 = vmatmul.f32.gmra.mxu0 %v5150
      %v5176 = vpop.f32.mrf.mxu0
      %v5177 = vadd.f32 %v5133, %v5176
      %5178 = vdwg.mxu0
      %5179 = vrot.lane.b32.xlu0 %v3546, 104
      %v5180 = vpop.permute.xlu0 %5179
      %5181 = vrot.lane.b32.xlu0 %v3547, 104
      %v5182 = vpop.permute.xlu0 %5181
      %5183 = vrot.lane.b32.xlu0 %v3527, 72
      %v5184 = vpop.permute.xlu0 %5183
      %5185 = vrot.lane.b32.xlu0 %v3530, 72
      %v5186 = vpop.permute.xlu0 %5185
      %v5187 = vsel %vm617, %v5180, 0
      %v5189 = vsel %vm617, %v5182, 0
      %v5191 = vsel %vm617, %v5184, 0
      %v5193 = vsel %vm617, %v5186, 0
      %5195 = vmatpush.xpose.msra.mxu0 0.0
      %5196 = vmatpush.xpose.msra.mxu0 0.0
      %5197 = vmatpush.xpose.msra.mxu0 0.0
      %5198 = vmatpush.xpose.msra.mxu0 0.0
      %5199 = vmatpush.xpose.msra.mxu0 0.0
      %5200 = vmatpush.xpose.msra.mxu0 0.0
      %5201 = vmatpush.xpose.msra.mxu0 0.0
      %5202 = vmatpush.xpose.msra.mxu0 0.0
      %5203 = vmatpush.xpose.msra.mxu0 0.0
      %5204 = vmatpush.xpose.msra.mxu0 0.0
      %5205 = vmatpush.xpose.msra.mxu0 0.0
      %5206 = vmatpush.xpose.msra.mxu0 0.0
      %5207 = vmatpush.xpose.msra.mxu0 0.0
      %5208 = vmatpush.xpose.msra.mxu0 0.0
      %5209 = vmatpush.xpose.msra.mxu0 %v5193
      %5210 = vmatpush.xpose.msra.mxu0 %v5191
      %5211 = vmatmul.f32.gmra.mxu0 %v5187
      %v5212 = vpop.f32.mrf.mxu0
      %v5213 = vadd.f32 %v5134, %v5212
      %5214 = vmatmul.f32.gmra.mxu0 %v5189
      %v5215 = vpop.f32.mrf.mxu0
      %v5216 = vadd.f32 %v5135, %v5215
      %5217 = vdwg.mxu0
      %5218 = vrot.lane.b32.xlu0 %v3548, 104
      %v5219 = vpop.permute.xlu0 %5218
      %5220 = vrot.lane.b32.xlu0 %v3549, 104
      %v5221 = vpop.permute.xlu0 %5220
      %5222 = vrot.lane.b32.xlu0 %v3533, 72
      %v5223 = vpop.permute.xlu0 %5222
      %5224 = vrot.lane.b32.xlu0 %v3536, 72
      %v5225 = vpop.permute.xlu0 %5224
      %v5226 = vsel %vm617, %v5219, 0
      %v5228 = vsel %vm617, %v5221, 0
      %v5230 = vsel %vm617, %v5223, 0
      %v5232 = vsel %vm617, %v5225, 0
      %5234 = vmatpush.xpose.msra.mxu0 0.0
      %5235 = vmatpush.xpose.msra.mxu0 0.0
      %5236 = vmatpush.xpose.msra.mxu0 0.0
      %5237 = vmatpush.xpose.msra.mxu0 0.0
      %5238 = vmatpush.xpose.msra.mxu0 0.0
      %5239 = vmatpush.xpose.msra.mxu0 0.0
      %5240 = vmatpush.xpose.msra.mxu0 0.0
      %5241 = vmatpush.xpose.msra.mxu0 0.0
      %5242 = vmatpush.xpose.msra.mxu0 0.0
      %5243 = vmatpush.xpose.msra.mxu0 0.0
      %5244 = vmatpush.xpose.msra.mxu0 0.0
      %5245 = vmatpush.xpose.msra.mxu0 0.0
      %5246 = vmatpush.xpose.msra.mxu0 0.0
      %5247 = vmatpush.xpose.msra.mxu0 0.0
      %5248 = vmatpush.xpose.msra.mxu0 %v5232
      %5249 = vmatpush.xpose.msra.mxu0 %v5230
      %5250 = vmatmul.f32.gmra.mxu0 %v5226
      %v5251 = vpop.f32.mrf.mxu0
      %v5252 = vadd.f32 %v5136, %v5251
      %5253 = vmatmul.f32.gmra.mxu0 %v5228
      %v5254 = vpop.f32.mrf.mxu0
      %v5255 = vadd.f32 %v5137, %v5254
      %5256 = vdwg.mxu0
      %5257 = vrot.lane.b32.xlu0 %v3550, 104
      %v5258 = vpop.permute.xlu0 %5257
      %5259 = vrot.lane.b32.xlu0 %v3551, 104
      %v5260 = vpop.permute.xlu0 %5259
      %5261 = vrot.lane.b32.xlu0 %v3539, 72
      %v5262 = vpop.permute.xlu0 %5261
      %5263 = vrot.lane.b32.xlu0 %v3542, 72
      %v5264 = vpop.permute.xlu0 %5263
      %v5265 = vsel %vm617, %v5258, 0
      %v5267 = vsel %vm617, %v5260, 0
      %v5269 = vsel %vm617, %v5262, 0
      %v5271 = vsel %vm617, %v5264, 0
      %5273 = vmatpush.xpose.msra.mxu0 0.0
      %5274 = vmatpush.xpose.msra.mxu0 0.0
      %5275 = vmatpush.xpose.msra.mxu0 0.0
      %5276 = vmatpush.xpose.msra.mxu0 0.0
      %5277 = vmatpush.xpose.msra.mxu0 0.0
      %5278 = vmatpush.xpose.msra.mxu0 0.0
      %5279 = vmatpush.xpose.msra.mxu0 0.0
      %5280 = vmatpush.xpose.msra.mxu0 0.0
      %5281 = vmatpush.xpose.msra.mxu0 0.0
      %5282 = vmatpush.xpose.msra.mxu0 0.0
      %5283 = vmatpush.xpose.msra.mxu0 0.0
      %5284 = vmatpush.xpose.msra.mxu0 0.0
      %5285 = vmatpush.xpose.msra.mxu0 0.0
      %5286 = vmatpush.xpose.msra.mxu0 0.0
      %5287 = vmatpush.xpose.msra.mxu0 %v5271
      %5288 = vmatpush.xpose.msra.mxu0 %v5269
      %5289 = vmatmul.f32.gmra.mxu0 %v5265
      %v5290 = vpop.f32.mrf.mxu0
      %v5291 = vadd.f32 %v5138, %v5290
      %5292 = vmatmul.f32.gmra.mxu0 %v5267
      %v5293 = vpop.f32.mrf.mxu0
      %v5294 = vadd.f32 %v5139, %v5293
      %5295 = vdwg.mxu0
      %v5296 = vsel %vm768, %v5174, -inf
      %5297 = vmax.xlane.f32.xlu0 %v5296
      %v5298 = vpop.xlane.xlu0 %5297
      %v5299 = vsel %vm768, %v5177, -inf
      %5300 = vmax.xlane.f32.xlu0 %v5299
      %v5301 = vpop.xlane.xlu0 %5300
      %v5302 = vsel %vm768, %v5213, -inf
      %5303 = vmax.xlane.f32.xlu0 %v5302
      %v5304 = vpop.xlane.xlu0 %5303
      %v5305 = vsel %vm768, %v5216, -inf
      %5306 = vmax.xlane.f32.xlu0 %v5305
      %v5307 = vpop.xlane.xlu0 %5306
      %v5308 = vsel %vm768, %v5252, -inf
      %5309 = vmax.xlane.f32.xlu0 %v5308
      %v5310 = vpop.xlane.xlu0 %5309
      %v5311 = vsel %vm768, %v5255, -inf
      %5312 = vmax.xlane.f32.xlu0 %v5311
      %v5313 = vpop.xlane.xlu0 %5312
      %v5314 = vsel %vm768, %v5291, -inf
      %5315 = vmax.xlane.f32.xlu0 %v5314
      %v5316 = vpop.xlane.xlu0 %5315
      %v5317 = vsel %vm768, %v5294, -inf
      %5318 = vmax.xlane.f32.xlu0 %v5317
      %v5319 = vpop.xlane.xlu0 %5318
      %v5320 = vsub.f32 %v5174, %v5298
      %v5321 = vsub.f32 %v5177, %v5301
      %v5322 = vsub.f32 %v5213, %v5304
      %v5323 = vsub.f32 %v5216, %v5307
      %v5324 = vsub.f32 %v5252, %v5310
      %v5325 = vsub.f32 %v5255, %v5313
      %v5326 = vsub.f32 %v5291, %v5316
      %v5327 = vsub.f32 %v5294, %v5319
      %v5328 = vmul.f32 %v5320, 1.442695
      %v5329 = vpow.pop %v5328
      %v5330 = vmul.f32 %v5321, 1.442695
      %v5331 = vpow.pop %v5330
      %v5332 = vmul.f32 %v5322, 1.442695
      %v5333 = vpow.pop %v5332
      %v5334 = vmul.f32 %v5323, 1.442695
      %v5335 = vpow.pop %v5334
      %v5336 = vmul.f32 %v5324, 1.442695
      %v5337 = vpow.pop %v5336
      %v5338 = vmul.f32 %v5325, 1.442695
      %v5339 = vpow.pop %v5338
      %v5340 = vmul.f32 %v5326, 1.442695
      %v5341 = vpow.pop %v5340
      %v5342 = vmul.f32 %v5327, 1.442695
      %v5343 = vpow.pop %v5342
      %v5344 = vsel %vm768, %v5329, 0.0
      %5345 = vadd.xlane.f32.xlu0 %v5344
      %v5346 = vpop.xlane.xlu0 %5345
      %v5347 = vsel %vm768, %v5331, 0.0
      %5348 = vadd.xlane.f32.xlu0 %v5347
      %v5349 = vpop.xlane.xlu0 %5348
      %v5350 = vsel %vm768, %v5333, 0.0
      %5351 = vadd.xlane.f32.xlu0 %v5350
      %v5352 = vpop.xlane.xlu0 %5351
      %v5353 = vsel %vm768, %v5335, 0.0
      %5354 = vadd.xlane.f32.xlu0 %v5353
      %v5355 = vpop.xlane.xlu0 %5354
      %v5356 = vsel %vm768, %v5337, 0.0
      %5357 = vadd.xlane.f32.xlu0 %v5356
      %v5358 = vpop.xlane.xlu0 %5357
      %v5359 = vsel %vm768, %v5339, 0.0
      %5360 = vadd.xlane.f32.xlu0 %v5359
      %v5361 = vpop.xlane.xlu0 %5360
      %v5362 = vsel %vm768, %v5341, 0.0
      %5363 = vadd.xlane.f32.xlu0 %v5362
      %v5364 = vpop.xlane.xlu0 %5363
      %v5365 = vsel %vm768, %v5343, 0.0
      %5366 = vadd.xlane.f32.xlu0 %v5365
      %v5367 = vpop.xlane.xlu0 %5366
      %v5368 = vrcp.pop %v5346
      %v5369 = vmul.f32 %v5346, %v5368
      %v5370 = vsub.f32 1.0, %v5369
      %v5371 = vmul.f32 %v5368, %v5370
      %v5372 = vadd.f32 %v5368, %v5371
      %vm5373 = vweird.f32 %v5346
      %vm5374 = vweird.f32 %v5368
      %vm5375 = vmor %vm5373, %vm5374
      %v5376 = vsel %vm5375, %v5368, %v5372
      %v5377 = vand.u32 2147483647, %v5346
      %vm5378 = vcmp.eq.f32.partialorder %v5377, 8.507059e+37
      %v5379 = vand.u32 %v5346, 2147483648
      %v5380 = vor.u32 1.1754944e-38, %v5379
      %v5381 = vsel %vm5378, %v5380, %v5376
      %v5382 = vmul.f32 %v5329, %v5381
      %v5383 = vrcp.pop %v5349
      %v5384 = vmul.f32 %v5349, %v5383
      %v5385 = vsub.f32 1.0, %v5384
      %v5386 = vmul.f32 %v5383, %v5385
      %v5387 = vadd.f32 %v5383, %v5386
      %vm5388 = vweird.f32 %v5349
      %vm5389 = vweird.f32 %v5383
      %vm5390 = vmor %vm5388, %vm5389
      %v5391 = vsel %vm5390, %v5383, %v5387
      %v5392 = vand.u32 2147483647, %v5349
      %vm5393 = vcmp.eq.f32.partialorder %v5392, 8.507059e+37
      %v5394 = vand.u32 %v5349, 2147483648
      %v5395 = vor.u32 1.1754944e-38, %v5394
      %v5396 = vsel %vm5393, %v5395, %v5391
      %v5397 = vmul.f32 %v5331, %v5396
      %v5398 = vrcp.pop %v5352
      %v5399 = vmul.f32 %v5352, %v5398
      %v5400 = vsub.f32 1.0, %v5399
      %v5401 = vmul.f32 %v5398, %v5400
      %v5402 = vadd.f32 %v5398, %v5401
      %vm5403 = vweird.f32 %v5352
      %vm5404 = vweird.f32 %v5398
      %vm5405 = vmor %vm5403, %vm5404
      %v5406 = vsel %vm5405, %v5398, %v5402
      %v5407 = vand.u32 2147483647, %v5352
      %vm5408 = vcmp.eq.f32.partialorder %v5407, 8.507059e+37
      %v5409 = vand.u32 %v5352, 2147483648
      %v5410 = vor.u32 1.1754944e-38, %v5409
      %v5411 = vsel %vm5408, %v5410, %v5406
      %v5412 = vmul.f32 %v5333, %v5411
      %v5413 = vrcp.pop %v5355
      %v5414 = vmul.f32 %v5355, %v5413
      %v5415 = vsub.f32 1.0, %v5414
      %v5416 = vmul.f32 %v5413, %v5415
      %v5417 = vadd.f32 %v5413, %v5416
      %vm5418 = vweird.f32 %v5355
      %vm5419 = vweird.f32 %v5413
      %vm5420 = vmor %vm5418, %vm5419
      %v5421 = vsel %vm5420, %v5413, %v5417
      %v5422 = vand.u32 2147483647, %v5355
      %vm5423 = vcmp.eq.f32.partialorder %v5422, 8.507059e+37
      %v5424 = vand.u32 %v5355, 2147483648
      %v5425 = vor.u32 1.1754944e-38, %v5424
      %v5426 = vsel %vm5423, %v5425, %v5421
      %v5427 = vmul.f32 %v5335, %v5426
      %v5428 = vrcp.pop %v5358
      %v5429 = vmul.f32 %v5358, %v5428
      %v5430 = vsub.f32 1.0, %v5429
      %v5431 = vmul.f32 %v5428, %v5430
      %v5432 = vadd.f32 %v5428, %v5431
      %vm5433 = vweird.f32 %v5358
      %vm5434 = vweird.f32 %v5428
      %vm5435 = vmor %vm5433, %vm5434
      %v5436 = vsel %vm5435, %v5428, %v5432
      %v5437 = vand.u32 2147483647, %v5358
      %vm5438 = vcmp.eq.f32.partialorder %v5437, 8.507059e+37
      %v5439 = vand.u32 %v5358, 2147483648
      %v5440 = vor.u32 1.1754944e-38, %v5439
      %v5441 = vsel %vm5438, %v5440, %v5436
      %v5442 = vmul.f32 %v5337, %v5441
      %v5443 = vrcp.pop %v5361
      %v5444 = vmul.f32 %v5361, %v5443
      %v5445 = vsub.f32 1.0, %v5444
      %v5446 = vmul.f32 %v5443, %v5445
      %v5447 = vadd.f32 %v5443, %v5446
      %vm5448 = vweird.f32 %v5361
      %vm5449 = vweird.f32 %v5443
      %vm5450 = vmor %vm5448, %vm5449
      %v5451 = vsel %vm5450, %v5443, %v5447
      %v5452 = vand.u32 2147483647, %v5361
      %vm5453 = vcmp.eq.f32.partialorder %v5452, 8.507059e+37
      %v5454 = vand.u32 %v5361, 2147483648
      %v5455 = vor.u32 1.1754944e-38, %v5454
      %v5456 = vsel %vm5453, %v5455, %v5451
      %v5457 = vmul.f32 %v5339, %v5456
      %v5458 = vrcp.pop %v5364
      %v5459 = vmul.f32 %v5364, %v5458
      %v5460 = vsub.f32 1.0, %v5459
      %v5461 = vmul.f32 %v5458, %v5460
      %v5462 = vadd.f32 %v5458, %v5461
      %vm5463 = vweird.f32 %v5364
      %vm5464 = vweird.f32 %v5458
      %vm5465 = vmor %vm5463, %vm5464
      %v5466 = vsel %vm5465, %v5458, %v5462
      %v5467 = vand.u32 2147483647, %v5364
      %vm5468 = vcmp.eq.f32.partialorder %v5467, 8.507059e+37
      %v5469 = vand.u32 %v5364, 2147483648
      %v5470 = vor.u32 1.1754944e-38, %v5469
      %v5471 = vsel %vm5468, %v5470, %v5466
      %v5472 = vmul.f32 %v5341, %v5471
      %v5473 = vrcp.pop %v5367
      %v5474 = vmul.f32 %v5367, %v5473
      %v5475 = vsub.f32 1.0, %v5474
      %v5476 = vmul.f32 %v5473, %v5475
      %v5477 = vadd.f32 %v5473, %v5476
      %vm5478 = vweird.f32 %v5367
      %vm5479 = vweird.f32 %v5473
      %vm5480 = vmor %vm5478, %vm5479
      %v5481 = vsel %vm5480, %v5473, %v5477
      %v5482 = vand.u32 2147483647, %v5367
      %vm5483 = vcmp.eq.f32.partialorder %v5482, 8.507059e+37
      %v5484 = vand.u32 %v5367, 2147483648
      %v5485 = vor.u32 1.1754944e-38, %v5484
      %v5486 = vsel %vm5483, %v5485, %v5481
      %v5487 = vmul.f32 %v5343, %v5486
      %5488 = vrot.lane.b32.xlu0 %v3521, 40
      %v5489 = vpop.permute.xlu0 %5488
      %5490 = vrot.lane.b32.xlu0 %v3524, 40
      %v5491 = vpop.permute.xlu0 %5490
      %v5495 = vsel %vm768, %v5382, 0
      %v5498 = vsel %vm768, %v5397, 0
      %5500 = vmatpush.msra.mxu0 0.0
      %5501 = vmatpush.msra.mxu0 0.0
      %5502 = vmatpush.msra.mxu0 0.0
      %5503 = vmatpush.msra.mxu0 0.0
      %5504 = vmatpush.msra.mxu0 0.0
      %5505 = vmatpush.msra.mxu0 0.0
      %5506 = vmatpush.msra.mxu0 0.0
      %5507 = vmatpush.msra.mxu0 0.0
      %5508 = vmatpush.msra.mxu0 0.0
      %5509 = vmatpush.msra.mxu0 0.0
      %5510 = vmatpush.msra.mxu0 0.0
      %5511 = vmatpush.msra.mxu0 0.0
      %5512 = vmatpush.msra.mxu0 0.0
      %5513 = vmatpush.msra.mxu0 0.0
      %5514 = vmatpush.msra.mxu0 %v5491
      %5515 = vmatpush.msra.mxu0 %v5489
      %5516 = vmatmul.f32.gmra.mxu0 %v5495
      %v5517 = vpop.f32.mrf.mxu0
      %v5518 = vadd.f32 0.0, %v5517
      %5519 = vmatmul.f32.gmra.mxu0 %v5498
      %v5520 = vpop.f32.mrf.mxu0
      %v5521 = vadd.f32 0.0, %v5520
      %5522 = vdwg.mxu0
      %5523 = vrot.lane.b32.xlu0 %v3527, 40
      %v5524 = vpop.permute.xlu0 %5523
      %5525 = vrot.lane.b32.xlu0 %v3530, 40
      %v5526 = vpop.permute.xlu0 %5525
      %v5530 = vsel %vm768, %v5412, 0
      %v5533 = vsel %vm768, %v5427, 0
      %5535 = vmatpush.msra.mxu0 0.0
      %5536 = vmatpush.msra.mxu0 0.0
      %5537 = vmatpush.msra.mxu0 0.0
      %5538 = vmatpush.msra.mxu0 0.0
      %5539 = vmatpush.msra.mxu0 0.0
      %5540 = vmatpush.msra.mxu0 0.0
      %5541 = vmatpush.msra.mxu0 0.0
      %5542 = vmatpush.msra.mxu0 0.0
      %5543 = vmatpush.msra.mxu0 0.0
      %5544 = vmatpush.msra.mxu0 0.0
      %5545 = vmatpush.msra.mxu0 0.0
      %5546 = vmatpush.msra.mxu0 0.0
      %5547 = vmatpush.msra.mxu0 0.0
      %5548 = vmatpush.msra.mxu0 0.0
      %5549 = vmatpush.msra.mxu0 %v5526
      %5550 = vmatpush.msra.mxu0 %v5524
      %5551 = vmatmul.f32.gmra.mxu0 %v5530
      %v5552 = vpop.f32.mrf.mxu0
      %v5553 = vadd.f32 0.0, %v5552
      %5554 = vmatmul.f32.gmra.mxu0 %v5533
      %v5555 = vpop.f32.mrf.mxu0
      %v5556 = vadd.f32 0.0, %v5555
      %5557 = vdwg.mxu0
      %5558 = vrot.lane.b32.xlu0 %v3533, 40
      %v5559 = vpop.permute.xlu0 %5558
      %5560 = vrot.lane.b32.xlu0 %v3536, 40
      %v5561 = vpop.permute.xlu0 %5560
      %v5565 = vsel %vm768, %v5442, 0
      %v5568 = vsel %vm768, %v5457, 0
      %5570 = vmatpush.msra.mxu0 0.0
      %5571 = vmatpush.msra.mxu0 0.0
      %5572 = vmatpush.msra.mxu0 0.0
      %5573 = vmatpush.msra.mxu0 0.0
      %5574 = vmatpush.msra.mxu0 0.0
      %5575 = vmatpush.msra.mxu0 0.0
      %5576 = vmatpush.msra.mxu0 0.0
      %5577 = vmatpush.msra.mxu0 0.0
      %5578 = vmatpush.msra.mxu0 0.0
      %5579 = vmatpush.msra.mxu0 0.0
      %5580 = vmatpush.msra.mxu0 0.0
      %5581 = vmatpush.msra.mxu0 0.0
      %5582 = vmatpush.msra.mxu0 0.0
      %5583 = vmatpush.msra.mxu0 0.0
      %5584 = vmatpush.msra.mxu0 %v5561
      %5585 = vmatpush.msra.mxu0 %v5559
      %5586 = vmatmul.f32.gmra.mxu0 %v5565
      %v5587 = vpop.f32.mrf.mxu0
      %v5588 = vadd.f32 0.0, %v5587
      %5589 = vmatmul.f32.gmra.mxu0 %v5568
      %v5590 = vpop.f32.mrf.mxu0
      %v5591 = vadd.f32 0.0, %v5590
      %5592 = vdwg.mxu0
      %5593 = vrot.lane.b32.xlu0 %v3539, 40
      %v5594 = vpop.permute.xlu0 %5593
      %5595 = vrot.lane.b32.xlu0 %v3542, 40
      %v5596 = vpop.permute.xlu0 %5595
      %v5600 = vsel %vm768, %v5472, 0
      %v5603 = vsel %vm768, %v5487, 0
      %5605 = vmatpush.msra.mxu0 0.0
      %5606 = vmatpush.msra.mxu0 0.0
      %5607 = vmatpush.msra.mxu0 0.0
      %5608 = vmatpush.msra.mxu0 0.0
      %5609 = vmatpush.msra.mxu0 0.0
      %5610 = vmatpush.msra.mxu0 0.0
      %5611 = vmatpush.msra.mxu0 0.0
      %5612 = vmatpush.msra.mxu0 0.0
      %5613 = vmatpush.msra.mxu0 0.0
      %5614 = vmatpush.msra.mxu0 0.0
      %5615 = vmatpush.msra.mxu0 0.0
      %5616 = vmatpush.msra.mxu0 0.0
      %5617 = vmatpush.msra.mxu0 0.0
      %5618 = vmatpush.msra.mxu0 0.0
      %5619 = vmatpush.msra.mxu0 %v5596
      %5620 = vmatpush.msra.mxu0 %v5594
      %5621 = vmatmul.f32.gmra.mxu0 %v5600
      %v5622 = vpop.f32.mrf.mxu0
      %v5623 = vadd.f32 0.0, %v5622
      %5624 = vmatmul.f32.gmra.mxu0 %v5603
      %v5625 = vpop.f32.mrf.mxu0
      %v5626 = vadd.f32 0.0, %v5625
      %5627 = vdwg.mxu0
      %5636 = vrot.lane.b32.xlu0 %v5518, 24
      %v5637 = vpop.permute.xlu0 %5636
      %5638 = vrot.lane.b32.xlu0 %v5521, 24
      %v5639 = vpop.permute.xlu0 %5638
      %5640 = vrot.lane.b32.xlu0 %v5553, 24
      %v5641 = vpop.permute.xlu0 %5640
      %5642 = vrot.lane.b32.xlu0 %v5556, 24
      %v5643 = vpop.permute.xlu0 %5642
      %5644 = vrot.lane.b32.xlu0 %v5588, 24
      %v5645 = vpop.permute.xlu0 %5644
      %5646 = vrot.lane.b32.xlu0 %v5591, 24
      %v5647 = vpop.permute.xlu0 %5646
      %5648 = vrot.lane.b32.xlu0 %v5623, 24
      %v5649 = vpop.permute.xlu0 %5648
      %5650 = vrot.lane.b32.xlu0 %v5626, 24
      %v5651 = vpop.permute.xlu0 %5650
      %5660 = vst.msk [vmem:[#allocation2] sm:$0xff] %vm2714, %v5637
      %5661 = vst.msk [vmem:[#allocation2 + $0x8] sm:$0xff] %vm2714, %v5639
      %5662 = vst.msk [vmem:[#allocation2 + $0x10] sm:$0xff] %vm2714, %v5641
      %5663 = vst.msk [vmem:[#allocation2 + $0x18] sm:$0xff] %vm2714, %v5643
      %5664 = vst.msk [vmem:[#allocation2 + $0x20] sm:$0xff] %vm2714, %v5645
      %5665 = vst.msk [vmem:[#allocation2 + $0x28] sm:$0xff] %vm2714, %v5647
      %5666 = vst.msk [vmem:[#allocation2 + $0x30] sm:$0xff] %vm2714, %v5649
      %5667 = vst.msk [vmem:[#allocation2 + $0x38] sm:$0xff] %vm2714, %v5651
      %v5668 = vld [vmem:[#allocation2] sm:$0xff]
      %v5669 = vld [vmem:[#allocation2 + $0x8] sm:$0xff]
      %v5670 = vld [vmem:[#allocation2 + $0x10] sm:$0xff]
      %v5671 = vld [vmem:[#allocation2 + $0x18] sm:$0xff]
      %v5672 = vld [vmem:[#allocation2 + $0x20] sm:$0xff]
      %v5673 = vld [vmem:[#allocation2 + $0x28] sm:$0xff]
      %v5674 = vld [vmem:[#allocation2 + $0x30] sm:$0xff]
      %v5675 = vld [vmem:[#allocation2 + $0x38] sm:$0xff]
      %s5676 = scalar_lea.vmem %s5, 32
      %v5677 = vld [vmem:[%s5676] sm:$0xff]
      %v5678 = vld [vmem:[%s5676 + $0x8] sm:$0xff]
      %v5679 = vld [vmem:[%s5676 + $0x10] sm:$0xff]
      %v5680 = vld [vmem:[%s5676 + $0x18] sm:$0xff]
      %v5681 = vperm.slane %v3278, 3
      %v5683 = vsel %vm323, %v5668, 0
      %v5686 = vsel %vm323, %v5669, 0
      %v5689 = vsel %vm323, %v5670, 0
      %v5692 = vsel %vm323, %v5671, 0
      %v5695 = vsel %vm323, %v5672, 0
      %v5698 = vsel %vm323, %v5673, 0
      %v5701 = vsel %vm323, %v5674, 0
      %v5704 = vsel %vm323, %v5675, 0
      %5706 = vmatpush.msra.mxu0 0.0
      %5707 = vmatpush.msra.mxu0 0.0
      %5708 = vmatpush.msra.mxu0 0.0
      %5709 = vmatpush.msra.mxu0 0.0
      %5710 = vmatpush.msra.mxu0 0.0
      %5711 = vmatpush.msra.mxu0 0.0
      %5712 = vmatpush.msra.mxu0 0.0
      %5713 = vmatpush.msra.mxu0 0.0
      %5714 = vmatpush.msra.mxu0 0.0
      %5715 = vmatpush.msra.mxu0 0.0
      %5716 = vmatpush.msra.mxu0 0.0
      %5717 = vmatpush.msra.mxu0 0.0
      %5718 = vmatpush.msra.mxu0 %v5680
      %5719 = vmatpush.msra.mxu0 %v5679
      %5720 = vmatpush.msra.mxu0 %v5678
      %5721 = vmatpush.msra.mxu0 %v5677
      %5722 = vmatmul.f32.gmra.mxu0 %v5683
      %v5723 = vpop.f32.mrf.mxu0
      %v5724 = vadd.f32 %v5681, %v5723
      %5725 = vmatmul.f32.gmra.mxu0 %v5686
      %v5726 = vpop.f32.mrf.mxu0
      %v5727 = vadd.f32 %v5681, %v5726
      %5728 = vmatmul.f32.gmra.mxu0 %v5689
      %v5729 = vpop.f32.mrf.mxu0
      %v5730 = vadd.f32 %v5681, %v5729
      %5731 = vmatmul.f32.gmra.mxu0 %v5692
      %v5732 = vpop.f32.mrf.mxu0
      %v5733 = vadd.f32 %v5681, %v5732
      %5734 = vmatmul.f32.gmra.mxu0 %v5695
      %v5735 = vpop.f32.mrf.mxu0
      %v5736 = vadd.f32 %v5681, %v5735
      %5737 = vmatmul.f32.gmra.mxu0 %v5698
      %v5738 = vpop.f32.mrf.mxu0
      %v5739 = vadd.f32 %v5681, %v5738
      %5740 = vmatmul.f32.gmra.mxu0 %v5701
      %v5741 = vpop.f32.mrf.mxu0
      %v5742 = vadd.f32 %v5681, %v5741
      %5743 = vmatmul.f32.gmra.mxu0 %v5704
      %v5744 = vpop.f32.mrf.mxu0
      %v5745 = vadd.f32 %v5681, %v5744
      %5746 = vdwg.mxu0
      %v5747 = vadd.f32 %v3254, %v5724
      %v5748 = vadd.f32 %v3257, %v5727
      %v5749 = vadd.f32 %v3260, %v5730
      %v5750 = vadd.f32 %v3263, %v5733
      %v5751 = vadd.f32 %v3266, %v5736
      %v5752 = vadd.f32 %v3269, %v5739
      %v5753 = vadd.f32 %v3272, %v5742
      %v5754 = vadd.f32 %v3275, %v5745
      %v5755 = vsel %vm323, %v5747, 0.0
      %5756 = vadd.xlane.f32.xlu0 %v5755
      %v5757 = vpop.xlane.xlu0 %5756
      %v5758 = vsel %vm323, %v5748, 0.0
      %5759 = vadd.xlane.f32.xlu0 %v5758
      %v5760 = vpop.xlane.xlu0 %5759
      %v5761 = vsel %vm323, %v5749, 0.0
      %5762 = vadd.xlane.f32.xlu0 %v5761
      %v5763 = vpop.xlane.xlu0 %5762
      %v5764 = vsel %vm323, %v5750, 0.0
      %5765 = vadd.xlane.f32.xlu0 %v5764
      %v5766 = vpop.xlane.xlu0 %5765
      %v5767 = vsel %vm323, %v5751, 0.0
      %5768 = vadd.xlane.f32.xlu0 %v5767
      %v5769 = vpop.xlane.xlu0 %5768
      %v5770 = vsel %vm323, %v5752, 0.0
      %5771 = vadd.xlane.f32.xlu0 %v5770
      %v5772 = vpop.xlane.xlu0 %5771
      %v5773 = vsel %vm323, %v5753, 0.0
      %5774 = vadd.xlane.f32.xlu0 %v5773
      %v5775 = vpop.xlane.xlu0 %5774
      %v5776 = vsel %vm323, %v5754, 0.0
      %5777 = vadd.xlane.f32.xlu0 %v5776
      %v5778 = vpop.xlane.xlu0 %5777
      %v5779 = vmul.f32 %v5757, %v354
      %v5780 = vmul.f32 %v5760, %v354
      %v5781 = vmul.f32 %v5763, %v354
      %v5782 = vmul.f32 %v5766, %v354
      %v5783 = vmul.f32 %v5769, %v354
      %v5784 = vmul.f32 %v5772, %v354
      %v5785 = vmul.f32 %v5775, %v354
      %v5786 = vmul.f32 %v5778, %v354
      %v5787 = vsub.f32 %v5747, %v5779
      %v5788 = vsub.f32 %v5748, %v5780
      %v5789 = vsub.f32 %v5749, %v5781
      %v5790 = vsub.f32 %v5750, %v5782
      %v5791 = vsub.f32 %v5751, %v5783
      %v5792 = vsub.f32 %v5752, %v5784
      %v5793 = vsub.f32 %v5753, %v5785
      %v5794 = vsub.f32 %v5754, %v5786
      %v5795 = vmul.f32 %v5787, %v5787
      %v5796 = vmul.f32 %v5788, %v5788
      %v5797 = vmul.f32 %v5789, %v5789
      %v5798 = vmul.f32 %v5790, %v5790
      %v5799 = vmul.f32 %v5791, %v5791
      %v5800 = vmul.f32 %v5792, %v5792
      %v5801 = vmul.f32 %v5793, %v5793
      %v5802 = vmul.f32 %v5794, %v5794
      %v5803 = vsel %vm323, %v5795, 0.0
      %5804 = vadd.xlane.f32.xlu0 %v5803
      %v5805 = vpop.xlane.xlu0 %5804
      %v5806 = vsel %vm323, %v5796, 0.0
      %5807 = vadd.xlane.f32.xlu0 %v5806
      %v5808 = vpop.xlane.xlu0 %5807
      %v5809 = vsel %vm323, %v5797, 0.0
      %5810 = vadd.xlane.f32.xlu0 %v5809
      %v5811 = vpop.xlane.xlu0 %5810
      %v5812 = vsel %vm323, %v5798, 0.0
      %5813 = vadd.xlane.f32.xlu0 %v5812
      %v5814 = vpop.xlane.xlu0 %5813
      %v5815 = vsel %vm323, %v5799, 0.0
      %5816 = vadd.xlane.f32.xlu0 %v5815
      %v5817 = vpop.xlane.xlu0 %5816
      %v5818 = vsel %vm323, %v5800, 0.0
      %5819 = vadd.xlane.f32.xlu0 %v5818
      %v5820 = vpop.xlane.xlu0 %5819
      %v5821 = vsel %vm323, %v5801, 0.0
      %5822 = vadd.xlane.f32.xlu0 %v5821
      %v5823 = vpop.xlane.xlu0 %5822
      %v5824 = vsel %vm323, %v5802, 0.0
      %5825 = vadd.xlane.f32.xlu0 %v5824
      %v5826 = vpop.xlane.xlu0 %5825
      %v5827 = vmul.f32 %v5805, %v354
      %v5828 = vmul.f32 %v5808, %v354
      %v5829 = vmul.f32 %v5811, %v354
      %v5830 = vmul.f32 %v5814, %v354
      %v5831 = vmul.f32 %v5817, %v354
      %v5832 = vmul.f32 %v5820, %v354
      %v5833 = vmul.f32 %v5823, %v354
      %v5834 = vmul.f32 %v5826, %v354
      %v5835 = vadd.f32 %v5827, 1e-05
      %v5836 = vadd.f32 %v5828, 1e-05
      %v5837 = vadd.f32 %v5829, 1e-05
      %v5838 = vadd.f32 %v5830, 1e-05
      %v5839 = vadd.f32 %v5831, 1e-05
      %v5840 = vadd.f32 %v5832, 1e-05
      %v5841 = vadd.f32 %v5833, 1e-05
      %v5842 = vadd.f32 %v5834, 1e-05
      %v5843 = vrsqrt.pop %v5835
      %v5844 = vmul.f32 %v5843, %v5835
      %v5845 = vmul.f32 %v5844, %v5843
      %v5846 = vmul.f32 0.5, %v5845
      %v5847 = vsub.f32 1.5, %v5846
      %v5848 = vmul.f32 %v5843, %v5847
      %vm5849 = vweird.f32 %v5835
      %vm5850 = vweird.f32 %v5843
      %vm5851 = vmor %vm5849, %vm5850
      %v5852 = vsel %vm5851, %v5843, %v5848
      %v5853 = vrsqrt.pop %v5836
      %v5854 = vmul.f32 %v5853, %v5836
      %v5855 = vmul.f32 %v5854, %v5853
      %v5856 = vmul.f32 0.5, %v5855
      %v5857 = vsub.f32 1.5, %v5856
      %v5858 = vmul.f32 %v5853, %v5857
      %vm5859 = vweird.f32 %v5836
      %vm5860 = vweird.f32 %v5853
      %vm5861 = vmor %vm5859, %vm5860
      %v5862 = vsel %vm5861, %v5853, %v5858
      %v5863 = vrsqrt.pop %v5837
      %v5864 = vmul.f32 %v5863, %v5837
      %v5865 = vmul.f32 %v5864, %v5863
      %v5866 = vmul.f32 0.5, %v5865
      %v5867 = vsub.f32 1.5, %v5866
      %v5868 = vmul.f32 %v5863, %v5867
      %vm5869 = vweird.f32 %v5837
      %vm5870 = vweird.f32 %v5863
      %vm5871 = vmor %vm5869, %vm5870
      %v5872 = vsel %vm5871, %v5863, %v5868
      %v5873 = vrsqrt.pop %v5838
      %v5874 = vmul.f32 %v5873, %v5838
      %v5875 = vmul.f32 %v5874, %v5873
      %v5876 = vmul.f32 0.5, %v5875
      %v5877 = vsub.f32 1.5, %v5876
      %v5878 = vmul.f32 %v5873, %v5877
      %vm5879 = vweird.f32 %v5838
      %vm5880 = vweird.f32 %v5873
      %vm5881 = vmor %vm5879, %vm5880
      %v5882 = vsel %vm5881, %v5873, %v5878
      %v5883 = vrsqrt.pop %v5839
      %v5884 = vmul.f32 %v5883, %v5839
      %v5885 = vmul.f32 %v5884, %v5883
      %v5886 = vmul.f32 0.5, %v5885
      %v5887 = vsub.f32 1.5, %v5886
      %v5888 = vmul.f32 %v5883, %v5887
      %vm5889 = vweird.f32 %v5839
      %vm5890 = vweird.f32 %v5883
      %vm5891 = vmor %vm5889, %vm5890
      %v5892 = vsel %vm5891, %v5883, %v5888
      %v5893 = vrsqrt.pop %v5840
      %v5894 = vmul.f32 %v5893, %v5840
      %v5895 = vmul.f32 %v5894, %v5893
      %v5896 = vmul.f32 0.5, %v5895
      %v5897 = vsub.f32 1.5, %v5896
      %v5898 = vmul.f32 %v5893, %v5897
      %vm5899 = vweird.f32 %v5840
      %vm5900 = vweird.f32 %v5893
      %vm5901 = vmor %vm5899, %vm5900
      %v5902 = vsel %vm5901, %v5893, %v5898
      %v5903 = vrsqrt.pop %v5841
      %v5904 = vmul.f32 %v5903, %v5841
      %v5905 = vmul.f32 %v5904, %v5903
      %v5906 = vmul.f32 0.5, %v5905
      %v5907 = vsub.f32 1.5, %v5906
      %v5908 = vmul.f32 %v5903, %v5907
      %vm5909 = vweird.f32 %v5841
      %vm5910 = vweird.f32 %v5903
      %vm5911 = vmor %vm5909, %vm5910
      %v5912 = vsel %vm5911, %v5903, %v5908
      %v5913 = vrsqrt.pop %v5842
      %v5914 = vmul.f32 %v5913, %v5842
      %v5915 = vmul.f32 %v5914, %v5913
      %v5916 = vmul.f32 0.5, %v5915
      %v5917 = vsub.f32 1.5, %v5916
      %v5918 = vmul.f32 %v5913, %v5917
      %vm5919 = vweird.f32 %v5842
      %vm5920 = vweird.f32 %v5913
      %vm5921 = vmor %vm5919, %vm5920
      %v5922 = vsel %vm5921, %v5913, %v5918
      %v5923 = vmul.f32 %v5787, %v5852
      %v5924 = vmul.f32 %v5788, %v5862
      %v5925 = vmul.f32 %v5789, %v5872
      %v5926 = vmul.f32 %v5790, %v5882
      %v5927 = vmul.f32 %v5791, %v5892
      %v5928 = vmul.f32 %v5792, %v5902
      %v5929 = vmul.f32 %v5793, %v5912
      %v5930 = vmul.f32 %v5794, %v5922
      %v5931 = vperm.slane %v3278, 4
      %v5932 = vmul.f32 %v5923, %v5931
      %v5933 = vmul.f32 %v5924, %v5931
      %v5934 = vmul.f32 %v5925, %v5931
      %v5935 = vmul.f32 %v5926, %v5931
      %v5936 = vmul.f32 %v5927, %v5931
      %v5937 = vmul.f32 %v5928, %v5931
      %v5938 = vmul.f32 %v5929, %v5931
      %v5939 = vmul.f32 %v5930, %v5931
      %v5940 = vperm.slane %v3278, 5
      %v5941 = vadd.f32 %v5932, %v5940
      %v5942 = vadd.f32 %v5933, %v5940
      %v5943 = vadd.f32 %v5934, %v5940
      %v5944 = vadd.f32 %v5935, %v5940
      %v5945 = vadd.f32 %v5936, %v5940
      %v5946 = vadd.f32 %v5937, %v5940
      %v5947 = vadd.f32 %v5938, %v5940
      %v5948 = vadd.f32 %v5939, %v5940
      %s5949 = scalar_lea.vmem %s6, 32
      %v5950 = vld [vmem:[%s5949] sm:$0xff]
      %v5951 = vld [vmem:[%s5949 + $0x8] sm:$0xff]
      %v5952 = vld [vmem:[%s5949 + $0x10] sm:$0xff]
      %v5953 = vld [vmem:[%s5949 + $0x18] sm:$0xff]
      %v5954 = vperm.slane %v3278, 6
      %v5956 = vsel %vm323, %v5941, 0
      %v5959 = vsel %vm323, %v5942, 0
      %v5962 = vsel %vm323, %v5943, 0
      %v5965 = vsel %vm323, %v5944, 0
      %v5968 = vsel %vm323, %v5945, 0
      %v5971 = vsel %vm323, %v5946, 0
      %v5974 = vsel %vm323, %v5947, 0
      %v5977 = vsel %vm323, %v5948, 0
      %5979 = vmatpush.msra.mxu0 0.0
      %5980 = vmatpush.msra.mxu0 0.0
      %5981 = vmatpush.msra.mxu0 0.0
      %5982 = vmatpush.msra.mxu0 0.0
      %5983 = vmatpush.msra.mxu0 0.0
      %5984 = vmatpush.msra.mxu0 0.0
      %5985 = vmatpush.msra.mxu0 0.0
      %5986 = vmatpush.msra.mxu0 0.0
      %5987 = vmatpush.msra.mxu0 0.0
      %5988 = vmatpush.msra.mxu0 0.0
      %5989 = vmatpush.msra.mxu0 0.0
      %5990 = vmatpush.msra.mxu0 0.0
      %5991 = vmatpush.msra.mxu0 %v5953
      %5992 = vmatpush.msra.mxu0 %v5952
      %5993 = vmatpush.msra.mxu0 %v5951
      %5994 = vmatpush.msra.mxu0 %v5950
      %5995 = vmatmul.f32.gmra.mxu0 %v5956
      %v5996 = vpop.f32.mrf.mxu0
      %v5997 = vadd.f32 %v5954, %v5996
      %5998 = vmatmul.f32.gmra.mxu0 %v5959
      %v5999 = vpop.f32.mrf.mxu0
      %v6000 = vadd.f32 %v5954, %v5999
      %6001 = vmatmul.f32.gmra.mxu0 %v5962
      %v6002 = vpop.f32.mrf.mxu0
      %v6003 = vadd.f32 %v5954, %v6002
      %6004 = vmatmul.f32.gmra.mxu0 %v5965
      %v6005 = vpop.f32.mrf.mxu0
      %v6006 = vadd.f32 %v5954, %v6005
      %6007 = vmatmul.f32.gmra.mxu0 %v5968
      %v6008 = vpop.f32.mrf.mxu0
      %v6009 = vadd.f32 %v5954, %v6008
      %6010 = vmatmul.f32.gmra.mxu0 %v5971
      %v6011 = vpop.f32.mrf.mxu0
      %v6012 = vadd.f32 %v5954, %v6011
      %6013 = vmatmul.f32.gmra.mxu0 %v5974
      %v6014 = vpop.f32.mrf.mxu0
      %v6015 = vadd.f32 %v5954, %v6014
      %6016 = vmatmul.f32.gmra.mxu0 %v5977
      %v6017 = vpop.f32.mrf.mxu0
      %v6018 = vadd.f32 %v5954, %v6017
      %6019 = vdwg.mxu0
      %v6020 = vmul.f32 %v5997, 0.5
      %v6021 = vmul.f32 %v6000, 0.5
      %v6022 = vmul.f32 %v6003, 0.5
      %v6023 = vmul.f32 %v6006, 0.5
      %v6024 = vmul.f32 %v6009, 0.5
      %v6025 = vmul.f32 %v6012, 0.5
      %v6026 = vmul.f32 %v6015, 0.5
      %v6027 = vmul.f32 %v6018, 0.5
      %v6028 = vmul.f32 %v5997, 0.044715
      %v6029 = vmul.f32 %v6000, 0.044715
      %v6030 = vmul.f32 %v6003, 0.044715
      %v6031 = vmul.f32 %v6006, 0.044715
      %v6032 = vmul.f32 %v6009, 0.044715
      %v6033 = vmul.f32 %v6012, 0.044715
      %v6034 = vmul.f32 %v6015, 0.044715
      %v6035 = vmul.f32 %v6018, 0.044715
      %v6036 = vmul.f32 %v6028, %v5997
      %v6037 = vmul.f32 %v6029, %v6000
      %v6038 = vmul.f32 %v6030, %v6003
      %v6039 = vmul.f32 %v6031, %v6006
      %v6040 = vmul.f32 %v6032, %v6009
      %v6041 = vmul.f32 %v6033, %v6012
      %v6042 = vmul.f32 %v6034, %v6015
      %v6043 = vmul.f32 %v6035, %v6018
      %v6044 = vmul.f32 %v6036, %v5997
      %v6045 = vmul.f32 %v6037, %v6000
      %v6046 = vmul.f32 %v6038, %v6003
      %v6047 = vmul.f32 %v6039, %v6006
      %v6048 = vmul.f32 %v6040, %v6009
      %v6049 = vmul.f32 %v6041, %v6012
      %v6050 = vmul.f32 %v6042, %v6015
      %v6051 = vmul.f32 %v6043, %v6018
      %v6052 = vadd.f32 %v5997, %v6044
      %v6053 = vadd.f32 %v6000, %v6045
      %v6054 = vadd.f32 %v6003, %v6046
      %v6055 = vadd.f32 %v6006, %v6047
      %v6056 = vadd.f32 %v6009, %v6048
      %v6057 = vadd.f32 %v6012, %v6049
      %v6058 = vadd.f32 %v6015, %v6050
      %v6059 = vadd.f32 %v6018, %v6051
      %v6060 = vmul.f32 %v6052, 0.7978846
      %v6061 = vmul.f32 %v6053, 0.7978846
      %v6062 = vmul.f32 %v6054, 0.7978846
      %v6063 = vmul.f32 %v6055, 0.7978846
      %v6064 = vmul.f32 %v6056, 0.7978846
      %v6065 = vmul.f32 %v6057, 0.7978846
      %v6066 = vmul.f32 %v6058, 0.7978846
      %v6067 = vmul.f32 %v6059, 0.7978846
      %v6068 = vtanh.pop %v6060
      %v6069 = vtanh.pop %v6061
      %v6070 = vtanh.pop %v6062
      %v6071 = vtanh.pop %v6063
      %v6072 = vtanh.pop %v6064
      %v6073 = vtanh.pop %v6065
      %v6074 = vtanh.pop %v6066
      %v6075 = vtanh.pop %v6067
      %v6076 = vadd.f32 %v6068, 1.0
      %v6077 = vadd.f32 %v6069, 1.0
      %v6078 = vadd.f32 %v6070, 1.0
      %v6079 = vadd.f32 %v6071, 1.0
      %v6080 = vadd.f32 %v6072, 1.0
      %v6081 = vadd.f32 %v6073, 1.0
      %v6082 = vadd.f32 %v6074, 1.0
      %v6083 = vadd.f32 %v6075, 1.0
      %v6084 = vmul.f32 %v6020, %v6076
      %v6085 = vmul.f32 %v6021, %v6077
      %v6086 = vmul.f32 %v6022, %v6078
      %v6087 = vmul.f32 %v6023, %v6079
      %v6088 = vmul.f32 %v6024, %v6080
      %v6089 = vmul.f32 %v6025, %v6081
      %v6090 = vmul.f32 %v6026, %v6082
      %v6091 = vmul.f32 %v6027, %v6083
      %s6092 = scalar_lea.vmem %s7, 128
      %v6093 = vld [vmem:[%s6092] sm:$0xff]
      %v6094 = vld [vmem:[%s6092 + $0x8] sm:$0xff]
      %v6095 = vld [vmem:[%s6092 + $0x10] sm:$0xff]
      %v6096 = vld [vmem:[%s6092 + $0x18] sm:$0xff]
      %v6097 = vld [vmem:[%s6092 + $0x20] sm:$0xff]
      %v6098 = vld [vmem:[%s6092 + $0x28] sm:$0xff]
      %v6099 = vld [vmem:[%s6092 + $0x30] sm:$0xff]
      %v6100 = vld [vmem:[%s6092 + $0x38] sm:$0xff]
      %v6101 = vld [vmem:[%s6092 + $0x40] sm:$0xff]
      %v6102 = vld [vmem:[%s6092 + $0x48] sm:$0xff]
      %v6103 = vld [vmem:[%s6092 + $0x50] sm:$0xff]
      %v6104 = vld [vmem:[%s6092 + $0x58] sm:$0xff]
      %v6105 = vld [vmem:[%s6092 + $0x60] sm:$0xff]
      %v6106 = vld [vmem:[%s6092 + $0x68] sm:$0xff]
      %v6107 = vld [vmem:[%s6092 + $0x70] sm:$0xff]
      %v6108 = vld [vmem:[%s6092 + $0x78] sm:$0xff]
      %v6109 = vperm.slane %v3278, 7
      %6110 = vmatpush.msra.mxu0 %v6108
      %6111 = vmatpush.msra.mxu0 %v6107
      %6112 = vmatpush.msra.mxu0 %v6106
      %6113 = vmatpush.msra.mxu0 %v6105
      %6114 = vmatpush.msra.mxu0 %v6104
      %6115 = vmatpush.msra.mxu0 %v6103
      %6116 = vmatpush.msra.mxu0 %v6102
      %6117 = vmatpush.msra.mxu0 %v6101
      %6118 = vmatpush.msra.mxu0 %v6100
      %6119 = vmatpush.msra.mxu0 %v6099
      %6120 = vmatpush.msra.mxu0 %v6098
      %6121 = vmatpush.msra.mxu0 %v6097
      %6122 = vmatpush.msra.mxu0 %v6096
      %6123 = vmatpush.msra.mxu0 %v6095
      %6124 = vmatpush.msra.mxu0 %v6094
      %6125 = vmatpush.msra.mxu0 %v6093
      %6126 = vmatmul.f32.gmra.mxu0 %v6084
      %v6127 = vpop.f32.mrf.mxu0
      %v6128 = vadd.f32 %v6109, %v6127
      %6129 = vmatmul.f32.gmra.mxu0 %v6085
      %v6130 = vpop.f32.mrf.mxu0
      %v6131 = vadd.f32 %v6109, %v6130
      %6132 = vmatmul.f32.gmra.mxu0 %v6086
      %v6133 = vpop.f32.mrf.mxu0
      %v6134 = vadd.f32 %v6109, %v6133
      %6135 = vmatmul.f32.gmra.mxu0 %v6087
      %v6136 = vpop.f32.mrf.mxu0
      %v6137 = vadd.f32 %v6109, %v6136
      %6138 = vmatmul.f32.gmra.mxu0 %v6088
      %v6139 = vpop.f32.mrf.mxu0
      %v6140 = vadd.f32 %v6109, %v6139
      %6141 = vmatmul.f32.gmra.mxu0 %v6089
      %v6142 = vpop.f32.mrf.mxu0
      %v6143 = vadd.f32 %v6109, %v6142
      %6144 = vmatmul.f32.gmra.mxu0 %v6090
      %v6145 = vpop.f32.mrf.mxu0
      %v6146 = vadd.f32 %v6109, %v6145
      %6147 = vmatmul.f32.gmra.mxu0 %v6091
      %v6148 = vpop.f32.mrf.mxu0
      %v6149 = vadd.f32 %v6109, %v6148
      %6150 = vdwg.mxu0
      %v6151 = vadd.f32 %v5747, %v6128
      %v6152 = vadd.f32 %v5748, %v6131
      %v6153 = vadd.f32 %v5749, %v6134
      %v6154 = vadd.f32 %v5750, %v6137
      %v6155 = vadd.f32 %v5751, %v6140
      %v6156 = vadd.f32 %v5752, %v6143
      %v6157 = vadd.f32 %v5753, %v6146
      %v6158 = vadd.f32 %v5754, %v6149
      %6159 = vxpose.xlu0.b32.start [1/16] %v314, 128
      %6160 = vxpose.xlu0.b32.cont [2/16] %v315, 128
      %6161 = vxpose.xlu0.b32.cont [3/16] %v316, 128
      %6162 = vxpose.xlu0.b32.cont [4/16] %v317, 128
      %6163 = vxpose.xlu0.b32.cont [5/16] %v318, 128
      %6164 = vxpose.xlu0.b32.cont [6/16] %v319, 128
      %6165 = vxpose.xlu0.b32.cont [7/16] %v320, 128
      %6166 = vxpose.xlu0.b32.cont [8/16] %v321, 128
      %6167 = vxpose.xlu0.b32.cont [9/16] 0.0, 128
      %6168 = vxpose.xlu0.b32.cont [10/16] 0.0, 128
      %6169 = vxpose.xlu0.b32.cont [11/16] 0.0, 128
      %6170 = vxpose.xlu0.b32.cont [12/16] 0.0, 128
      %6171 = vxpose.xlu0.b32.cont [13/16] 0.0, 128
      %6172 = vxpose.xlu0.b32.cont [14/16] 0.0, 128
      %6173 = vxpose.xlu0.b32.cont [15/16] 0.0, 128
      %6174 = vxpose.xlu0.b32.end [16/16] 0.0, 128
      %v6175 = vpop.trf.xlu0
      %v6176 = vpop.trf.xlu0
      %v6177 = vpop.trf.xlu0
      %v6178 = vpop.trf.xlu0
      %v6179 = vpop.trf.xlu0
      %v6180 = vpop.trf.xlu0
      %v6181 = vpop.trf.xlu0
      %v6182 = vpop.trf.xlu0
      %v6183 = vpop.trf.xlu0
      %v6184 = vpop.trf.xlu0
      %v6185 = vpop.trf.xlu0
      %v6186 = vpop.trf.xlu0
      %v6187 = vpop.trf.xlu0
      %v6188 = vpop.trf.xlu0
      %v6189 = vpop.trf.xlu0
      %v6190 = vpop.trf.xlu0
      %v6192 = vsel %vm3211, %v6175, 0
      %v6195 = vsel %vm3211, %v6176, 0
      %v6198 = vsel %vm3211, %v6177, 0
      %v6201 = vsel %vm3211, %v6178, 0
      %v6204 = vsel %vm3211, %v6179, 0
      %v6207 = vsel %vm3211, %v6180, 0
      %v6210 = vsel %vm3211, %v6181, 0
      %v6213 = vsel %vm3211, %v6182, 0
      %6215 = vmatpush.msra.mxu0 0.0
      %6216 = vmatpush.msra.mxu0 0.0
      %6217 = vmatpush.msra.mxu0 0.0
      %6218 = vmatpush.msra.mxu0 0.0
      %6219 = vmatpush.msra.mxu0 0.0
      %6220 = vmatpush.msra.mxu0 0.0
      %6221 = vmatpush.msra.mxu0 0.0
      %6222 = vmatpush.msra.mxu0 0.0
      %6223 = vmatpush.msra.mxu0 %v6158
      %6224 = vmatpush.msra.mxu0 %v6157
      %6225 = vmatpush.msra.mxu0 %v6156
      %6226 = vmatpush.msra.mxu0 %v6155
      %6227 = vmatpush.msra.mxu0 %v6154
      %6228 = vmatpush.msra.mxu0 %v6153
      %6229 = vmatpush.msra.mxu0 %v6152
      %6230 = vmatpush.msra.mxu0 %v6151
      %6231 = vmatmul.f32.gmra.mxu0 %v6192
      %v6232 = vpop.f32.mrf.mxu0
      %v6233 = vadd.f32 0.0, %v6232
      %6234 = vmatmul.f32.gmra.mxu0 %v6195
      %v6235 = vpop.f32.mrf.mxu0
      %v6236 = vadd.f32 0.0, %v6235
      %6237 = vmatmul.f32.gmra.mxu0 %v6198
      %v6238 = vpop.f32.mrf.mxu0
      %v6239 = vadd.f32 0.0, %v6238
      %6240 = vmatmul.f32.gmra.mxu0 %v6201
      %v6241 = vpop.f32.mrf.mxu0
      %v6242 = vadd.f32 0.0, %v6241
      %6243 = vmatmul.f32.gmra.mxu0 %v6204
      %v6244 = vpop.f32.mrf.mxu0
      %v6245 = vadd.f32 0.0, %v6244
      %6246 = vmatmul.f32.gmra.mxu0 %v6207
      %v6247 = vpop.f32.mrf.mxu0
      %v6248 = vadd.f32 0.0, %v6247
      %6249 = vmatmul.f32.gmra.mxu0 %v6210
      %v6250 = vpop.f32.mrf.mxu0
      %v6251 = vadd.f32 0.0, %v6250
      %6252 = vmatmul.f32.gmra.mxu0 %v6213
      %v6253 = vpop.f32.mrf.mxu0
      %v6254 = vadd.f32 0.0, %v6253
      %6255 = vdwg.mxu0
      %6256 = vst.msk [vmem:[%s305] sm:$0xff] %vm323, %v6233
      %6257 = vst.msk [vmem:[%s305 + $0x8] sm:$0xff] %vm323, %v6236
      %6258 = vst.msk [vmem:[%s305 + $0x10] sm:$0xff] %vm323, %v6239
      %6259 = vst.msk [vmem:[%s305 + $0x18] sm:$0xff] %vm323, %v6242
      %6260 = vst.msk [vmem:[%s305 + $0x20] sm:$0xff] %vm323, %v6245
      %6261 = vst.msk [vmem:[%s305 + $0x28] sm:$0xff] %vm323, %v6248
      %6262 = vst.msk [vmem:[%s305 + $0x30] sm:$0xff] %vm323, %v6251
      %6263 = vst.msk [vmem:[%s305 + $0x38] sm:$0xff] %vm323, %v6254
      %p6264 = scmp.lt.s32.totalorder %s19, 1
      %s6265 = scalar_select %p6264, %s19, 1
      %s6266 = smul.addr %s6265, 8
      %s6267 = smul.addr %s6266, 8
      %s6268 = scalar_lea.vmem %s8, %s6267
      // Predicated region
      $region53: #{basic_layer_forward.1} parent=51 // pred_check
        %p6269 = pneg %p210
      $region54: #{basic_layer_forward.1} parent=51 // pred_check_branch
        %6271 = sbr.rel (%p6269) target = $region56
      $region55: #{basic_layer_forward.1} parent=51 // pred_region
        _
      $region56: #{basic_layer_forward.1} parent=51 // pred_fallthru
        _
    $region52: #{basic_layer_forward.1} parent=5 // pred_fallthru
      _
    %p6272 = scmp.le.s32.totalorder 2, %s14
    // Predicated region
    $region57: #{basic_layer_forward.1} parent=5 // pred_check
      %p6273 = pneg %p6272
    $region58: #{basic_layer_forward.1} parent=5 // pred_check_branch
      %6275 = sbr.rel (%p6273) target = $region60
    $region59: #{basic_layer_forward.1} parent=5 // pred_region
      %s6276 = ssub.s32 %s14, 2
      // Predicated region
      $region61: #{basic_layer_forward.1} parent=59 // pred_check
        %p6277 = pneg %p216
      $region62: #{basic_layer_forward.1} parent=59 // pred_check_branch
        %6279 = sbr.rel (%p6277) target = $region64
      $region63: #{basic_layer_forward.1} parent=59 // pred_region
        %p6280 = scmp.lt.s32.totalorder %s20, 1
        %s6281 = scalar_select %p6280, %s20, 1
        %s6282 = smul.addr %s6281, 8
        %s6283 = smul.addr %s6282, 8
        %s6284 = scalar_lea.vmem %s8, %s6283
      $region64: #{basic_layer_forward.1} parent=59 // pred_fallthru
        _
    $region60: #{basic_layer_forward.1} parent=5 // pred_fallthru
      _
  $region6: #{basic_layer_forward.1} parent=0 // loop_footer
    %s18 = sadd.s32 1, %s14
  $region7: #{basic_layer_forward.1} parent=0 // loop_footer_branch
    %13 = sbr.rel target = $region3
  $region8: #{basic_layer_forward.1} parent=0 // loop_exit
    _

</llo_original>
